<compile_context>
chip_gen: v7x
topology: tpu7x:2x2x1
jax: 0.10.0
libtpu: 0.0.40
codegen_flags: <defaults>
</compile_context>

<pallas_src>
import functools

import jax
import jax.numpy as jnp
from jax.experimental import pallas as pl
from jax.experimental.pallas import tpu as pltpu

EPS = 1e-5
_KIDX = ((3, 1), (2, 0))                    # weight k-index per (phase r/c, tap dy/dx)
_TAPS = ((0, 0), (0, 1), (1, 0), (1, 1))    # tap order (dy, dx)


def _round_up(x, m):
    return (x + m - 1) // m * m


def _pick_row_tile(rows):
    for t in (1024, 512, 256, 128, 64, 32, 16, 8):
        if rows % t == 0:
            return t
    return rows


# ------------------------------ Pallas kernels ------------------------------

def _up_conv_stats_kernel(x_ref, w_ref, y_ref, sum_ref, sq_ref, *, H, W, Ci):
    """One (batch, co-tile) step of the sub-pixel transposed conv.

    x_ref : (H+2, W+2, Ci)   bf16  zero-padded NHWC image (one batch element)
    w_ref : (16*Ci, TN)      bf16  weights packed as (phase, tap, ci) x co-tile
    y_ref : (2, 2, H*W, TN)  bf16  per-phase conv output
    sum_ref, sq_ref : (1, TN) f32  per-channel partial sum / sum-of-squares
    """
    HW = H * W
    TN = y_ref.shape[-1]
    s = jnp.zeros((1, TN), jnp.float32)
    q = jnp.zeros((1, TN), jnp.float32)
    for r in range(2):
        for c in range(2):
            p = r * 2 + c
            acc = jnp.zeros((HW, TN), jnp.float32)
            for t, (dy, dx) in enumerate(_TAPS):
                xt = x_ref[r + dy:r + dy + H, c + dx:c + dx + W, :]      # static slice
                wt = w_ref[(p * 4 + t) * Ci:(p * 4 + t + 1) * Ci, :]     # static slice
                acc += jnp.dot(xt.reshape(HW, Ci), wt,
                               preferred_element_type=jnp.float32)
            y_ref[r, c] = acc.astype(y_ref.dtype)
            s = s + jnp.sum(acc, axis=0, keepdims=True)
            q = q + jnp.sum(acc * acc, axis=0, keepdims=True)
    sum_ref[...] = s
    sq_ref[...] = q


def _bn_relu_kernel(y_ref, s_ref, t_ref, o_ref):
    """relu(y * scale + shift) with per-channel (lane) scale/shift."""
    o_ref[...] = jnp.maximum(
        y_ref[...].astype(jnp.float32) * s_ref[...] + t_ref[...], 0.0)


# ------------------------------ forward pass --------------------------------

def up_forward(x_nchw, w, gamma, beta):
    """ConvTranspose2d(4, stride=2, padding=1, bias=False) + BatchNorm2d + ReLU.

    x_nchw: (N, Ci, H, W) f32;  w: (Ci, Co, 4, 4) (PyTorch layout);
    gamma/beta: (Co,).  Returns (N, Co, 2H, 2W) f32.
    """
    x = jnp.transpose(x_nchw, (0, 2, 3, 1)).astype(jnp.bfloat16)   # NHWC, bf16
    N, H, W, Ci = x.shape
    Co = w.shape[1]
    HW = H * W

    Np = _round_up(Co, 128)
    TN = 256 if Np % 256 == 0 else 128        # 256-wide N for v6e/v7x MXU, 128 floor
    Nt = Np // TN

    # 1-pixel halo; the only full-size HBM copy of x (no 16x im2col).
    xpad = jnp.pad(x, ((0, 0), (1, 1), (1, 1), (0, 0)))

    # Pack weights once: rows ordered (phase r,c | tap dy,dx | ci) -> (16*Ci, Np)
    wb = w.astype(jnp.bfloat16)
    wblocks = [wb[:, :, _KIDX[r][dy], _KIDX[c][dx]]
               for r in range(2) for c in range(2)
               for dy in range(2) for dx in range(2)]
    B = jnp.concatenate(wblocks, axis=0)                           # (16*Ci, Co)
    if Np != Co:
        B = jnp.pad(B, ((0, 0), (0, Np - Co)))

    # ---- pass 1: fused im2col + MXU matmul + BN partial statistics ----------
    conv_kernel = functools.partial(_up_conv_stats_kernel, H=H, W=W, Ci=Ci)
    y, psum, psq = pl.pallas_call(
        conv_kernel,
        out_shape=(
            jax.ShapeDtypeStruct((2, 2, N, HW, Np), jnp.bfloat16),  # bf16 intermediate
            jax.ShapeDtypeStruct((N, 1, Np), jnp.float32),
            jax.ShapeDtypeStruct((N, 1, Np), jnp.float32),
        ),
        grid=(N, Nt),
        in_specs=[
            pl.BlockSpec((None, H + 2, W + 2, Ci), lambda b, n: (b, 0, 0, 0)),
            pl.BlockSpec((16 * Ci, TN), lambda b, n: (0, n)),
        ],
        out_specs=[
            pl.BlockSpec((2, 2, None, HW, TN), lambda b, n: (0, 0, b, 0, n)),
            pl.BlockSpec((None, 1, TN), lambda b, n: (b, 0, n)),
            pl.BlockSpec((None, 1, TN), lambda b, n: (b, 0, n)),
        ],
        compiler_params=pltpu.CompilerParams(
            dimension_semantics=("parallel", "parallel")),
    )(xpad, B)

    # ---- BN scale/shift from the fused stats (biased, training-mode) --------
    count = jnp.float32(N * 4 * HW)                  # = N * 2H * 2W
    ch_sum = jnp.sum(psum[:, 0, :], axis=0)          # (Np,)
    ch_sq = jnp.sum(psq[:, 0, :], axis=0)
    mean = ch_sum / count
    # NOTE: E[y^2]-E[y]^2 in f32 (single-pass); fine at the test tolerance.
    var = jnp.maximum(ch_sq / count - mean * mean, 0.0)
    gamma_p = jnp.zeros((Np,), jnp.float32).at[:Co].set(gamma.astype(jnp.float32))
    beta_p = jnp.zeros((Np,), jnp.float32).at[:Co].set(beta.astype(jnp.float32))
    scale = gamma_p * jax.lax.rsqrt(var + EPS)
    shift = beta_p - mean * scale

    # ---- pass 2: lane-dense relu(y * scale + shift), bf16 in / f32 out ------
    rows = 4 * N * HW
    TMe = _pick_row_tile(rows)
    y2 = y.reshape(rows, Np)                          # contiguous merge (free)
    out2 = pl.pallas_call(
        _bn_relu_kernel,
        out_shape=jax.ShapeDtypeStruct((rows, Np), jnp.float32),
        grid=(rows // TMe,),
        in_specs=[
            pl.BlockSpec((TMe, Np), lambda i: (i, 0)),
            pl.BlockSpec((1, Np), lambda i: (0, 0)),
            pl.BlockSpec((1, Np), lambda i: (0, 0)),
        ],
        out_specs=pl.BlockSpec((TMe, Np), lambda i: (i, 0)),
        compiler_params=pltpu.CompilerParams(dimension_semantics=("parallel",)),
    )(y2, scale.reshape(1, Np), shift.reshape(1, Np))

    # ---- de-interleave phases keeping Co minor, then one NHWC->NCHW ---------
    # TODO(synk): fold this de-interleave into pass 2's out_spec once size-2
    # block dims on the second-minor axis are supported; running-stat buffers
    # of BatchNorm2d (module state) are not updated here.
    y_ph = out2.reshape(2, 2, N, H, W, Np)[..., :Co]              # (2,2,N,H,W,Co)
    y_nhwc = jnp.transpose(y_ph, (2, 3, 0, 4, 1, 5)).reshape(N, 2 * H, 2 * W, Co)
    return jnp.transpose(y_nhwc, (0, 3, 1, 2))                    # NCHW


# ------------------------------ reference -----------------------------------

def _reference_up(x, w, gamma, beta):
    """Pure-JAX f32 reference: ConvTranspose2d(4, 2, 1, bias=False) + BN + ReLU."""
    w_eq = jnp.transpose(w[:, :, ::-1, ::-1], (1, 0, 2, 3))        # (Co, Ci, 4, 4)
    y = jax.lax.conv_general_dilated(
        x, w_eq, window_strides=(1, 1), padding=((2, 2), (2, 2)),
        lhs_dilation=(2, 2), dimension_numbers=("NCHW", "OIHW", "NCHW"))
    mean = jnp.mean(y, axis=(0, 2, 3), keepdims=True)
    var = jnp.var(y, axis=(0, 2, 3), keepdims=True)
    g = gamma.reshape(1, -1, 1, 1)
    b = beta.reshape(1, -1, 1, 1)
    return jnp.maximum((y - mean) * jax.lax.rsqrt(var + EPS) * g + b, 0.0)


if __name__ == "__main__":
    key = jax.random.PRNGKey(0)
    kx, kw, kg, kb = jax.random.split(key, 4)
    N, Ci, Co, H, W = 2, 32, 32, 16, 16
    x = jax.random.normal(kx, (N, Ci, H, W), jnp.float32)
    fan_in = Ci * 4 * 4
    w = jax.random.normal(kw, (Ci, Co, 4, 4), jnp.float32) * (2.0 / fan_in) ** 0.5
    gamma = jax.random.uniform(kg, (Co,), jnp.float32, 0.5, 1.5)
    beta = 0.1 * jax.random.normal(kb, (Co,), jnp.float32)

    fwd = jax.jit(up_forward)
    out = jax.block_until_ready(fwd(x, w, gamma, beta))

    assert out.shape == (N, Co, 2 * H, 2 * W), out.shape
    assert bool(jnp.all(jnp.isfinite(out)))

    ref = _reference_up(x, w, gamma, beta)
    rel_rms = float(jnp.sqrt(jnp.mean((out - ref) ** 2)) /
                    (jnp.sqrt(jnp.mean(ref ** 2)) + 1e-6))
    assert rel_rms < 5e-2, rel_rms

    print("KERNEL_OK")
</pallas_src>

<mosaic_0001>
module attributes {stable_mosaic.version = 11 : i64} {
  func.func @_up_conv_stats_kernel(%arg0: i32, %arg1: i32, %arg2: memref<1x18x18x32xbf16, #tpu.memory_space<vmem>>, %arg3: memref<512x128xbf16, #tpu.memory_space<vmem>>, %arg4: memref<2x2x1x256x128xbf16, #tpu.memory_space<vmem>>, %arg5: memref<1x1x128xf32, #tpu.memory_space<vmem>>, %arg6: memref<1x1x128xf32, #tpu.memory_space<vmem>>) attributes {dimension_semantics = [#tpu.dimension_semantics<parallel>, #tpu.dimension_semantics<parallel>], iteration_bounds = array<i64: 2, 1>, scalar_prefetch = 0 : i64, scratch_operands = 0 : i64, tpu.core_type = #tpu.core_type<tc>, window_params = [{transform_indices = @transform_0, window_bounds = array<i64: 1, 18, 18, 32>}, {transform_indices = @transform_1, window_bounds = array<i64: 512, 128>}, {transform_indices = @transform_2, window_bounds = array<i64: 2, 2, 1, 256, 128>}, {transform_indices = @transform_3, window_bounds = array<i64: 1, 1, 128>}, {transform_indices = @transform_4, window_bounds = array<i64: 1, 1, 128>}]} {
    %cst = arith.constant 0.000000e+00 : f32
    %0 = vector.broadcast %cst : f32 to vector<1x128xf32>
    %cst_0 = arith.constant 0.000000e+00 : f32
    %1 = vector.broadcast %cst_0 : f32 to vector<1x128xf32>
    %cst_1 = arith.constant 0.000000e+00 : f32
    %2 = vector.broadcast %cst_1 : f32 to vector<256x128xf32>
    %c0 = arith.constant 0 : index
    %c0_2 = arith.constant 0 : index
    %c0_3 = arith.constant 0 : index
    %c0_4 = arith.constant 0 : index
    %3 = vector.load %arg2[%c0, %c0_2, %c0_3, %c0_4] : memref<1x18x18x32xbf16, #tpu.memory_space<vmem>>, vector<1x16x16x32xbf16>
    %4 = vector.shape_cast %3 : vector<1x16x16x32xbf16> to vector<16x16x32xbf16>
    %c0_5 = arith.constant 0 : index
    %c0_6 = arith.constant 0 : index
    %5 = vector.load %arg3[%c0_5, %c0_6] : memref<512x128xbf16, #tpu.memory_space<vmem>>, vector<32x128xbf16>
    %6 = vector.shape_cast %4 : vector<16x16x32xbf16> to vector<256x32xbf16>
    %cst_7 = arith.constant dense<0.000000e+00> : vector<256x128xf32>
    %7 = tpu.matmul %6, %5, %cst_7 {dimension_numbers = #tpu.dot_dimension_numbers<[1], [0], [0], [1], [0, 0, 1, 1], [], []>} : vector<256x32xbf16>, vector<32x128xbf16>, vector<256x128xf32> -> vector<256x128xf32>
    %8 = arith.addf %2, %7 : vector<256x128xf32>
    %c0_8 = arith.constant 0 : index
    %c0_9 = arith.constant 0 : index
    %c1 = arith.constant 1 : index
    %c0_10 = arith.constant 0 : index
    %9 = vector.load %arg2[%c0_8, %c0_9, %c1, %c0_10] : memref<1x18x18x32xbf16, #tpu.memory_space<vmem>>, vector<1x16x16x32xbf16>
    %10 = vector.shape_cast %9 : vector<1x16x16x32xbf16> to vector<16x16x32xbf16>
    %c32 = arith.constant 32 : index
    %c0_11 = arith.constant 0 : index
    %11 = vector.load %arg3[%c32, %c0_11] : memref<512x128xbf16, #tpu.memory_space<vmem>>, vector<32x128xbf16>
    %12 = vector.shape_cast %10 : vector<16x16x32xbf16> to vector<256x32xbf16>
    %cst_12 = arith.constant dense<0.000000e+00> : vector<256x128xf32>
    %13 = tpu.matmul %12, %11, %cst_12 {dimension_numbers = #tpu.dot_dimension_numbers<[1], [0], [0], [1], [0, 0, 1, 1], [], []>} : vector<256x32xbf16>, vector<32x128xbf16>, vector<256x128xf32> -> vector<256x128xf32>
    %14 = arith.addf %8, %13 : vector<256x128xf32>
    %c0_13 = arith.constant 0 : index
    %c1_14 = arith.constant 1 : index
    %c0_15 = arith.constant 0 : index
    %c0_16 = arith.constant 0 : index
    %15 = vector.load %arg2[%c0_13, %c1_14, %c0_15, %c0_16] : memref<1x18x18x32xbf16, #tpu.memory_space<vmem>>, vector<1x16x16x32xbf16>
    %16 = vector.shape_cast %15 : vector<1x16x16x32xbf16> to vector<16x16x32xbf16>
    %c64 = arith.constant 64 : index
    %c0_17 = arith.constant 0 : index
    %17 = vector.load %arg3[%c64, %c0_17] : memref<512x128xbf16, #tpu.memory_space<vmem>>, vector<32x128xbf16>
    %18 = vector.shape_cast %16 : vector<16x16x32xbf16> to vector<256x32xbf16>
    %cst_18 = arith.constant dense<0.000000e+00> : vector<256x128xf32>
    %19 = tpu.matmul %18, %17, %cst_18 {dimension_numbers = #tpu.dot_dimension_numbers<[1], [0], [0], [1], [0, 0, 1, 1], [], []>} : vector<256x32xbf16>, vector<32x128xbf16>, vector<256x128xf32> -> vector<256x128xf32>
    %20 = arith.addf %14, %19 : vector<256x128xf32>
    %c0_19 = arith.constant 0 : index
    %c1_20 = arith.constant 1 : index
    %c1_21 = arith.constant 1 : index
    %c0_22 = arith.constant 0 : index
    %21 = vector.load %arg2[%c0_19, %c1_20, %c1_21, %c0_22] : memref<1x18x18x32xbf16, #tpu.memory_space<vmem>>, vector<1x16x16x32xbf16>
    %22 = vector.shape_cast %21 : vector<1x16x16x32xbf16> to vector<16x16x32xbf16>
    %c96 = arith.constant 96 : index
    %c0_23 = arith.constant 0 : index
    %23 = vector.load %arg3[%c96, %c0_23] : memref<512x128xbf16, #tpu.memory_space<vmem>>, vector<32x128xbf16>
    %24 = vector.shape_cast %22 : vector<16x16x32xbf16> to vector<256x32xbf16>
    %cst_24 = arith.constant dense<0.000000e+00> : vector<256x128xf32>
    %25 = tpu.matmul %24, %23, %cst_24 {dimension_numbers = #tpu.dot_dimension_numbers<[1], [0], [0], [1], [0, 0, 1, 1], [], []>} : vector<256x32xbf16>, vector<32x128xbf16>, vector<256x128xf32> -> vector<256x128xf32>
    %26 = arith.addf %20, %25 : vector<256x128xf32>
    %27 = arith.truncf %26 : vector<256x128xf32> to vector<256x128xbf16>
    %c0_25 = arith.constant 0 : index
    %c0_26 = arith.constant 0 : index
    %c0_27 = arith.constant 0 : index
    %c0_28 = arith.constant 0 : index
    %c0_29 = arith.constant 0 : index
    %28 = vector.load %arg4[%c0_25, %c0_26, %c0_27, %c0_28, %c0_29] : memref<2x2x1x256x128xbf16, #tpu.memory_space<vmem>>, vector<1x1x1x256x128xbf16>
    %29 = vector.shape_cast %28 : vector<1x1x1x256x128xbf16> to vector<256x128xbf16>
    %30 = vector.shape_cast %27 : vector<256x128xbf16> to vector<1x1x1x256x128xbf16>
    tpu.vector_store %arg4[%c0_25, %c0_26, %c0_27, %c0_28, %c0_29], %30 {strides = array<i32>} : memref<2x2x1x256x128xbf16, #tpu.memory_space<vmem>>, vector<1x1x1x256x128xbf16>,
    %cst_30 = arith.constant dense<0.000000e+00> : vector<128xf32>
    %31 = vector.multi_reduction <add>, %26, %cst_30 [0] : vector<256x128xf32> to vector<128xf32>
    %32 = vector.shape_cast %31 : vector<128xf32> to vector<1x128xf32>
    %33 = arith.addf %0, %32 : vector<1x128xf32>
    %34 = arith.mulf %26, %26 : vector<256x128xf32>
    %cst_31 = arith.constant dense<0.000000e+00> : vector<128xf32>
    %35 = vector.multi_reduction <add>, %34, %cst_31 [0] : vector<256x128xf32> to vector<128xf32>
    %36 = vector.shape_cast %35 : vector<128xf32> to vector<1x128xf32>
    %37 = arith.addf %1, %36 : vector<1x128xf32>
    %cst_32 = arith.constant 0.000000e+00 : f32
    %38 = vector.broadcast %cst_32 : f32 to vector<256x128xf32>
    %c0_33 = arith.constant 0 : index
    %c0_34 = arith.constant 0 : index
    %c1_35 = arith.constant 1 : index
    %c0_36 = arith.constant 0 : index
    %39 = vector.load %arg2[%c0_33, %c0_34, %c1_35, %c0_36] : memref<1x18x18x32xbf16, #tpu.memory_space<vmem>>, vector<1x16x16x32xbf16>
    %40 = vector.shape_cast %39 : vector<1x16x16x32xbf16> to vector<16x16x32xbf16>
    %c128 = arith.constant 128 : index
    %c0_37 = arith.constant 0 : index
    %41 = vector.load %arg3[%c128, %c0_37] : memref<512x128xbf16, #tpu.memory_space<vmem>>, vector<32x128xbf16>
    %42 = vector.shape_cast %40 : vector<16x16x32xbf16> to vector<256x32xbf16>
    %cst_38 = arith.constant dense<0.000000e+00> : vector<256x128xf32>
    %43 = tpu.matmul %42, %41, %cst_38 {dimension_numbers = #tpu.dot_dimension_numbers<[1], [0], [0], [1], [0, 0, 1, 1], [], []>} : vector<256x32xbf16>, vector<32x128xbf16>, vector<256x128xf32> -> vector<256x128xf32>
    %44 = arith.addf %38, %43 : vector<256x128xf32>
    %c0_39 = arith.constant 0 : index
    %c0_40 = arith.constant 0 : index
    %c2 = arith.constant 2 : index
    %c0_41 = arith.constant 0 : index
    %45 = vector.load %arg2[%c0_39, %c0_40, %c2, %c0_41] : memref<1x18x18x32xbf16, #tpu.memory_space<vmem>>, vector<1x16x16x32xbf16>
    %46 = vector.shape_cast %45 : vector<1x16x16x32xbf16> to vector<16x16x32xbf16>
    %c160 = arith.constant 160 : index
    %c0_42 = arith.constant 0 : index
    %47 = vector.load %arg3[%c160, %c0_42] : memref<512x128xbf16, #tpu.memory_space<vmem>>, vector<32x128xbf16>
    %48 = vector.shape_cast %46 : vector<16x16x32xbf16> to vector<256x32xbf16>
    %cst_43 = arith.constant dense<0.000000e+00> : vector<256x128xf32>
    %49 = tpu.matmul %48, %47, %cst_43 {dimension_numbers = #tpu.dot_dimension_numbers<[1], [0], [0], [1], [0, 0, 1, 1], [], []>} : vector<256x32xbf16>, vector<32x128xbf16>, vector<256x128xf32> -> vector<256x128xf32>
    %50 = arith.addf %44, %49 : vector<256x128xf32>
    %c0_44 = arith.constant 0 : index
    %c1_45 = arith.constant 1 : index
    %c1_46 = arith.constant 1 : index
    %c0_47 = arith.constant 0 : index
    %51 = vector.load %arg2[%c0_44, %c1_45, %c1_46, %c0_47] : memref<1x18x18x32xbf16, #tpu.memory_space<vmem>>, vector<1x16x16x32xbf16>
    %52 = vector.shape_cast %51 : vector<1x16x16x32xbf16> to vector<16x16x32xbf16>
    %c192 = arith.constant 192 : index
    %c0_48 = arith.constant 0 : index
    %53 = vector.load %arg3[%c192, %c0_48] : memref<512x128xbf16, #tpu.memory_space<vmem>>, vector<32x128xbf16>
    %54 = vector.shape_cast %52 : vector<16x16x32xbf16> to vector<256x32xbf16>
    %cst_49 = arith.constant dense<0.000000e+00> : vector<256x128xf32>
    %55 = tpu.matmul %54, %53, %cst_49 {dimension_numbers = #tpu.dot_dimension_numbers<[1], [0], [0], [1], [0, 0, 1, 1], [], []>} : vector<256x32xbf16>, vector<32x128xbf16>, vector<256x128xf32> -> vector<256x128xf32>
    %56 = arith.addf %50, %55 : vector<256x128xf32>
    %c0_50 = arith.constant 0 : index
    %c1_51 = arith.constant 1 : index
    %c2_52 = arith.constant 2 : index
    %c0_53 = arith.constant 0 : index
    %57 = vector.load %arg2[%c0_50, %c1_51, %c2_52, %c0_53] : memref<1x18x18x32xbf16, #tpu.memory_space<vmem>>, vector<1x16x16x32xbf16>
    %58 = vector.shape_cast %57 : vector<1x16x16x32xbf16> to vector<16x16x32xbf16>
    %c224 = arith.constant 224 : index
    %c0_54 = arith.constant 0 : index
    %59 = vector.load %arg3[%c224, %c0_54] : memref<512x128xbf16, #tpu.memory_space<vmem>>, vector<32x128xbf16>
    %60 = vector.shape_cast %58 : vector<16x16x32xbf16> to vector<256x32xbf16>
    %cst_55 = arith.constant dense<0.000000e+00> : vector<256x128xf32>
    %61 = tpu.matmul %60, %59, %cst_55 {dimension_numbers = #tpu.dot_dimension_numbers<[1], [0], [0], [1], [0, 0, 1, 1], [], []>} : vector<256x32xbf16>, vector<32x128xbf16>, vector<256x128xf32> -> vector<256x128xf32>
    %62 = arith.addf %56, %61 : vector<256x128xf32>
    %63 = arith.truncf %62 : vector<256x128xf32> to vector<256x128xbf16>
    %c0_56 = arith.constant 0 : index
    %c1_57 = arith.constant 1 : index
    %c0_58 = arith.constant 0 : index
    %c0_59 = arith.constant 0 : index
    %c0_60 = arith.constant 0 : index
    %64 = vector.load %arg4[%c0_56, %c1_57, %c0_58, %c0_59, %c0_60] : memref<2x2x1x256x128xbf16, #tpu.memory_space<vmem>>, vector<1x1x1x256x128xbf16>
    %65 = vector.shape_cast %64 : vector<1x1x1x256x128xbf16> to vector<256x128xbf16>
    %66 = vector.shape_cast %63 : vector<256x128xbf16> to vector<1x1x1x256x128xbf16>
    tpu.vector_store %arg4[%c0_56, %c1_57, %c0_58, %c0_59, %c0_60], %66 {strides = array<i32>} : memref<2x2x1x256x128xbf16, #tpu.memory_space<vmem>>, vector<1x1x1x256x128xbf16>,
    %cst_61 = arith.constant dense<0.000000e+00> : vector<128xf32>
    %67 = vector.multi_reduction <add>, %62, %cst_61 [0] : vector<256x128xf32> to vector<128xf32>
    %68 = vector.shape_cast %67 : vector<128xf32> to vector<1x128xf32>
    %69 = arith.addf %33, %68 : vector<1x128xf32>
    %70 = arith.mulf %62, %62 : vector<256x128xf32>
    %cst_62 = arith.constant dense<0.000000e+00> : vector<128xf32>
    %71 = vector.multi_reduction <add>, %70, %cst_62 [0] : vector<256x128xf32> to vector<128xf32>
    %72 = vector.shape_cast %71 : vector<128xf32> to vector<1x128xf32>
    %73 = arith.addf %37, %72 : vector<1x128xf32>
    %cst_63 = arith.constant 0.000000e+00 : f32
    %74 = vector.broadcast %cst_63 : f32 to vector<256x128xf32>
    %c0_64 = arith.constant 0 : index
    %c1_65 = arith.constant 1 : index
    %c0_66 = arith.constant 0 : index
    %c0_67 = arith.constant 0 : index
    %75 = vector.load %arg2[%c0_64, %c1_65, %c0_66, %c0_67] : memref<1x18x18x32xbf16, #tpu.memory_space<vmem>>, vector<1x16x16x32xbf16>
    %76 = vector.shape_cast %75 : vector<1x16x16x32xbf16> to vector<16x16x32xbf16>
    %c256 = arith.constant 256 : index
    %c0_68 = arith.constant 0 : index
    %77 = vector.load %arg3[%c256, %c0_68] : memref<512x128xbf16, #tpu.memory_space<vmem>>, vector<32x128xbf16>
    %78 = vector.shape_cast %76 : vector<16x16x32xbf16> to vector<256x32xbf16>
    %cst_69 = arith.constant dense<0.000000e+00> : vector<256x128xf32>
    %79 = tpu.matmul %78, %77, %cst_69 {dimension_numbers = #tpu.dot_dimension_numbers<[1], [0], [0], [1], [0, 0, 1, 1], [], []>} : vector<256x32xbf16>, vector<32x128xbf16>, vector<256x128xf32> -> vector<256x128xf32>
    %80 = arith.addf %74, %79 : vector<256x128xf32>
    %c0_70 = arith.constant 0 : index
    %c1_71 = arith.constant 1 : index
    %c1_72 = arith.constant 1 : index
    %c0_73 = arith.constant 0 : index
    %81 = vector.load %arg2[%c0_70, %c1_71, %c1_72, %c0_73] : memref<1x18x18x32xbf16, #tpu.memory_space<vmem>>, vector<1x16x16x32xbf16>
    %82 = vector.shape_cast %81 : vector<1x16x16x32xbf16> to vector<16x16x32xbf16>
    %c288 = arith.constant 288 : index
    %c0_74 = arith.constant 0 : index
    %83 = vector.load %arg3[%c288, %c0_74] : memref<512x128xbf16, #tpu.memory_space<vmem>>, vector<32x128xbf16>
    %84 = vector.shape_cast %82 : vector<16x16x32xbf16> to vector<256x32xbf16>
    %cst_75 = arith.constant dense<0.000000e+00> : vector<256x128xf32>
    %85 = tpu.matmul %84, %83, %cst_75 {dimension_numbers = #tpu.dot_dimension_numbers<[1], [0], [0], [1], [0, 0, 1, 1], [], []>} : vector<256x32xbf16>, vector<32x128xbf16>, vector<256x128xf32> -> vector<256x128xf32>
    %86 = arith.addf %80, %85 : vector<256x128xf32>
    %c0_76 = arith.constant 0 : index
    %c2_77 = arith.constant 2 : index
    %c0_78 = arith.constant 0 : index
    %c0_79 = arith.constant 0 : index
    %87 = vector.load %arg2[%c0_76, %c2_77, %c0_78, %c0_79] : memref<1x18x18x32xbf16, #tpu.memory_space<vmem>>, vector<1x16x16x32xbf16>
    %88 = vector.shape_cast %87 : vector<1x16x16x32xbf16> to vector<16x16x32xbf16>
    %c320 = arith.constant 320 : index
    %c0_80 = arith.constant 0 : index
    %89 = vector.load %arg3[%c320, %c0_80] : memref<512x128xbf16, #tpu.memory_space<vmem>>, vector<32x128xbf16>
    %90 = vector.shape_cast %88 : vector<16x16x32xbf16> to vector<256x32xbf16>
    %cst_81 = arith.constant dense<0.000000e+00> : vector<256x128xf32>
    %91 = tpu.matmul %90, %89, %cst_81 {dimension_numbers = #tpu.dot_dimension_numbers<[1], [0], [0], [1], [0, 0, 1, 1], [], []>} : vector<256x32xbf16>, vector<32x128xbf16>, vector<256x128xf32> -> vector<256x128xf32>
    %92 = arith.addf %86, %91 : vector<256x128xf32>
    %c0_82 = arith.constant 0 : index
    %c2_83 = arith.constant 2 : index
    %c1_84 = arith.constant 1 : index
    %c0_85 = arith.constant 0 : index
    %93 = vector.load %arg2[%c0_82, %c2_83, %c1_84, %c0_85] : memref<1x18x18x32xbf16, #tpu.memory_space<vmem>>, vector<1x16x16x32xbf16>
    %94 = vector.shape_cast %93 : vector<1x16x16x32xbf16> to vector<16x16x32xbf16>
    %c352 = arith.constant 352 : index
    %c0_86 = arith.constant 0 : index
    %95 = vector.load %arg3[%c352, %c0_86] : memref<512x128xbf16, #tpu.memory_space<vmem>>, vector<32x128xbf16>
    %96 = vector.shape_cast %94 : vector<16x16x32xbf16> to vector<256x32xbf16>
    %cst_87 = arith.constant dense<0.000000e+00> : vector<256x128xf32>
    %97 = tpu.matmul %96, %95, %cst_87 {dimension_numbers = #tpu.dot_dimension_numbers<[1], [0], [0], [1], [0, 0, 1, 1], [], []>} : vector<256x32xbf16>, vector<32x128xbf16>, vector<256x128xf32> -> vector<256x128xf32>
    %98 = arith.addf %92, %97 : vector<256x128xf32>
    %99 = arith.truncf %98 : vector<256x128xf32> to vector<256x128xbf16>
    %c1_88 = arith.constant 1 : index
    %c0_89 = arith.constant 0 : index
    %c0_90 = arith.constant 0 : index
    %c0_91 = arith.constant 0 : index
    %c0_92 = arith.constant 0 : index
    %100 = vector.load %arg4[%c1_88, %c0_89, %c0_90, %c0_91, %c0_92] : memref<2x2x1x256x128xbf16, #tpu.memory_space<vmem>>, vector<1x1x1x256x128xbf16>
    %101 = vector.shape_cast %100 : vector<1x1x1x256x128xbf16> to vector<256x128xbf16>
    %102 = vector.shape_cast %99 : vector<256x128xbf16> to vector<1x1x1x256x128xbf16>
    tpu.vector_store %arg4[%c1_88, %c0_89, %c0_90, %c0_91, %c0_92], %102 {strides = array<i32>} : memref<2x2x1x256x128xbf16, #tpu.memory_space<vmem>>, vector<1x1x1x256x128xbf16>,
    %cst_93 = arith.constant dense<0.000000e+00> : vector<128xf32>
    %103 = vector.multi_reduction <add>, %98, %cst_93 [0] : vector<256x128xf32> to vector<128xf32>
    %104 = vector.shape_cast %103 : vector<128xf32> to vector<1x128xf32>
    %105 = arith.addf %69, %104 : vector<1x128xf32>
    %106 = arith.mulf %98, %98 : vector<256x128xf32>
    %cst_94 = arith.constant dense<0.000000e+00> : vector<128xf32>
    %107 = vector.multi_reduction <add>, %106, %cst_94 [0] : vector<256x128xf32> to vector<128xf32>
    %108 = vector.shape_cast %107 : vector<128xf32> to vector<1x128xf32>
    %109 = arith.addf %73, %108 : vector<1x128xf32>
    %cst_95 = arith.constant 0.000000e+00 : f32
    %110 = vector.broadcast %cst_95 : f32 to vector<256x128xf32>
    %c0_96 = arith.constant 0 : index
    %c1_97 = arith.constant 1 : index
    %c1_98 = arith.constant 1 : index
    %c0_99 = arith.constant 0 : index
    %111 = vector.load %arg2[%c0_96, %c1_97, %c1_98, %c0_99] : memref<1x18x18x32xbf16, #tpu.memory_space<vmem>>, vector<1x16x16x32xbf16>
    %112 = vector.shape_cast %111 : vector<1x16x16x32xbf16> to vector<16x16x32xbf16>
    %c384 = arith.constant 384 : index
    %c0_100 = arith.constant 0 : index
    %113 = vector.load %arg3[%c384, %c0_100] : memref<512x128xbf16, #tpu.memory_space<vmem>>, vector<32x128xbf16>
    %114 = vector.shape_cast %112 : vector<16x16x32xbf16> to vector<256x32xbf16>
    %cst_101 = arith.constant dense<0.000000e+00> : vector<256x128xf32>
    %115 = tpu.matmul %114, %113, %cst_101 {dimension_numbers = #tpu.dot_dimension_numbers<[1], [0], [0], [1], [0, 0, 1, 1], [], []>} : vector<256x32xbf16>, vector<32x128xbf16>, vector<256x128xf32> -> vector<256x128xf32>
    %116 = arith.addf %110, %115 : vector<256x128xf32>
    %c0_102 = arith.constant 0 : index
    %c1_103 = arith.constant 1 : index
    %c2_104 = arith.constant 2 : index
    %c0_105 = arith.constant 0 : index
    %117 = vector.load %arg2[%c0_102, %c1_103, %c2_104, %c0_105] : memref<1x18x18x32xbf16, #tpu.memory_space<vmem>>, vector<1x16x16x32xbf16>
    %118 = vector.shape_cast %117 : vector<1x16x16x32xbf16> to vector<16x16x32xbf16>
    %c416 = arith.constant 416 : index
    %c0_106 = arith.constant 0 : index
    %119 = vector.load %arg3[%c416, %c0_106] : memref<512x128xbf16, #tpu.memory_space<vmem>>, vector<32x128xbf16>
    %120 = vector.shape_cast %118 : vector<16x16x32xbf16> to vector<256x32xbf16>
    %cst_107 = arith.constant dense<0.000000e+00> : vector<256x128xf32>
    %121 = tpu.matmul %120, %119, %cst_107 {dimension_numbers = #tpu.dot_dimension_numbers<[1], [0], [0], [1], [0, 0, 1, 1], [], []>} : vector<256x32xbf16>, vector<32x128xbf16>, vector<256x128xf32> -> vector<256x128xf32>
    %122 = arith.addf %116, %121 : vector<256x128xf32>
    %c0_108 = arith.constant 0 : index
    %c2_109 = arith.constant 2 : index
    %c1_110 = arith.constant 1 : index
    %c0_111 = arith.constant 0 : index
    %123 = vector.load %arg2[%c0_108, %c2_109, %c1_110, %c0_111] : memref<1x18x18x32xbf16, #tpu.memory_space<vmem>>, vector<1x16x16x32xbf16>
    %124 = vector.shape_cast %123 : vector<1x16x16x32xbf16> to vector<16x16x32xbf16>
    %c448 = arith.constant 448 : index
    %c0_112 = arith.constant 0 : index
    %125 = vector.load %arg3[%c448, %c0_112] : memref<512x128xbf16, #tpu.memory_space<vmem>>, vector<32x128xbf16>
    %126 = vector.shape_cast %124 : vector<16x16x32xbf16> to vector<256x32xbf16>
    %cst_113 = arith.constant dense<0.000000e+00> : vector<256x128xf32>
    %127 = tpu.matmul %126, %125, %cst_113 {dimension_numbers = #tpu.dot_dimension_numbers<[1], [0], [0], [1], [0, 0, 1, 1], [], []>} : vector<256x32xbf16>, vector<32x128xbf16>, vector<256x128xf32> -> vector<256x128xf32>
    %128 = arith.addf %122, %127 : vector<256x128xf32>
    %c0_114 = arith.constant 0 : index
    %c2_115 = arith.constant 2 : index
    %c2_116 = arith.constant 2 : index
    %c0_117 = arith.constant 0 : index
    %129 = vector.load %arg2[%c0_114, %c2_115, %c2_116, %c0_117] : memref<1x18x18x32xbf16, #tpu.memory_space<vmem>>, vector<1x16x16x32xbf16>
    %130 = vector.shape_cast %129 : vector<1x16x16x32xbf16> to vector<16x16x32xbf16>
    %c480 = arith.constant 480 : index
    %c0_118 = arith.constant 0 : index
    %131 = vector.load %arg3[%c480, %c0_118] : memref<512x128xbf16, #tpu.memory_space<vmem>>, vector<32x128xbf16>
    %132 = vector.shape_cast %130 : vector<16x16x32xbf16> to vector<256x32xbf16>
    %cst_119 = arith.constant dense<0.000000e+00> : vector<256x128xf32>
    %133 = tpu.matmul %132, %131, %cst_119 {dimension_numbers = #tpu.dot_dimension_numbers<[1], [0], [0], [1], [0, 0, 1, 1], [], []>} : vector<256x32xbf16>, vector<32x128xbf16>, vector<256x128xf32> -> vector<256x128xf32>
    %134 = arith.addf %128, %133 : vector<256x128xf32>
    %135 = arith.truncf %134 : vector<256x128xf32> to vector<256x128xbf16>
    %c1_120 = arith.constant 1 : index
    %c1_121 = arith.constant 1 : index
    %c0_122 = arith.constant 0 : index
    %c0_123 = arith.constant 0 : index
    %c0_124 = arith.constant 0 : index
    %136 = vector.load %arg4[%c1_120, %c1_121, %c0_122, %c0_123, %c0_124] : memref<2x2x1x256x128xbf16, #tpu.memory_space<vmem>>, vector<1x1x1x256x128xbf16>
    %137 = vector.shape_cast %136 : vector<1x1x1x256x128xbf16> to vector<256x128xbf16>
    %138 = vector.shape_cast %135 : vector<256x128xbf16> to vector<1x1x1x256x128xbf16>
    tpu.vector_store %arg4[%c1_120, %c1_121, %c0_122, %c0_123, %c0_124], %138 {strides = array<i32>} : memref<2x2x1x256x128xbf16, #tpu.memory_space<vmem>>, vector<1x1x1x256x128xbf16>,
    %cst_125 = arith.constant dense<0.000000e+00> : vector<128xf32>
    %139 = vector.multi_reduction <add>, %134, %cst_125 [0] : vector<256x128xf32> to vector<128xf32>
    %140 = vector.shape_cast %139 : vector<128xf32> to vector<1x128xf32>
    %141 = arith.addf %105, %140 : vector<1x128xf32>
    %142 = arith.mulf %134, %134 : vector<256x128xf32>
    %cst_126 = arith.constant dense<0.000000e+00> : vector<128xf32>
    %143 = vector.multi_reduction <add>, %142, %cst_126 [0] : vector<256x128xf32> to vector<128xf32>
    %144 = vector.shape_cast %143 : vector<128xf32> to vector<1x128xf32>
    %145 = arith.addf %109, %144 : vector<1x128xf32>
    %c0_127 = arith.constant 0 : index
    %c0_128 = arith.constant 0 : index
    %c0_129 = arith.constant 0 : index
    %146 = vector.load %arg5[%c0_127, %c0_128, %c0_129] : memref<1x1x128xf32, #tpu.memory_space<vmem>>, vector<1x1x128xf32>
    %147 = vector.shape_cast %146 : vector<1x1x128xf32> to vector<1x128xf32>
    %148 = vector.shape_cast %141 : vector<1x128xf32> to vector<1x1x128xf32>
    tpu.vector_store %arg5[%c0_127, %c0_128, %c0_129], %148 {strides = array<i32>} : memref<1x1x128xf32, #tpu.memory_space<vmem>>, vector<1x1x128xf32>,
    %c0_130 = arith.constant 0 : index
    %c0_131 = arith.constant 0 : index
    %c0_132 = arith.constant 0 : index
    %149 = vector.load %arg6[%c0_130, %c0_131, %c0_132] : memref<1x1x128xf32, #tpu.memory_space<vmem>>, vector<1x1x128xf32>
    %150 = vector.shape_cast %149 : vector<1x1x128xf32> to vector<1x128xf32>
    %151 = vector.shape_cast %145 : vector<1x128xf32> to vector<1x1x128xf32>
    tpu.vector_store %arg6[%c0_130, %c0_131, %c0_132], %151 {strides = array<i32>} : memref<1x1x128xf32, #tpu.memory_space<vmem>>, vector<1x1x128xf32>,
    return
  }
  func.func @transform_0(%arg0: i32, %arg1: i32) -> (i32, i32, i32, i32) {
    %c0_i32 = arith.constant 0 : i32
    %c0_i32_0 = arith.constant 0 : i32
    %c0_i32_1 = arith.constant 0 : i32
    %c0_i32_2 = arith.constant 0 : i32
    return %arg0, %c0_i32, %c0_i32_0, %c0_i32_1 : i32, i32, i32, i32
  }
  func.func @transform_1(%arg0: i32, %arg1: i32) -> (i32, i32) {
    %c0_i32 = arith.constant 0 : i32
    %c0_i32_0 = arith.constant 0 : i32
    return %c0_i32, %arg1 : i32, i32
  }
  func.func @transform_2(%arg0: i32, %arg1: i32) -> (i32, i32, i32, i32, i32) {
    %c0_i32 = arith.constant 0 : i32
    %c0_i32_0 = arith.constant 0 : i32
    %c0_i32_1 = arith.constant 0 : i32
    %c0_i32_2 = arith.constant 0 : i32
    return %c0_i32, %c0_i32_0, %arg0, %c0_i32_1, %arg1 : i32, i32, i32, i32, i32
  }
  func.func @transform_3(%arg0: i32, %arg1: i32) -> (i32, i32, i32) {
    %c0_i32 = arith.constant 0 : i32
    %c0_i32_0 = arith.constant 0 : i32
    return %arg0, %c0_i32, %arg1 : i32, i32, i32
  }
  func.func @transform_4(%arg0: i32, %arg1: i32) -> (i32, i32, i32) {
    %c0_i32 = arith.constant 0 : i32
    %c0_i32_0 = arith.constant 0 : i32
    return %arg0, %c0_i32, %arg1 : i32, i32, i32
  }
}

module attributes {stable_mosaic.version = 11 : i64} {
  func.func @_bn_relu_kernel(%arg0: i32, %arg1: memref<1024x128xbf16, #tpu.memory_space<vmem>>, %arg2: memref<1x128xf32, #tpu.memory_space<vmem>>, %arg3: memref<1x128xf32, #tpu.memory_space<vmem>>, %arg4: memref<1024x128xf32, #tpu.memory_space<vmem>>) attributes {dimension_semantics = [#tpu.dimension_semantics<parallel>], iteration_bounds = array<i64: 2>, scalar_prefetch = 0 : i64, scratch_operands = 0 : i64, tpu.core_type = #tpu.core_type<tc>, window_params = [{transform_indices = @transform_0, window_bounds = array<i64: 1024, 128>}, {pipeline_mode = #tpu.pipeline_mode<synchronous>, transform_indices = @transform_1, window_bounds = array<i64: 1, 128>}, {pipeline_mode = #tpu.pipeline_mode<synchronous>, transform_indices = @transform_2, window_bounds = array<i64: 1, 128>}, {transform_indices = @transform_3, window_bounds = array<i64: 1024, 128>}]} {
    %c0 = arith.constant 0 : index
    %c0_0 = arith.constant 0 : index
    %0 = vector.load %arg1[%c0, %c0_0] : memref<1024x128xbf16, #tpu.memory_space<vmem>>, vector<1024x128xbf16>
    %1 = arith.extf %0 : vector<1024x128xbf16> to vector<1024x128xf32>
    %c0_1 = arith.constant 0 : index
    %c0_2 = arith.constant 0 : index
    %2 = vector.load %arg2[%c0_1, %c0_2] : memref<1x128xf32, #tpu.memory_space<vmem>>, vector<1x128xf32>
    %3 = vector.broadcast %2 : vector<1x128xf32> to vector<1024x128xf32>
    %4 = arith.mulf %1, %3 : vector<1024x128xf32>
    %c0_3 = arith.constant 0 : index
    %c0_4 = arith.constant 0 : index
    %5 = vector.load %arg3[%c0_3, %c0_4] : memref<1x128xf32, #tpu.memory_space<vmem>>, vector<1x128xf32>
    %6 = vector.broadcast %5 : vector<1x128xf32> to vector<1024x128xf32>
    %7 = arith.addf %4, %6 : vector<1024x128xf32>
    %cst = arith.constant 0.000000e+00 : f32
    %8 = vector.broadcast %cst : f32 to vector<1024x128xf32>
    %9 = arith.maximumf %7, %8 : vector<1024x128xf32>
    %c0_5 = arith.constant 0 : index
    %c0_6 = arith.constant 0 : index
    %10 = vector.load %arg4[%c0_5, %c0_6] : memref<1024x128xf32, #tpu.memory_space<vmem>>, vector<1024x128xf32>
    tpu.vector_store %arg4[%c0_5, %c0_6], %9 {strides = array<i32>} : memref<1024x128xf32, #tpu.memory_space<vmem>>, vector<1024x128xf32>,
    return
  }
  func.func @transform_0(%arg0: i32) -> (i32, i32) {
    %c0_i32 = arith.constant 0 : i32
    %c0_i32_0 = arith.constant 0 : i32
    return %arg0, %c0_i32 : i32, i32
  }
  func.func @transform_1(%arg0: i32) -> (i32, i32) {
    %c0_i32 = arith.constant 0 : i32
    %c0_i32_0 = arith.constant 0 : i32
    %c0_i32_1 = arith.constant 0 : i32
    return %c0_i32, %c0_i32_0 : i32, i32
  }
  func.func @transform_2(%arg0: i32) -> (i32, i32) {
    %c0_i32 = arith.constant 0 : i32
    %c0_i32_0 = arith.constant 0 : i32
    %c0_i32_1 = arith.constant 0 : i32
    return %c0_i32, %c0_i32_0 : i32, i32
  }
  func.func @transform_3(%arg0: i32) -> (i32, i32) {
    %c0_i32 = arith.constant 0 : i32
    %c0_i32_0 = arith.constant 0 : i32
    return %arg0, %c0_i32 : i32, i32
  }
}

</mosaic_0001>

<llo_original>
// kernel: up_forward.3
$region0: #{up_forward.3}
  #allocation0 [shape = 'u32[]', space=smem, size = 0x4, offset = 0x4, fixed_abs, tag = 'smem constant byte address 0x4 - core index']
  #allocation1 [shape = 'u32[144,128]{1,0:T(1,128)}', space=vmem, size = 0x12000, scoped, tag = 'internal scratch']
  %s0 = inlined_call_operand.vmem [shape: bf16[2048,128], index: 0, kind: input, shape index: {}]
  %s1 = inlined_call_operand.vmem [shape: f32[1,128], index: 1, kind: input, shape index: {}]
  %s2 = inlined_call_operand.vmem [shape: f32[1,128], index: 2, kind: input, shape index: {}]
  %s3 = inlined_call_operand.vmem [shape: f32[2048,128], index: 3, kind: output, shape index: {}]
  %s4 = sld [smem:[#allocation0]]
  $region45: #{up_forward.3} parent=0
    _
  %s6 = ssub.s32 1, %s4
  %s7 = scalar_select 0, %s6, %s4
  loop: start=0, step=1, limit=4
  $region2: #{up_forward.3} parent=0 // loop_pre_header
    _
  $region3: #{up_forward.3} parent=0 // loop_header
    %s9 = sphi 0, %s13
    %p10 = scmp.ge.s32.totalorder %s9, 4
    %s19 = sphi 0, %s21
    %s22 = sphi 0, %s19
    %s23 = sphi 0, %s22
    %s39 = sphi 0, %s23
    %s43 = sphi 0, %s43
    %s45 = sphi 0, %s43
    %s46 = sphi 0, %s45
    %s60 = sphi 0, %s46
    %s64 = sphi 0, %s64
    %s66 = sphi 0, %s64
    %s67 = sphi 0, %s66
    %s81 = sphi 0, %s67
    %s87 = sphi 0, %s89
    %s90 = sphi 0, %s87
    %s91 = sphi 0, %s90
    %s107 = sphi 0, %s91
  $region4: #{up_forward.3} parent=0 // loop_header_branch
    %12 = sbr.rel (%p10) target = $region8
  $region5: #{up_forward.3} parent=0 // loop_body
    %s14 = ssub.s32 %s9, 1
    %s15 = ssub.s32 %s9, 2
    %s16 = sadd.s32 %s9, 1
    %s17 = ssub.s32 %s9, %s16
    %p18 = scmp.eq.s32.totalorder %s17, 0
    %s20 = sadd.s32 %s19, 1
    %s21 = scalar_select %p18, %s19, %s20
    %p24 = pneg %p18
    %p25 = scmp.eq.s32.totalorder %s9, 1
    %p26 = por %p24, %p25
    %p27 = scmp.ne.s32.totalorder %s19, %s22
    %p28 = scmp.eq.s32.totalorder %s9, 0
    %p29 = por %p27, %p28
    %p30 = scmp.ne.s32.totalorder %s19, %s22
    %p31 = scmp.eq.s32.totalorder %s14, 1
    %p32 = por %p30, %p31
    %p33 = scmp.ne.s32.totalorder %s22, %s23
    %p34 = scmp.eq.s32.totalorder %s14, 0
    %p35 = por %p33, %p34
    %p36 = scmp.ne.s32.totalorder %s22, %s23
    %p37 = scmp.eq.s32.totalorder %s15, 1
    %p38 = por %p36, %p37
    %p40 = scmp.ne.s32.totalorder %s23, %s39
    %p41 = scmp.eq.s32.totalorder %s15, 0
    %p42 = por %p40, %p41
    %s44 = sadd.s32 %s43, 1
    %p47 = scmp.eq.s32.totalorder %s9, 1
    %p48 = scmp.ne.s32.totalorder %s43, %s45
    %p49 = scmp.eq.s32.totalorder %s9, 0
    %p50 = por %p48, %p49
    %p51 = scmp.ne.s32.totalorder %s43, %s45
    %p52 = scmp.eq.s32.totalorder %s14, 1
    %p53 = por %p51, %p52
    %p54 = scmp.ne.s32.totalorder %s45, %s46
    %p55 = scmp.eq.s32.totalorder %s14, 0
    %p56 = por %p54, %p55
    %p57 = scmp.ne.s32.totalorder %s45, %s46
    %p58 = scmp.eq.s32.totalorder %s15, 1
    %p59 = por %p57, %p58
    %p61 = scmp.ne.s32.totalorder %s46, %s60
    %p62 = scmp.eq.s32.totalorder %s15, 0
    %p63 = por %p61, %p62
    %s65 = sadd.s32 %s64, 1
    %p68 = scmp.eq.s32.totalorder %s9, 1
    %p69 = scmp.ne.s32.totalorder %s64, %s66
    %p70 = scmp.eq.s32.totalorder %s9, 0
    %p71 = por %p69, %p70
    %p72 = scmp.ne.s32.totalorder %s64, %s66
    %p73 = scmp.eq.s32.totalorder %s14, 1
    %p74 = por %p72, %p73
    %p75 = scmp.ne.s32.totalorder %s66, %s67
    %p76 = scmp.eq.s32.totalorder %s14, 0
    %p77 = por %p75, %p76
    %p78 = scmp.ne.s32.totalorder %s66, %s67
    %p79 = scmp.eq.s32.totalorder %s15, 1
    %p80 = por %p78, %p79
    %p82 = scmp.ne.s32.totalorder %s67, %s81
    %p83 = scmp.eq.s32.totalorder %s15, 0
    %p84 = por %p82, %p83
    %s85 = ssub.s32 %s9, %s16
    %p86 = scmp.eq.s32.totalorder %s85, 0
    %s88 = sadd.s32 %s87, 1
    %s89 = scalar_select %p86, %s87, %s88
    %p92 = pneg %p86
    %p93 = scmp.eq.s32.totalorder %s9, 1
    %p94 = por %p92, %p93
    %p95 = scmp.ne.s32.totalorder %s87, %s90
    %p96 = scmp.eq.s32.totalorder %s9, 0
    %p97 = por %p95, %p96
    %p98 = scmp.ne.s32.totalorder %s87, %s90
    %p99 = scmp.eq.s32.totalorder %s14, 1
    %p100 = por %p98, %p99
    %p101 = scmp.ne.s32.totalorder %s90, %s91
    %p102 = scmp.eq.s32.totalorder %s14, 0
    %p103 = por %p101, %p102
    %p104 = scmp.ne.s32.totalorder %s90, %s91
    %p105 = scmp.eq.s32.totalorder %s15, 1
    %p106 = por %p104, %p105
    %p108 = scmp.ne.s32.totalorder %s91, %s107
    %p109 = scmp.eq.s32.totalorder %s15, 0
    %p110 = por %p108, %p109
    %p111 = scmp.le.s32.totalorder 1, %s9
    %p112 = scmp.lt.s32.totalorder %s9, 3
    %p113 = pnand %p111, %p112
    %p114 = pneg %p113
    // Predicated region
    $region9: #{up_forward.3} parent=5 // pred_check
      _
    $region10: #{up_forward.3} parent=5 // pred_check_branch
      %116 = sbr.rel (%p113) target = $region12
    $region11: #{up_forward.3} parent=5 // pred_region
      %s117 = ssub.s32 %s9, 1
      // Predicated region
      $region13: #{up_forward.3} parent=11 // pred_check
        %p118 = pneg %p56
      $region14: #{up_forward.3} parent=11 // pred_check_branch
        %120 = sbr.rel (%p118) target = $region16
      $region15: #{up_forward.3} parent=11 // pred_region
        _
      $region16: #{up_forward.3} parent=11 // pred_fallthru
        _
      // Predicated region
      $region17: #{up_forward.3} parent=11 // pred_check
        %p121 = pneg %p77
      $region18: #{up_forward.3} parent=11 // pred_check_branch
        %123 = sbr.rel (%p121) target = $region20
      $region19: #{up_forward.3} parent=11 // pred_region
        _
      $region20: #{up_forward.3} parent=11 // pred_fallthru
        _
    $region12: #{up_forward.3} parent=5 // pred_fallthru
      _
    %p124 = scmp.lt.s32.totalorder %s9, 2
    // Predicated region
    $region21: #{up_forward.3} parent=5 // pred_check
      %p125 = pneg %p124
    $region22: #{up_forward.3} parent=5 // pred_check_branch
      %127 = sbr.rel (%p125) target = $region24
    $region23: #{up_forward.3} parent=5 // pred_region
      // Predicated region
      $region25: #{up_forward.3} parent=23 // pred_check
        %p128 = pneg %p29
      $region26: #{up_forward.3} parent=23 // pred_check_branch
        %130 = sbr.rel (%p128) target = $region28
      $region27: #{up_forward.3} parent=23 // pred_region
        %s131 = smul.u32 128, %s9
        %p132 = scmp.lt.s32.totalorder %s131, 255
        %s133 = scalar_select %p132, %s131, 255
        %s134 = smul.addr %s133, 4
        %s135 = scalar_lea.vmem %s0, %s134
        %s136 = smul.u32 128, %s9
      $region28: #{up_forward.3} parent=23 // pred_fallthru
        _
    $region24: #{up_forward.3} parent=5 // pred_fallthru
      _
    %p137 = scmp.le.s32.totalorder 1, %s9
    %p138 = scmp.lt.s32.totalorder %s9, 3
    %p139 = pnand %p137, %p138
    %p140 = pneg %p139
    // Predicated region
    $region29: #{up_forward.3} parent=5 // pred_check
      _
    $region30: #{up_forward.3} parent=5 // pred_check_branch
      %142 = sbr.rel (%p139) target = $region32
    $region31: #{up_forward.3} parent=5 // pred_region
      %s143 = ssub.s32 %s9, 1
      %s144 = smul.u32 128, %s14
      %p145 = scmp.lt.s32.totalorder %s144, 255
      %s146 = scalar_select %p145, %s144, 255
      %s147 = smul.addr %s146, 4
      %s148 = scalar_lea.vmem %s0, %s147
      %p149 = pneg %p35
      %p150 = pneg %p32
      %p151 = pneg %p56
      %p152 = pneg %p53
      %p153 = pneg %p77
      %p154 = pneg %p74
      %p155 = pneg %p103
      %p156 = pneg %p100
      %s157 = smul.u32 128, %s14
      %p158 = scmp.lt.s32.totalorder %s157, 255
      %s159 = scalar_select %p158, %s157, 255
      %s160 = smul.addr %s159, 8
      %s161 = scalar_lea.vmem %s3, %s160
      %s162 = smul.u32 128, %s14
      %p163 = scmp.lt.s32.totalorder %s162, 255
      %s164 = scalar_select %p163, %s162, 255
      %s165 = smul.addr %s164, 4
      %s166 = scalar_lea.vmem %s0, %s165
      %s167 = smul.u32 128, %s14
      %s168 = smul.u32 128, %s14
      %p169 = scmp.lt.s32.totalorder %s168, 255
      %s170 = scalar_select %p169, %s168, 255
      %s171 = smul.addr %s170, 8
      %s172 = scalar_lea.vmem %s3, %s171
      %s173 = smul.u32 128, %s14
      %v174 = vld [vmem:[%s166] sm:$0xf]
      %v175 = vld [vmem:[%s166 + $0x4] sm:$0xf]
      %v176 = vld [vmem:[%s166 + $0x8] sm:$0xf]
      %v177 = vld [vmem:[%s166 + $0xc] sm:$0xf]
      %v178 = vld [vmem:[%s166 + $0x10] sm:$0xf]
      %v179 = vld [vmem:[%s166 + $0x14] sm:$0xf]
      %v180 = vld [vmem:[%s166 + $0x18] sm:$0xf]
      %v181 = vld [vmem:[%s166 + $0x1c] sm:$0xf]
      %v182 = vld [vmem:[%s166 + $0x20] sm:$0xf]
      %v183 = vld [vmem:[%s166 + $0x24] sm:$0xf]
      %v184 = vld [vmem:[%s166 + $0x28] sm:$0xf]
      %v185 = vld [vmem:[%s166 + $0x2c] sm:$0xf]
      %v186 = vld [vmem:[%s166 + $0x30] sm:$0xf]
      %v187 = vld [vmem:[%s166 + $0x34] sm:$0xf]
      %v188 = vld [vmem:[%s166 + $0x38] sm:$0xf]
      %v189 = vld [vmem:[%s166 + $0x3c] sm:$0xf]
      %v190 = vld [vmem:[%s166 + $0x40] sm:$0xf]
      %v191 = vld [vmem:[%s166 + $0x44] sm:$0xf]
      %v192 = vld [vmem:[%s166 + $0x48] sm:$0xf]
      %v193 = vld [vmem:[%s166 + $0x4c] sm:$0xf]
      %v194 = vld [vmem:[%s166 + $0x50] sm:$0xf]
      %v195 = vld [vmem:[%s166 + $0x54] sm:$0xf]
      %v196 = vld [vmem:[%s166 + $0x58] sm:$0xf]
      %v197 = vld [vmem:[%s166 + $0x5c] sm:$0xf]
      %v198 = vld [vmem:[%s166 + $0x60] sm:$0xf]
      %v199 = vld [vmem:[%s166 + $0x64] sm:$0xf]
      %v200 = vld [vmem:[%s166 + $0x68] sm:$0xf]
      %v201 = vld [vmem:[%s166 + $0x6c] sm:$0xf]
      %v202 = vld [vmem:[%s166 + $0x70] sm:$0xf]
      %v203 = vld [vmem:[%s166 + $0x74] sm:$0xf]
      %v204 = vld [vmem:[%s166 + $0x78] sm:$0xf]
      %v205 = vld [vmem:[%s166 + $0x7c] sm:$0xf]
      %v206 = vld [vmem:[%s166 + $0x80] sm:$0xf]
      %v207 = vld [vmem:[%s166 + $0x84] sm:$0xf]
      %v208 = vld [vmem:[%s166 + $0x88] sm:$0xf]
      %v209 = vld [vmem:[%s166 + $0x8c] sm:$0xf]
      %v210 = vld [vmem:[%s166 + $0x90] sm:$0xf]
      %v211 = vld [vmem:[%s166 + $0x94] sm:$0xf]
      %v212 = vld [vmem:[%s166 + $0x98] sm:$0xf]
      %v213 = vld [vmem:[%s166 + $0x9c] sm:$0xf]
      %v214 = vld [vmem:[%s166 + $0xa0] sm:$0xf]
      %v215 = vld [vmem:[%s166 + $0xa4] sm:$0xf]
      %v216 = vld [vmem:[%s166 + $0xa8] sm:$0xf]
      %v217 = vld [vmem:[%s166 + $0xac] sm:$0xf]
      %v218 = vld [vmem:[%s166 + $0xb0] sm:$0xf]
      %v219 = vld [vmem:[%s166 + $0xb4] sm:$0xf]
      %v220 = vld [vmem:[%s166 + $0xb8] sm:$0xf]
      %v221 = vld [vmem:[%s166 + $0xbc] sm:$0xf]
      %v222 = vld [vmem:[%s166 + $0xc0] sm:$0xf]
      %v223 = vld [vmem:[%s166 + $0xc4] sm:$0xf]
      %v224 = vld [vmem:[%s166 + $0xc8] sm:$0xf]
      %v225 = vld [vmem:[%s166 + $0xcc] sm:$0xf]
      %v226 = vld [vmem:[%s166 + $0xd0] sm:$0xf]
      %v227 = vld [vmem:[%s166 + $0xd4] sm:$0xf]
      %v228 = vld [vmem:[%s166 + $0xd8] sm:$0xf]
      %v229 = vld [vmem:[%s166 + $0xdc] sm:$0xf]
      %v230 = vld [vmem:[%s166 + $0xe0] sm:$0xf]
      %v231 = vld [vmem:[%s166 + $0xe4] sm:$0xf]
      %v232 = vld [vmem:[%s166 + $0xe8] sm:$0xf]
      %v233 = vld [vmem:[%s166 + $0xec] sm:$0xf]
      %v234 = vld [vmem:[%s166 + $0xf0] sm:$0xf]
      %v235 = vld [vmem:[%s166 + $0xf4] sm:$0xf]
      %v236 = vld [vmem:[%s166 + $0xf8] sm:$0xf]
      %v237 = vld [vmem:[%s166 + $0xfc] sm:$0xf]
      %v238 = vld [vmem:[%s166 + $0x100] sm:$0xf]
      %v239 = vld [vmem:[%s166 + $0x104] sm:$0xf]
      %v240 = vld [vmem:[%s166 + $0x108] sm:$0xf]
      %v241 = vld [vmem:[%s166 + $0x10c] sm:$0xf]
      %v242 = vld [vmem:[%s166 + $0x110] sm:$0xf]
      %v243 = vld [vmem:[%s166 + $0x114] sm:$0xf]
      %v244 = vld [vmem:[%s166 + $0x118] sm:$0xf]
      %v245 = vld [vmem:[%s166 + $0x11c] sm:$0xf]
      %v246 = vld [vmem:[%s166 + $0x120] sm:$0xf]
      %v247 = vld [vmem:[%s166 + $0x124] sm:$0xf]
      %v248 = vld [vmem:[%s166 + $0x128] sm:$0xf]
      %v249 = vld [vmem:[%s166 + $0x12c] sm:$0xf]
      %v250 = vld [vmem:[%s166 + $0x130] sm:$0xf]
      %v251 = vld [vmem:[%s166 + $0x134] sm:$0xf]
      %v252 = vld [vmem:[%s166 + $0x138] sm:$0xf]
      %v253 = vld [vmem:[%s166 + $0x13c] sm:$0xf]
      %v254 = vld [vmem:[%s166 + $0x140] sm:$0xf]
      %v255 = vld [vmem:[%s166 + $0x144] sm:$0xf]
      %v256 = vld [vmem:[%s166 + $0x148] sm:$0xf]
      %v257 = vld [vmem:[%s166 + $0x14c] sm:$0xf]
      %v258 = vld [vmem:[%s166 + $0x150] sm:$0xf]
      %v259 = vld [vmem:[%s166 + $0x154] sm:$0xf]
      %v260 = vld [vmem:[%s166 + $0x158] sm:$0xf]
      %v261 = vld [vmem:[%s166 + $0x15c] sm:$0xf]
      %v262 = vld [vmem:[%s166 + $0x160] sm:$0xf]
      %v263 = vld [vmem:[%s166 + $0x164] sm:$0xf]
      %v264 = vld [vmem:[%s166 + $0x168] sm:$0xf]
      %v265 = vld [vmem:[%s166 + $0x16c] sm:$0xf]
      %v266 = vld [vmem:[%s166 + $0x170] sm:$0xf]
      %v267 = vld [vmem:[%s166 + $0x174] sm:$0xf]
      %v268 = vld [vmem:[%s166 + $0x178] sm:$0xf]
      %v269 = vld [vmem:[%s166 + $0x17c] sm:$0xf]
      %v270 = vld [vmem:[%s166 + $0x180] sm:$0xf]
      %v271 = vld [vmem:[%s166 + $0x184] sm:$0xf]
      %v272 = vld [vmem:[%s166 + $0x188] sm:$0xf]
      %v273 = vld [vmem:[%s166 + $0x18c] sm:$0xf]
      %v274 = vld [vmem:[%s166 + $0x190] sm:$0xf]
      %v275 = vld [vmem:[%s166 + $0x194] sm:$0xf]
      %v276 = vld [vmem:[%s166 + $0x198] sm:$0xf]
      %v277 = vld [vmem:[%s166 + $0x19c] sm:$0xf]
      %v278 = vld [vmem:[%s166 + $0x1a0] sm:$0xf]
      %v279 = vld [vmem:[%s166 + $0x1a4] sm:$0xf]
      %v280 = vld [vmem:[%s166 + $0x1a8] sm:$0xf]
      %v281 = vld [vmem:[%s166 + $0x1ac] sm:$0xf]
      %v282 = vld [vmem:[%s166 + $0x1b0] sm:$0xf]
      %v283 = vld [vmem:[%s166 + $0x1b4] sm:$0xf]
      %v284 = vld [vmem:[%s166 + $0x1b8] sm:$0xf]
      %v285 = vld [vmem:[%s166 + $0x1bc] sm:$0xf]
      %v286 = vld [vmem:[%s166 + $0x1c0] sm:$0xf]
      %v287 = vld [vmem:[%s166 + $0x1c4] sm:$0xf]
      %v288 = vld [vmem:[%s166 + $0x1c8] sm:$0xf]
      %v289 = vld [vmem:[%s166 + $0x1cc] sm:$0xf]
      %v290 = vld [vmem:[%s166 + $0x1d0] sm:$0xf]
      %v291 = vld [vmem:[%s166 + $0x1d4] sm:$0xf]
      %v292 = vld [vmem:[%s166 + $0x1d8] sm:$0xf]
      %v293 = vld [vmem:[%s166 + $0x1dc] sm:$0xf]
      %v294 = vld [vmem:[%s166 + $0x1e0] sm:$0xf]
      %v295 = vld [vmem:[%s166 + $0x1e4] sm:$0xf]
      %v296 = vld [vmem:[%s166 + $0x1e8] sm:$0xf]
      %v297 = vld [vmem:[%s166 + $0x1ec] sm:$0xf]
      %v298 = vld [vmem:[%s166 + $0x1f0] sm:$0xf]
      %v299 = vld [vmem:[%s166 + $0x1f4] sm:$0xf]
      %v300 = vld [vmem:[%s166 + $0x1f8] sm:$0xf]
      %v301 = vld [vmem:[%s166 + $0x1fc] sm:$0xf]
      %v302 = vunpack.c.l.bf16 %v174
      %v303 = vunpack.c.l.bf16 %v175
      %v304 = vunpack.c.l.bf16 %v176
      %v305 = vunpack.c.l.bf16 %v177
      %v306 = vunpack.c.l.bf16 %v178
      %v307 = vunpack.c.l.bf16 %v179
      %v308 = vunpack.c.l.bf16 %v180
      %v309 = vunpack.c.l.bf16 %v181
      %v310 = vunpack.c.l.bf16 %v182
      %v311 = vunpack.c.l.bf16 %v183
      %v312 = vunpack.c.l.bf16 %v184
      %v313 = vunpack.c.l.bf16 %v185
      %v314 = vunpack.c.l.bf16 %v186
      %v315 = vunpack.c.l.bf16 %v187
      %v316 = vunpack.c.l.bf16 %v188
      %v317 = vunpack.c.l.bf16 %v189
      %v318 = vunpack.c.l.bf16 %v190
      %v319 = vunpack.c.l.bf16 %v191
      %v320 = vunpack.c.l.bf16 %v192
      %v321 = vunpack.c.l.bf16 %v193
      %v322 = vunpack.c.l.bf16 %v194
      %v323 = vunpack.c.l.bf16 %v195
      %v324 = vunpack.c.l.bf16 %v196
      %v325 = vunpack.c.l.bf16 %v197
      %v326 = vunpack.c.l.bf16 %v198
      %v327 = vunpack.c.l.bf16 %v199
      %v328 = vunpack.c.l.bf16 %v200
      %v329 = vunpack.c.l.bf16 %v201
      %v330 = vunpack.c.l.bf16 %v202
      %v331 = vunpack.c.l.bf16 %v203
      %v332 = vunpack.c.l.bf16 %v204
      %v333 = vunpack.c.l.bf16 %v205
      %v334 = vunpack.c.l.bf16 %v206
      %v335 = vunpack.c.l.bf16 %v207
      %v336 = vunpack.c.l.bf16 %v208
      %v337 = vunpack.c.l.bf16 %v209
      %v338 = vunpack.c.l.bf16 %v210
      %v339 = vunpack.c.l.bf16 %v211
      %v340 = vunpack.c.l.bf16 %v212
      %v341 = vunpack.c.l.bf16 %v213
      %v342 = vunpack.c.l.bf16 %v214
      %v343 = vunpack.c.l.bf16 %v215
      %v344 = vunpack.c.l.bf16 %v216
      %v345 = vunpack.c.l.bf16 %v217
      %v346 = vunpack.c.l.bf16 %v218
      %v347 = vunpack.c.l.bf16 %v219
      %v348 = vunpack.c.l.bf16 %v220
      %v349 = vunpack.c.l.bf16 %v221
      %v350 = vunpack.c.l.bf16 %v222
      %v351 = vunpack.c.l.bf16 %v223
      %v352 = vunpack.c.l.bf16 %v224
      %v353 = vunpack.c.l.bf16 %v225
      %v354 = vunpack.c.l.bf16 %v226
      %v355 = vunpack.c.l.bf16 %v227
      %v356 = vunpack.c.l.bf16 %v228
      %v357 = vunpack.c.l.bf16 %v229
      %v358 = vunpack.c.l.bf16 %v230
      %v359 = vunpack.c.l.bf16 %v231
      %v360 = vunpack.c.l.bf16 %v232
      %v361 = vunpack.c.l.bf16 %v233
      %v362 = vunpack.c.l.bf16 %v234
      %v363 = vunpack.c.l.bf16 %v235
      %v364 = vunpack.c.l.bf16 %v236
      %v365 = vunpack.c.l.bf16 %v237
      %v366 = vunpack.c.l.bf16 %v238
      %v367 = vunpack.c.l.bf16 %v239
      %v368 = vunpack.c.l.bf16 %v240
      %v369 = vunpack.c.l.bf16 %v241
      %v370 = vunpack.c.l.bf16 %v242
      %v371 = vunpack.c.l.bf16 %v243
      %v372 = vunpack.c.l.bf16 %v244
      %v373 = vunpack.c.l.bf16 %v245
      %v374 = vunpack.c.l.bf16 %v246
      %v375 = vunpack.c.l.bf16 %v247
      %v376 = vunpack.c.l.bf16 %v248
      %v377 = vunpack.c.l.bf16 %v249
      %v378 = vunpack.c.l.bf16 %v250
      %v379 = vunpack.c.l.bf16 %v251
      %v380 = vunpack.c.l.bf16 %v252
      %v381 = vunpack.c.l.bf16 %v253
      %v382 = vunpack.c.l.bf16 %v254
      %v383 = vunpack.c.l.bf16 %v255
      %v384 = vunpack.c.l.bf16 %v256
      %v385 = vunpack.c.l.bf16 %v257
      %v386 = vunpack.c.l.bf16 %v258
      %v387 = vunpack.c.l.bf16 %v259
      %v388 = vunpack.c.l.bf16 %v260
      %v389 = vunpack.c.l.bf16 %v261
      %v390 = vunpack.c.l.bf16 %v262
      %v391 = vunpack.c.l.bf16 %v263
      %v392 = vunpack.c.l.bf16 %v264
      %v393 = vunpack.c.l.bf16 %v265
      %v394 = vunpack.c.l.bf16 %v266
      %v395 = vunpack.c.l.bf16 %v267
      %v396 = vunpack.c.l.bf16 %v268
      %v397 = vunpack.c.l.bf16 %v269
      %v398 = vunpack.c.l.bf16 %v270
      %v399 = vunpack.c.l.bf16 %v271
      %v400 = vunpack.c.l.bf16 %v272
      %v401 = vunpack.c.l.bf16 %v273
      %v402 = vunpack.c.l.bf16 %v274
      %v403 = vunpack.c.l.bf16 %v275
      %v404 = vunpack.c.l.bf16 %v276
      %v405 = vunpack.c.l.bf16 %v277
      %v406 = vunpack.c.l.bf16 %v278
      %v407 = vunpack.c.l.bf16 %v279
      %v408 = vunpack.c.l.bf16 %v280
      %v409 = vunpack.c.l.bf16 %v281
      %v410 = vunpack.c.l.bf16 %v282
      %v411 = vunpack.c.l.bf16 %v283
      %v412 = vunpack.c.l.bf16 %v284
      %v413 = vunpack.c.l.bf16 %v285
      %v414 = vunpack.c.l.bf16 %v286
      %v415 = vunpack.c.l.bf16 %v287
      %v416 = vunpack.c.l.bf16 %v288
      %v417 = vunpack.c.l.bf16 %v289
      %v418 = vunpack.c.l.bf16 %v290
      %v419 = vunpack.c.l.bf16 %v291
      %v420 = vunpack.c.l.bf16 %v292
      %v421 = vunpack.c.l.bf16 %v293
      %v422 = vunpack.c.l.bf16 %v294
      %v423 = vunpack.c.l.bf16 %v295
      %v424 = vunpack.c.l.bf16 %v296
      %v425 = vunpack.c.l.bf16 %v297
      %v426 = vunpack.c.l.bf16 %v298
      %v427 = vunpack.c.l.bf16 %v299
      %v428 = vunpack.c.l.bf16 %v300
      %v429 = vunpack.c.l.bf16 %v301
      %v430 = vld [vmem:[%s1] sm:$0x1]
      %v432 = vlaneseq
      %v433 = vshrl.u32 %v432, 7
      %v434 = vsub.s32 0, %v433
      %v435 = vrot.slane %v430, %v434
      %v437 = vmul.f32 %v302, %v435
      %v438 = vmul.f32 %v303, %v435
      %v439 = vmul.f32 %v304, %v435
      %v440 = vmul.f32 %v305, %v435
      %v441 = vmul.f32 %v306, %v435
      %v442 = vmul.f32 %v307, %v435
      %v443 = vmul.f32 %v308, %v435
      %v444 = vmul.f32 %v309, %v435
      %v445 = vmul.f32 %v310, %v435
      %v446 = vmul.f32 %v311, %v435
      %v447 = vmul.f32 %v312, %v435
      %v448 = vmul.f32 %v313, %v435
      %v449 = vmul.f32 %v314, %v435
      %v450 = vmul.f32 %v315, %v435
      %v451 = vmul.f32 %v316, %v435
      %v452 = vmul.f32 %v317, %v435
      %v453 = vmul.f32 %v318, %v435
      %v454 = vmul.f32 %v319, %v435
      %v455 = vmul.f32 %v320, %v435
      %v456 = vmul.f32 %v321, %v435
      %v457 = vmul.f32 %v322, %v435
      %v458 = vmul.f32 %v323, %v435
      %v459 = vmul.f32 %v324, %v435
      %v460 = vmul.f32 %v325, %v435
      %v461 = vmul.f32 %v326, %v435
      %v462 = vmul.f32 %v327, %v435
      %v463 = vmul.f32 %v328, %v435
      %v464 = vmul.f32 %v329, %v435
      %v465 = vmul.f32 %v330, %v435
      %v466 = vmul.f32 %v331, %v435
      %v467 = vmul.f32 %v332, %v435
      %v468 = vmul.f32 %v333, %v435
      %v469 = vmul.f32 %v334, %v435
      %v470 = vmul.f32 %v335, %v435
      %v471 = vmul.f32 %v336, %v435
      %v472 = vmul.f32 %v337, %v435
      %v473 = vmul.f32 %v338, %v435
      %v474 = vmul.f32 %v339, %v435
      %v475 = vmul.f32 %v340, %v435
      %v476 = vmul.f32 %v341, %v435
      %v477 = vmul.f32 %v342, %v435
      %v478 = vmul.f32 %v343, %v435
      %v479 = vmul.f32 %v344, %v435
      %v480 = vmul.f32 %v345, %v435
      %v481 = vmul.f32 %v346, %v435
      %v482 = vmul.f32 %v347, %v435
      %v483 = vmul.f32 %v348, %v435
      %v484 = vmul.f32 %v349, %v435
      %v485 = vmul.f32 %v350, %v435
      %v486 = vmul.f32 %v351, %v435
      %v487 = vmul.f32 %v352, %v435
      %v488 = vmul.f32 %v353, %v435
      %v489 = vmul.f32 %v354, %v435
      %v490 = vmul.f32 %v355, %v435
      %v491 = vmul.f32 %v356, %v435
      %v492 = vmul.f32 %v357, %v435
      %v493 = vmul.f32 %v358, %v435
      %v494 = vmul.f32 %v359, %v435
      %v495 = vmul.f32 %v360, %v435
      %v496 = vmul.f32 %v361, %v435
      %v497 = vmul.f32 %v362, %v435
      %v498 = vmul.f32 %v363, %v435
      %v499 = vmul.f32 %v364, %v435
      %v500 = vmul.f32 %v365, %v435
      %v501 = vmul.f32 %v366, %v435
      %v502 = vmul.f32 %v367, %v435
      %v503 = vmul.f32 %v368, %v435
      %v504 = vmul.f32 %v369, %v435
      %v505 = vmul.f32 %v370, %v435
      %v506 = vmul.f32 %v371, %v435
      %v507 = vmul.f32 %v372, %v435
      %v508 = vmul.f32 %v373, %v435
      %v509 = vmul.f32 %v374, %v435
      %v510 = vmul.f32 %v375, %v435
      %v511 = vmul.f32 %v376, %v435
      %v512 = vmul.f32 %v377, %v435
      %v513 = vmul.f32 %v378, %v435
      %v514 = vmul.f32 %v379, %v435
      %v515 = vmul.f32 %v380, %v435
      %v516 = vmul.f32 %v381, %v435
      %v517 = vmul.f32 %v382, %v435
      %v518 = vmul.f32 %v383, %v435
      %v519 = vmul.f32 %v384, %v435
      %v520 = vmul.f32 %v385, %v435
      %v521 = vmul.f32 %v386, %v435
      %v522 = vmul.f32 %v387, %v435
      %v523 = vmul.f32 %v388, %v435
      %v524 = vmul.f32 %v389, %v435
      %v525 = vmul.f32 %v390, %v435
      %v526 = vmul.f32 %v391, %v435
      %v527 = vmul.f32 %v392, %v435
      %v528 = vmul.f32 %v393, %v435
      %v529 = vmul.f32 %v394, %v435
      %v530 = vmul.f32 %v395, %v435
      %v531 = vmul.f32 %v396, %v435
      %v532 = vmul.f32 %v397, %v435
      %v533 = vmul.f32 %v398, %v435
      %v534 = vmul.f32 %v399, %v435
      %v535 = vmul.f32 %v400, %v435
      %v536 = vmul.f32 %v401, %v435
      %v537 = vmul.f32 %v402, %v435
      %v538 = vmul.f32 %v403, %v435
      %v539 = vmul.f32 %v404, %v435
      %v540 = vmul.f32 %v405, %v435
      %v541 = vmul.f32 %v406, %v435
      %v542 = vmul.f32 %v407, %v435
      %v543 = vmul.f32 %v408, %v435
      %v544 = vmul.f32 %v409, %v435
      %v545 = vmul.f32 %v410, %v435
      %v546 = vmul.f32 %v411, %v435
      %v547 = vmul.f32 %v412, %v435
      %v548 = vmul.f32 %v413, %v435
      %v549 = vmul.f32 %v414, %v435
      %v550 = vmul.f32 %v415, %v435
      %v551 = vmul.f32 %v416, %v435
      %v552 = vmul.f32 %v417, %v435
      %v553 = vmul.f32 %v418, %v435
      %v554 = vmul.f32 %v419, %v435
      %v555 = vmul.f32 %v420, %v435
      %v556 = vmul.f32 %v421, %v435
      %v557 = vmul.f32 %v422, %v435
      %v558 = vmul.f32 %v423, %v435
      %v559 = vmul.f32 %v424, %v435
      %v560 = vmul.f32 %v425, %v435
      %v561 = vmul.f32 %v426, %v435
      %v562 = vmul.f32 %v427, %v435
      %v563 = vmul.f32 %v428, %v435
      %v564 = vmul.f32 %v429, %v435
      %v565 = vld [vmem:[%s2] sm:$0x1]
      %v567 = vlaneseq
      %v568 = vshrl.u32 %v567, 7
      %v569 = vsub.s32 0, %v568
      %v570 = vrot.slane %v565, %v569
      %v572 = vadd.f32 %v437, %v570
      %v573 = vadd.f32 %v438, %v570
      %v574 = vadd.f32 %v439, %v570
      %v575 = vadd.f32 %v440, %v570
      %v576 = vadd.f32 %v441, %v570
      %v577 = vadd.f32 %v442, %v570
      %v578 = vadd.f32 %v443, %v570
      %v579 = vadd.f32 %v444, %v570
      %v580 = vadd.f32 %v445, %v570
      %v581 = vadd.f32 %v446, %v570
      %v582 = vadd.f32 %v447, %v570
      %v583 = vadd.f32 %v448, %v570
      %v584 = vadd.f32 %v449, %v570
      %v585 = vadd.f32 %v450, %v570
      %v586 = vadd.f32 %v451, %v570
      %v587 = vadd.f32 %v452, %v570
      %v588 = vadd.f32 %v453, %v570
      %v589 = vadd.f32 %v454, %v570
      %v590 = vadd.f32 %v455, %v570
      %v591 = vadd.f32 %v456, %v570
      %v592 = vadd.f32 %v457, %v570
      %v593 = vadd.f32 %v458, %v570
      %v594 = vadd.f32 %v459, %v570
      %v595 = vadd.f32 %v460, %v570
      %v596 = vadd.f32 %v461, %v570
      %v597 = vadd.f32 %v462, %v570
      %v598 = vadd.f32 %v463, %v570
      %v599 = vadd.f32 %v464, %v570
      %v600 = vadd.f32 %v465, %v570
      %v601 = vadd.f32 %v466, %v570
      %v602 = vadd.f32 %v467, %v570
      %v603 = vadd.f32 %v468, %v570
      %v604 = vadd.f32 %v469, %v570
      %v605 = vadd.f32 %v470, %v570
      %v606 = vadd.f32 %v471, %v570
      %v607 = vadd.f32 %v472, %v570
      %v608 = vadd.f32 %v473, %v570
      %v609 = vadd.f32 %v474, %v570
      %v610 = vadd.f32 %v475, %v570
      %v611 = vadd.f32 %v476, %v570
      %v612 = vadd.f32 %v477, %v570
      %v613 = vadd.f32 %v478, %v570
      %v614 = vadd.f32 %v479, %v570
      %v615 = vadd.f32 %v480, %v570
      %v616 = vadd.f32 %v481, %v570
      %v617 = vadd.f32 %v482, %v570
      %v618 = vadd.f32 %v483, %v570
      %v619 = vadd.f32 %v484, %v570
      %v620 = vadd.f32 %v485, %v570
      %v621 = vadd.f32 %v486, %v570
      %v622 = vadd.f32 %v487, %v570
      %v623 = vadd.f32 %v488, %v570
      %v624 = vadd.f32 %v489, %v570
      %v625 = vadd.f32 %v490, %v570
      %v626 = vadd.f32 %v491, %v570
      %v627 = vadd.f32 %v492, %v570
      %v628 = vadd.f32 %v493, %v570
      %v629 = vadd.f32 %v494, %v570
      %v630 = vadd.f32 %v495, %v570
      %v631 = vadd.f32 %v496, %v570
      %v632 = vadd.f32 %v497, %v570
      %v633 = vadd.f32 %v498, %v570
      %v634 = vadd.f32 %v499, %v570
      %v635 = vadd.f32 %v500, %v570
      %v636 = vadd.f32 %v501, %v570
      %v637 = vadd.f32 %v502, %v570
      %v638 = vadd.f32 %v503, %v570
      %v639 = vadd.f32 %v504, %v570
      %v640 = vadd.f32 %v505, %v570
      %v641 = vadd.f32 %v506, %v570
      %v642 = vadd.f32 %v507, %v570
      %v643 = vadd.f32 %v508, %v570
      %v644 = vadd.f32 %v509, %v570
      %v645 = vadd.f32 %v510, %v570
      %v646 = vadd.f32 %v511, %v570
      %v647 = vadd.f32 %v512, %v570
      %v648 = vadd.f32 %v513, %v570
      %v649 = vadd.f32 %v514, %v570
      %v650 = vadd.f32 %v515, %v570
      %v651 = vadd.f32 %v516, %v570
      %v652 = vadd.f32 %v517, %v570
      %v653 = vadd.f32 %v518, %v570
      %v654 = vadd.f32 %v519, %v570
      %v655 = vadd.f32 %v520, %v570
      %v656 = vadd.f32 %v521, %v570
      %v657 = vadd.f32 %v522, %v570
      %v658 = vadd.f32 %v523, %v570
      %v659 = vadd.f32 %v524, %v570
      %v660 = vadd.f32 %v525, %v570
      %v661 = vadd.f32 %v526, %v570
      %v662 = vadd.f32 %v527, %v570
      %v663 = vadd.f32 %v528, %v570
      %v664 = vadd.f32 %v529, %v570
      %v665 = vadd.f32 %v530, %v570
      %v666 = vadd.f32 %v531, %v570
      %v667 = vadd.f32 %v532, %v570
      %v668 = vadd.f32 %v533, %v570
      %v669 = vadd.f32 %v534, %v570
      %v670 = vadd.f32 %v535, %v570
      %v671 = vadd.f32 %v536, %v570
      %v672 = vadd.f32 %v537, %v570
      %v673 = vadd.f32 %v538, %v570
      %v674 = vadd.f32 %v539, %v570
      %v675 = vadd.f32 %v540, %v570
      %v676 = vadd.f32 %v541, %v570
      %v677 = vadd.f32 %v542, %v570
      %v678 = vadd.f32 %v543, %v570
      %v679 = vadd.f32 %v544, %v570
      %v680 = vadd.f32 %v545, %v570
      %v681 = vadd.f32 %v546, %v570
      %v682 = vadd.f32 %v547, %v570
      %v683 = vadd.f32 %v548, %v570
      %v684 = vadd.f32 %v549, %v570
      %v685 = vadd.f32 %v550, %v570
      %v686 = vadd.f32 %v551, %v570
      %v687 = vadd.f32 %v552, %v570
      %v688 = vadd.f32 %v553, %v570
      %v689 = vadd.f32 %v554, %v570
      %v690 = vadd.f32 %v555, %v570
      %v691 = vadd.f32 %v556, %v570
      %v692 = vadd.f32 %v557, %v570
      %v693 = vadd.f32 %v558, %v570
      %v694 = vadd.f32 %v559, %v570
      %v695 = vadd.f32 %v560, %v570
      %v696 = vadd.f32 %v561, %v570
      %v697 = vadd.f32 %v562, %v570
      %v698 = vadd.f32 %v563, %v570
      %v699 = vadd.f32 %v564, %v570
      %v700 = vmax.f32 %v572, 0.0
      %v701 = vmax.f32 %v573, 0.0
      %v702 = vmax.f32 %v574, 0.0
      %v703 = vmax.f32 %v575, 0.0
      %v704 = vmax.f32 %v576, 0.0
      %v705 = vmax.f32 %v577, 0.0
      %v706 = vmax.f32 %v578, 0.0
      %v707 = vmax.f32 %v579, 0.0
      %v708 = vmax.f32 %v580, 0.0
      %v709 = vmax.f32 %v581, 0.0
      %v710 = vmax.f32 %v582, 0.0
      %v711 = vmax.f32 %v583, 0.0
      %v712 = vmax.f32 %v584, 0.0
      %v713 = vmax.f32 %v585, 0.0
      %v714 = vmax.f32 %v586, 0.0
      %v715 = vmax.f32 %v587, 0.0
      %v716 = vmax.f32 %v588, 0.0
      %v717 = vmax.f32 %v589, 0.0
      %v718 = vmax.f32 %v590, 0.0
      %v719 = vmax.f32 %v591, 0.0
      %v720 = vmax.f32 %v592, 0.0
      %v721 = vmax.f32 %v593, 0.0
      %v722 = vmax.f32 %v594, 0.0
      %v723 = vmax.f32 %v595, 0.0
      %v724 = vmax.f32 %v596, 0.0
      %v725 = vmax.f32 %v597, 0.0
      %v726 = vmax.f32 %v598, 0.0
      %v727 = vmax.f32 %v599, 0.0
      %v728 = vmax.f32 %v600, 0.0
      %v729 = vmax.f32 %v601, 0.0
      %v730 = vmax.f32 %v602, 0.0
      %v731 = vmax.f32 %v603, 0.0
      %v732 = vmax.f32 %v604, 0.0
      %v733 = vmax.f32 %v605, 0.0
      %v734 = vmax.f32 %v606, 0.0
      %v735 = vmax.f32 %v607, 0.0
      %v736 = vmax.f32 %v608, 0.0
      %v737 = vmax.f32 %v609, 0.0
      %v738 = vmax.f32 %v610, 0.0
      %v739 = vmax.f32 %v611, 0.0
      %v740 = vmax.f32 %v612, 0.0
      %v741 = vmax.f32 %v613, 0.0
      %v742 = vmax.f32 %v614, 0.0
      %v743 = vmax.f32 %v615, 0.0
      %v744 = vmax.f32 %v616, 0.0
      %v745 = vmax.f32 %v617, 0.0
      %v746 = vmax.f32 %v618, 0.0
      %v747 = vmax.f32 %v619, 0.0
      %v748 = vmax.f32 %v620, 0.0
      %v749 = vmax.f32 %v621, 0.0
      %v750 = vmax.f32 %v622, 0.0
      %v751 = vmax.f32 %v623, 0.0
      %v752 = vmax.f32 %v624, 0.0
      %v753 = vmax.f32 %v625, 0.0
      %v754 = vmax.f32 %v626, 0.0
      %v755 = vmax.f32 %v627, 0.0
      %v756 = vmax.f32 %v628, 0.0
      %v757 = vmax.f32 %v629, 0.0
      %v758 = vmax.f32 %v630, 0.0
      %v759 = vmax.f32 %v631, 0.0
      %v760 = vmax.f32 %v632, 0.0
      %v761 = vmax.f32 %v633, 0.0
      %v762 = vmax.f32 %v634, 0.0
      %v763 = vmax.f32 %v635, 0.0
      %v764 = vmax.f32 %v636, 0.0
      %v765 = vmax.f32 %v637, 0.0
      %v766 = vmax.f32 %v638, 0.0
      %v767 = vmax.f32 %v639, 0.0
      %v768 = vmax.f32 %v640, 0.0
      %v769 = vmax.f32 %v641, 0.0
      %v770 = vmax.f32 %v642, 0.0
      %v771 = vmax.f32 %v643, 0.0
      %v772 = vmax.f32 %v644, 0.0
      %v773 = vmax.f32 %v645, 0.0
      %v774 = vmax.f32 %v646, 0.0
      %v775 = vmax.f32 %v647, 0.0
      %v776 = vmax.f32 %v648, 0.0
      %v777 = vmax.f32 %v649, 0.0
      %v778 = vmax.f32 %v650, 0.0
      %v779 = vmax.f32 %v651, 0.0
      %v780 = vmax.f32 %v652, 0.0
      %v781 = vmax.f32 %v653, 0.0
      %v782 = vmax.f32 %v654, 0.0
      %v783 = vmax.f32 %v655, 0.0
      %v784 = vmax.f32 %v656, 0.0
      %v785 = vmax.f32 %v657, 0.0
      %v786 = vmax.f32 %v658, 0.0
      %v787 = vmax.f32 %v659, 0.0
      %v788 = vmax.f32 %v660, 0.0
      %v789 = vmax.f32 %v661, 0.0
      %v790 = vmax.f32 %v662, 0.0
      %v791 = vmax.f32 %v663, 0.0
      %v792 = vmax.f32 %v664, 0.0
      %v793 = vmax.f32 %v665, 0.0
      %v794 = vmax.f32 %v666, 0.0
      %v795 = vmax.f32 %v667, 0.0
      %v796 = vmax.f32 %v668, 0.0
      %v797 = vmax.f32 %v669, 0.0
      %v798 = vmax.f32 %v670, 0.0
      %v799 = vmax.f32 %v671, 0.0
      %v800 = vmax.f32 %v672, 0.0
      %v801 = vmax.f32 %v673, 0.0
      %v802 = vmax.f32 %v674, 0.0
      %v803 = vmax.f32 %v675, 0.0
      %v804 = vmax.f32 %v676, 0.0
      %v805 = vmax.f32 %v677, 0.0
      %v806 = vmax.f32 %v678, 0.0
      %v807 = vmax.f32 %v679, 0.0
      %v808 = vmax.f32 %v680, 0.0
      %v809 = vmax.f32 %v681, 0.0
      %v810 = vmax.f32 %v682, 0.0
      %v811 = vmax.f32 %v683, 0.0
      %v812 = vmax.f32 %v684, 0.0
      %v813 = vmax.f32 %v685, 0.0
      %v814 = vmax.f32 %v686, 0.0
      %v815 = vmax.f32 %v687, 0.0
      %v816 = vmax.f32 %v688, 0.0
      %v817 = vmax.f32 %v689, 0.0
      %v818 = vmax.f32 %v690, 0.0
      %v819 = vmax.f32 %v691, 0.0
      %v820 = vmax.f32 %v692, 0.0
      %v821 = vmax.f32 %v693, 0.0
      %v822 = vmax.f32 %v694, 0.0
      %v823 = vmax.f32 %v695, 0.0
      %v824 = vmax.f32 %v696, 0.0
      %v825 = vmax.f32 %v697, 0.0
      %v826 = vmax.f32 %v698, 0.0
      %v827 = vmax.f32 %v699, 0.0
      %828 = vst [vmem:[%s172] sm:$0xff] %v700
      %829 = vst [vmem:[%s172 + $0x8] sm:$0xff] %v701
      %830 = vst [vmem:[%s172 + $0x10] sm:$0xff] %v702
      %831 = vst [vmem:[%s172 + $0x18] sm:$0xff] %v703
      %832 = vst [vmem:[%s172 + $0x20] sm:$0xff] %v704
      %833 = vst [vmem:[%s172 + $0x28] sm:$0xff] %v705
      %834 = vst [vmem:[%s172 + $0x30] sm:$0xff] %v706
      %835 = vst [vmem:[%s172 + $0x38] sm:$0xff] %v707
      %836 = vst [vmem:[%s172 + $0x40] sm:$0xff] %v708
      %837 = vst [vmem:[%s172 + $0x48] sm:$0xff] %v709
      %838 = vst [vmem:[%s172 + $0x50] sm:$0xff] %v710
      %839 = vst [vmem:[%s172 + $0x58] sm:$0xff] %v711
      %840 = vst [vmem:[%s172 + $0x60] sm:$0xff] %v712
      %841 = vst [vmem:[%s172 + $0x68] sm:$0xff] %v713
      %842 = vst [vmem:[%s172 + $0x70] sm:$0xff] %v714
      %843 = vst [vmem:[%s172 + $0x78] sm:$0xff] %v715
      %844 = vst [vmem:[%s172 + $0x80] sm:$0xff] %v716
      %845 = vst [vmem:[%s172 + $0x88] sm:$0xff] %v717
      %846 = vst [vmem:[%s172 + $0x90] sm:$0xff] %v718
      %847 = vst [vmem:[%s172 + $0x98] sm:$0xff] %v719
      %848 = vst [vmem:[%s172 + $0xa0] sm:$0xff] %v720
      %849 = vst [vmem:[%s172 + $0xa8] sm:$0xff] %v721
      %850 = vst [vmem:[%s172 + $0xb0] sm:$0xff] %v722
      %851 = vst [vmem:[%s172 + $0xb8] sm:$0xff] %v723
      %852 = vst [vmem:[%s172 + $0xc0] sm:$0xff] %v724
      %853 = vst [vmem:[%s172 + $0xc8] sm:$0xff] %v725
      %854 = vst [vmem:[%s172 + $0xd0] sm:$0xff] %v726
      %855 = vst [vmem:[%s172 + $0xd8] sm:$0xff] %v727
      %856 = vst [vmem:[%s172 + $0xe0] sm:$0xff] %v728
      %857 = vst [vmem:[%s172 + $0xe8] sm:$0xff] %v729
      %858 = vst [vmem:[%s172 + $0xf0] sm:$0xff] %v730
      %859 = vst [vmem:[%s172 + $0xf8] sm:$0xff] %v731
      %860 = vst [vmem:[%s172 + $0x100] sm:$0xff] %v732
      %861 = vst [vmem:[%s172 + $0x108] sm:$0xff] %v733
      %862 = vst [vmem:[%s172 + $0x110] sm:$0xff] %v734
      %863 = vst [vmem:[%s172 + $0x118] sm:$0xff] %v735
      %864 = vst [vmem:[%s172 + $0x120] sm:$0xff] %v736
      %865 = vst [vmem:[%s172 + $0x128] sm:$0xff] %v737
      %866 = vst [vmem:[%s172 + $0x130] sm:$0xff] %v738
      %867 = vst [vmem:[%s172 + $0x138] sm:$0xff] %v739
      %868 = vst [vmem:[%s172 + $0x140] sm:$0xff] %v740
      %869 = vst [vmem:[%s172 + $0x148] sm:$0xff] %v741
      %870 = vst [vmem:[%s172 + $0x150] sm:$0xff] %v742
      %871 = vst [vmem:[%s172 + $0x158] sm:$0xff] %v743
      %872 = vst [vmem:[%s172 + $0x160] sm:$0xff] %v744
      %873 = vst [vmem:[%s172 + $0x168] sm:$0xff] %v745
      %874 = vst [vmem:[%s172 + $0x170] sm:$0xff] %v746
      %875 = vst [vmem:[%s172 + $0x178] sm:$0xff] %v747
      %876 = vst [vmem:[%s172 + $0x180] sm:$0xff] %v748
      %877 = vst [vmem:[%s172 + $0x188] sm:$0xff] %v749
      %878 = vst [vmem:[%s172 + $0x190] sm:$0xff] %v750
      %879 = vst [vmem:[%s172 + $0x198] sm:$0xff] %v751
      %880 = vst [vmem:[%s172 + $0x1a0] sm:$0xff] %v752
      %881 = vst [vmem:[%s172 + $0x1a8] sm:$0xff] %v753
      %882 = vst [vmem:[%s172 + $0x1b0] sm:$0xff] %v754
      %883 = vst [vmem:[%s172 + $0x1b8] sm:$0xff] %v755
      %884 = vst [vmem:[%s172 + $0x1c0] sm:$0xff] %v756
      %885 = vst [vmem:[%s172 + $0x1c8] sm:$0xff] %v757
      %886 = vst [vmem:[%s172 + $0x1d0] sm:$0xff] %v758
      %887 = vst [vmem:[%s172 + $0x1d8] sm:$0xff] %v759
      %888 = vst [vmem:[%s172 + $0x1e0] sm:$0xff] %v760
      %889 = vst [vmem:[%s172 + $0x1e8] sm:$0xff] %v761
      %890 = vst [vmem:[%s172 + $0x1f0] sm:$0xff] %v762
      %891 = vst [vmem:[%s172 + $0x1f8] sm:$0xff] %v763
      %892 = vst [vmem:[%s172 + $0x200] sm:$0xff] %v764
      %893 = vst [vmem:[%s172 + $0x208] sm:$0xff] %v765
      %894 = vst [vmem:[%s172 + $0x210] sm:$0xff] %v766
      %895 = vst [vmem:[%s172 + $0x218] sm:$0xff] %v767
      %896 = vst [vmem:[%s172 + $0x220] sm:$0xff] %v768
      %897 = vst [vmem:[%s172 + $0x228] sm:$0xff] %v769
      %898 = vst [vmem:[%s172 + $0x230] sm:$0xff] %v770
      %899 = vst [vmem:[%s172 + $0x238] sm:$0xff] %v771
      %900 = vst [vmem:[%s172 + $0x240] sm:$0xff] %v772
      %901 = vst [vmem:[%s172 + $0x248] sm:$0xff] %v773
      %902 = vst [vmem:[%s172 + $0x250] sm:$0xff] %v774
      %903 = vst [vmem:[%s172 + $0x258] sm:$0xff] %v775
      %904 = vst [vmem:[%s172 + $0x260] sm:$0xff] %v776
      %905 = vst [vmem:[%s172 + $0x268] sm:$0xff] %v777
      %906 = vst [vmem:[%s172 + $0x270] sm:$0xff] %v778
      %907 = vst [vmem:[%s172 + $0x278] sm:$0xff] %v779
      %908 = vst [vmem:[%s172 + $0x280] sm:$0xff] %v780
      %909 = vst [vmem:[%s172 + $0x288] sm:$0xff] %v781
      %910 = vst [vmem:[%s172 + $0x290] sm:$0xff] %v782
      %911 = vst [vmem:[%s172 + $0x298] sm:$0xff] %v783
      %912 = vst [vmem:[%s172 + $0x2a0] sm:$0xff] %v784
      %913 = vst [vmem:[%s172 + $0x2a8] sm:$0xff] %v785
      %914 = vst [vmem:[%s172 + $0x2b0] sm:$0xff] %v786
      %915 = vst [vmem:[%s172 + $0x2b8] sm:$0xff] %v787
      %916 = vst [vmem:[%s172 + $0x2c0] sm:$0xff] %v788
      %917 = vst [vmem:[%s172 + $0x2c8] sm:$0xff] %v789
      %918 = vst [vmem:[%s172 + $0x2d0] sm:$0xff] %v790
      %919 = vst [vmem:[%s172 + $0x2d8] sm:$0xff] %v791
      %920 = vst [vmem:[%s172 + $0x2e0] sm:$0xff] %v792
      %921 = vst [vmem:[%s172 + $0x2e8] sm:$0xff] %v793
      %922 = vst [vmem:[%s172 + $0x2f0] sm:$0xff] %v794
      %923 = vst [vmem:[%s172 + $0x2f8] sm:$0xff] %v795
      %924 = vst [vmem:[%s172 + $0x300] sm:$0xff] %v796
      %925 = vst [vmem:[%s172 + $0x308] sm:$0xff] %v797
      %926 = vst [vmem:[%s172 + $0x310] sm:$0xff] %v798
      %927 = vst [vmem:[%s172 + $0x318] sm:$0xff] %v799
      %928 = vst [vmem:[%s172 + $0x320] sm:$0xff] %v800
      %929 = vst [vmem:[%s172 + $0x328] sm:$0xff] %v801
      %930 = vst [vmem:[%s172 + $0x330] sm:$0xff] %v802
      %931 = vst [vmem:[%s172 + $0x338] sm:$0xff] %v803
      %932 = vst [vmem:[%s172 + $0x340] sm:$0xff] %v804
      %933 = vst [vmem:[%s172 + $0x348] sm:$0xff] %v805
      %934 = vst [vmem:[%s172 + $0x350] sm:$0xff] %v806
      %935 = vst [vmem:[%s172 + $0x358] sm:$0xff] %v807
      %936 = vst [vmem:[%s172 + $0x360] sm:$0xff] %v808
      %937 = vst [vmem:[%s172 + $0x368] sm:$0xff] %v809
      %938 = vst [vmem:[%s172 + $0x370] sm:$0xff] %v810
      %939 = vst [vmem:[%s172 + $0x378] sm:$0xff] %v811
      %940 = vst [vmem:[%s172 + $0x380] sm:$0xff] %v812
      %941 = vst [vmem:[%s172 + $0x388] sm:$0xff] %v813
      %942 = vst [vmem:[%s172 + $0x390] sm:$0xff] %v814
      %943 = vst [vmem:[%s172 + $0x398] sm:$0xff] %v815
      %944 = vst [vmem:[%s172 + $0x3a0] sm:$0xff] %v816
      %945 = vst [vmem:[%s172 + $0x3a8] sm:$0xff] %v817
      %946 = vst [vmem:[%s172 + $0x3b0] sm:$0xff] %v818
      %947 = vst [vmem:[%s172 + $0x3b8] sm:$0xff] %v819
      %948 = vst [vmem:[%s172 + $0x3c0] sm:$0xff] %v820
      %949 = vst [vmem:[%s172 + $0x3c8] sm:$0xff] %v821
      %950 = vst [vmem:[%s172 + $0x3d0] sm:$0xff] %v822
      %951 = vst [vmem:[%s172 + $0x3d8] sm:$0xff] %v823
      %952 = vst [vmem:[%s172 + $0x3e0] sm:$0xff] %v824
      %953 = vst [vmem:[%s172 + $0x3e8] sm:$0xff] %v825
      %954 = vst [vmem:[%s172 + $0x3f0] sm:$0xff] %v826
      %955 = vst [vmem:[%s172 + $0x3f8] sm:$0xff] %v827
      %s956 = smul.u32 128, %s14
      %p957 = scmp.lt.s32.totalorder %s956, 255
      %s958 = scalar_select %p957, %s956, 255
      %s959 = smul.addr %s958, 8
      %s960 = scalar_lea.vmem %s3, %s959
      // Predicated region
      $region33: #{up_forward.3} parent=31 // pred_check
        %p961 = pneg %p100
      $region34: #{up_forward.3} parent=31 // pred_check_branch
        %963 = sbr.rel (%p961) target = $region36
      $region35: #{up_forward.3} parent=31 // pred_region
        %s964 = smul.u32 128, %s14
      $region36: #{up_forward.3} parent=31 // pred_fallthru
        _
    $region32: #{up_forward.3} parent=5 // pred_fallthru
      _
    %p965 = scmp.le.s32.totalorder 2, %s9
    // Predicated region
    $region37: #{up_forward.3} parent=5 // pred_check
      %p966 = pneg %p965
    $region38: #{up_forward.3} parent=5 // pred_check_branch
      %968 = sbr.rel (%p966) target = $region40
    $region39: #{up_forward.3} parent=5 // pred_region
      %s969 = ssub.s32 %s9, 2
      // Predicated region
      $region41: #{up_forward.3} parent=39 // pred_check
        %p970 = pneg %p106
      $region42: #{up_forward.3} parent=39 // pred_check_branch
        %972 = sbr.rel (%p970) target = $region44
      $region43: #{up_forward.3} parent=39 // pred_region
        %s973 = smul.u32 128, %s15
        %p974 = scmp.lt.s32.totalorder %s973, 255
        %s975 = scalar_select %p974, %s973, 255
        %s976 = smul.addr %s975, 8
        %s977 = scalar_lea.vmem %s3, %s976
      $region44: #{up_forward.3} parent=39 // pred_fallthru
        _
    $region40: #{up_forward.3} parent=5 // pred_fallthru
      _
  $region6: #{up_forward.3} parent=0 // loop_footer
    %s13 = sadd.s32 1, %s9
  $region7: #{up_forward.3} parent=0 // loop_footer_branch
    %8 = sbr.rel target = $region3
  $region8: #{up_forward.3} parent=0 // loop_exit
    _

// kernel: up_forward.2
$region0: #{up_forward.2}
  #allocation0 [shape = 'u32[]', space=smem, size = 0x4, offset = 0x4, fixed_abs, tag = 'smem constant byte address 0x4 - core index']
  #allocation1 [shape = 'u32[144,128]{1,0:T(1,128)}', space=vmem, size = 0x12000, scoped, tag = 'internal scratch']
  %s0 = inlined_call_operand.vmem [shape: bf16[2,18,18,32], index: 0, kind: input, shape index: {}]
  %s1 = inlined_call_operand.vmem [shape: bf16[512,128], index: 1, kind: input, shape index: {}]
  %s2 = inlined_call_operand.vmem [shape: bf16[2,2,2,256,128], index: 2, kind: output, shape index: {0}]
  %s3 = inlined_call_operand.vmem [shape: f32[2,1,128], index: 3, kind: output, shape index: {1}]
  %s4 = inlined_call_operand.vmem [shape: f32[2,1,128], index: 4, kind: output, shape index: {2}]
  %5 = xla_tuple %s2, %s3, %s4
  %s6 = sld [smem:[#allocation0]]
  $region94: #{up_forward.2} parent=0
    _
  %s8 = ssub.s32 1, %s6
  %s9 = scalar_select 0, %s8, %s6
  $region1: #{up_forward.2} parent=0
    #allocation2 [shape = 'u8[524288]{0}', space=vmem, size = 0x80000, scoped, tag = 'output window, operand 0']
    loop: start=0, step=1, limit=4
    $region2: #{up_forward.2} parent=1 // loop_pre_header
      _
    $region3: #{up_forward.2} parent=1 // loop_header
      %s11 = sphi 0, %s15
      %p12 = scmp.ge.s32.totalorder %s11, 4
      %s18 = sphi 0, %s30
      %s19 = sphi 0, %s26
      %s20 = sphi 0, %s18
      %s21 = sphi 0, %s19
      %s22 = sphi 0, %s20
      %s23 = sphi 0, %s21
      %s33 = sphi 0, %s35
      %s36 = sphi 0, %s33
      %s37 = sphi 0, %s36
      %s53 = sphi 0, %s37
      %s59 = sphi 0, %s61
      %s62 = sphi 0, %s59
      %s63 = sphi 0, %s62
      %s79 = sphi 0, %s63
      %s87 = sphi 0, %s89
      %s90 = sphi 0, %s87
      %s91 = sphi 0, %s90
      %s107 = sphi 0, %s91
      %s115 = sphi 0, %s117
      %s118 = sphi 0, %s115
      %s119 = sphi 0, %s118
      %s135 = sphi 0, %s119
      %s143 = sphi 0, %s145
      %s146 = sphi 0, %s143
      %s147 = sphi 0, %s146
      %s163 = sphi 0, %s147
    $region4: #{up_forward.2} parent=1 // loop_header_branch
      %14 = sbr.rel (%p12) target = $region8
    $region5: #{up_forward.2} parent=1 // loop_body
      %s16 = ssub.s32 %s11, 1
      %s17 = ssub.s32 %s11, 2
      %s24 = sadd.s32 1, %s19
      %p25 = scmp.ge.s32.totalorder %s24, 1
      %s26 = scalar_select %p25, 0, %s24
      %s27 = sadd.s32 1, %s18
      %s28 = scalar_select %p25, %s27, %s18
      %p29 = scmp.ge.s32.totalorder %s28, 2
      %s30 = scalar_select %p29, 0, %s28
      %s31 = ssub.s32 %s18, %s30
      %p32 = scmp.eq.s32.totalorder %s31, 0
      %s34 = sadd.s32 %s33, 1
      %s35 = scalar_select %p32, %s33, %s34
      %p38 = pneg %p32
      %p39 = scmp.eq.s32.totalorder %s11, 1
      %p40 = por %p38, %p39
      %p41 = scmp.ne.s32.totalorder %s33, %s36
      %p42 = scmp.eq.s32.totalorder %s11, 0
      %p43 = por %p41, %p42
      %p44 = scmp.ne.s32.totalorder %s33, %s36
      %p45 = scmp.eq.s32.totalorder %s16, 1
      %p46 = por %p44, %p45
      %p47 = scmp.ne.s32.totalorder %s36, %s37
      %p48 = scmp.eq.s32.totalorder %s16, 0
      %p49 = por %p47, %p48
      %p50 = scmp.ne.s32.totalorder %s36, %s37
      %p51 = scmp.eq.s32.totalorder %s17, 1
      %p52 = por %p50, %p51
      %p54 = scmp.ne.s32.totalorder %s37, %s53
      %p55 = scmp.eq.s32.totalorder %s17, 0
      %p56 = por %p54, %p55
      %s57 = ssub.s32 %s19, %s26
      %p58 = scmp.eq.s32.totalorder %s57, 0
      %s60 = sadd.s32 %s59, 1
      %s61 = scalar_select %p58, %s59, %s60
      %p64 = pneg %p58
      %p65 = scmp.eq.s32.totalorder %s11, 1
      %p66 = por %p64, %p65
      %p67 = scmp.ne.s32.totalorder %s59, %s62
      %p68 = scmp.eq.s32.totalorder %s11, 0
      %p69 = por %p67, %p68
      %p70 = scmp.ne.s32.totalorder %s59, %s62
      %p71 = scmp.eq.s32.totalorder %s16, 1
      %p72 = por %p70, %p71
      %p73 = scmp.ne.s32.totalorder %s62, %s63
      %p74 = scmp.eq.s32.totalorder %s16, 0
      %p75 = por %p73, %p74
      %p76 = scmp.ne.s32.totalorder %s62, %s63
      %p77 = scmp.eq.s32.totalorder %s17, 1
      %p78 = por %p76, %p77
      %p80 = scmp.ne.s32.totalorder %s63, %s79
      %p81 = scmp.eq.s32.totalorder %s17, 0
      %p82 = por %p80, %p81
      %s83 = ssub.s32 %s18, %s30
      %s84 = ssub.s32 %s19, %s26
      %s85 = sor.u32 %s83, %s84
      %p86 = scmp.eq.s32.totalorder %s85, 0
      %s88 = sadd.s32 %s87, 1
      %s89 = scalar_select %p86, %s87, %s88
      %p92 = pneg %p86
      %p93 = scmp.eq.s32.totalorder %s11, 1
      %p94 = por %p92, %p93
      %p95 = scmp.ne.s32.totalorder %s87, %s90
      %p96 = scmp.eq.s32.totalorder %s11, 0
      %p97 = por %p95, %p96
      %p98 = scmp.ne.s32.totalorder %s87, %s90
      %p99 = scmp.eq.s32.totalorder %s16, 1
      %p100 = por %p98, %p99
      %p101 = scmp.ne.s32.totalorder %s90, %s91
      %p102 = scmp.eq.s32.totalorder %s16, 0
      %p103 = por %p101, %p102
      %p104 = scmp.ne.s32.totalorder %s90, %s91
      %p105 = scmp.eq.s32.totalorder %s17, 1
      %p106 = por %p104, %p105
      %p108 = scmp.ne.s32.totalorder %s91, %s107
      %p109 = scmp.eq.s32.totalorder %s17, 0
      %p110 = por %p108, %p109
      %s111 = ssub.s32 %s18, %s30
      %s112 = ssub.s32 %s19, %s26
      %s113 = sor.u32 %s111, %s112
      %p114 = scmp.eq.s32.totalorder %s113, 0
      %s116 = sadd.s32 %s115, 1
      %s117 = scalar_select %p114, %s115, %s116
      %p120 = pneg %p114
      %p121 = scmp.eq.s32.totalorder %s11, 1
      %p122 = por %p120, %p121
      %p123 = scmp.ne.s32.totalorder %s115, %s118
      %p124 = scmp.eq.s32.totalorder %s11, 0
      %p125 = por %p123, %p124
      %p126 = scmp.ne.s32.totalorder %s115, %s118
      %p127 = scmp.eq.s32.totalorder %s16, 1
      %p128 = por %p126, %p127
      %p129 = scmp.ne.s32.totalorder %s118, %s119
      %p130 = scmp.eq.s32.totalorder %s16, 0
      %p131 = por %p129, %p130
      %p132 = scmp.ne.s32.totalorder %s118, %s119
      %p133 = scmp.eq.s32.totalorder %s17, 1
      %p134 = por %p132, %p133
      %p136 = scmp.ne.s32.totalorder %s119, %s135
      %p137 = scmp.eq.s32.totalorder %s17, 0
      %p138 = por %p136, %p137
      %s139 = ssub.s32 %s18, %s30
      %s140 = ssub.s32 %s19, %s26
      %s141 = sor.u32 %s139, %s140
      %p142 = scmp.eq.s32.totalorder %s141, 0
      %s144 = sadd.s32 %s143, 1
      %s145 = scalar_select %p142, %s143, %s144
      %p148 = pneg %p142
      %p149 = scmp.eq.s32.totalorder %s11, 1
      %p150 = por %p148, %p149
      %p151 = scmp.ne.s32.totalorder %s143, %s146
      %p152 = scmp.eq.s32.totalorder %s11, 0
      %p153 = por %p151, %p152
      %p154 = scmp.ne.s32.totalorder %s143, %s146
      %p155 = scmp.eq.s32.totalorder %s16, 1
      %p156 = por %p154, %p155
      %p157 = scmp.ne.s32.totalorder %s146, %s147
      %p158 = scmp.eq.s32.totalorder %s16, 0
      %p159 = por %p157, %p158
      %p160 = scmp.ne.s32.totalorder %s146, %s147
      %p161 = scmp.eq.s32.totalorder %s17, 1
      %p162 = por %p160, %p161
      %p164 = scmp.ne.s32.totalorder %s147, %s163
      %p165 = scmp.eq.s32.totalorder %s17, 0
      %p166 = por %p164, %p165
      %p167 = scmp.le.s32.totalorder 1, %s11
      %p168 = scmp.lt.s32.totalorder %s11, 3
      %p169 = pnand %p167, %p168
      %p170 = pneg %p169
      // Predicated region
      $region9: #{up_forward.2} parent=5 // pred_check
        _
      $region10: #{up_forward.2} parent=5 // pred_check_branch
        %172 = sbr.rel (%p169) target = $region12
      $region11: #{up_forward.2} parent=5 // pred_region
        %s173 = ssub.s32 %s11, 1
        // Predicated region
        $region13: #{up_forward.2} parent=11 // pred_check
          %p174 = pneg %p75
        $region14: #{up_forward.2} parent=11 // pred_check_branch
          %176 = sbr.rel (%p174) target = $region16
        $region15: #{up_forward.2} parent=11 // pred_region
          %p177 = scmp.lt.s32.totalorder %s21, 0
          %s178 = scalar_select %p177, %s21, 0
          %s179 = smul.addr %s178, 4
          %s180 = scalar_lea.vmem %s1, %s179
        $region16: #{up_forward.2} parent=11 // pred_fallthru
          _
      $region12: #{up_forward.2} parent=5 // pred_fallthru
        _
      %p181 = scmp.lt.s32.totalorder %s11, 2
      // Predicated region
      $region17: #{up_forward.2} parent=5 // pred_check
        %p182 = pneg %p181
      $region18: #{up_forward.2} parent=5 // pred_check_branch
        %184 = sbr.rel (%p182) target = $region20
      $region19: #{up_forward.2} parent=5 // pred_region
        // Predicated region
        $region21: #{up_forward.2} parent=19 // pred_check
          %p185 = pneg %p43
        $region22: #{up_forward.2} parent=19 // pred_check_branch
          %187 = sbr.rel (%p185) target = $region24
        $region23: #{up_forward.2} parent=19 // pred_region
          %p188 = scmp.lt.s32.totalorder %s18, 1
          %s189 = scalar_select %p188, %s18, 1
          %s190 = smul.addr %s189, 54
          %s191 = smul.addr %s190, 4
          %s192 = scalar_lea.vmem %s0, %s191
        $region24: #{up_forward.2} parent=19 // pred_fallthru
          _
      $region20: #{up_forward.2} parent=5 // pred_fallthru
        _
      %p193 = scmp.le.s32.totalorder 1, %s11
      %p194 = scmp.lt.s32.totalorder %s11, 3
      %p195 = pnand %p193, %p194
      %p196 = pneg %p195
      // Predicated region
      $region25: #{up_forward.2} parent=5 // pred_check
        _
      $region26: #{up_forward.2} parent=5 // pred_check_branch
        %198 = sbr.rel (%p195) target = $region28
      $region27: #{up_forward.2} parent=5 // pred_region
        %s199 = ssub.s32 %s11, 1
        %p200 = scmp.lt.s32.totalorder %s20, 1
        %s201 = scalar_select %p200, %s20, 1
        %s202 = smul.addr %s201, 54
        %s203 = smul.addr %s202, 4
        %s204 = scalar_lea.vmem %s0, %s203
        %p205 = pneg %p49
        %p206 = pneg %p46
        %p207 = scmp.lt.s32.totalorder %s21, 0
        %s208 = scalar_select %p207, %s21, 0
        %s209 = smul.addr %s208, 4
        %s210 = scalar_lea.vmem %s1, %s209
        %p211 = pneg %p75
        %p212 = pneg %p72
        %p213 = pneg %p103
        %p214 = pneg %p100
        %s215 = sand.u32 %s90, 1
        %s216 = sand.u32 %s90, 1
        %s217 = smul.addr %s216, 512
        %s218 = scalar_lea.vmem [#allocation2], %s217
        %p219 = pneg %p131
        %p220 = pneg %p128
        %p221 = scmp.lt.s32.totalorder %s20, 1
        %s222 = scalar_select %p221, %s20, 1
        %p223 = scmp.lt.s32.totalorder %s21, 0
        %s224 = scalar_select %p223, %s21, 0
        %s225 = sadd.s32 %s224, %s222
        %s226 = scalar_lea.vmem %s3, %s225
        %p227 = pneg %p159
        %p228 = pneg %p156
        %p229 = scmp.lt.s32.totalorder %s20, 1
        %s230 = scalar_select %p229, %s20, 1
        %p231 = scmp.lt.s32.totalorder %s21, 0
        %s232 = scalar_select %p231, %s21, 0
        %s233 = sadd.s32 %s232, %s230
        %s234 = scalar_lea.vmem %s4, %s233
        %p235 = scmp.lt.s32.totalorder %s20, 1
        %s236 = scalar_select %p235, %s20, 1
        %s237 = smul.addr %s236, 54
        %s238 = smul.addr %s237, 4
        %s239 = scalar_lea.vmem %s0, %s238
        %p240 = scmp.lt.s32.totalorder %s21, 0
        %s241 = scalar_select %p240, %s21, 0
        %s242 = smul.addr %s241, 4
        %s243 = scalar_lea.vmem %s1, %s242
        %p244 = scmp.lt.s32.totalorder %s20, 1
        %s245 = scalar_select %p244, %s20, 1
        %p246 = scmp.lt.s32.totalorder %s21, 0
        %s247 = scalar_select %p246, %s21, 0
        %s248 = sadd.s32 %s247, %s245
        %s249 = scalar_lea.vmem %s3, %s248
        %p250 = scmp.lt.s32.totalorder %s20, 1
        %s251 = scalar_select %p250, %s20, 1
        %p252 = scmp.lt.s32.totalorder %s21, 0
        %s253 = scalar_select %p252, %s21, 0
        %s254 = sadd.s32 %s253, %s251
        %s255 = scalar_lea.vmem %s4, %s254
        %v257 = vld [vmem:[%s239] sm:$0xf]
        %v258 = vld [vmem:[%s239 + $0x4] sm:$0xf]
        %v259 = vld [vmem:[%s239 + $0xc] sm:$0xf]
        %v260 = vld [vmem:[%s239 + $0x10] sm:$0xf]
        %v261 = vld [vmem:[%s239 + $0x18] sm:$0xf]
        %v262 = vld [vmem:[%s239 + $0x1c] sm:$0xf]
        %v263 = vld [vmem:[%s239 + $0x24] sm:$0xf]
        %v264 = vld [vmem:[%s239 + $0x28] sm:$0xf]
        %v265 = vld [vmem:[%s239 + $0x30] sm:$0xf]
        %v266 = vld [vmem:[%s239 + $0x34] sm:$0xf]
        %v267 = vld [vmem:[%s239 + $0x3c] sm:$0xf]
        %v268 = vld [vmem:[%s239 + $0x40] sm:$0xf]
        %v269 = vld [vmem:[%s239 + $0x48] sm:$0xf]
        %v270 = vld [vmem:[%s239 + $0x4c] sm:$0xf]
        %v271 = vld [vmem:[%s239 + $0x54] sm:$0xf]
        %v272 = vld [vmem:[%s239 + $0x58] sm:$0xf]
        %v273 = vld [vmem:[%s239 + $0x60] sm:$0xf]
        %v274 = vld [vmem:[%s239 + $0x64] sm:$0xf]
        %v275 = vld [vmem:[%s239 + $0x6c] sm:$0xf]
        %v276 = vld [vmem:[%s239 + $0x70] sm:$0xf]
        %v277 = vld [vmem:[%s239 + $0x78] sm:$0xf]
        %v278 = vld [vmem:[%s239 + $0x7c] sm:$0xf]
        %v279 = vld [vmem:[%s239 + $0x84] sm:$0xf]
        %v280 = vld [vmem:[%s239 + $0x88] sm:$0xf]
        %v281 = vld [vmem:[%s239 + $0x90] sm:$0xf]
        %v282 = vld [vmem:[%s239 + $0x94] sm:$0xf]
        %v283 = vld [vmem:[%s239 + $0x9c] sm:$0xf]
        %v284 = vld [vmem:[%s239 + $0xa0] sm:$0xf]
        %v285 = vld [vmem:[%s239 + $0xa8] sm:$0xf]
        %v286 = vld [vmem:[%s239 + $0xac] sm:$0xf]
        %v287 = vld [vmem:[%s239 + $0xb4] sm:$0xf]
        %v288 = vld [vmem:[%s239 + $0xb8] sm:$0xf]
        %v289 = vld [vmem:[%s243] sm:$0xf]
        %v290 = vld [vmem:[%s243 + $0x4] sm:$0xf]
        %v291 = vld [vmem:[%s243 + $0x8] sm:$0xf]
        %v292 = vld [vmem:[%s243 + $0xc] sm:$0xf]
        %v293 = vld [vmem:[%s239 + $0x8] sm:$0x1]
        %v294 = vld [vmem:[%s239 + $0x14] sm:$0x1]
        %v295 = vld [vmem:[%s239 + $0x20] sm:$0x1]
        %v296 = vld [vmem:[%s239 + $0x2c] sm:$0x1]
        %v297 = vld [vmem:[%s239 + $0x38] sm:$0x1]
        %v298 = vld [vmem:[%s239 + $0x44] sm:$0x1]
        %v299 = vld [vmem:[%s239 + $0x50] sm:$0x1]
        %v300 = vld [vmem:[%s239 + $0x5c] sm:$0x1]
        %v301 = vld [vmem:[%s239 + $0x68] sm:$0x1]
        %v302 = vld [vmem:[%s239 + $0x74] sm:$0x1]
        %v303 = vld [vmem:[%s239 + $0x80] sm:$0x1]
        %v304 = vld [vmem:[%s239 + $0x8c] sm:$0x1]
        %v305 = vld [vmem:[%s239 + $0x98] sm:$0x1]
        %v306 = vld [vmem:[%s239 + $0xa4] sm:$0x1]
        %v307 = vld [vmem:[%s239 + $0xb0] sm:$0x1]
        %v308 = vld [vmem:[%s239 + $0xbc] sm:$0x1]
        %v309 = vld [vmem:[%s243 + $0x10] sm:$0xf]
        %v310 = vld [vmem:[%s243 + $0x14] sm:$0xf]
        %v311 = vld [vmem:[%s243 + $0x18] sm:$0xf]
        %v312 = vld [vmem:[%s243 + $0x1c] sm:$0xf]
        %vm313 = vsmask.f32 3328
        %vm314 = vsmask.f32 7440
        %vm315 = vmor %vm313, %vm314
        %v317 = vshrl.u32 %v257, 16
        %v319 = vrot.slane %v317, 4
        %v320 = vshll.u32 %v257, 16
        %v322 = vrot.slane %v320, 5
        %v323 = vor.u32 %v319, %v322
        %v324 = vrot.slane %v323, 4
        %v326 = vshll.u32 %v258, 16
        %v328 = vrot.slane %v326, 5
        %v329 = vsel %vm315, %v324, %v328
        %v330 = vshrl.u32 %v258, 16
        %v332 = vrot.slane %v330, 4
        %v333 = vor.u32 %v332, %v328
        %v334 = vrot.slane %v333, 4
        %v336 = vshll.u32 %v293, 16
        %v338 = vrot.slane %v336, 5
        %v339 = vsel %vm315, %v334, %v338
        %v341 = vshrl.u32 %v259, 16
        %v343 = vrot.slane %v341, 4
        %v344 = vshll.u32 %v259, 16
        %v346 = vrot.slane %v344, 5
        %v347 = vor.u32 %v343, %v346
        %v348 = vrot.slane %v347, 4
        %v350 = vshll.u32 %v260, 16
        %v352 = vrot.slane %v350, 5
        %v353 = vsel %vm315, %v348, %v352
        %v354 = vshrl.u32 %v260, 16
        %v356 = vrot.slane %v354, 4
        %v357 = vor.u32 %v356, %v352
        %v358 = vrot.slane %v357, 4
        %v360 = vshll.u32 %v294, 16
        %v362 = vrot.slane %v360, 5
        %v363 = vsel %vm315, %v358, %v362
        %v365 = vshrl.u32 %v261, 16
        %v367 = vrot.slane %v365, 4
        %v368 = vshll.u32 %v261, 16
        %v370 = vrot.slane %v368, 5
        %v371 = vor.u32 %v367, %v370
        %v372 = vrot.slane %v371, 4
        %v374 = vshll.u32 %v262, 16
        %v376 = vrot.slane %v374, 5
        %v377 = vsel %vm315, %v372, %v376
        %v378 = vshrl.u32 %v262, 16
        %v380 = vrot.slane %v378, 4
        %v381 = vor.u32 %v380, %v376
        %v382 = vrot.slane %v381, 4
        %v384 = vshll.u32 %v295, 16
        %v386 = vrot.slane %v384, 5
        %v387 = vsel %vm315, %v382, %v386
        %v389 = vshrl.u32 %v263, 16
        %v391 = vrot.slane %v389, 4
        %v392 = vshll.u32 %v263, 16
        %v394 = vrot.slane %v392, 5
        %v395 = vor.u32 %v391, %v394
        %v396 = vrot.slane %v395, 4
        %v398 = vshll.u32 %v264, 16
        %v400 = vrot.slane %v398, 5
        %v401 = vsel %vm315, %v396, %v400
        %v402 = vshrl.u32 %v264, 16
        %v404 = vrot.slane %v402, 4
        %v405 = vor.u32 %v404, %v400
        %v406 = vrot.slane %v405, 4
        %v408 = vshll.u32 %v296, 16
        %v410 = vrot.slane %v408, 5
        %v411 = vsel %vm315, %v406, %v410
        %v413 = vshrl.u32 %v265, 16
        %v415 = vrot.slane %v413, 4
        %v416 = vshll.u32 %v265, 16
        %v418 = vrot.slane %v416, 5
        %v419 = vor.u32 %v415, %v418
        %v420 = vrot.slane %v419, 4
        %v422 = vshll.u32 %v266, 16
        %v424 = vrot.slane %v422, 5
        %v425 = vsel %vm315, %v420, %v424
        %v426 = vshrl.u32 %v266, 16
        %v428 = vrot.slane %v426, 4
        %v429 = vor.u32 %v428, %v424
        %v430 = vrot.slane %v429, 4
        %v432 = vshll.u32 %v297, 16
        %v434 = vrot.slane %v432, 5
        %v435 = vsel %vm315, %v430, %v434
        %v437 = vshrl.u32 %v267, 16
        %v439 = vrot.slane %v437, 4
        %v440 = vshll.u32 %v267, 16
        %v442 = vrot.slane %v440, 5
        %v443 = vor.u32 %v439, %v442
        %v444 = vrot.slane %v443, 4
        %v446 = vshll.u32 %v268, 16
        %v448 = vrot.slane %v446, 5
        %v449 = vsel %vm315, %v444, %v448
        %v450 = vshrl.u32 %v268, 16
        %v452 = vrot.slane %v450, 4
        %v453 = vor.u32 %v452, %v448
        %v454 = vrot.slane %v453, 4
        %v456 = vshll.u32 %v298, 16
        %v458 = vrot.slane %v456, 5
        %v459 = vsel %vm315, %v454, %v458
        %v461 = vshrl.u32 %v269, 16
        %v463 = vrot.slane %v461, 4
        %v464 = vshll.u32 %v269, 16
        %v466 = vrot.slane %v464, 5
        %v467 = vor.u32 %v463, %v466
        %v468 = vrot.slane %v467, 4
        %v470 = vshll.u32 %v270, 16
        %v472 = vrot.slane %v470, 5
        %v473 = vsel %vm315, %v468, %v472
        %v474 = vshrl.u32 %v270, 16
        %v476 = vrot.slane %v474, 4
        %v477 = vor.u32 %v476, %v472
        %v478 = vrot.slane %v477, 4
        %v480 = vshll.u32 %v299, 16
        %v482 = vrot.slane %v480, 5
        %v483 = vsel %vm315, %v478, %v482
        %v485 = vshrl.u32 %v271, 16
        %v487 = vrot.slane %v485, 4
        %v488 = vshll.u32 %v271, 16
        %v490 = vrot.slane %v488, 5
        %v491 = vor.u32 %v487, %v490
        %v492 = vrot.slane %v491, 4
        %v494 = vshll.u32 %v272, 16
        %v496 = vrot.slane %v494, 5
        %v497 = vsel %vm315, %v492, %v496
        %v498 = vshrl.u32 %v272, 16
        %v500 = vrot.slane %v498, 4
        %v501 = vor.u32 %v500, %v496
        %v502 = vrot.slane %v501, 4
        %v504 = vshll.u32 %v300, 16
        %v506 = vrot.slane %v504, 5
        %v507 = vsel %vm315, %v502, %v506
        %v509 = vshrl.u32 %v273, 16
        %v511 = vrot.slane %v509, 4
        %v512 = vshll.u32 %v273, 16
        %v514 = vrot.slane %v512, 5
        %v515 = vor.u32 %v511, %v514
        %v516 = vrot.slane %v515, 4
        %v518 = vshll.u32 %v274, 16
        %v520 = vrot.slane %v518, 5
        %v521 = vsel %vm315, %v516, %v520
        %v522 = vshrl.u32 %v274, 16
        %v524 = vrot.slane %v522, 4
        %v525 = vor.u32 %v524, %v520
        %v526 = vrot.slane %v525, 4
        %v528 = vshll.u32 %v301, 16
        %v530 = vrot.slane %v528, 5
        %v531 = vsel %vm315, %v526, %v530
        %v533 = vshrl.u32 %v275, 16
        %v535 = vrot.slane %v533, 4
        %v536 = vshll.u32 %v275, 16
        %v538 = vrot.slane %v536, 5
        %v539 = vor.u32 %v535, %v538
        %v540 = vrot.slane %v539, 4
        %v542 = vshll.u32 %v276, 16
        %v544 = vrot.slane %v542, 5
        %v545 = vsel %vm315, %v540, %v544
        %v546 = vshrl.u32 %v276, 16
        %v548 = vrot.slane %v546, 4
        %v549 = vor.u32 %v548, %v544
        %v550 = vrot.slane %v549, 4
        %v552 = vshll.u32 %v302, 16
        %v554 = vrot.slane %v552, 5
        %v555 = vsel %vm315, %v550, %v554
        %v557 = vshrl.u32 %v277, 16
        %v559 = vrot.slane %v557, 4
        %v560 = vshll.u32 %v277, 16
        %v562 = vrot.slane %v560, 5
        %v563 = vor.u32 %v559, %v562
        %v564 = vrot.slane %v563, 4
        %v566 = vshll.u32 %v278, 16
        %v568 = vrot.slane %v566, 5
        %v569 = vsel %vm315, %v564, %v568
        %v570 = vshrl.u32 %v278, 16
        %v572 = vrot.slane %v570, 4
        %v573 = vor.u32 %v572, %v568
        %v574 = vrot.slane %v573, 4
        %v576 = vshll.u32 %v303, 16
        %v578 = vrot.slane %v576, 5
        %v579 = vsel %vm315, %v574, %v578
        %v581 = vshrl.u32 %v279, 16
        %v583 = vrot.slane %v581, 4
        %v584 = vshll.u32 %v279, 16
        %v586 = vrot.slane %v584, 5
        %v587 = vor.u32 %v583, %v586
        %v588 = vrot.slane %v587, 4
        %v590 = vshll.u32 %v280, 16
        %v592 = vrot.slane %v590, 5
        %v593 = vsel %vm315, %v588, %v592
        %v594 = vshrl.u32 %v280, 16
        %v596 = vrot.slane %v594, 4
        %v597 = vor.u32 %v596, %v592
        %v598 = vrot.slane %v597, 4
        %v600 = vshll.u32 %v304, 16
        %v602 = vrot.slane %v600, 5
        %v603 = vsel %vm315, %v598, %v602
        %v605 = vshrl.u32 %v281, 16
        %v607 = vrot.slane %v605, 4
        %v608 = vshll.u32 %v281, 16
        %v610 = vrot.slane %v608, 5
        %v611 = vor.u32 %v607, %v610
        %v612 = vrot.slane %v611, 4
        %v614 = vshll.u32 %v282, 16
        %v616 = vrot.slane %v614, 5
        %v617 = vsel %vm315, %v612, %v616
        %v618 = vshrl.u32 %v282, 16
        %v620 = vrot.slane %v618, 4
        %v621 = vor.u32 %v620, %v616
        %v622 = vrot.slane %v621, 4
        %v624 = vshll.u32 %v305, 16
        %v626 = vrot.slane %v624, 5
        %v627 = vsel %vm315, %v622, %v626
        %v629 = vshrl.u32 %v283, 16
        %v631 = vrot.slane %v629, 4
        %v632 = vshll.u32 %v283, 16
        %v634 = vrot.slane %v632, 5
        %v635 = vor.u32 %v631, %v634
        %v636 = vrot.slane %v635, 4
        %v638 = vshll.u32 %v284, 16
        %v640 = vrot.slane %v638, 5
        %v641 = vsel %vm315, %v636, %v640
        %v642 = vshrl.u32 %v284, 16
        %v644 = vrot.slane %v642, 4
        %v645 = vor.u32 %v644, %v640
        %v646 = vrot.slane %v645, 4
        %v648 = vshll.u32 %v306, 16
        %v650 = vrot.slane %v648, 5
        %v651 = vsel %vm315, %v646, %v650
        %v653 = vshrl.u32 %v285, 16
        %v655 = vrot.slane %v653, 4
        %v656 = vshll.u32 %v285, 16
        %v658 = vrot.slane %v656, 5
        %v659 = vor.u32 %v655, %v658
        %v660 = vrot.slane %v659, 4
        %v662 = vshll.u32 %v286, 16
        %v664 = vrot.slane %v662, 5
        %v665 = vsel %vm315, %v660, %v664
        %v666 = vshrl.u32 %v286, 16
        %v668 = vrot.slane %v666, 4
        %v669 = vor.u32 %v668, %v664
        %v670 = vrot.slane %v669, 4
        %v672 = vshll.u32 %v307, 16
        %v674 = vrot.slane %v672, 5
        %v675 = vsel %vm315, %v670, %v674
        %v677 = vshrl.u32 %v287, 16
        %v679 = vrot.slane %v677, 4
        %v680 = vshll.u32 %v287, 16
        %v682 = vrot.slane %v680, 5
        %v683 = vor.u32 %v679, %v682
        %v684 = vrot.slane %v683, 4
        %v686 = vshll.u32 %v288, 16
        %v688 = vrot.slane %v686, 5
        %v689 = vsel %vm315, %v684, %v688
        %v690 = vshrl.u32 %v288, 16
        %v692 = vrot.slane %v690, 4
        %v693 = vor.u32 %v692, %v688
        %v694 = vrot.slane %v693, 4
        %v696 = vshll.u32 %v308, 16
        %v698 = vrot.slane %v696, 5
        %v699 = vsel %vm315, %v694, %v698
        %v700 = vunpack.c.l.b16 %v329
        %v701 = vunpack.c.l.b16 %v339
        %v702 = vunpack.c.l.b16 %v353
        %v703 = vunpack.c.l.b16 %v363
        %v704 = vunpack.c.l.b16 %v377
        %v705 = vunpack.c.l.b16 %v387
        %v706 = vunpack.c.l.b16 %v401
        %v707 = vunpack.c.l.b16 %v411
        %v708 = vunpack.c.l.b16 %v425
        %v709 = vunpack.c.l.b16 %v435
        %v710 = vunpack.c.l.b16 %v449
        %v711 = vunpack.c.l.b16 %v459
        %v712 = vunpack.c.l.b16 %v473
        %v713 = vunpack.c.l.b16 %v483
        %v714 = vunpack.c.l.b16 %v497
        %v715 = vunpack.c.l.b16 %v507
        %v716 = vunpack.c.l.b16 %v521
        %v717 = vunpack.c.l.b16 %v531
        %v718 = vunpack.c.l.b16 %v545
        %v719 = vunpack.c.l.b16 %v555
        %v720 = vunpack.c.l.b16 %v569
        %v721 = vunpack.c.l.b16 %v579
        %v722 = vunpack.c.l.b16 %v593
        %v723 = vunpack.c.l.b16 %v603
        %v724 = vunpack.c.l.b16 %v617
        %v725 = vunpack.c.l.b16 %v627
        %v726 = vunpack.c.l.b16 %v641
        %v727 = vunpack.c.l.b16 %v651
        %v728 = vunpack.c.l.b16 %v665
        %v729 = vunpack.c.l.b16 %v675
        %v730 = vunpack.c.l.b16 %v689
        %v731 = vunpack.c.l.b16 %v699
        %v732 = vpack.c.b16 %v701, %v700
        %v733 = vpack.c.b16 %v703, %v702
        %v734 = vpack.c.b16 %v705, %v704
        %v735 = vpack.c.b16 %v707, %v706
        %v736 = vpack.c.b16 %v709, %v708
        %v737 = vpack.c.b16 %v711, %v710
        %v738 = vpack.c.b16 %v713, %v712
        %v739 = vpack.c.b16 %v715, %v714
        %v740 = vpack.c.b16 %v717, %v716
        %v741 = vpack.c.b16 %v719, %v718
        %v742 = vpack.c.b16 %v721, %v720
        %v743 = vpack.c.b16 %v723, %v722
        %v744 = vpack.c.b16 %v725, %v724
        %v745 = vpack.c.b16 %v727, %v726
        %v746 = vpack.c.b16 %v729, %v728
        %v747 = vpack.c.b16 %v731, %v730
        %v752 = vunpack.c.l.b16 %v309
        %v753 = vunpack.c.l.b16 %v310
        %v754 = vunpack.c.l.b16 %v311
        %v755 = vunpack.c.l.b16 %v312
        %v756 = vpack.c.b16 %v753, %v752
        %v757 = vpack.c.b16 %v755, %v754
        %vm760 = vcmask 261120
        %v762 = vsel %vm760, %v732, 0
        %v765 = vsel %vm760, %v733, 0
        %v768 = vsel %vm760, %v734, 0
        %v771 = vsel %vm760, %v735, 0
        %v774 = vsel %vm760, %v736, 0
        %v777 = vsel %vm760, %v737, 0
        %v780 = vsel %vm760, %v738, 0
        %v783 = vsel %vm760, %v739, 0
        %v786 = vsel %vm760, %v740, 0
        %v789 = vsel %vm760, %v741, 0
        %v792 = vsel %vm760, %v742, 0
        %v795 = vsel %vm760, %v743, 0
        %v798 = vsel %vm760, %v744, 0
        %v801 = vsel %vm760, %v745, 0
        %v804 = vsel %vm760, %v746, 0
        %v807 = vsel %vm760, %v747, 0
        %809 = vmatprep.subr.bf16.mxu0 0
        %810 = vmatpush1.bf16.msra.mxu0 %v756
        %811 = vmatprep.subr.bf16.mxu0 0
        %812 = vmatpush1.bf16.msra.mxu0 %v757
        %813 = vmatprep.subr.bf16.mxu0 0
        %814 = vmatpush1.bf16.msra.mxu0 0
        %815 = vmatprep.subr.bf16.mxu0 0
        %816 = vmatpush1.bf16.msra.mxu0 0
        %817 = vmatprep.subr.bf16.mxu0 0
        %818 = vmatpush1.bf16.msra.mxu0 0
        %819 = vmatprep.subr.bf16.mxu0 0
        %820 = vmatpush1.bf16.msra.mxu0 0
        %821 = vmatprep.subr.bf16.mxu0 0
        %822 = vmatpush1.bf16.msra.mxu0 0
        %823 = vmatprep.subr.bf16.mxu0 0
        %824 = vmatpush1.bf16.msra.mxu0 0
        %825 = vmatprep.subr.bf16.mxu0 0
        %826 = vmatpush1.bf16.msra.mxu0 0
        %827 = vmatprep.subr.bf16.mxu0 0
        %828 = vmatpush1.bf16.msra.mxu0 0
        %829 = vmatprep.subr.bf16.mxu0 0
        %830 = vmatpush1.bf16.msra.mxu0 0
        %831 = vmatprep.subr.bf16.mxu0 0
        %832 = vmatpush1.bf16.msra.mxu0 0
        %833 = vmatprep.subr.bf16.mxu0 0
        %834 = vmatpush1.bf16.msra.mxu0 0
        %835 = vmatprep.subr.bf16.mxu0 0
        %836 = vmatpush1.bf16.msra.mxu0 0
        %837 = vmatprep.subr.bf16.mxu0 0
        %838 = vmatpush1.bf16.msra.mxu0 0
        %839 = vmatprep.subr.bf16.mxu0 0
        %840 = vmatpush1.bf16.msra.mxu0 0
        %841 = vmatprep.mubr.bf16.mxu0 0
        %842 = vmatmul.mubr.bf16.gmra.mrb[0].mxu0 %v762
        %v843 = vpop.f32.mrb[0].mxu0
        %v844 = vadd.f32 0.0, %v843
        %v845 = vpop.f32.mrb[0].mxu0
        %v846 = vpop.f32.mrb[0].mxu0
        %v847 = vadd.f32 0.0, %v846
        %v848 = vpop.f32.mrb[0].mxu0
        %849 = vmatprep.mubr.bf16.mxu0 0
        %850 = vmatmul.mubr.bf16.gmra.mrb[0].mxu0 %v765
        %v851 = vpop.f32.mrb[0].mxu0
        %v852 = vadd.f32 0.0, %v851
        %v853 = vpop.f32.mrb[0].mxu0
        %v854 = vpop.f32.mrb[0].mxu0
        %v855 = vadd.f32 0.0, %v854
        %v856 = vpop.f32.mrb[0].mxu0
        %857 = vmatprep.mubr.bf16.mxu0 0
        %858 = vmatmul.mubr.bf16.gmra.mrb[0].mxu0 %v768
        %v859 = vpop.f32.mrb[0].mxu0
        %v860 = vadd.f32 0.0, %v859
        %v861 = vpop.f32.mrb[0].mxu0
        %v862 = vpop.f32.mrb[0].mxu0
        %v863 = vadd.f32 0.0, %v862
        %v864 = vpop.f32.mrb[0].mxu0
        %865 = vmatprep.mubr.bf16.mxu0 0
        %866 = vmatmul.mubr.bf16.gmra.mrb[0].mxu0 %v771
        %v867 = vpop.f32.mrb[0].mxu0
        %v868 = vadd.f32 0.0, %v867
        %v869 = vpop.f32.mrb[0].mxu0
        %v870 = vpop.f32.mrb[0].mxu0
        %v871 = vadd.f32 0.0, %v870
        %v872 = vpop.f32.mrb[0].mxu0
        %873 = vmatprep.mubr.bf16.mxu0 0
        %874 = vmatmul.mubr.bf16.gmra.mrb[0].mxu0 %v774
        %v875 = vpop.f32.mrb[0].mxu0
        %v876 = vadd.f32 0.0, %v875
        %v877 = vpop.f32.mrb[0].mxu0
        %v878 = vpop.f32.mrb[0].mxu0
        %v879 = vadd.f32 0.0, %v878
        %v880 = vpop.f32.mrb[0].mxu0
        %881 = vmatprep.mubr.bf16.mxu0 0
        %882 = vmatmul.mubr.bf16.gmra.mrb[0].mxu0 %v777
        %v883 = vpop.f32.mrb[0].mxu0
        %v884 = vadd.f32 0.0, %v883
        %v885 = vpop.f32.mrb[0].mxu0
        %v886 = vpop.f32.mrb[0].mxu0
        %v887 = vadd.f32 0.0, %v886
        %v888 = vpop.f32.mrb[0].mxu0
        %889 = vmatprep.mubr.bf16.mxu0 0
        %890 = vmatmul.mubr.bf16.gmra.mrb[0].mxu0 %v780
        %v891 = vpop.f32.mrb[0].mxu0
        %v892 = vadd.f32 0.0, %v891
        %v893 = vpop.f32.mrb[0].mxu0
        %v894 = vpop.f32.mrb[0].mxu0
        %v895 = vadd.f32 0.0, %v894
        %v896 = vpop.f32.mrb[0].mxu0
        %897 = vmatprep.mubr.bf16.mxu0 0
        %898 = vmatmul.mubr.bf16.gmra.mrb[0].mxu0 %v783
        %v899 = vpop.f32.mrb[0].mxu0
        %v900 = vadd.f32 0.0, %v899
        %v901 = vpop.f32.mrb[0].mxu0
        %v902 = vpop.f32.mrb[0].mxu0
        %v903 = vadd.f32 0.0, %v902
        %v904 = vpop.f32.mrb[0].mxu0
        %905 = vmatprep.mubr.bf16.mxu0 0
        %906 = vmatmul.mubr.bf16.gmra.mrb[0].mxu0 %v786
        %v907 = vpop.f32.mrb[0].mxu0
        %v908 = vadd.f32 0.0, %v907
        %v909 = vpop.f32.mrb[0].mxu0
        %v910 = vpop.f32.mrb[0].mxu0
        %v911 = vadd.f32 0.0, %v910
        %v912 = vpop.f32.mrb[0].mxu0
        %913 = vmatprep.mubr.bf16.mxu0 0
        %914 = vmatmul.mubr.bf16.gmra.mrb[0].mxu0 %v789
        %v915 = vpop.f32.mrb[0].mxu0
        %v916 = vadd.f32 0.0, %v915
        %v917 = vpop.f32.mrb[0].mxu0
        %v918 = vpop.f32.mrb[0].mxu0
        %v919 = vadd.f32 0.0, %v918
        %v920 = vpop.f32.mrb[0].mxu0
        %921 = vmatprep.mubr.bf16.mxu0 0
        %922 = vmatmul.mubr.bf16.gmra.mrb[0].mxu0 %v792
        %v923 = vpop.f32.mrb[0].mxu0
        %v924 = vadd.f32 0.0, %v923
        %v925 = vpop.f32.mrb[0].mxu0
        %v926 = vpop.f32.mrb[0].mxu0
        %v927 = vadd.f32 0.0, %v926
        %v928 = vpop.f32.mrb[0].mxu0
        %929 = vmatprep.mubr.bf16.mxu0 0
        %930 = vmatmul.mubr.bf16.gmra.mrb[0].mxu0 %v795
        %v931 = vpop.f32.mrb[0].mxu0
        %v932 = vadd.f32 0.0, %v931
        %v933 = vpop.f32.mrb[0].mxu0
        %v934 = vpop.f32.mrb[0].mxu0
        %v935 = vadd.f32 0.0, %v934
        %v936 = vpop.f32.mrb[0].mxu0
        %937 = vmatprep.mubr.bf16.mxu0 0
        %938 = vmatmul.mubr.bf16.gmra.mrb[0].mxu0 %v798
        %v939 = vpop.f32.mrb[0].mxu0
        %v940 = vadd.f32 0.0, %v939
        %v941 = vpop.f32.mrb[0].mxu0
        %v942 = vpop.f32.mrb[0].mxu0
        %v943 = vadd.f32 0.0, %v942
        %v944 = vpop.f32.mrb[0].mxu0
        %945 = vmatprep.mubr.bf16.mxu0 0
        %946 = vmatmul.mubr.bf16.gmra.mrb[0].mxu0 %v801
        %v947 = vpop.f32.mrb[0].mxu0
        %v948 = vadd.f32 0.0, %v947
        %v949 = vpop.f32.mrb[0].mxu0
        %v950 = vpop.f32.mrb[0].mxu0
        %v951 = vadd.f32 0.0, %v950
        %v952 = vpop.f32.mrb[0].mxu0
        %953 = vmatprep.mubr.bf16.mxu0 0
        %954 = vmatmul.mubr.bf16.gmra.mrb[0].mxu0 %v804
        %v955 = vpop.f32.mrb[0].mxu0
        %v956 = vadd.f32 0.0, %v955
        %v957 = vpop.f32.mrb[0].mxu0
        %v958 = vpop.f32.mrb[0].mxu0
        %v959 = vadd.f32 0.0, %v958
        %v960 = vpop.f32.mrb[0].mxu0
        %961 = vmatprep.mubr.bf16.mxu0 0
        %962 = vmatmul.mubr.bf16.gmra.mrb[0].mxu0 %v807
        %v963 = vpop.f32.mrb[0].mxu0
        %v964 = vadd.f32 0.0, %v963
        %v965 = vpop.f32.mrb[0].mxu0
        %v966 = vpop.f32.mrb[0].mxu0
        %v967 = vadd.f32 0.0, %v966
        %v968 = vpop.f32.mrb[0].mxu0
        %969 = vdwg.mxu0
        %v1002 = vunpack.c.l.b16 %v257
        %v1003 = vunpack.c.l.b16 %v258
        %v1004 = vunpack.c.l.b16 %v259
        %v1005 = vunpack.c.l.b16 %v260
        %v1006 = vunpack.c.l.b16 %v261
        %v1007 = vunpack.c.l.b16 %v262
        %v1008 = vunpack.c.l.b16 %v263
        %v1009 = vunpack.c.l.b16 %v264
        %v1010 = vunpack.c.l.b16 %v265
        %v1011 = vunpack.c.l.b16 %v266
        %v1012 = vunpack.c.l.b16 %v267
        %v1013 = vunpack.c.l.b16 %v268
        %v1014 = vunpack.c.l.b16 %v269
        %v1015 = vunpack.c.l.b16 %v270
        %v1016 = vunpack.c.l.b16 %v271
        %v1017 = vunpack.c.l.b16 %v272
        %v1018 = vunpack.c.l.b16 %v273
        %v1019 = vunpack.c.l.b16 %v274
        %v1020 = vunpack.c.l.b16 %v275
        %v1021 = vunpack.c.l.b16 %v276
        %v1022 = vunpack.c.l.b16 %v277
        %v1023 = vunpack.c.l.b16 %v278
        %v1024 = vunpack.c.l.b16 %v279
        %v1025 = vunpack.c.l.b16 %v280
        %v1026 = vunpack.c.l.b16 %v281
        %v1027 = vunpack.c.l.b16 %v282
        %v1028 = vunpack.c.l.b16 %v283
        %v1029 = vunpack.c.l.b16 %v284
        %v1030 = vunpack.c.l.b16 %v285
        %v1031 = vunpack.c.l.b16 %v286
        %v1032 = vunpack.c.l.b16 %v287
        %v1033 = vunpack.c.l.b16 %v288
        %v1034 = vpack.c.b16 %v1003, %v1002
        %v1035 = vpack.c.b16 %v1005, %v1004
        %v1036 = vpack.c.b16 %v1007, %v1006
        %v1037 = vpack.c.b16 %v1009, %v1008
        %v1038 = vpack.c.b16 %v1011, %v1010
        %v1039 = vpack.c.b16 %v1013, %v1012
        %v1040 = vpack.c.b16 %v1015, %v1014
        %v1041 = vpack.c.b16 %v1017, %v1016
        %v1042 = vpack.c.b16 %v1019, %v1018
        %v1043 = vpack.c.b16 %v1021, %v1020
        %v1044 = vpack.c.b16 %v1023, %v1022
        %v1045 = vpack.c.b16 %v1025, %v1024
        %v1046 = vpack.c.b16 %v1027, %v1026
        %v1047 = vpack.c.b16 %v1029, %v1028
        %v1048 = vpack.c.b16 %v1031, %v1030
        %v1049 = vpack.c.b16 %v1033, %v1032
        %v1054 = vunpack.c.l.b16 %v289
        %v1055 = vunpack.c.l.b16 %v290
        %v1056 = vunpack.c.l.b16 %v291
        %v1057 = vunpack.c.l.b16 %v292
        %v1058 = vpack.c.b16 %v1055, %v1054
        %v1059 = vpack.c.b16 %v1057, %v1056
        %v1063 = vsel %vm760, %v1034, 0
        %v1066 = vsel %vm760, %v1035, 0
        %v1069 = vsel %vm760, %v1036, 0
        %v1072 = vsel %vm760, %v1037, 0
        %v1075 = vsel %vm760, %v1038, 0
        %v1078 = vsel %vm760, %v1039, 0
        %v1081 = vsel %vm760, %v1040, 0
        %v1084 = vsel %vm760, %v1041, 0
        %v1087 = vsel %vm760, %v1042, 0
        %v1090 = vsel %vm760, %v1043, 0
        %v1093 = vsel %vm760, %v1044, 0
        %v1096 = vsel %vm760, %v1045, 0
        %v1099 = vsel %vm760, %v1046, 0
        %v1102 = vsel %vm760, %v1047, 0
        %v1105 = vsel %vm760, %v1048, 0
        %v1108 = vsel %vm760, %v1049, 0
        %1110 = vmatprep.subr.bf16.mxu0 0
        %1111 = vmatpush1.bf16.msra.mxu0 %v1058
        %1112 = vmatprep.subr.bf16.mxu0 0
        %1113 = vmatpush1.bf16.msra.mxu0 %v1059
        %1114 = vmatprep.subr.bf16.mxu0 0
        %1115 = vmatpush1.bf16.msra.mxu0 0
        %1116 = vmatprep.subr.bf16.mxu0 0
        %1117 = vmatpush1.bf16.msra.mxu0 0
        %1118 = vmatprep.subr.bf16.mxu0 0
        %1119 = vmatpush1.bf16.msra.mxu0 0
        %1120 = vmatprep.subr.bf16.mxu0 0
        %1121 = vmatpush1.bf16.msra.mxu0 0
        %1122 = vmatprep.subr.bf16.mxu0 0
        %1123 = vmatpush1.bf16.msra.mxu0 0
        %1124 = vmatprep.subr.bf16.mxu0 0
        %1125 = vmatpush1.bf16.msra.mxu0 0
        %1126 = vmatprep.subr.bf16.mxu0 0
        %1127 = vmatpush1.bf16.msra.mxu0 0
        %1128 = vmatprep.subr.bf16.mxu0 0
        %1129 = vmatpush1.bf16.msra.mxu0 0
        %1130 = vmatprep.subr.bf16.mxu0 0
        %1131 = vmatpush1.bf16.msra.mxu0 0
        %1132 = vmatprep.subr.bf16.mxu0 0
        %1133 = vmatpush1.bf16.msra.mxu0 0
        %1134 = vmatprep.subr.bf16.mxu0 0
        %1135 = vmatpush1.bf16.msra.mxu0 0
        %1136 = vmatprep.subr.bf16.mxu0 0
        %1137 = vmatpush1.bf16.msra.mxu0 0
        %1138 = vmatprep.subr.bf16.mxu0 0
        %1139 = vmatpush1.bf16.msra.mxu0 0
        %1140 = vmatprep.subr.bf16.mxu0 0
        %1141 = vmatpush1.bf16.msra.mxu0 0
        %1142 = vmatprep.mubr.bf16.mxu0 0
        %1143 = vmatmul.mubr.bf16.gmra.mrb[0].mxu0 %v1063
        %v1144 = vpop.f32.mrb[0].mxu0
        %v1145 = vadd.f32 %v844, %v1144
        %v1146 = vpop.f32.mrb[0].mxu0
        %v1147 = vpop.f32.mrb[0].mxu0
        %v1148 = vadd.f32 %v847, %v1147
        %v1149 = vpop.f32.mrb[0].mxu0
        %1150 = vmatprep.mubr.bf16.mxu0 0
        %1151 = vmatmul.mubr.bf16.gmra.mrb[0].mxu0 %v1066
        %v1152 = vpop.f32.mrb[0].mxu0
        %v1153 = vadd.f32 %v852, %v1152
        %v1154 = vpop.f32.mrb[0].mxu0
        %v1155 = vpop.f32.mrb[0].mxu0
        %v1156 = vadd.f32 %v855, %v1155
        %v1157 = vpop.f32.mrb[0].mxu0
        %1158 = vmatprep.mubr.bf16.mxu0 0
        %1159 = vmatmul.mubr.bf16.gmra.mrb[0].mxu0 %v1069
        %v1160 = vpop.f32.mrb[0].mxu0
        %v1161 = vadd.f32 %v860, %v1160
        %v1162 = vpop.f32.mrb[0].mxu0
        %v1163 = vpop.f32.mrb[0].mxu0
        %v1164 = vadd.f32 %v863, %v1163
        %v1165 = vpop.f32.mrb[0].mxu0
        %1166 = vmatprep.mubr.bf16.mxu0 0
        %1167 = vmatmul.mubr.bf16.gmra.mrb[0].mxu0 %v1072
        %v1168 = vpop.f32.mrb[0].mxu0
        %v1169 = vadd.f32 %v868, %v1168
        %v1170 = vpop.f32.mrb[0].mxu0
        %v1171 = vpop.f32.mrb[0].mxu0
        %v1172 = vadd.f32 %v871, %v1171
        %v1173 = vpop.f32.mrb[0].mxu0
        %1174 = vmatprep.mubr.bf16.mxu0 0
        %1175 = vmatmul.mubr.bf16.gmra.mrb[0].mxu0 %v1075
        %v1176 = vpop.f32.mrb[0].mxu0
        %v1177 = vadd.f32 %v876, %v1176
        %v1178 = vpop.f32.mrb[0].mxu0
        %v1179 = vpop.f32.mrb[0].mxu0
        %v1180 = vadd.f32 %v879, %v1179
        %v1181 = vpop.f32.mrb[0].mxu0
        %1182 = vmatprep.mubr.bf16.mxu0 0
        %1183 = vmatmul.mubr.bf16.gmra.mrb[0].mxu0 %v1078
        %v1184 = vpop.f32.mrb[0].mxu0
        %v1185 = vadd.f32 %v884, %v1184
        %v1186 = vpop.f32.mrb[0].mxu0
        %v1187 = vpop.f32.mrb[0].mxu0
        %v1188 = vadd.f32 %v887, %v1187
        %v1189 = vpop.f32.mrb[0].mxu0
        %1190 = vmatprep.mubr.bf16.mxu0 0
        %1191 = vmatmul.mubr.bf16.gmra.mrb[0].mxu0 %v1081
        %v1192 = vpop.f32.mrb[0].mxu0
        %v1193 = vadd.f32 %v892, %v1192
        %v1194 = vpop.f32.mrb[0].mxu0
        %v1195 = vpop.f32.mrb[0].mxu0
        %v1196 = vadd.f32 %v895, %v1195
        %v1197 = vpop.f32.mrb[0].mxu0
        %1198 = vmatprep.mubr.bf16.mxu0 0
        %1199 = vmatmul.mubr.bf16.gmra.mrb[0].mxu0 %v1084
        %v1200 = vpop.f32.mrb[0].mxu0
        %v1201 = vadd.f32 %v900, %v1200
        %v1202 = vpop.f32.mrb[0].mxu0
        %v1203 = vpop.f32.mrb[0].mxu0
        %v1204 = vadd.f32 %v903, %v1203
        %v1205 = vpop.f32.mrb[0].mxu0
        %1206 = vmatprep.mubr.bf16.mxu0 0
        %1207 = vmatmul.mubr.bf16.gmra.mrb[0].mxu0 %v1087
        %v1208 = vpop.f32.mrb[0].mxu0
        %v1209 = vadd.f32 %v908, %v1208
        %v1210 = vpop.f32.mrb[0].mxu0
        %v1211 = vpop.f32.mrb[0].mxu0
        %v1212 = vadd.f32 %v911, %v1211
        %v1213 = vpop.f32.mrb[0].mxu0
        %1214 = vmatprep.mubr.bf16.mxu0 0
        %1215 = vmatmul.mubr.bf16.gmra.mrb[0].mxu0 %v1090
        %v1216 = vpop.f32.mrb[0].mxu0
        %v1217 = vadd.f32 %v916, %v1216
        %v1218 = vpop.f32.mrb[0].mxu0
        %v1219 = vpop.f32.mrb[0].mxu0
        %v1220 = vadd.f32 %v919, %v1219
        %v1221 = vpop.f32.mrb[0].mxu0
        %1222 = vmatprep.mubr.bf16.mxu0 0
        %1223 = vmatmul.mubr.bf16.gmra.mrb[0].mxu0 %v1093
        %v1224 = vpop.f32.mrb[0].mxu0
        %v1225 = vadd.f32 %v924, %v1224
        %v1226 = vpop.f32.mrb[0].mxu0
        %v1227 = vpop.f32.mrb[0].mxu0
        %v1228 = vadd.f32 %v927, %v1227
        %v1229 = vpop.f32.mrb[0].mxu0
        %1230 = vmatprep.mubr.bf16.mxu0 0
        %1231 = vmatmul.mubr.bf16.gmra.mrb[0].mxu0 %v1096
        %v1232 = vpop.f32.mrb[0].mxu0
        %v1233 = vadd.f32 %v932, %v1232
        %v1234 = vpop.f32.mrb[0].mxu0
        %v1235 = vpop.f32.mrb[0].mxu0
        %v1236 = vadd.f32 %v935, %v1235
        %v1237 = vpop.f32.mrb[0].mxu0
        %1238 = vmatprep.mubr.bf16.mxu0 0
        %1239 = vmatmul.mubr.bf16.gmra.mrb[0].mxu0 %v1099
        %v1240 = vpop.f32.mrb[0].mxu0
        %v1241 = vadd.f32 %v940, %v1240
        %v1242 = vpop.f32.mrb[0].mxu0
        %v1243 = vpop.f32.mrb[0].mxu0
        %v1244 = vadd.f32 %v943, %v1243
        %v1245 = vpop.f32.mrb[0].mxu0
        %1246 = vmatprep.mubr.bf16.mxu0 0
        %1247 = vmatmul.mubr.bf16.gmra.mrb[0].mxu0 %v1102
        %v1248 = vpop.f32.mrb[0].mxu0
        %v1249 = vadd.f32 %v948, %v1248
        %v1250 = vpop.f32.mrb[0].mxu0
        %v1251 = vpop.f32.mrb[0].mxu0
        %v1252 = vadd.f32 %v951, %v1251
        %v1253 = vpop.f32.mrb[0].mxu0
        %1254 = vmatprep.mubr.bf16.mxu0 0
        %1255 = vmatmul.mubr.bf16.gmra.mrb[0].mxu0 %v1105
        %v1256 = vpop.f32.mrb[0].mxu0
        %v1257 = vadd.f32 %v956, %v1256
        %v1258 = vpop.f32.mrb[0].mxu0
        %v1259 = vpop.f32.mrb[0].mxu0
        %v1260 = vadd.f32 %v959, %v1259
        %v1261 = vpop.f32.mrb[0].mxu0
        %1262 = vmatprep.mubr.bf16.mxu0 0
        %1263 = vmatmul.mubr.bf16.gmra.mrb[0].mxu0 %v1108
        %v1264 = vpop.f32.mrb[0].mxu0
        %v1265 = vadd.f32 %v964, %v1264
        %v1266 = vpop.f32.mrb[0].mxu0
        %v1267 = vpop.f32.mrb[0].mxu0
        %v1268 = vadd.f32 %v967, %v1267
        %v1269 = vpop.f32.mrb[0].mxu0
        %1270 = vdwg.mxu0
        %s1271 = scalar_lea.vmem %s239, 12
        %v1272 = vld [vmem:[%s1271] sm:$0xf]
        %v1273 = vld [vmem:[%s1271 + $0x4] sm:$0xf]
        %v1274 = vld [vmem:[%s1271 + $0xc] sm:$0xf]
        %v1275 = vld [vmem:[%s1271 + $0x10] sm:$0xf]
        %v1276 = vld [vmem:[%s1271 + $0x18] sm:$0xf]
        %v1277 = vld [vmem:[%s1271 + $0x1c] sm:$0xf]
        %v1278 = vld [vmem:[%s1271 + $0x24] sm:$0xf]
        %v1279 = vld [vmem:[%s1271 + $0x28] sm:$0xf]
        %v1280 = vld [vmem:[%s1271 + $0x30] sm:$0xf]
        %v1281 = vld [vmem:[%s1271 + $0x34] sm:$0xf]
        %v1282 = vld [vmem:[%s1271 + $0x3c] sm:$0xf]
        %v1283 = vld [vmem:[%s1271 + $0x40] sm:$0xf]
        %v1284 = vld [vmem:[%s1271 + $0x48] sm:$0xf]
        %v1285 = vld [vmem:[%s1271 + $0x4c] sm:$0xf]
        %v1286 = vld [vmem:[%s1271 + $0x54] sm:$0xf]
        %v1287 = vld [vmem:[%s1271 + $0x58] sm:$0xf]
        %v1288 = vld [vmem:[%s1271 + $0x60] sm:$0xf]
        %v1289 = vld [vmem:[%s1271 + $0x64] sm:$0xf]
        %v1290 = vld [vmem:[%s1271 + $0x6c] sm:$0xf]
        %v1291 = vld [vmem:[%s1271 + $0x70] sm:$0xf]
        %v1292 = vld [vmem:[%s1271 + $0x78] sm:$0xf]
        %v1293 = vld [vmem:[%s1271 + $0x7c] sm:$0xf]
        %v1294 = vld [vmem:[%s1271 + $0x84] sm:$0xf]
        %v1295 = vld [vmem:[%s1271 + $0x88] sm:$0xf]
        %v1296 = vld [vmem:[%s1271 + $0x90] sm:$0xf]
        %v1297 = vld [vmem:[%s1271 + $0x94] sm:$0xf]
        %v1298 = vld [vmem:[%s1271 + $0x9c] sm:$0xf]
        %v1299 = vld [vmem:[%s1271 + $0xa0] sm:$0xf]
        %v1300 = vld [vmem:[%s1271 + $0xa8] sm:$0xf]
        %v1301 = vld [vmem:[%s1271 + $0xac] sm:$0xf]
        %v1302 = vld [vmem:[%s1271 + $0xb4] sm:$0xf]
        %v1303 = vld [vmem:[%s1271 + $0xb8] sm:$0xf]
        %v1304 = vld [vmem:[%s243 + $0x20] sm:$0xf]
        %v1305 = vld [vmem:[%s243 + $0x24] sm:$0xf]
        %v1306 = vld [vmem:[%s243 + $0x28] sm:$0xf]
        %v1307 = vld [vmem:[%s243 + $0x2c] sm:$0xf]
        %v1340 = vunpack.c.l.b16 %v1272
        %v1341 = vunpack.c.l.b16 %v1273
        %v1342 = vunpack.c.l.b16 %v1274
        %v1343 = vunpack.c.l.b16 %v1275
        %v1344 = vunpack.c.l.b16 %v1276
        %v1345 = vunpack.c.l.b16 %v1277
        %v1346 = vunpack.c.l.b16 %v1278
        %v1347 = vunpack.c.l.b16 %v1279
        %v1348 = vunpack.c.l.b16 %v1280
        %v1349 = vunpack.c.l.b16 %v1281
        %v1350 = vunpack.c.l.b16 %v1282
        %v1351 = vunpack.c.l.b16 %v1283
        %v1352 = vunpack.c.l.b16 %v1284
        %v1353 = vunpack.c.l.b16 %v1285
        %v1354 = vunpack.c.l.b16 %v1286
        %v1355 = vunpack.c.l.b16 %v1287
        %v1356 = vunpack.c.l.b16 %v1288
        %v1357 = vunpack.c.l.b16 %v1289
        %v1358 = vunpack.c.l.b16 %v1290
        %v1359 = vunpack.c.l.b16 %v1291
        %v1360 = vunpack.c.l.b16 %v1292
        %v1361 = vunpack.c.l.b16 %v1293
        %v1362 = vunpack.c.l.b16 %v1294
        %v1363 = vunpack.c.l.b16 %v1295
        %v1364 = vunpack.c.l.b16 %v1296
        %v1365 = vunpack.c.l.b16 %v1297
        %v1366 = vunpack.c.l.b16 %v1298
        %v1367 = vunpack.c.l.b16 %v1299
        %v1368 = vunpack.c.l.b16 %v1300
        %v1369 = vunpack.c.l.b16 %v1301
        %v1370 = vunpack.c.l.b16 %v1302
        %v1371 = vunpack.c.l.b16 %v1303
        %v1372 = vpack.c.b16 %v1341, %v1340
        %v1373 = vpack.c.b16 %v1343, %v1342
        %v1374 = vpack.c.b16 %v1345, %v1344
        %v1375 = vpack.c.b16 %v1347, %v1346
        %v1376 = vpack.c.b16 %v1349, %v1348
        %v1377 = vpack.c.b16 %v1351, %v1350
        %v1378 = vpack.c.b16 %v1353, %v1352
        %v1379 = vpack.c.b16 %v1355, %v1354
        %v1380 = vpack.c.b16 %v1357, %v1356
        %v1381 = vpack.c.b16 %v1359, %v1358
        %v1382 = vpack.c.b16 %v1361, %v1360
        %v1383 = vpack.c.b16 %v1363, %v1362
        %v1384 = vpack.c.b16 %v1365, %v1364
        %v1385 = vpack.c.b16 %v1367, %v1366
        %v1386 = vpack.c.b16 %v1369, %v1368
        %v1387 = vpack.c.b16 %v1371, %v1370
        %v1392 = vunpack.c.l.b16 %v1304
        %v1393 = vunpack.c.l.b16 %v1305
        %v1394 = vunpack.c.l.b16 %v1306
        %v1395 = vunpack.c.l.b16 %v1307
        %v1396 = vpack.c.b16 %v1393, %v1392
        %v1397 = vpack.c.b16 %v1395, %v1394
        %v1401 = vsel %vm760, %v1372, 0
        %v1404 = vsel %vm760, %v1373, 0
        %v1407 = vsel %vm760, %v1374, 0
        %v1410 = vsel %vm760, %v1375, 0
        %v1413 = vsel %vm760, %v1376, 0
        %v1416 = vsel %vm760, %v1377, 0
        %v1419 = vsel %vm760, %v1378, 0
        %v1422 = vsel %vm760, %v1379, 0
        %v1425 = vsel %vm760, %v1380, 0
        %v1428 = vsel %vm760, %v1381, 0
        %v1431 = vsel %vm760, %v1382, 0
        %v1434 = vsel %vm760, %v1383, 0
        %v1437 = vsel %vm760, %v1384, 0
        %v1440 = vsel %vm760, %v1385, 0
        %v1443 = vsel %vm760, %v1386, 0
        %v1446 = vsel %vm760, %v1387, 0
        %1448 = vmatprep.subr.bf16.mxu0 0
        %1449 = vmatpush1.bf16.msra.mxu0 %v1396
        %1450 = vmatprep.subr.bf16.mxu0 0
        %1451 = vmatpush1.bf16.msra.mxu0 %v1397
        %1452 = vmatprep.subr.bf16.mxu0 0
        %1453 = vmatpush1.bf16.msra.mxu0 0
        %1454 = vmatprep.subr.bf16.mxu0 0
        %1455 = vmatpush1.bf16.msra.mxu0 0
        %1456 = vmatprep.subr.bf16.mxu0 0
        %1457 = vmatpush1.bf16.msra.mxu0 0
        %1458 = vmatprep.subr.bf16.mxu0 0
        %1459 = vmatpush1.bf16.msra.mxu0 0
        %1460 = vmatprep.subr.bf16.mxu0 0
        %1461 = vmatpush1.bf16.msra.mxu0 0
        %1462 = vmatprep.subr.bf16.mxu0 0
        %1463 = vmatpush1.bf16.msra.mxu0 0
        %1464 = vmatprep.subr.bf16.mxu0 0
        %1465 = vmatpush1.bf16.msra.mxu0 0
        %1466 = vmatprep.subr.bf16.mxu0 0
        %1467 = vmatpush1.bf16.msra.mxu0 0
        %1468 = vmatprep.subr.bf16.mxu0 0
        %1469 = vmatpush1.bf16.msra.mxu0 0
        %1470 = vmatprep.subr.bf16.mxu0 0
        %1471 = vmatpush1.bf16.msra.mxu0 0
        %1472 = vmatprep.subr.bf16.mxu0 0
        %1473 = vmatpush1.bf16.msra.mxu0 0
        %1474 = vmatprep.subr.bf16.mxu0 0
        %1475 = vmatpush1.bf16.msra.mxu0 0
        %1476 = vmatprep.subr.bf16.mxu0 0
        %1477 = vmatpush1.bf16.msra.mxu0 0
        %1478 = vmatprep.subr.bf16.mxu0 0
        %1479 = vmatpush1.bf16.msra.mxu0 0
        %1480 = vmatprep.mubr.bf16.mxu0 0
        %1481 = vmatmul.mubr.bf16.gmra.mrb[0].mxu0 %v1401
        %v1482 = vpop.f32.mrb[0].mxu0
        %v1483 = vadd.f32 0.0, %v1482
        %v1484 = vpop.f32.mrb[0].mxu0
        %v1485 = vpop.f32.mrb[0].mxu0
        %v1486 = vadd.f32 0.0, %v1485
        %v1487 = vpop.f32.mrb[0].mxu0
        %1488 = vmatprep.mubr.bf16.mxu0 0
        %1489 = vmatmul.mubr.bf16.gmra.mrb[0].mxu0 %v1404
        %v1490 = vpop.f32.mrb[0].mxu0
        %v1491 = vadd.f32 0.0, %v1490
        %v1492 = vpop.f32.mrb[0].mxu0
        %v1493 = vpop.f32.mrb[0].mxu0
        %v1494 = vadd.f32 0.0, %v1493
        %v1495 = vpop.f32.mrb[0].mxu0
        %1496 = vmatprep.mubr.bf16.mxu0 0
        %1497 = vmatmul.mubr.bf16.gmra.mrb[0].mxu0 %v1407
        %v1498 = vpop.f32.mrb[0].mxu0
        %v1499 = vadd.f32 0.0, %v1498
        %v1500 = vpop.f32.mrb[0].mxu0
        %v1501 = vpop.f32.mrb[0].mxu0
        %v1502 = vadd.f32 0.0, %v1501
        %v1503 = vpop.f32.mrb[0].mxu0
        %1504 = vmatprep.mubr.bf16.mxu0 0
        %1505 = vmatmul.mubr.bf16.gmra.mrb[0].mxu0 %v1410
        %v1506 = vpop.f32.mrb[0].mxu0
        %v1507 = vadd.f32 0.0, %v1506
        %v1508 = vpop.f32.mrb[0].mxu0
        %v1509 = vpop.f32.mrb[0].mxu0
        %v1510 = vadd.f32 0.0, %v1509
        %v1511 = vpop.f32.mrb[0].mxu0
        %1512 = vmatprep.mubr.bf16.mxu0 0
        %1513 = vmatmul.mubr.bf16.gmra.mrb[0].mxu0 %v1413
        %v1514 = vpop.f32.mrb[0].mxu0
        %v1515 = vadd.f32 0.0, %v1514
        %v1516 = vpop.f32.mrb[0].mxu0
        %v1517 = vpop.f32.mrb[0].mxu0
        %v1518 = vadd.f32 0.0, %v1517
        %v1519 = vpop.f32.mrb[0].mxu0
        %1520 = vmatprep.mubr.bf16.mxu0 0
        %1521 = vmatmul.mubr.bf16.gmra.mrb[0].mxu0 %v1416
        %v1522 = vpop.f32.mrb[0].mxu0
        %v1523 = vadd.f32 0.0, %v1522
        %v1524 = vpop.f32.mrb[0].mxu0
        %v1525 = vpop.f32.mrb[0].mxu0
        %v1526 = vadd.f32 0.0, %v1525
        %v1527 = vpop.f32.mrb[0].mxu0
        %1528 = vmatprep.mubr.bf16.mxu0 0
        %1529 = vmatmul.mubr.bf16.gmra.mrb[0].mxu0 %v1419
        %v1530 = vpop.f32.mrb[0].mxu0
        %v1531 = vadd.f32 0.0, %v1530
        %v1532 = vpop.f32.mrb[0].mxu0
        %v1533 = vpop.f32.mrb[0].mxu0
        %v1534 = vadd.f32 0.0, %v1533
        %v1535 = vpop.f32.mrb[0].mxu0
        %1536 = vmatprep.mubr.bf16.mxu0 0
        %1537 = vmatmul.mubr.bf16.gmra.mrb[0].mxu0 %v1422
        %v1538 = vpop.f32.mrb[0].mxu0
        %v1539 = vadd.f32 0.0, %v1538
        %v1540 = vpop.f32.mrb[0].mxu0
        %v1541 = vpop.f32.mrb[0].mxu0
        %v1542 = vadd.f32 0.0, %v1541
        %v1543 = vpop.f32.mrb[0].mxu0
        %1544 = vmatprep.mubr.bf16.mxu0 0
        %1545 = vmatmul.mubr.bf16.gmra.mrb[0].mxu0 %v1425
        %v1546 = vpop.f32.mrb[0].mxu0
        %v1547 = vadd.f32 0.0, %v1546
        %v1548 = vpop.f32.mrb[0].mxu0
        %v1549 = vpop.f32.mrb[0].mxu0
        %v1550 = vadd.f32 0.0, %v1549
        %v1551 = vpop.f32.mrb[0].mxu0
        %1552 = vmatprep.mubr.bf16.mxu0 0
        %1553 = vmatmul.mubr.bf16.gmra.mrb[0].mxu0 %v1428
        %v1554 = vpop.f32.mrb[0].mxu0
        %v1555 = vadd.f32 0.0, %v1554
        %v1556 = vpop.f32.mrb[0].mxu0
        %v1557 = vpop.f32.mrb[0].mxu0
        %v1558 = vadd.f32 0.0, %v1557
        %v1559 = vpop.f32.mrb[0].mxu0
        %1560 = vmatprep.mubr.bf16.mxu0 0
        %1561 = vmatmul.mubr.bf16.gmra.mrb[0].mxu0 %v1431
        %v1562 = vpop.f32.mrb[0].mxu0
        %v1563 = vadd.f32 0.0, %v1562
        %v1564 = vpop.f32.mrb[0].mxu0
        %v1565 = vpop.f32.mrb[0].mxu0
        %v1566 = vadd.f32 0.0, %v1565
        %v1567 = vpop.f32.mrb[0].mxu0
        %1568 = vmatprep.mubr.bf16.mxu0 0
        %1569 = vmatmul.mubr.bf16.gmra.mrb[0].mxu0 %v1434
        %v1570 = vpop.f32.mrb[0].mxu0
        %v1571 = vadd.f32 0.0, %v1570
        %v1572 = vpop.f32.mrb[0].mxu0
        %v1573 = vpop.f32.mrb[0].mxu0
        %v1574 = vadd.f32 0.0, %v1573
        %v1575 = vpop.f32.mrb[0].mxu0
        %1576 = vmatprep.mubr.bf16.mxu0 0
        %1577 = vmatmul.mubr.bf16.gmra.mrb[0].mxu0 %v1437
        %v1578 = vpop.f32.mrb[0].mxu0
        %v1579 = vadd.f32 0.0, %v1578
        %v1580 = vpop.f32.mrb[0].mxu0
        %v1581 = vpop.f32.mrb[0].mxu0
        %v1582 = vadd.f32 0.0, %v1581
        %v1583 = vpop.f32.mrb[0].mxu0
        %1584 = vmatprep.mubr.bf16.mxu0 0
        %1585 = vmatmul.mubr.bf16.gmra.mrb[0].mxu0 %v1440
        %v1586 = vpop.f32.mrb[0].mxu0
        %v1587 = vadd.f32 0.0, %v1586
        %v1588 = vpop.f32.mrb[0].mxu0
        %v1589 = vpop.f32.mrb[0].mxu0
        %v1590 = vadd.f32 0.0, %v1589
        %v1591 = vpop.f32.mrb[0].mxu0
        %1592 = vmatprep.mubr.bf16.mxu0 0
        %1593 = vmatmul.mubr.bf16.gmra.mrb[0].mxu0 %v1443
        %v1594 = vpop.f32.mrb[0].mxu0
        %v1595 = vadd.f32 0.0, %v1594
        %v1596 = vpop.f32.mrb[0].mxu0
        %v1597 = vpop.f32.mrb[0].mxu0
        %v1598 = vadd.f32 0.0, %v1597
        %v1599 = vpop.f32.mrb[0].mxu0
        %1600 = vmatprep.mubr.bf16.mxu0 0
        %1601 = vmatmul.mubr.bf16.gmra.mrb[0].mxu0 %v1446
        %v1602 = vpop.f32.mrb[0].mxu0
        %v1603 = vadd.f32 0.0, %v1602
        %v1604 = vpop.f32.mrb[0].mxu0
        %v1605 = vpop.f32.mrb[0].mxu0
        %v1606 = vadd.f32 0.0, %v1605
        %v1607 = vpop.f32.mrb[0].mxu0
        %1608 = vdwg.mxu0
        %v1609 = vadd.f32 %v1145, %v1483
        %v1610 = vadd.f32 %v1148, %v1486
        %v1611 = vadd.f32 %v1153, %v1491
        %v1612 = vadd.f32 %v1156, %v1494
        %v1613 = vadd.f32 %v1161, %v1499
        %v1614 = vadd.f32 %v1164, %v1502
        %v1615 = vadd.f32 %v1169, %v1507
        %v1616 = vadd.f32 %v1172, %v1510
        %v1617 = vadd.f32 %v1177, %v1515
        %v1618 = vadd.f32 %v1180, %v1518
        %v1619 = vadd.f32 %v1185, %v1523
        %v1620 = vadd.f32 %v1188, %v1526
        %v1621 = vadd.f32 %v1193, %v1531
        %v1622 = vadd.f32 %v1196, %v1534
        %v1623 = vadd.f32 %v1201, %v1539
        %v1624 = vadd.f32 %v1204, %v1542
        %v1625 = vadd.f32 %v1209, %v1547
        %v1626 = vadd.f32 %v1212, %v1550
        %v1627 = vadd.f32 %v1217, %v1555
        %v1628 = vadd.f32 %v1220, %v1558
        %v1629 = vadd.f32 %v1225, %v1563
        %v1630 = vadd.f32 %v1228, %v1566
        %v1631 = vadd.f32 %v1233, %v1571
        %v1632 = vadd.f32 %v1236, %v1574
        %v1633 = vadd.f32 %v1241, %v1579
        %v1634 = vadd.f32 %v1244, %v1582
        %v1635 = vadd.f32 %v1249, %v1587
        %v1636 = vadd.f32 %v1252, %v1590
        %v1637 = vadd.f32 %v1257, %v1595
        %v1638 = vadd.f32 %v1260, %v1598
        %v1639 = vadd.f32 %v1265, %v1603
        %v1640 = vadd.f32 %v1268, %v1606
        %v1641 = vld [vmem:[%s1271] sm:$0xf]
        %v1642 = vld [vmem:[%s1271 + $0x4] sm:$0xf]
        %v1643 = vld [vmem:[%s1271 + $0x8] sm:$0x1]
        %v1644 = vld [vmem:[%s1271 + $0xc] sm:$0xf]
        %v1645 = vld [vmem:[%s1271 + $0x10] sm:$0xf]
        %v1646 = vld [vmem:[%s1271 + $0x14] sm:$0x1]
        %v1647 = vld [vmem:[%s1271 + $0x18] sm:$0xf]
        %v1648 = vld [vmem:[%s1271 + $0x1c] sm:$0xf]
        %v1649 = vld [vmem:[%s1271 + $0x20] sm:$0x1]
        %v1650 = vld [vmem:[%s1271 + $0x24] sm:$0xf]
        %v1651 = vld [vmem:[%s1271 + $0x28] sm:$0xf]
        %v1652 = vld [vmem:[%s1271 + $0x2c] sm:$0x1]
        %v1653 = vld [vmem:[%s1271 + $0x30] sm:$0xf]
        %v1654 = vld [vmem:[%s1271 + $0x34] sm:$0xf]
        %v1655 = vld [vmem:[%s1271 + $0x38] sm:$0x1]
        %v1656 = vld [vmem:[%s1271 + $0x3c] sm:$0xf]
        %v1657 = vld [vmem:[%s1271 + $0x40] sm:$0xf]
        %v1658 = vld [vmem:[%s1271 + $0x44] sm:$0x1]
        %v1659 = vld [vmem:[%s1271 + $0x48] sm:$0xf]
        %v1660 = vld [vmem:[%s1271 + $0x4c] sm:$0xf]
        %v1661 = vld [vmem:[%s1271 + $0x50] sm:$0x1]
        %v1662 = vld [vmem:[%s1271 + $0x54] sm:$0xf]
        %v1663 = vld [vmem:[%s1271 + $0x58] sm:$0xf]
        %v1664 = vld [vmem:[%s1271 + $0x5c] sm:$0x1]
        %v1665 = vld [vmem:[%s1271 + $0x60] sm:$0xf]
        %v1666 = vld [vmem:[%s1271 + $0x64] sm:$0xf]
        %v1667 = vld [vmem:[%s1271 + $0x68] sm:$0x1]
        %v1668 = vld [vmem:[%s1271 + $0x6c] sm:$0xf]
        %v1669 = vld [vmem:[%s1271 + $0x70] sm:$0xf]
        %v1670 = vld [vmem:[%s1271 + $0x74] sm:$0x1]
        %v1671 = vld [vmem:[%s1271 + $0x78] sm:$0xf]
        %v1672 = vld [vmem:[%s1271 + $0x7c] sm:$0xf]
        %v1673 = vld [vmem:[%s1271 + $0x80] sm:$0x1]
        %v1674 = vld [vmem:[%s1271 + $0x84] sm:$0xf]
        %v1675 = vld [vmem:[%s1271 + $0x88] sm:$0xf]
        %v1676 = vld [vmem:[%s1271 + $0x8c] sm:$0x1]
        %v1677 = vld [vmem:[%s1271 + $0x90] sm:$0xf]
        %v1678 = vld [vmem:[%s1271 + $0x94] sm:$0xf]
        %v1679 = vld [vmem:[%s1271 + $0x98] sm:$0x1]
        %v1680 = vld [vmem:[%s1271 + $0x9c] sm:$0xf]
        %v1681 = vld [vmem:[%s1271 + $0xa0] sm:$0xf]
        %v1682 = vld [vmem:[%s1271 + $0xa4] sm:$0x1]
        %v1683 = vld [vmem:[%s1271 + $0xa8] sm:$0xf]
        %v1684 = vld [vmem:[%s1271 + $0xac] sm:$0xf]
        %v1685 = vld [vmem:[%s1271 + $0xb0] sm:$0x1]
        %v1686 = vld [vmem:[%s1271 + $0xb4] sm:$0xf]
        %v1687 = vld [vmem:[%s1271 + $0xb8] sm:$0xf]
        %v1688 = vld [vmem:[%s1271 + $0xbc] sm:$0x1]
        %v1689 = vld [vmem:[%s243 + $0x30] sm:$0xf]
        %v1690 = vld [vmem:[%s243 + $0x34] sm:$0xf]
        %v1691 = vld [vmem:[%s243 + $0x38] sm:$0xf]
        %v1692 = vld [vmem:[%s243 + $0x3c] sm:$0xf]
        %v1694 = vshrl.u32 %v1641, 16
        %v1696 = vrot.slane %v1694, 4
        %v1697 = vshll.u32 %v1641, 16
        %v1699 = vrot.slane %v1697, 5
        %v1700 = vor.u32 %v1696, %v1699
        %v1701 = vrot.slane %v1700, 4
        %v1703 = vshll.u32 %v1642, 16
        %v1705 = vrot.slane %v1703, 5
        %v1706 = vsel %vm315, %v1701, %v1705
        %v1707 = vshrl.u32 %v1642, 16
        %v1709 = vrot.slane %v1707, 4
        %v1710 = vor.u32 %v1709, %v1705
        %v1711 = vrot.slane %v1710, 4
        %v1713 = vshll.u32 %v1643, 16
        %v1715 = vrot.slane %v1713, 5
        %v1716 = vsel %vm315, %v1711, %v1715
        %v1718 = vshrl.u32 %v1644, 16
        %v1720 = vrot.slane %v1718, 4
        %v1721 = vshll.u32 %v1644, 16
        %v1723 = vrot.slane %v1721, 5
        %v1724 = vor.u32 %v1720, %v1723
        %v1725 = vrot.slane %v1724, 4
        %v1727 = vshll.u32 %v1645, 16
        %v1729 = vrot.slane %v1727, 5
        %v1730 = vsel %vm315, %v1725, %v1729
        %v1731 = vshrl.u32 %v1645, 16
        %v1733 = vrot.slane %v1731, 4
        %v1734 = vor.u32 %v1733, %v1729
        %v1735 = vrot.slane %v1734, 4
        %v1737 = vshll.u32 %v1646, 16
        %v1739 = vrot.slane %v1737, 5
        %v1740 = vsel %vm315, %v1735, %v1739
        %v1742 = vshrl.u32 %v1647, 16
        %v1744 = vrot.slane %v1742, 4
        %v1745 = vshll.u32 %v1647, 16
        %v1747 = vrot.slane %v1745, 5
        %v1748 = vor.u32 %v1744, %v1747
        %v1749 = vrot.slane %v1748, 4
        %v1751 = vshll.u32 %v1648, 16
        %v1753 = vrot.slane %v1751, 5
        %v1754 = vsel %vm315, %v1749, %v1753
        %v1755 = vshrl.u32 %v1648, 16
        %v1757 = vrot.slane %v1755, 4
        %v1758 = vor.u32 %v1757, %v1753
        %v1759 = vrot.slane %v1758, 4
        %v1761 = vshll.u32 %v1649, 16
        %v1763 = vrot.slane %v1761, 5
        %v1764 = vsel %vm315, %v1759, %v1763
        %v1766 = vshrl.u32 %v1650, 16
        %v1768 = vrot.slane %v1766, 4
        %v1769 = vshll.u32 %v1650, 16
        %v1771 = vrot.slane %v1769, 5
        %v1772 = vor.u32 %v1768, %v1771
        %v1773 = vrot.slane %v1772, 4
        %v1775 = vshll.u32 %v1651, 16
        %v1777 = vrot.slane %v1775, 5
        %v1778 = vsel %vm315, %v1773, %v1777
        %v1779 = vshrl.u32 %v1651, 16
        %v1781 = vrot.slane %v1779, 4
        %v1782 = vor.u32 %v1781, %v1777
        %v1783 = vrot.slane %v1782, 4
        %v1785 = vshll.u32 %v1652, 16
        %v1787 = vrot.slane %v1785, 5
        %v1788 = vsel %vm315, %v1783, %v1787
        %v1790 = vshrl.u32 %v1653, 16
        %v1792 = vrot.slane %v1790, 4
        %v1793 = vshll.u32 %v1653, 16
        %v1795 = vrot.slane %v1793, 5
        %v1796 = vor.u32 %v1792, %v1795
        %v1797 = vrot.slane %v1796, 4
        %v1799 = vshll.u32 %v1654, 16
        %v1801 = vrot.slane %v1799, 5
        %v1802 = vsel %vm315, %v1797, %v1801
        %v1803 = vshrl.u32 %v1654, 16
        %v1805 = vrot.slane %v1803, 4
        %v1806 = vor.u32 %v1805, %v1801
        %v1807 = vrot.slane %v1806, 4
        %v1809 = vshll.u32 %v1655, 16
        %v1811 = vrot.slane %v1809, 5
        %v1812 = vsel %vm315, %v1807, %v1811
        %v1814 = vshrl.u32 %v1656, 16
        %v1816 = vrot.slane %v1814, 4
        %v1817 = vshll.u32 %v1656, 16
        %v1819 = vrot.slane %v1817, 5
        %v1820 = vor.u32 %v1816, %v1819
        %v1821 = vrot.slane %v1820, 4
        %v1823 = vshll.u32 %v1657, 16
        %v1825 = vrot.slane %v1823, 5
        %v1826 = vsel %vm315, %v1821, %v1825
        %v1827 = vshrl.u32 %v1657, 16
        %v1829 = vrot.slane %v1827, 4
        %v1830 = vor.u32 %v1829, %v1825
        %v1831 = vrot.slane %v1830, 4
        %v1833 = vshll.u32 %v1658, 16
        %v1835 = vrot.slane %v1833, 5
        %v1836 = vsel %vm315, %v1831, %v1835
        %v1838 = vshrl.u32 %v1659, 16
        %v1840 = vrot.slane %v1838, 4
        %v1841 = vshll.u32 %v1659, 16
        %v1843 = vrot.slane %v1841, 5
        %v1844 = vor.u32 %v1840, %v1843
        %v1845 = vrot.slane %v1844, 4
        %v1847 = vshll.u32 %v1660, 16
        %v1849 = vrot.slane %v1847, 5
        %v1850 = vsel %vm315, %v1845, %v1849
        %v1851 = vshrl.u32 %v1660, 16
        %v1853 = vrot.slane %v1851, 4
        %v1854 = vor.u32 %v1853, %v1849
        %v1855 = vrot.slane %v1854, 4
        %v1857 = vshll.u32 %v1661, 16
        %v1859 = vrot.slane %v1857, 5
        %v1860 = vsel %vm315, %v1855, %v1859
        %v1862 = vshrl.u32 %v1662, 16
        %v1864 = vrot.slane %v1862, 4
        %v1865 = vshll.u32 %v1662, 16
        %v1867 = vrot.slane %v1865, 5
        %v1868 = vor.u32 %v1864, %v1867
        %v1869 = vrot.slane %v1868, 4
        %v1871 = vshll.u32 %v1663, 16
        %v1873 = vrot.slane %v1871, 5
        %v1874 = vsel %vm315, %v1869, %v1873
        %v1875 = vshrl.u32 %v1663, 16
        %v1877 = vrot.slane %v1875, 4
        %v1878 = vor.u32 %v1877, %v1873
        %v1879 = vrot.slane %v1878, 4
        %v1881 = vshll.u32 %v1664, 16
        %v1883 = vrot.slane %v1881, 5
        %v1884 = vsel %vm315, %v1879, %v1883
        %v1886 = vshrl.u32 %v1665, 16
        %v1888 = vrot.slane %v1886, 4
        %v1889 = vshll.u32 %v1665, 16
        %v1891 = vrot.slane %v1889, 5
        %v1892 = vor.u32 %v1888, %v1891
        %v1893 = vrot.slane %v1892, 4
        %v1895 = vshll.u32 %v1666, 16
        %v1897 = vrot.slane %v1895, 5
        %v1898 = vsel %vm315, %v1893, %v1897
        %v1899 = vshrl.u32 %v1666, 16
        %v1901 = vrot.slane %v1899, 4
        %v1902 = vor.u32 %v1901, %v1897
        %v1903 = vrot.slane %v1902, 4
        %v1905 = vshll.u32 %v1667, 16
        %v1907 = vrot.slane %v1905, 5
        %v1908 = vsel %vm315, %v1903, %v1907
        %v1910 = vshrl.u32 %v1668, 16
        %v1912 = vrot.slane %v1910, 4
        %v1913 = vshll.u32 %v1668, 16
        %v1915 = vrot.slane %v1913, 5
        %v1916 = vor.u32 %v1912, %v1915
        %v1917 = vrot.slane %v1916, 4
        %v1919 = vshll.u32 %v1669, 16
        %v1921 = vrot.slane %v1919, 5
        %v1922 = vsel %vm315, %v1917, %v1921
        %v1923 = vshrl.u32 %v1669, 16
        %v1925 = vrot.slane %v1923, 4
        %v1926 = vor.u32 %v1925, %v1921
        %v1927 = vrot.slane %v1926, 4
        %v1929 = vshll.u32 %v1670, 16
        %v1931 = vrot.slane %v1929, 5
        %v1932 = vsel %vm315, %v1927, %v1931
        %v1934 = vshrl.u32 %v1671, 16
        %v1936 = vrot.slane %v1934, 4
        %v1937 = vshll.u32 %v1671, 16
        %v1939 = vrot.slane %v1937, 5
        %v1940 = vor.u32 %v1936, %v1939
        %v1941 = vrot.slane %v1940, 4
        %v1943 = vshll.u32 %v1672, 16
        %v1945 = vrot.slane %v1943, 5
        %v1946 = vsel %vm315, %v1941, %v1945
        %v1947 = vshrl.u32 %v1672, 16
        %v1949 = vrot.slane %v1947, 4
        %v1950 = vor.u32 %v1949, %v1945
        %v1951 = vrot.slane %v1950, 4
        %v1953 = vshll.u32 %v1673, 16
        %v1955 = vrot.slane %v1953, 5
        %v1956 = vsel %vm315, %v1951, %v1955
        %v1958 = vshrl.u32 %v1674, 16
        %v1960 = vrot.slane %v1958, 4
        %v1961 = vshll.u32 %v1674, 16
        %v1963 = vrot.slane %v1961, 5
        %v1964 = vor.u32 %v1960, %v1963
        %v1965 = vrot.slane %v1964, 4
        %v1967 = vshll.u32 %v1675, 16
        %v1969 = vrot.slane %v1967, 5
        %v1970 = vsel %vm315, %v1965, %v1969
        %v1971 = vshrl.u32 %v1675, 16
        %v1973 = vrot.slane %v1971, 4
        %v1974 = vor.u32 %v1973, %v1969
        %v1975 = vrot.slane %v1974, 4
        %v1977 = vshll.u32 %v1676, 16
        %v1979 = vrot.slane %v1977, 5
        %v1980 = vsel %vm315, %v1975, %v1979
        %v1982 = vshrl.u32 %v1677, 16
        %v1984 = vrot.slane %v1982, 4
        %v1985 = vshll.u32 %v1677, 16
        %v1987 = vrot.slane %v1985, 5
        %v1988 = vor.u32 %v1984, %v1987
        %v1989 = vrot.slane %v1988, 4
        %v1991 = vshll.u32 %v1678, 16
        %v1993 = vrot.slane %v1991, 5
        %v1994 = vsel %vm315, %v1989, %v1993
        %v1995 = vshrl.u32 %v1678, 16
        %v1997 = vrot.slane %v1995, 4
        %v1998 = vor.u32 %v1997, %v1993
        %v1999 = vrot.slane %v1998, 4
        %v2001 = vshll.u32 %v1679, 16
        %v2003 = vrot.slane %v2001, 5
        %v2004 = vsel %vm315, %v1999, %v2003
        %v2006 = vshrl.u32 %v1680, 16
        %v2008 = vrot.slane %v2006, 4
        %v2009 = vshll.u32 %v1680, 16
        %v2011 = vrot.slane %v2009, 5
        %v2012 = vor.u32 %v2008, %v2011
        %v2013 = vrot.slane %v2012, 4
        %v2015 = vshll.u32 %v1681, 16
        %v2017 = vrot.slane %v2015, 5
        %v2018 = vsel %vm315, %v2013, %v2017
        %v2019 = vshrl.u32 %v1681, 16
        %v2021 = vrot.slane %v2019, 4
        %v2022 = vor.u32 %v2021, %v2017
        %v2023 = vrot.slane %v2022, 4
        %v2025 = vshll.u32 %v1682, 16
        %v2027 = vrot.slane %v2025, 5
        %v2028 = vsel %vm315, %v2023, %v2027
        %v2030 = vshrl.u32 %v1683, 16
        %v2032 = vrot.slane %v2030, 4
        %v2033 = vshll.u32 %v1683, 16
        %v2035 = vrot.slane %v2033, 5
        %v2036 = vor.u32 %v2032, %v2035
        %v2037 = vrot.slane %v2036, 4
        %v2039 = vshll.u32 %v1684, 16
        %v2041 = vrot.slane %v2039, 5
        %v2042 = vsel %vm315, %v2037, %v2041
        %v2043 = vshrl.u32 %v1684, 16
        %v2045 = vrot.slane %v2043, 4
        %v2046 = vor.u32 %v2045, %v2041
        %v2047 = vrot.slane %v2046, 4
        %v2049 = vshll.u32 %v1685, 16
        %v2051 = vrot.slane %v2049, 5
        %v2052 = vsel %vm315, %v2047, %v2051
        %v2054 = vshrl.u32 %v1686, 16
        %v2056 = vrot.slane %v2054, 4
        %v2057 = vshll.u32 %v1686, 16
        %v2059 = vrot.slane %v2057, 5
        %v2060 = vor.u32 %v2056, %v2059
        %v2061 = vrot.slane %v2060, 4
        %v2063 = vshll.u32 %v1687, 16
        %v2065 = vrot.slane %v2063, 5
        %v2066 = vsel %vm315, %v2061, %v2065
        %v2067 = vshrl.u32 %v1687, 16
        %v2069 = vrot.slane %v2067, 4
        %v2070 = vor.u32 %v2069, %v2065
        %v2071 = vrot.slane %v2070, 4
        %v2073 = vshll.u32 %v1688, 16
        %v2075 = vrot.slane %v2073, 5
        %v2076 = vsel %vm315, %v2071, %v2075
        %v2077 = vunpack.c.l.b16 %v1706
        %v2078 = vunpack.c.l.b16 %v1716
        %v2079 = vunpack.c.l.b16 %v1730
        %v2080 = vunpack.c.l.b16 %v1740
        %v2081 = vunpack.c.l.b16 %v1754
        %v2082 = vunpack.c.l.b16 %v1764
        %v2083 = vunpack.c.l.b16 %v1778
        %v2084 = vunpack.c.l.b16 %v1788
        %v2085 = vunpack.c.l.b16 %v1802
        %v2086 = vunpack.c.l.b16 %v1812
        %v2087 = vunpack.c.l.b16 %v1826
        %v2088 = vunpack.c.l.b16 %v1836
        %v2089 = vunpack.c.l.b16 %v1850
        %v2090 = vunpack.c.l.b16 %v1860
        %v2091 = vunpack.c.l.b16 %v1874
        %v2092 = vunpack.c.l.b16 %v1884
        %v2093 = vunpack.c.l.b16 %v1898
        %v2094 = vunpack.c.l.b16 %v1908
        %v2095 = vunpack.c.l.b16 %v1922
        %v2096 = vunpack.c.l.b16 %v1932
        %v2097 = vunpack.c.l.b16 %v1946
        %v2098 = vunpack.c.l.b16 %v1956
        %v2099 = vunpack.c.l.b16 %v1970
        %v2100 = vunpack.c.l.b16 %v1980
        %v2101 = vunpack.c.l.b16 %v1994
        %v2102 = vunpack.c.l.b16 %v2004
        %v2103 = vunpack.c.l.b16 %v2018
        %v2104 = vunpack.c.l.b16 %v2028
        %v2105 = vunpack.c.l.b16 %v2042
        %v2106 = vunpack.c.l.b16 %v2052
        %v2107 = vunpack.c.l.b16 %v2066
        %v2108 = vunpack.c.l.b16 %v2076
        %v2109 = vpack.c.b16 %v2078, %v2077
        %v2110 = vpack.c.b16 %v2080, %v2079
        %v2111 = vpack.c.b16 %v2082, %v2081
        %v2112 = vpack.c.b16 %v2084, %v2083
        %v2113 = vpack.c.b16 %v2086, %v2085
        %v2114 = vpack.c.b16 %v2088, %v2087
        %v2115 = vpack.c.b16 %v2090, %v2089
        %v2116 = vpack.c.b16 %v2092, %v2091
        %v2117 = vpack.c.b16 %v2094, %v2093
        %v2118 = vpack.c.b16 %v2096, %v2095
        %v2119 = vpack.c.b16 %v2098, %v2097
        %v2120 = vpack.c.b16 %v2100, %v2099
        %v2121 = vpack.c.b16 %v2102, %v2101
        %v2122 = vpack.c.b16 %v2104, %v2103
        %v2123 = vpack.c.b16 %v2106, %v2105
        %v2124 = vpack.c.b16 %v2108, %v2107
        %v2129 = vunpack.c.l.b16 %v1689
        %v2130 = vunpack.c.l.b16 %v1690
        %v2131 = vunpack.c.l.b16 %v1691
        %v2132 = vunpack.c.l.b16 %v1692
        %v2133 = vpack.c.b16 %v2130, %v2129
        %v2134 = vpack.c.b16 %v2132, %v2131
        %v2138 = vsel %vm760, %v2109, 0
        %v2141 = vsel %vm760, %v2110, 0
        %v2144 = vsel %vm760, %v2111, 0
        %v2147 = vsel %vm760, %v2112, 0
        %v2150 = vsel %vm760, %v2113, 0
        %v2153 = vsel %vm760, %v2114, 0
        %v2156 = vsel %vm760, %v2115, 0
        %v2159 = vsel %vm760, %v2116, 0
        %v2162 = vsel %vm760, %v2117, 0
        %v2165 = vsel %vm760, %v2118, 0
        %v2168 = vsel %vm760, %v2119, 0
        %v2171 = vsel %vm760, %v2120, 0
        %v2174 = vsel %vm760, %v2121, 0
        %v2177 = vsel %vm760, %v2122, 0
        %v2180 = vsel %vm760, %v2123, 0
        %v2183 = vsel %vm760, %v2124, 0
        %2185 = vmatprep.subr.bf16.mxu0 0
        %2186 = vmatpush1.bf16.msra.mxu0 %v2133
        %2187 = vmatprep.subr.bf16.mxu0 0
        %2188 = vmatpush1.bf16.msra.mxu0 %v2134
        %2189 = vmatprep.subr.bf16.mxu0 0
        %2190 = vmatpush1.bf16.msra.mxu0 0
        %2191 = vmatprep.subr.bf16.mxu0 0
        %2192 = vmatpush1.bf16.msra.mxu0 0
        %2193 = vmatprep.subr.bf16.mxu0 0
        %2194 = vmatpush1.bf16.msra.mxu0 0
        %2195 = vmatprep.subr.bf16.mxu0 0
        %2196 = vmatpush1.bf16.msra.mxu0 0
        %2197 = vmatprep.subr.bf16.mxu0 0
        %2198 = vmatpush1.bf16.msra.mxu0 0
        %2199 = vmatprep.subr.bf16.mxu0 0
        %2200 = vmatpush1.bf16.msra.mxu0 0
        %2201 = vmatprep.subr.bf16.mxu0 0
        %2202 = vmatpush1.bf16.msra.mxu0 0
        %2203 = vmatprep.subr.bf16.mxu0 0
        %2204 = vmatpush1.bf16.msra.mxu0 0
        %2205 = vmatprep.subr.bf16.mxu0 0
        %2206 = vmatpush1.bf16.msra.mxu0 0
        %2207 = vmatprep.subr.bf16.mxu0 0
        %2208 = vmatpush1.bf16.msra.mxu0 0
        %2209 = vmatprep.subr.bf16.mxu0 0
        %2210 = vmatpush1.bf16.msra.mxu0 0
        %2211 = vmatprep.subr.bf16.mxu0 0
        %2212 = vmatpush1.bf16.msra.mxu0 0
        %2213 = vmatprep.subr.bf16.mxu0 0
        %2214 = vmatpush1.bf16.msra.mxu0 0
        %2215 = vmatprep.subr.bf16.mxu0 0
        %2216 = vmatpush1.bf16.msra.mxu0 0
        %2217 = vmatprep.mubr.bf16.mxu0 0
        %2218 = vmatmul.mubr.bf16.gmra.mrb[0].mxu0 %v2138
        %v2219 = vpop.f32.mrb[0].mxu0
        %v2220 = vadd.f32 0.0, %v2219
        %v2221 = vpop.f32.mrb[0].mxu0
        %v2222 = vpop.f32.mrb[0].mxu0
        %v2223 = vadd.f32 0.0, %v2222
        %v2224 = vpop.f32.mrb[0].mxu0
        %2225 = vmatprep.mubr.bf16.mxu0 0
        %2226 = vmatmul.mubr.bf16.gmra.mrb[0].mxu0 %v2141
        %v2227 = vpop.f32.mrb[0].mxu0
        %v2228 = vadd.f32 0.0, %v2227
        %v2229 = vpop.f32.mrb[0].mxu0
        %v2230 = vpop.f32.mrb[0].mxu0
        %v2231 = vadd.f32 0.0, %v2230
        %v2232 = vpop.f32.mrb[0].mxu0
        %2233 = vmatprep.mubr.bf16.mxu0 0
        %2234 = vmatmul.mubr.bf16.gmra.mrb[0].mxu0 %v2144
        %v2235 = vpop.f32.mrb[0].mxu0
        %v2236 = vadd.f32 0.0, %v2235
        %v2237 = vpop.f32.mrb[0].mxu0
        %v2238 = vpop.f32.mrb[0].mxu0
        %v2239 = vadd.f32 0.0, %v2238
        %v2240 = vpop.f32.mrb[0].mxu0
        %2241 = vmatprep.mubr.bf16.mxu0 0
        %2242 = vmatmul.mubr.bf16.gmra.mrb[0].mxu0 %v2147
        %v2243 = vpop.f32.mrb[0].mxu0
        %v2244 = vadd.f32 0.0, %v2243
        %v2245 = vpop.f32.mrb[0].mxu0
        %v2246 = vpop.f32.mrb[0].mxu0
        %v2247 = vadd.f32 0.0, %v2246
        %v2248 = vpop.f32.mrb[0].mxu0
        %2249 = vmatprep.mubr.bf16.mxu0 0
        %2250 = vmatmul.mubr.bf16.gmra.mrb[0].mxu0 %v2150
        %v2251 = vpop.f32.mrb[0].mxu0
        %v2252 = vadd.f32 0.0, %v2251
        %v2253 = vpop.f32.mrb[0].mxu0
        %v2254 = vpop.f32.mrb[0].mxu0
        %v2255 = vadd.f32 0.0, %v2254
        %v2256 = vpop.f32.mrb[0].mxu0
        %2257 = vmatprep.mubr.bf16.mxu0 0
        %2258 = vmatmul.mubr.bf16.gmra.mrb[0].mxu0 %v2153
        %v2259 = vpop.f32.mrb[0].mxu0
        %v2260 = vadd.f32 0.0, %v2259
        %v2261 = vpop.f32.mrb[0].mxu0
        %v2262 = vpop.f32.mrb[0].mxu0
        %v2263 = vadd.f32 0.0, %v2262
        %v2264 = vpop.f32.mrb[0].mxu0
        %2265 = vmatprep.mubr.bf16.mxu0 0
        %2266 = vmatmul.mubr.bf16.gmra.mrb[0].mxu0 %v2156
        %v2267 = vpop.f32.mrb[0].mxu0
        %v2268 = vadd.f32 0.0, %v2267
        %v2269 = vpop.f32.mrb[0].mxu0
        %v2270 = vpop.f32.mrb[0].mxu0
        %v2271 = vadd.f32 0.0, %v2270
        %v2272 = vpop.f32.mrb[0].mxu0
        %2273 = vmatprep.mubr.bf16.mxu0 0
        %2274 = vmatmul.mubr.bf16.gmra.mrb[0].mxu0 %v2159
        %v2275 = vpop.f32.mrb[0].mxu0
        %v2276 = vadd.f32 0.0, %v2275
        %v2277 = vpop.f32.mrb[0].mxu0
        %v2278 = vpop.f32.mrb[0].mxu0
        %v2279 = vadd.f32 0.0, %v2278
        %v2280 = vpop.f32.mrb[0].mxu0
        %2281 = vmatprep.mubr.bf16.mxu0 0
        %2282 = vmatmul.mubr.bf16.gmra.mrb[0].mxu0 %v2162
        %v2283 = vpop.f32.mrb[0].mxu0
        %v2284 = vadd.f32 0.0, %v2283
        %v2285 = vpop.f32.mrb[0].mxu0
        %v2286 = vpop.f32.mrb[0].mxu0
        %v2287 = vadd.f32 0.0, %v2286
        %v2288 = vpop.f32.mrb[0].mxu0
        %2289 = vmatprep.mubr.bf16.mxu0 0
        %2290 = vmatmul.mubr.bf16.gmra.mrb[0].mxu0 %v2165
        %v2291 = vpop.f32.mrb[0].mxu0
        %v2292 = vadd.f32 0.0, %v2291
        %v2293 = vpop.f32.mrb[0].mxu0
        %v2294 = vpop.f32.mrb[0].mxu0
        %v2295 = vadd.f32 0.0, %v2294
        %v2296 = vpop.f32.mrb[0].mxu0
        %2297 = vmatprep.mubr.bf16.mxu0 0
        %2298 = vmatmul.mubr.bf16.gmra.mrb[0].mxu0 %v2168
        %v2299 = vpop.f32.mrb[0].mxu0
        %v2300 = vadd.f32 0.0, %v2299
        %v2301 = vpop.f32.mrb[0].mxu0
        %v2302 = vpop.f32.mrb[0].mxu0
        %v2303 = vadd.f32 0.0, %v2302
        %v2304 = vpop.f32.mrb[0].mxu0
        %2305 = vmatprep.mubr.bf16.mxu0 0
        %2306 = vmatmul.mubr.bf16.gmra.mrb[0].mxu0 %v2171
        %v2307 = vpop.f32.mrb[0].mxu0
        %v2308 = vadd.f32 0.0, %v2307
        %v2309 = vpop.f32.mrb[0].mxu0
        %v2310 = vpop.f32.mrb[0].mxu0
        %v2311 = vadd.f32 0.0, %v2310
        %v2312 = vpop.f32.mrb[0].mxu0
        %2313 = vmatprep.mubr.bf16.mxu0 0
        %2314 = vmatmul.mubr.bf16.gmra.mrb[0].mxu0 %v2174
        %v2315 = vpop.f32.mrb[0].mxu0
        %v2316 = vadd.f32 0.0, %v2315
        %v2317 = vpop.f32.mrb[0].mxu0
        %v2318 = vpop.f32.mrb[0].mxu0
        %v2319 = vadd.f32 0.0, %v2318
        %v2320 = vpop.f32.mrb[0].mxu0
        %2321 = vmatprep.mubr.bf16.mxu0 0
        %2322 = vmatmul.mubr.bf16.gmra.mrb[0].mxu0 %v2177
        %v2323 = vpop.f32.mrb[0].mxu0
        %v2324 = vadd.f32 0.0, %v2323
        %v2325 = vpop.f32.mrb[0].mxu0
        %v2326 = vpop.f32.mrb[0].mxu0
        %v2327 = vadd.f32 0.0, %v2326
        %v2328 = vpop.f32.mrb[0].mxu0
        %2329 = vmatprep.mubr.bf16.mxu0 0
        %2330 = vmatmul.mubr.bf16.gmra.mrb[0].mxu0 %v2180
        %v2331 = vpop.f32.mrb[0].mxu0
        %v2332 = vadd.f32 0.0, %v2331
        %v2333 = vpop.f32.mrb[0].mxu0
        %v2334 = vpop.f32.mrb[0].mxu0
        %v2335 = vadd.f32 0.0, %v2334
        %v2336 = vpop.f32.mrb[0].mxu0
        %2337 = vmatprep.mubr.bf16.mxu0 0
        %2338 = vmatmul.mubr.bf16.gmra.mrb[0].mxu0 %v2183
        %v2339 = vpop.f32.mrb[0].mxu0
        %v2340 = vadd.f32 0.0, %v2339
        %v2341 = vpop.f32.mrb[0].mxu0
        %v2342 = vpop.f32.mrb[0].mxu0
        %v2343 = vadd.f32 0.0, %v2342
        %v2344 = vpop.f32.mrb[0].mxu0
        %2345 = vdwg.mxu0
        %v2346 = vadd.f32 %v1609, %v2220
        %v2347 = vadd.f32 %v1610, %v2223
        %v2348 = vadd.f32 %v1611, %v2228
        %v2349 = vadd.f32 %v1612, %v2231
        %v2350 = vadd.f32 %v1613, %v2236
        %v2351 = vadd.f32 %v1614, %v2239
        %v2352 = vadd.f32 %v1615, %v2244
        %v2353 = vadd.f32 %v1616, %v2247
        %v2354 = vadd.f32 %v1617, %v2252
        %v2355 = vadd.f32 %v1618, %v2255
        %v2356 = vadd.f32 %v1619, %v2260
        %v2357 = vadd.f32 %v1620, %v2263
        %v2358 = vadd.f32 %v1621, %v2268
        %v2359 = vadd.f32 %v1622, %v2271
        %v2360 = vadd.f32 %v1623, %v2276
        %v2361 = vadd.f32 %v1624, %v2279
        %v2362 = vadd.f32 %v1625, %v2284
        %v2363 = vadd.f32 %v1626, %v2287
        %v2364 = vadd.f32 %v1627, %v2292
        %v2365 = vadd.f32 %v1628, %v2295
        %v2366 = vadd.f32 %v1629, %v2300
        %v2367 = vadd.f32 %v1630, %v2303
        %v2368 = vadd.f32 %v1631, %v2308
        %v2369 = vadd.f32 %v1632, %v2311
        %v2370 = vadd.f32 %v1633, %v2316
        %v2371 = vadd.f32 %v1634, %v2319
        %v2372 = vadd.f32 %v1635, %v2324
        %v2373 = vadd.f32 %v1636, %v2327
        %v2374 = vadd.f32 %v1637, %v2332
        %v2375 = vadd.f32 %v1638, %v2335
        %v2376 = vadd.f32 %v1639, %v2340
        %v2377 = vadd.f32 %v1640, %v2343
        %v2378 = vpack.c.bf16 %v2347, %v2346
        %v2379 = vpack.c.bf16 %v2349, %v2348
        %v2380 = vpack.c.bf16 %v2351, %v2350
        %v2381 = vpack.c.bf16 %v2353, %v2352
        %v2382 = vpack.c.bf16 %v2355, %v2354
        %v2383 = vpack.c.bf16 %v2357, %v2356
        %v2384 = vpack.c.bf16 %v2359, %v2358
        %v2385 = vpack.c.bf16 %v2361, %v2360
        %v2386 = vpack.c.bf16 %v2363, %v2362
        %v2387 = vpack.c.bf16 %v2365, %v2364
        %v2388 = vpack.c.bf16 %v2367, %v2366
        %v2389 = vpack.c.bf16 %v2369, %v2368
        %v2390 = vpack.c.bf16 %v2371, %v2370
        %v2391 = vpack.c.bf16 %v2373, %v2372
        %v2392 = vpack.c.bf16 %v2375, %v2374
        %v2393 = vpack.c.bf16 %v2377, %v2376
        %v2410 = vunpack.c.l.b16 %v2378
        %v2411 = vunpack.c.h.b16 %v2378
        %v2412 = vunpack.c.l.b16 %v2379
        %v2413 = vunpack.c.h.b16 %v2379
        %v2414 = vunpack.c.l.b16 %v2380
        %v2415 = vunpack.c.h.b16 %v2380
        %v2416 = vunpack.c.l.b16 %v2381
        %v2417 = vunpack.c.h.b16 %v2381
        %v2418 = vunpack.c.l.b16 %v2382
        %v2419 = vunpack.c.h.b16 %v2382
        %v2420 = vunpack.c.l.b16 %v2383
        %v2421 = vunpack.c.h.b16 %v2383
        %v2422 = vunpack.c.l.b16 %v2384
        %v2423 = vunpack.c.h.b16 %v2384
        %v2424 = vunpack.c.l.b16 %v2385
        %v2425 = vunpack.c.h.b16 %v2385
        %v2426 = vunpack.c.l.b16 %v2386
        %v2427 = vunpack.c.h.b16 %v2386
        %v2428 = vunpack.c.l.b16 %v2387
        %v2429 = vunpack.c.h.b16 %v2387
        %v2430 = vunpack.c.l.b16 %v2388
        %v2431 = vunpack.c.h.b16 %v2388
        %v2432 = vunpack.c.l.b16 %v2389
        %v2433 = vunpack.c.h.b16 %v2389
        %v2434 = vunpack.c.l.b16 %v2390
        %v2435 = vunpack.c.h.b16 %v2390
        %v2436 = vunpack.c.l.b16 %v2391
        %v2437 = vunpack.c.h.b16 %v2391
        %v2438 = vunpack.c.l.b16 %v2392
        %v2439 = vunpack.c.h.b16 %v2392
        %v2440 = vunpack.c.l.b16 %v2393
        %v2441 = vunpack.c.h.b16 %v2393
        %v2442 = vpack.c.b16 %v2410, %v2410
        %v2443 = vpack.c.b16 %v2411, %v2411
        %v2444 = vpack.c.b16 %v2412, %v2412
        %v2445 = vpack.c.b16 %v2413, %v2413
        %v2446 = vpack.c.b16 %v2414, %v2414
        %v2447 = vpack.c.b16 %v2415, %v2415
        %v2448 = vpack.c.b16 %v2416, %v2416
        %v2449 = vpack.c.b16 %v2417, %v2417
        %v2450 = vpack.c.b16 %v2418, %v2418
        %v2451 = vpack.c.b16 %v2419, %v2419
        %v2452 = vpack.c.b16 %v2420, %v2420
        %v2453 = vpack.c.b16 %v2421, %v2421
        %v2454 = vpack.c.b16 %v2422, %v2422
        %v2455 = vpack.c.b16 %v2423, %v2423
        %v2456 = vpack.c.b16 %v2424, %v2424
        %v2457 = vpack.c.b16 %v2425, %v2425
        %v2458 = vpack.c.b16 %v2426, %v2426
        %v2459 = vpack.c.b16 %v2427, %v2427
        %v2460 = vpack.c.b16 %v2428, %v2428
        %v2461 = vpack.c.b16 %v2429, %v2429
        %v2462 = vpack.c.b16 %v2430, %v2430
        %v2463 = vpack.c.b16 %v2431, %v2431
        %v2464 = vpack.c.b16 %v2432, %v2432
        %v2465 = vpack.c.b16 %v2433, %v2433
        %v2466 = vpack.c.b16 %v2434, %v2434
        %v2467 = vpack.c.b16 %v2435, %v2435
        %v2468 = vpack.c.b16 %v2436, %v2436
        %v2469 = vpack.c.b16 %v2437, %v2437
        %v2470 = vpack.c.b16 %v2438, %v2438
        %v2471 = vpack.c.b16 %v2439, %v2439
        %v2472 = vpack.c.b16 %v2440, %v2440
        %v2473 = vpack.c.b16 %v2441, %v2441
        %2506 = vst [vmem:[%s218] sm:$0xf] %v2442
        %2507 = vst [vmem:[%s218 + $0x4] sm:$0xf] %v2443
        %2508 = vst [vmem:[%s218 + $0x8] sm:$0xf] %v2444
        %2509 = vst [vmem:[%s218 + $0xc] sm:$0xf] %v2445
        %2510 = vst [vmem:[%s218 + $0x10] sm:$0xf] %v2446
        %2511 = vst [vmem:[%s218 + $0x14] sm:$0xf] %v2447
        %2512 = vst [vmem:[%s218 + $0x18] sm:$0xf] %v2448
        %2513 = vst [vmem:[%s218 + $0x1c] sm:$0xf] %v2449
        %2514 = vst [vmem:[%s218 + $0x20] sm:$0xf] %v2450
        %2515 = vst [vmem:[%s218 + $0x24] sm:$0xf] %v2451
        %2516 = vst [vmem:[%s218 + $0x28] sm:$0xf] %v2452
        %2517 = vst [vmem:[%s218 + $0x2c] sm:$0xf] %v2453
        %2518 = vst [vmem:[%s218 + $0x30] sm:$0xf] %v2454
        %2519 = vst [vmem:[%s218 + $0x34] sm:$0xf] %v2455
        %2520 = vst [vmem:[%s218 + $0x38] sm:$0xf] %v2456
        %2521 = vst [vmem:[%s218 + $0x3c] sm:$0xf] %v2457
        %2522 = vst [vmem:[%s218 + $0x40] sm:$0xf] %v2458
        %2523 = vst [vmem:[%s218 + $0x44] sm:$0xf] %v2459
        %2524 = vst [vmem:[%s218 + $0x48] sm:$0xf] %v2460
        %2525 = vst [vmem:[%s218 + $0x4c] sm:$0xf] %v2461
        %2526 = vst [vmem:[%s218 + $0x50] sm:$0xf] %v2462
        %2527 = vst [vmem:[%s218 + $0x54] sm:$0xf] %v2463
        %2528 = vst [vmem:[%s218 + $0x58] sm:$0xf] %v2464
        %2529 = vst [vmem:[%s218 + $0x5c] sm:$0xf] %v2465
        %2530 = vst [vmem:[%s218 + $0x60] sm:$0xf] %v2466
        %2531 = vst [vmem:[%s218 + $0x64] sm:$0xf] %v2467
        %2532 = vst [vmem:[%s218 + $0x68] sm:$0xf] %v2468
        %2533 = vst [vmem:[%s218 + $0x6c] sm:$0xf] %v2469
        %2534 = vst [vmem:[%s218 + $0x70] sm:$0xf] %v2470
        %2535 = vst [vmem:[%s218 + $0x74] sm:$0xf] %v2471
        %2536 = vst [vmem:[%s218 + $0x78] sm:$0xf] %v2472
        %2537 = vst [vmem:[%s218 + $0x7c] sm:$0xf] %v2473
        %v2538 = vadd.f32 %v2346, %v2347
        %v2539 = vadd.f32 %v2538, %v2348
        %v2540 = vadd.f32 %v2539, %v2349
        %v2541 = vadd.f32 %v2540, %v2350
        %v2542 = vadd.f32 %v2541, %v2351
        %v2543 = vadd.f32 %v2542, %v2352
        %v2544 = vadd.f32 %v2543, %v2353
        %v2545 = vadd.f32 %v2544, %v2354
        %v2546 = vadd.f32 %v2545, %v2355
        %v2547 = vadd.f32 %v2546, %v2356
        %v2548 = vadd.f32 %v2547, %v2357
        %v2549 = vadd.f32 %v2548, %v2358
        %v2550 = vadd.f32 %v2549, %v2359
        %v2551 = vadd.f32 %v2550, %v2360
        %v2552 = vadd.f32 %v2551, %v2361
        %v2553 = vadd.f32 %v2552, %v2362
        %v2554 = vadd.f32 %v2553, %v2363
        %v2555 = vadd.f32 %v2554, %v2364
        %v2556 = vadd.f32 %v2555, %v2365
        %v2557 = vadd.f32 %v2556, %v2366
        %v2558 = vadd.f32 %v2557, %v2367
        %v2559 = vadd.f32 %v2558, %v2368
        %v2560 = vadd.f32 %v2559, %v2369
        %v2561 = vadd.f32 %v2560, %v2370
        %v2562 = vadd.f32 %v2561, %v2371
        %v2563 = vadd.f32 %v2562, %v2372
        %v2564 = vadd.f32 %v2563, %v2373
        %v2565 = vadd.f32 %v2564, %v2374
        %v2566 = vadd.f32 %v2565, %v2375
        %v2567 = vadd.f32 %v2566, %v2376
        %v2568 = vadd.f32 %v2567, %v2377
        %v2569 = vrot.slane %v2568, 4
        %v2570 = vadd.f32 %v2568, %v2569
        %v2571 = vrot.slane %v2570, 2
        %v2572 = vadd.f32 %v2570, %v2571
        %v2573 = vrot.slane %v2572, 1
        %v2574 = vadd.f32 %v2572, %v2573
        %v2575 = vadd.f32 %v2574, 0.0
        %v2576 = vmul.f32 %v2346, %v2346
        %v2577 = vmul.f32 %v2347, %v2347
        %v2578 = vmul.f32 %v2348, %v2348
        %v2579 = vmul.f32 %v2349, %v2349
        %v2580 = vmul.f32 %v2350, %v2350
        %v2581 = vmul.f32 %v2351, %v2351
        %v2582 = vmul.f32 %v2352, %v2352
        %v2583 = vmul.f32 %v2353, %v2353
        %v2584 = vmul.f32 %v2354, %v2354
        %v2585 = vmul.f32 %v2355, %v2355
        %v2586 = vmul.f32 %v2356, %v2356
        %v2587 = vmul.f32 %v2357, %v2357
        %v2588 = vmul.f32 %v2358, %v2358
        %v2589 = vmul.f32 %v2359, %v2359
        %v2590 = vmul.f32 %v2360, %v2360
        %v2591 = vmul.f32 %v2361, %v2361
        %v2592 = vmul.f32 %v2362, %v2362
        %v2593 = vmul.f32 %v2363, %v2363
        %v2594 = vmul.f32 %v2364, %v2364
        %v2595 = vmul.f32 %v2365, %v2365
        %v2596 = vmul.f32 %v2366, %v2366
        %v2597 = vmul.f32 %v2367, %v2367
        %v2598 = vmul.f32 %v2368, %v2368
        %v2599 = vmul.f32 %v2369, %v2369
        %v2600 = vmul.f32 %v2370, %v2370
        %v2601 = vmul.f32 %v2371, %v2371
        %v2602 = vmul.f32 %v2372, %v2372
        %v2603 = vmul.f32 %v2373, %v2373
        %v2604 = vmul.f32 %v2374, %v2374
        %v2605 = vmul.f32 %v2375, %v2375
        %v2606 = vmul.f32 %v2376, %v2376
        %v2607 = vmul.f32 %v2377, %v2377
        %v2608 = vadd.f32 %v2576, %v2577
        %v2609 = vadd.f32 %v2608, %v2578
        %v2610 = vadd.f32 %v2609, %v2579
        %v2611 = vadd.f32 %v2610, %v2580
        %v2612 = vadd.f32 %v2611, %v2581
        %v2613 = vadd.f32 %v2612, %v2582
        %v2614 = vadd.f32 %v2613, %v2583
        %v2615 = vadd.f32 %v2614, %v2584
        %v2616 = vadd.f32 %v2615, %v2585
        %v2617 = vadd.f32 %v2616, %v2586
        %v2618 = vadd.f32 %v2617, %v2587
        %v2619 = vadd.f32 %v2618, %v2588
        %v2620 = vadd.f32 %v2619, %v2589
        %v2621 = vadd.f32 %v2620, %v2590
        %v2622 = vadd.f32 %v2621, %v2591
        %v2623 = vadd.f32 %v2622, %v2592
        %v2624 = vadd.f32 %v2623, %v2593
        %v2625 = vadd.f32 %v2624, %v2594
        %v2626 = vadd.f32 %v2625, %v2595
        %v2627 = vadd.f32 %v2626, %v2596
        %v2628 = vadd.f32 %v2627, %v2597
        %v2629 = vadd.f32 %v2628, %v2598
        %v2630 = vadd.f32 %v2629, %v2599
        %v2631 = vadd.f32 %v2630, %v2600
        %v2632 = vadd.f32 %v2631, %v2601
        %v2633 = vadd.f32 %v2632, %v2602
        %v2634 = vadd.f32 %v2633, %v2603
        %v2635 = vadd.f32 %v2634, %v2604
        %v2636 = vadd.f32 %v2635, %v2605
        %v2637 = vadd.f32 %v2636, %v2606
        %v2638 = vadd.f32 %v2637, %v2607
        %v2639 = vrot.slane %v2638, 4
        %v2640 = vadd.f32 %v2638, %v2639
        %v2641 = vrot.slane %v2640, 2
        %v2642 = vadd.f32 %v2640, %v2641
        %v2643 = vrot.slane %v2642, 1
        %v2644 = vadd.f32 %v2642, %v2643
        %v2645 = vadd.f32 %v2644, 0.0
        %v2646 = vld [vmem:[%s239] sm:$0xf]
        %v2647 = vld [vmem:[%s239 + $0x4] sm:$0xf]
        %v2648 = vld [vmem:[%s239 + $0x8] sm:$0x1]
        %v2649 = vld [vmem:[%s239 + $0xc] sm:$0xf]
        %v2650 = vld [vmem:[%s239 + $0x10] sm:$0xf]
        %v2651 = vld [vmem:[%s239 + $0x14] sm:$0x1]
        %v2652 = vld [vmem:[%s239 + $0x18] sm:$0xf]
        %v2653 = vld [vmem:[%s239 + $0x1c] sm:$0xf]
        %v2654 = vld [vmem:[%s239 + $0x20] sm:$0x1]
        %v2655 = vld [vmem:[%s239 + $0x24] sm:$0xf]
        %v2656 = vld [vmem:[%s239 + $0x28] sm:$0xf]
        %v2657 = vld [vmem:[%s239 + $0x2c] sm:$0x1]
        %v2658 = vld [vmem:[%s239 + $0x30] sm:$0xf]
        %v2659 = vld [vmem:[%s239 + $0x34] sm:$0xf]
        %v2660 = vld [vmem:[%s239 + $0x38] sm:$0x1]
        %v2661 = vld [vmem:[%s239 + $0x3c] sm:$0xf]
        %v2662 = vld [vmem:[%s239 + $0x40] sm:$0xf]
        %v2663 = vld [vmem:[%s239 + $0x44] sm:$0x1]
        %v2664 = vld [vmem:[%s239 + $0x48] sm:$0xf]
        %v2665 = vld [vmem:[%s239 + $0x4c] sm:$0xf]
        %v2666 = vld [vmem:[%s239 + $0x50] sm:$0x1]
        %v2667 = vld [vmem:[%s239 + $0x54] sm:$0xf]
        %v2668 = vld [vmem:[%s239 + $0x58] sm:$0xf]
        %v2669 = vld [vmem:[%s239 + $0x5c] sm:$0x1]
        %v2670 = vld [vmem:[%s239 + $0x60] sm:$0xf]
        %v2671 = vld [vmem:[%s239 + $0x64] sm:$0xf]
        %v2672 = vld [vmem:[%s239 + $0x68] sm:$0x1]
        %v2673 = vld [vmem:[%s239 + $0x6c] sm:$0xf]
        %v2674 = vld [vmem:[%s239 + $0x70] sm:$0xf]
        %v2675 = vld [vmem:[%s239 + $0x74] sm:$0x1]
        %v2676 = vld [vmem:[%s239 + $0x78] sm:$0xf]
        %v2677 = vld [vmem:[%s239 + $0x7c] sm:$0xf]
        %v2678 = vld [vmem:[%s239 + $0x80] sm:$0x1]
        %v2679 = vld [vmem:[%s239 + $0x84] sm:$0xf]
        %v2680 = vld [vmem:[%s239 + $0x88] sm:$0xf]
        %v2681 = vld [vmem:[%s239 + $0x8c] sm:$0x1]
        %v2682 = vld [vmem:[%s239 + $0x90] sm:$0xf]
        %v2683 = vld [vmem:[%s239 + $0x94] sm:$0xf]
        %v2684 = vld [vmem:[%s239 + $0x98] sm:$0x1]
        %v2685 = vld [vmem:[%s239 + $0x9c] sm:$0xf]
        %v2686 = vld [vmem:[%s239 + $0xa0] sm:$0xf]
        %v2687 = vld [vmem:[%s239 + $0xa4] sm:$0x1]
        %v2688 = vld [vmem:[%s239 + $0xa8] sm:$0xf]
        %v2689 = vld [vmem:[%s239 + $0xac] sm:$0xf]
        %v2690 = vld [vmem:[%s239 + $0xb0] sm:$0x1]
        %v2691 = vld [vmem:[%s239 + $0xb4] sm:$0xf]
        %v2692 = vld [vmem:[%s239 + $0xb8] sm:$0xf]
        %v2693 = vld [vmem:[%s239 + $0xbc] sm:$0x1]
        %v2694 = vld [vmem:[%s243 + $0x40] sm:$0xf]
        %v2695 = vld [vmem:[%s243 + $0x44] sm:$0xf]
        %v2696 = vld [vmem:[%s243 + $0x48] sm:$0xf]
        %v2697 = vld [vmem:[%s243 + $0x4c] sm:$0xf]
        %v2699 = vshrl.u32 %v2646, 16
        %v2701 = vrot.slane %v2699, 4
        %v2702 = vshll.u32 %v2646, 16
        %v2704 = vrot.slane %v2702, 5
        %v2705 = vor.u32 %v2701, %v2704
        %v2706 = vrot.slane %v2705, 4
        %v2708 = vshll.u32 %v2647, 16
        %v2710 = vrot.slane %v2708, 5
        %v2711 = vsel %vm315, %v2706, %v2710
        %v2712 = vshrl.u32 %v2647, 16
        %v2714 = vrot.slane %v2712, 4
        %v2715 = vor.u32 %v2714, %v2710
        %v2716 = vrot.slane %v2715, 4
        %v2718 = vshll.u32 %v2648, 16
        %v2720 = vrot.slane %v2718, 5
        %v2721 = vsel %vm315, %v2716, %v2720
        %v2723 = vshrl.u32 %v2649, 16
        %v2725 = vrot.slane %v2723, 4
        %v2726 = vshll.u32 %v2649, 16
        %v2728 = vrot.slane %v2726, 5
        %v2729 = vor.u32 %v2725, %v2728
        %v2730 = vrot.slane %v2729, 4
        %v2732 = vshll.u32 %v2650, 16
        %v2734 = vrot.slane %v2732, 5
        %v2735 = vsel %vm315, %v2730, %v2734
        %v2736 = vshrl.u32 %v2650, 16
        %v2738 = vrot.slane %v2736, 4
        %v2739 = vor.u32 %v2738, %v2734
        %v2740 = vrot.slane %v2739, 4
        %v2742 = vshll.u32 %v2651, 16
        %v2744 = vrot.slane %v2742, 5
        %v2745 = vsel %vm315, %v2740, %v2744
        %v2747 = vshrl.u32 %v2652, 16
        %v2749 = vrot.slane %v2747, 4
        %v2750 = vshll.u32 %v2652, 16
        %v2752 = vrot.slane %v2750, 5
        %v2753 = vor.u32 %v2749, %v2752
        %v2754 = vrot.slane %v2753, 4
        %v2756 = vshll.u32 %v2653, 16
        %v2758 = vrot.slane %v2756, 5
        %v2759 = vsel %vm315, %v2754, %v2758
        %v2760 = vshrl.u32 %v2653, 16
        %v2762 = vrot.slane %v2760, 4
        %v2763 = vor.u32 %v2762, %v2758
        %v2764 = vrot.slane %v2763, 4
        %v2766 = vshll.u32 %v2654, 16
        %v2768 = vrot.slane %v2766, 5
        %v2769 = vsel %vm315, %v2764, %v2768
        %v2771 = vshrl.u32 %v2655, 16
        %v2773 = vrot.slane %v2771, 4
        %v2774 = vshll.u32 %v2655, 16
        %v2776 = vrot.slane %v2774, 5
        %v2777 = vor.u32 %v2773, %v2776
        %v2778 = vrot.slane %v2777, 4
        %v2780 = vshll.u32 %v2656, 16
        %v2782 = vrot.slane %v2780, 5
        %v2783 = vsel %vm315, %v2778, %v2782
        %v2784 = vshrl.u32 %v2656, 16
        %v2786 = vrot.slane %v2784, 4
        %v2787 = vor.u32 %v2786, %v2782
        %v2788 = vrot.slane %v2787, 4
        %v2790 = vshll.u32 %v2657, 16
        %v2792 = vrot.slane %v2790, 5
        %v2793 = vsel %vm315, %v2788, %v2792
        %v2795 = vshrl.u32 %v2658, 16
        %v2797 = vrot.slane %v2795, 4
        %v2798 = vshll.u32 %v2658, 16
        %v2800 = vrot.slane %v2798, 5
        %v2801 = vor.u32 %v2797, %v2800
        %v2802 = vrot.slane %v2801, 4
        %v2804 = vshll.u32 %v2659, 16
        %v2806 = vrot.slane %v2804, 5
        %v2807 = vsel %vm315, %v2802, %v2806
        %v2808 = vshrl.u32 %v2659, 16
        %v2810 = vrot.slane %v2808, 4
        %v2811 = vor.u32 %v2810, %v2806
        %v2812 = vrot.slane %v2811, 4
        %v2814 = vshll.u32 %v2660, 16
        %v2816 = vrot.slane %v2814, 5
        %v2817 = vsel %vm315, %v2812, %v2816
        %v2819 = vshrl.u32 %v2661, 16
        %v2821 = vrot.slane %v2819, 4
        %v2822 = vshll.u32 %v2661, 16
        %v2824 = vrot.slane %v2822, 5
        %v2825 = vor.u32 %v2821, %v2824
        %v2826 = vrot.slane %v2825, 4
        %v2828 = vshll.u32 %v2662, 16
        %v2830 = vrot.slane %v2828, 5
        %v2831 = vsel %vm315, %v2826, %v2830
        %v2832 = vshrl.u32 %v2662, 16
        %v2834 = vrot.slane %v2832, 4
        %v2835 = vor.u32 %v2834, %v2830
        %v2836 = vrot.slane %v2835, 4
        %v2838 = vshll.u32 %v2663, 16
        %v2840 = vrot.slane %v2838, 5
        %v2841 = vsel %vm315, %v2836, %v2840
        %v2843 = vshrl.u32 %v2664, 16
        %v2845 = vrot.slane %v2843, 4
        %v2846 = vshll.u32 %v2664, 16
        %v2848 = vrot.slane %v2846, 5
        %v2849 = vor.u32 %v2845, %v2848
        %v2850 = vrot.slane %v2849, 4
        %v2852 = vshll.u32 %v2665, 16
        %v2854 = vrot.slane %v2852, 5
        %v2855 = vsel %vm315, %v2850, %v2854
        %v2856 = vshrl.u32 %v2665, 16
        %v2858 = vrot.slane %v2856, 4
        %v2859 = vor.u32 %v2858, %v2854
        %v2860 = vrot.slane %v2859, 4
        %v2862 = vshll.u32 %v2666, 16
        %v2864 = vrot.slane %v2862, 5
        %v2865 = vsel %vm315, %v2860, %v2864
        %v2867 = vshrl.u32 %v2667, 16
        %v2869 = vrot.slane %v2867, 4
        %v2870 = vshll.u32 %v2667, 16
        %v2872 = vrot.slane %v2870, 5
        %v2873 = vor.u32 %v2869, %v2872
        %v2874 = vrot.slane %v2873, 4
        %v2876 = vshll.u32 %v2668, 16
        %v2878 = vrot.slane %v2876, 5
        %v2879 = vsel %vm315, %v2874, %v2878
        %v2880 = vshrl.u32 %v2668, 16
        %v2882 = vrot.slane %v2880, 4
        %v2883 = vor.u32 %v2882, %v2878
        %v2884 = vrot.slane %v2883, 4
        %v2886 = vshll.u32 %v2669, 16
        %v2888 = vrot.slane %v2886, 5
        %v2889 = vsel %vm315, %v2884, %v2888
        %v2891 = vshrl.u32 %v2670, 16
        %v2893 = vrot.slane %v2891, 4
        %v2894 = vshll.u32 %v2670, 16
        %v2896 = vrot.slane %v2894, 5
        %v2897 = vor.u32 %v2893, %v2896
        %v2898 = vrot.slane %v2897, 4
        %v2900 = vshll.u32 %v2671, 16
        %v2902 = vrot.slane %v2900, 5
        %v2903 = vsel %vm315, %v2898, %v2902
        %v2904 = vshrl.u32 %v2671, 16
        %v2906 = vrot.slane %v2904, 4
        %v2907 = vor.u32 %v2906, %v2902
        %v2908 = vrot.slane %v2907, 4
        %v2910 = vshll.u32 %v2672, 16
        %v2912 = vrot.slane %v2910, 5
        %v2913 = vsel %vm315, %v2908, %v2912
        %v2915 = vshrl.u32 %v2673, 16
        %v2917 = vrot.slane %v2915, 4
        %v2918 = vshll.u32 %v2673, 16
        %v2920 = vrot.slane %v2918, 5
        %v2921 = vor.u32 %v2917, %v2920
        %v2922 = vrot.slane %v2921, 4
        %v2924 = vshll.u32 %v2674, 16
        %v2926 = vrot.slane %v2924, 5
        %v2927 = vsel %vm315, %v2922, %v2926
        %v2928 = vshrl.u32 %v2674, 16
        %v2930 = vrot.slane %v2928, 4
        %v2931 = vor.u32 %v2930, %v2926
        %v2932 = vrot.slane %v2931, 4
        %v2934 = vshll.u32 %v2675, 16
        %v2936 = vrot.slane %v2934, 5
        %v2937 = vsel %vm315, %v2932, %v2936
        %v2939 = vshrl.u32 %v2676, 16
        %v2941 = vrot.slane %v2939, 4
        %v2942 = vshll.u32 %v2676, 16
        %v2944 = vrot.slane %v2942, 5
        %v2945 = vor.u32 %v2941, %v2944
        %v2946 = vrot.slane %v2945, 4
        %v2948 = vshll.u32 %v2677, 16
        %v2950 = vrot.slane %v2948, 5
        %v2951 = vsel %vm315, %v2946, %v2950
        %v2952 = vshrl.u32 %v2677, 16
        %v2954 = vrot.slane %v2952, 4
        %v2955 = vor.u32 %v2954, %v2950
        %v2956 = vrot.slane %v2955, 4
        %v2958 = vshll.u32 %v2678, 16
        %v2960 = vrot.slane %v2958, 5
        %v2961 = vsel %vm315, %v2956, %v2960
        %v2963 = vshrl.u32 %v2679, 16
        %v2965 = vrot.slane %v2963, 4
        %v2966 = vshll.u32 %v2679, 16
        %v2968 = vrot.slane %v2966, 5
        %v2969 = vor.u32 %v2965, %v2968
        %v2970 = vrot.slane %v2969, 4
        %v2972 = vshll.u32 %v2680, 16
        %v2974 = vrot.slane %v2972, 5
        %v2975 = vsel %vm315, %v2970, %v2974
        %v2976 = vshrl.u32 %v2680, 16
        %v2978 = vrot.slane %v2976, 4
        %v2979 = vor.u32 %v2978, %v2974
        %v2980 = vrot.slane %v2979, 4
        %v2982 = vshll.u32 %v2681, 16
        %v2984 = vrot.slane %v2982, 5
        %v2985 = vsel %vm315, %v2980, %v2984
        %v2987 = vshrl.u32 %v2682, 16
        %v2989 = vrot.slane %v2987, 4
        %v2990 = vshll.u32 %v2682, 16
        %v2992 = vrot.slane %v2990, 5
        %v2993 = vor.u32 %v2989, %v2992
        %v2994 = vrot.slane %v2993, 4
        %v2996 = vshll.u32 %v2683, 16
        %v2998 = vrot.slane %v2996, 5
        %v2999 = vsel %vm315, %v2994, %v2998
        %v3000 = vshrl.u32 %v2683, 16
        %v3002 = vrot.slane %v3000, 4
        %v3003 = vor.u32 %v3002, %v2998
        %v3004 = vrot.slane %v3003, 4
        %v3006 = vshll.u32 %v2684, 16
        %v3008 = vrot.slane %v3006, 5
        %v3009 = vsel %vm315, %v3004, %v3008
        %v3011 = vshrl.u32 %v2685, 16
        %v3013 = vrot.slane %v3011, 4
        %v3014 = vshll.u32 %v2685, 16
        %v3016 = vrot.slane %v3014, 5
        %v3017 = vor.u32 %v3013, %v3016
        %v3018 = vrot.slane %v3017, 4
        %v3020 = vshll.u32 %v2686, 16
        %v3022 = vrot.slane %v3020, 5
        %v3023 = vsel %vm315, %v3018, %v3022
        %v3024 = vshrl.u32 %v2686, 16
        %v3026 = vrot.slane %v3024, 4
        %v3027 = vor.u32 %v3026, %v3022
        %v3028 = vrot.slane %v3027, 4
        %v3030 = vshll.u32 %v2687, 16
        %v3032 = vrot.slane %v3030, 5
        %v3033 = vsel %vm315, %v3028, %v3032
        %v3035 = vshrl.u32 %v2688, 16
        %v3037 = vrot.slane %v3035, 4
        %v3038 = vshll.u32 %v2688, 16
        %v3040 = vrot.slane %v3038, 5
        %v3041 = vor.u32 %v3037, %v3040
        %v3042 = vrot.slane %v3041, 4
        %v3044 = vshll.u32 %v2689, 16
        %v3046 = vrot.slane %v3044, 5
        %v3047 = vsel %vm315, %v3042, %v3046
        %v3048 = vshrl.u32 %v2689, 16
        %v3050 = vrot.slane %v3048, 4
        %v3051 = vor.u32 %v3050, %v3046
        %v3052 = vrot.slane %v3051, 4
        %v3054 = vshll.u32 %v2690, 16
        %v3056 = vrot.slane %v3054, 5
        %v3057 = vsel %vm315, %v3052, %v3056
        %v3059 = vshrl.u32 %v2691, 16
        %v3061 = vrot.slane %v3059, 4
        %v3062 = vshll.u32 %v2691, 16
        %v3064 = vrot.slane %v3062, 5
        %v3065 = vor.u32 %v3061, %v3064
        %v3066 = vrot.slane %v3065, 4
        %v3068 = vshll.u32 %v2692, 16
        %v3070 = vrot.slane %v3068, 5
        %v3071 = vsel %vm315, %v3066, %v3070
        %v3072 = vshrl.u32 %v2692, 16
        %v3074 = vrot.slane %v3072, 4
        %v3075 = vor.u32 %v3074, %v3070
        %v3076 = vrot.slane %v3075, 4
        %v3078 = vshll.u32 %v2693, 16
        %v3080 = vrot.slane %v3078, 5
        %v3081 = vsel %vm315, %v3076, %v3080
        %v3082 = vld [vmem:[%s239] sm:$0xe]
        %v3083 = vld [vmem:[%s239 + $0xc] sm:$0xe]
        %v3084 = vld [vmem:[%s239 + $0x18] sm:$0xe]
        %v3085 = vld [vmem:[%s239 + $0x24] sm:$0xe]
        %v3086 = vld [vmem:[%s239 + $0x30] sm:$0xe]
        %v3087 = vld [vmem:[%s239 + $0x3c] sm:$0xe]
        %v3088 = vld [vmem:[%s239 + $0x48] sm:$0xe]
        %v3089 = vld [vmem:[%s239 + $0x54] sm:$0xe]
        %v3090 = vld [vmem:[%s239 + $0x60] sm:$0xe]
        %v3091 = vld [vmem:[%s239 + $0x6c] sm:$0xe]
        %v3092 = vld [vmem:[%s239 + $0x78] sm:$0xe]
        %v3093 = vld [vmem:[%s239 + $0x84] sm:$0xe]
        %v3094 = vld [vmem:[%s239 + $0x90] sm:$0xe]
        %v3095 = vld [vmem:[%s239 + $0x9c] sm:$0xe]
        %v3096 = vld [vmem:[%s239 + $0xa8] sm:$0xe]
        %v3097 = vld [vmem:[%s239 + $0xb4] sm:$0xe]
        %v3098 = vld [vmem:[%s243 + $0x50] sm:$0xf]
        %v3099 = vld [vmem:[%s243 + $0x54] sm:$0xf]
        %v3100 = vld [vmem:[%s243 + $0x58] sm:$0xf]
        %v3101 = vld [vmem:[%s243 + $0x5c] sm:$0xf]
        %vm3150 = vcmask 1042432
        %vm3151 = vcmask 1046532
        %vm3152 = vmor %vm3150, %vm3151
        %v3153 = vrot.slane %v3082, 5
        %v3154 = vrot.slane %v3153, 4
        %v3155 = vrot.slane %v2647, 5
        %v3156 = vsel %vm3152, %v3154, %v3155
        %v3157 = vrot.slane %v3155, 4
        %v3158 = vrot.slane %v2648, 5
        %v3159 = vsel %vm3152, %v3157, %v3158
        %v3160 = vrot.slane %v3083, 5
        %v3161 = vrot.slane %v3160, 4
        %v3162 = vrot.slane %v2650, 5
        %v3163 = vsel %vm3152, %v3161, %v3162
        %v3164 = vrot.slane %v3162, 4
        %v3165 = vrot.slane %v2651, 5
        %v3166 = vsel %vm3152, %v3164, %v3165
        %v3167 = vrot.slane %v3084, 5
        %v3168 = vrot.slane %v3167, 4
        %v3169 = vrot.slane %v2653, 5
        %v3170 = vsel %vm3152, %v3168, %v3169
        %v3171 = vrot.slane %v3169, 4
        %v3172 = vrot.slane %v2654, 5
        %v3173 = vsel %vm3152, %v3171, %v3172
        %v3174 = vrot.slane %v3085, 5
        %v3175 = vrot.slane %v3174, 4
        %v3176 = vrot.slane %v2656, 5
        %v3177 = vsel %vm3152, %v3175, %v3176
        %v3178 = vrot.slane %v3176, 4
        %v3179 = vrot.slane %v2657, 5
        %v3180 = vsel %vm3152, %v3178, %v3179
        %v3181 = vrot.slane %v3086, 5
        %v3182 = vrot.slane %v3181, 4
        %v3183 = vrot.slane %v2659, 5
        %v3184 = vsel %vm3152, %v3182, %v3183
        %v3185 = vrot.slane %v3183, 4
        %v3186 = vrot.slane %v2660, 5
        %v3187 = vsel %vm3152, %v3185, %v3186
        %v3188 = vrot.slane %v3087, 5
        %v3189 = vrot.slane %v3188, 4
        %v3190 = vrot.slane %v2662, 5
        %v3191 = vsel %vm3152, %v3189, %v3190
        %v3192 = vrot.slane %v3190, 4
        %v3193 = vrot.slane %v2663, 5
        %v3194 = vsel %vm3152, %v3192, %v3193
        %v3195 = vrot.slane %v3088, 5
        %v3196 = vrot.slane %v3195, 4
        %v3197 = vrot.slane %v2665, 5
        %v3198 = vsel %vm3152, %v3196, %v3197
        %v3199 = vrot.slane %v3197, 4
        %v3200 = vrot.slane %v2666, 5
        %v3201 = vsel %vm3152, %v3199, %v3200
        %v3202 = vrot.slane %v3089, 5
        %v3203 = vrot.slane %v3202, 4
        %v3204 = vrot.slane %v2668, 5
        %v3205 = vsel %vm3152, %v3203, %v3204
        %v3206 = vrot.slane %v3204, 4
        %v3207 = vrot.slane %v2669, 5
        %v3208 = vsel %vm3152, %v3206, %v3207
        %v3209 = vrot.slane %v3090, 5
        %v3210 = vrot.slane %v3209, 4
        %v3211 = vrot.slane %v2671, 5
        %v3212 = vsel %vm3152, %v3210, %v3211
        %v3213 = vrot.slane %v3211, 4
        %v3214 = vrot.slane %v2672, 5
        %v3215 = vsel %vm3152, %v3213, %v3214
        %v3216 = vrot.slane %v3091, 5
        %v3217 = vrot.slane %v3216, 4
        %v3218 = vrot.slane %v2674, 5
        %v3219 = vsel %vm3152, %v3217, %v3218
        %v3220 = vrot.slane %v3218, 4
        %v3221 = vrot.slane %v2675, 5
        %v3222 = vsel %vm3152, %v3220, %v3221
        %v3223 = vrot.slane %v3092, 5
        %v3224 = vrot.slane %v3223, 4
        %v3225 = vrot.slane %v2677, 5
        %v3226 = vsel %vm3152, %v3224, %v3225
        %v3227 = vrot.slane %v3225, 4
        %v3228 = vrot.slane %v2678, 5
        %v3229 = vsel %vm3152, %v3227, %v3228
        %v3230 = vrot.slane %v3093, 5
        %v3231 = vrot.slane %v3230, 4
        %v3232 = vrot.slane %v2680, 5
        %v3233 = vsel %vm3152, %v3231, %v3232
        %v3234 = vrot.slane %v3232, 4
        %v3235 = vrot.slane %v2681, 5
        %v3236 = vsel %vm3152, %v3234, %v3235
        %v3237 = vrot.slane %v3094, 5
        %v3238 = vrot.slane %v3237, 4
        %v3239 = vrot.slane %v2683, 5
        %v3240 = vsel %vm3152, %v3238, %v3239
        %v3241 = vrot.slane %v3239, 4
        %v3242 = vrot.slane %v2684, 5
        %v3243 = vsel %vm3152, %v3241, %v3242
        %v3244 = vrot.slane %v3095, 5
        %v3245 = vrot.slane %v3244, 4
        %v3246 = vrot.slane %v2686, 5
        %v3247 = vsel %vm3152, %v3245, %v3246
        %v3248 = vrot.slane %v3246, 4
        %v3249 = vrot.slane %v2687, 5
        %v3250 = vsel %vm3152, %v3248, %v3249
        %v3251 = vrot.slane %v3096, 5
        %v3252 = vrot.slane %v3251, 4
        %v3253 = vrot.slane %v2689, 5
        %v3254 = vsel %vm3152, %v3252, %v3253
        %v3255 = vrot.slane %v3253, 4
        %v3256 = vrot.slane %v2690, 5
        %v3257 = vsel %vm3152, %v3255, %v3256
        %v3258 = vrot.slane %v3097, 5
        %v3259 = vrot.slane %v3258, 4
        %v3260 = vrot.slane %v2692, 5
        %v3261 = vsel %vm3152, %v3259, %v3260
        %v3262 = vrot.slane %v3260, 4
        %v3263 = vrot.slane %v2693, 5
        %v3264 = vsel %vm3152, %v3262, %v3263
        %v3265 = vunpack.c.l.b16 %v3156
        %v3266 = vunpack.c.l.b16 %v3159
        %v3267 = vunpack.c.l.b16 %v3163
        %v3268 = vunpack.c.l.b16 %v3166
        %v3269 = vunpack.c.l.b16 %v3170
        %v3270 = vunpack.c.l.b16 %v3173
        %v3271 = vunpack.c.l.b16 %v3177
        %v3272 = vunpack.c.l.b16 %v3180
        %v3273 = vunpack.c.l.b16 %v3184
        %v3274 = vunpack.c.l.b16 %v3187
        %v3275 = vunpack.c.l.b16 %v3191
        %v3276 = vunpack.c.l.b16 %v3194
        %v3277 = vunpack.c.l.b16 %v3198
        %v3278 = vunpack.c.l.b16 %v3201
        %v3279 = vunpack.c.l.b16 %v3205
        %v3280 = vunpack.c.l.b16 %v3208
        %v3281 = vunpack.c.l.b16 %v3212
        %v3282 = vunpack.c.l.b16 %v3215
        %v3283 = vunpack.c.l.b16 %v3219
        %v3284 = vunpack.c.l.b16 %v3222
        %v3285 = vunpack.c.l.b16 %v3226
        %v3286 = vunpack.c.l.b16 %v3229
        %v3287 = vunpack.c.l.b16 %v3233
        %v3288 = vunpack.c.l.b16 %v3236
        %v3289 = vunpack.c.l.b16 %v3240
        %v3290 = vunpack.c.l.b16 %v3243
        %v3291 = vunpack.c.l.b16 %v3247
        %v3292 = vunpack.c.l.b16 %v3250
        %v3293 = vunpack.c.l.b16 %v3254
        %v3294 = vunpack.c.l.b16 %v3257
        %v3295 = vunpack.c.l.b16 %v3261
        %v3296 = vunpack.c.l.b16 %v3264
        %v3297 = vpack.c.b16 %v3266, %v3265
        %v3298 = vpack.c.b16 %v3268, %v3267
        %v3299 = vpack.c.b16 %v3270, %v3269
        %v3300 = vpack.c.b16 %v3272, %v3271
        %v3301 = vpack.c.b16 %v3274, %v3273
        %v3302 = vpack.c.b16 %v3276, %v3275
        %v3303 = vpack.c.b16 %v3278, %v3277
        %v3304 = vpack.c.b16 %v3280, %v3279
        %v3305 = vpack.c.b16 %v3282, %v3281
        %v3306 = vpack.c.b16 %v3284, %v3283
        %v3307 = vpack.c.b16 %v3286, %v3285
        %v3308 = vpack.c.b16 %v3288, %v3287
        %v3309 = vpack.c.b16 %v3290, %v3289
        %v3310 = vpack.c.b16 %v3292, %v3291
        %v3311 = vpack.c.b16 %v3294, %v3293
        %v3312 = vpack.c.b16 %v3296, %v3295
        %v3317 = vunpack.c.l.b16 %v3098
        %v3318 = vunpack.c.l.b16 %v3099
        %v3319 = vunpack.c.l.b16 %v3100
        %v3320 = vunpack.c.l.b16 %v3101
        %v3321 = vpack.c.b16 %v3318, %v3317
        %v3322 = vpack.c.b16 %v3320, %v3319
        %v3326 = vsel %vm760, %v3297, 0
        %v3329 = vsel %vm760, %v3298, 0
        %v3332 = vsel %vm760, %v3299, 0
        %v3335 = vsel %vm760, %v3300, 0
        %v3338 = vsel %vm760, %v3301, 0
        %v3341 = vsel %vm760, %v3302, 0
        %v3344 = vsel %vm760, %v3303, 0
        %v3347 = vsel %vm760, %v3304, 0
        %v3350 = vsel %vm760, %v3305, 0
        %v3353 = vsel %vm760, %v3306, 0
        %v3356 = vsel %vm760, %v3307, 0
        %v3359 = vsel %vm760, %v3308, 0
        %v3362 = vsel %vm760, %v3309, 0
        %v3365 = vsel %vm760, %v3310, 0
        %v3368 = vsel %vm760, %v3311, 0
        %v3371 = vsel %vm760, %v3312, 0
        %3373 = vmatprep.subr.bf16.mxu0 0
        %3374 = vmatpush1.bf16.msra.mxu0 %v3321
        %3375 = vmatprep.subr.bf16.mxu0 0
        %3376 = vmatpush1.bf16.msra.mxu0 %v3322
        %3377 = vmatprep.subr.bf16.mxu0 0
        %3378 = vmatpush1.bf16.msra.mxu0 0
        %3379 = vmatprep.subr.bf16.mxu0 0
        %3380 = vmatpush1.bf16.msra.mxu0 0
        %3381 = vmatprep.subr.bf16.mxu0 0
        %3382 = vmatpush1.bf16.msra.mxu0 0
        %3383 = vmatprep.subr.bf16.mxu0 0
        %3384 = vmatpush1.bf16.msra.mxu0 0
        %3385 = vmatprep.subr.bf16.mxu0 0
        %3386 = vmatpush1.bf16.msra.mxu0 0
        %3387 = vmatprep.subr.bf16.mxu0 0
        %3388 = vmatpush1.bf16.msra.mxu0 0
        %3389 = vmatprep.subr.bf16.mxu0 0
        %3390 = vmatpush1.bf16.msra.mxu0 0
        %3391 = vmatprep.subr.bf16.mxu0 0
        %3392 = vmatpush1.bf16.msra.mxu0 0
        %3393 = vmatprep.subr.bf16.mxu0 0
        %3394 = vmatpush1.bf16.msra.mxu0 0
        %3395 = vmatprep.subr.bf16.mxu0 0
        %3396 = vmatpush1.bf16.msra.mxu0 0
        %3397 = vmatprep.subr.bf16.mxu0 0
        %3398 = vmatpush1.bf16.msra.mxu0 0
        %3399 = vmatprep.subr.bf16.mxu0 0
        %3400 = vmatpush1.bf16.msra.mxu0 0
        %3401 = vmatprep.subr.bf16.mxu0 0
        %3402 = vmatpush1.bf16.msra.mxu0 0
        %3403 = vmatprep.subr.bf16.mxu0 0
        %3404 = vmatpush1.bf16.msra.mxu0 0
        %3405 = vmatprep.mubr.bf16.mxu0 0
        %3406 = vmatmul.mubr.bf16.gmra.mrb[0].mxu0 %v3326
        %v3407 = vpop.f32.mrb[0].mxu0
        %v3408 = vadd.f32 0.0, %v3407
        %v3409 = vpop.f32.mrb[0].mxu0
        %v3410 = vpop.f32.mrb[0].mxu0
        %v3411 = vadd.f32 0.0, %v3410
        %v3412 = vpop.f32.mrb[0].mxu0
        %3413 = vmatprep.mubr.bf16.mxu0 0
        %3414 = vmatmul.mubr.bf16.gmra.mrb[0].mxu0 %v3329
        %v3415 = vpop.f32.mrb[0].mxu0
        %v3416 = vadd.f32 0.0, %v3415
        %v3417 = vpop.f32.mrb[0].mxu0
        %v3418 = vpop.f32.mrb[0].mxu0
        %v3419 = vadd.f32 0.0, %v3418
        %v3420 = vpop.f32.mrb[0].mxu0
        %3421 = vmatprep.mubr.bf16.mxu0 0
        %3422 = vmatmul.mubr.bf16.gmra.mrb[0].mxu0 %v3332
        %v3423 = vpop.f32.mrb[0].mxu0
        %v3424 = vadd.f32 0.0, %v3423
        %v3425 = vpop.f32.mrb[0].mxu0
        %v3426 = vpop.f32.mrb[0].mxu0
        %v3427 = vadd.f32 0.0, %v3426
        %v3428 = vpop.f32.mrb[0].mxu0
        %3429 = vmatprep.mubr.bf16.mxu0 0
        %3430 = vmatmul.mubr.bf16.gmra.mrb[0].mxu0 %v3335
        %v3431 = vpop.f32.mrb[0].mxu0
        %v3432 = vadd.f32 0.0, %v3431
        %v3433 = vpop.f32.mrb[0].mxu0
        %v3434 = vpop.f32.mrb[0].mxu0
        %v3435 = vadd.f32 0.0, %v3434
        %v3436 = vpop.f32.mrb[0].mxu0
        %3437 = vmatprep.mubr.bf16.mxu0 0
        %3438 = vmatmul.mubr.bf16.gmra.mrb[0].mxu0 %v3338
        %v3439 = vpop.f32.mrb[0].mxu0
        %v3440 = vadd.f32 0.0, %v3439
        %v3441 = vpop.f32.mrb[0].mxu0
        %v3442 = vpop.f32.mrb[0].mxu0
        %v3443 = vadd.f32 0.0, %v3442
        %v3444 = vpop.f32.mrb[0].mxu0
        %3445 = vmatprep.mubr.bf16.mxu0 0
        %3446 = vmatmul.mubr.bf16.gmra.mrb[0].mxu0 %v3341
        %v3447 = vpop.f32.mrb[0].mxu0
        %v3448 = vadd.f32 0.0, %v3447
        %v3449 = vpop.f32.mrb[0].mxu0
        %v3450 = vpop.f32.mrb[0].mxu0
        %v3451 = vadd.f32 0.0, %v3450
        %v3452 = vpop.f32.mrb[0].mxu0
        %3453 = vmatprep.mubr.bf16.mxu0 0
        %3454 = vmatmul.mubr.bf16.gmra.mrb[0].mxu0 %v3344
        %v3455 = vpop.f32.mrb[0].mxu0
        %v3456 = vadd.f32 0.0, %v3455
        %v3457 = vpop.f32.mrb[0].mxu0
        %v3458 = vpop.f32.mrb[0].mxu0
        %v3459 = vadd.f32 0.0, %v3458
        %v3460 = vpop.f32.mrb[0].mxu0
        %3461 = vmatprep.mubr.bf16.mxu0 0
        %3462 = vmatmul.mubr.bf16.gmra.mrb[0].mxu0 %v3347
        %v3463 = vpop.f32.mrb[0].mxu0
        %v3464 = vadd.f32 0.0, %v3463
        %v3465 = vpop.f32.mrb[0].mxu0
        %v3466 = vpop.f32.mrb[0].mxu0
        %v3467 = vadd.f32 0.0, %v3466
        %v3468 = vpop.f32.mrb[0].mxu0
        %3469 = vmatprep.mubr.bf16.mxu0 0
        %3470 = vmatmul.mubr.bf16.gmra.mrb[0].mxu0 %v3350
        %v3471 = vpop.f32.mrb[0].mxu0
        %v3472 = vadd.f32 0.0, %v3471
        %v3473 = vpop.f32.mrb[0].mxu0
        %v3474 = vpop.f32.mrb[0].mxu0
        %v3475 = vadd.f32 0.0, %v3474
        %v3476 = vpop.f32.mrb[0].mxu0
        %3477 = vmatprep.mubr.bf16.mxu0 0
        %3478 = vmatmul.mubr.bf16.gmra.mrb[0].mxu0 %v3353
        %v3479 = vpop.f32.mrb[0].mxu0
        %v3480 = vadd.f32 0.0, %v3479
        %v3481 = vpop.f32.mrb[0].mxu0
        %v3482 = vpop.f32.mrb[0].mxu0
        %v3483 = vadd.f32 0.0, %v3482
        %v3484 = vpop.f32.mrb[0].mxu0
        %3485 = vmatprep.mubr.bf16.mxu0 0
        %3486 = vmatmul.mubr.bf16.gmra.mrb[0].mxu0 %v3356
        %v3487 = vpop.f32.mrb[0].mxu0
        %v3488 = vadd.f32 0.0, %v3487
        %v3489 = vpop.f32.mrb[0].mxu0
        %v3490 = vpop.f32.mrb[0].mxu0
        %v3491 = vadd.f32 0.0, %v3490
        %v3492 = vpop.f32.mrb[0].mxu0
        %3493 = vmatprep.mubr.bf16.mxu0 0
        %3494 = vmatmul.mubr.bf16.gmra.mrb[0].mxu0 %v3359
        %v3495 = vpop.f32.mrb[0].mxu0
        %v3496 = vadd.f32 0.0, %v3495
        %v3497 = vpop.f32.mrb[0].mxu0
        %v3498 = vpop.f32.mrb[0].mxu0
        %v3499 = vadd.f32 0.0, %v3498
        %v3500 = vpop.f32.mrb[0].mxu0
        %3501 = vmatprep.mubr.bf16.mxu0 0
        %3502 = vmatmul.mubr.bf16.gmra.mrb[0].mxu0 %v3362
        %v3503 = vpop.f32.mrb[0].mxu0
        %v3504 = vadd.f32 0.0, %v3503
        %v3505 = vpop.f32.mrb[0].mxu0
        %v3506 = vpop.f32.mrb[0].mxu0
        %v3507 = vadd.f32 0.0, %v3506
        %v3508 = vpop.f32.mrb[0].mxu0
        %3509 = vmatprep.mubr.bf16.mxu0 0
        %3510 = vmatmul.mubr.bf16.gmra.mrb[0].mxu0 %v3365
        %v3511 = vpop.f32.mrb[0].mxu0
        %v3512 = vadd.f32 0.0, %v3511
        %v3513 = vpop.f32.mrb[0].mxu0
        %v3514 = vpop.f32.mrb[0].mxu0
        %v3515 = vadd.f32 0.0, %v3514
        %v3516 = vpop.f32.mrb[0].mxu0
        %3517 = vmatprep.mubr.bf16.mxu0 0
        %3518 = vmatmul.mubr.bf16.gmra.mrb[0].mxu0 %v3368
        %v3519 = vpop.f32.mrb[0].mxu0
        %v3520 = vadd.f32 0.0, %v3519
        %v3521 = vpop.f32.mrb[0].mxu0
        %v3522 = vpop.f32.mrb[0].mxu0
        %v3523 = vadd.f32 0.0, %v3522
        %v3524 = vpop.f32.mrb[0].mxu0
        %3525 = vmatprep.mubr.bf16.mxu0 0
        %3526 = vmatmul.mubr.bf16.gmra.mrb[0].mxu0 %v3371
        %v3527 = vpop.f32.mrb[0].mxu0
        %v3528 = vadd.f32 0.0, %v3527
        %v3529 = vpop.f32.mrb[0].mxu0
        %v3530 = vpop.f32.mrb[0].mxu0
        %v3531 = vadd.f32 0.0, %v3530
        %v3532 = vpop.f32.mrb[0].mxu0
        %3533 = vdwg.mxu0
        %v3534 = vunpack.c.l.b16 %v2711
        %v3535 = vunpack.c.l.b16 %v2721
        %v3536 = vunpack.c.l.b16 %v2735
        %v3537 = vunpack.c.l.b16 %v2745
        %v3538 = vunpack.c.l.b16 %v2759
        %v3539 = vunpack.c.l.b16 %v2769
        %v3540 = vunpack.c.l.b16 %v2783
        %v3541 = vunpack.c.l.b16 %v2793
        %v3542 = vunpack.c.l.b16 %v2807
        %v3543 = vunpack.c.l.b16 %v2817
        %v3544 = vunpack.c.l.b16 %v2831
        %v3545 = vunpack.c.l.b16 %v2841
        %v3546 = vunpack.c.l.b16 %v2855
        %v3547 = vunpack.c.l.b16 %v2865
        %v3548 = vunpack.c.l.b16 %v2879
        %v3549 = vunpack.c.l.b16 %v2889
        %v3550 = vunpack.c.l.b16 %v2903
        %v3551 = vunpack.c.l.b16 %v2913
        %v3552 = vunpack.c.l.b16 %v2927
        %v3553 = vunpack.c.l.b16 %v2937
        %v3554 = vunpack.c.l.b16 %v2951
        %v3555 = vunpack.c.l.b16 %v2961
        %v3556 = vunpack.c.l.b16 %v2975
        %v3557 = vunpack.c.l.b16 %v2985
        %v3558 = vunpack.c.l.b16 %v2999
        %v3559 = vunpack.c.l.b16 %v3009
        %v3560 = vunpack.c.l.b16 %v3023
        %v3561 = vunpack.c.l.b16 %v3033
        %v3562 = vunpack.c.l.b16 %v3047
        %v3563 = vunpack.c.l.b16 %v3057
        %v3564 = vunpack.c.l.b16 %v3071
        %v3565 = vunpack.c.l.b16 %v3081
        %v3566 = vpack.c.b16 %v3535, %v3534
        %v3567 = vpack.c.b16 %v3537, %v3536
        %v3568 = vpack.c.b16 %v3539, %v3538
        %v3569 = vpack.c.b16 %v3541, %v3540
        %v3570 = vpack.c.b16 %v3543, %v3542
        %v3571 = vpack.c.b16 %v3545, %v3544
        %v3572 = vpack.c.b16 %v3547, %v3546
        %v3573 = vpack.c.b16 %v3549, %v3548
        %v3574 = vpack.c.b16 %v3551, %v3550
        %v3575 = vpack.c.b16 %v3553, %v3552
        %v3576 = vpack.c.b16 %v3555, %v3554
        %v3577 = vpack.c.b16 %v3557, %v3556
        %v3578 = vpack.c.b16 %v3559, %v3558
        %v3579 = vpack.c.b16 %v3561, %v3560
        %v3580 = vpack.c.b16 %v3563, %v3562
        %v3581 = vpack.c.b16 %v3565, %v3564
        %v3586 = vunpack.c.l.b16 %v2694
        %v3587 = vunpack.c.l.b16 %v2695
        %v3588 = vunpack.c.l.b16 %v2696
        %v3589 = vunpack.c.l.b16 %v2697
        %v3590 = vpack.c.b16 %v3587, %v3586
        %v3591 = vpack.c.b16 %v3589, %v3588
        %v3595 = vsel %vm760, %v3566, 0
        %v3598 = vsel %vm760, %v3567, 0
        %v3601 = vsel %vm760, %v3568, 0
        %v3604 = vsel %vm760, %v3569, 0
        %v3607 = vsel %vm760, %v3570, 0
        %v3610 = vsel %vm760, %v3571, 0
        %v3613 = vsel %vm760, %v3572, 0
        %v3616 = vsel %vm760, %v3573, 0
        %v3619 = vsel %vm760, %v3574, 0
        %v3622 = vsel %vm760, %v3575, 0
        %v3625 = vsel %vm760, %v3576, 0
        %v3628 = vsel %vm760, %v3577, 0
        %v3631 = vsel %vm760, %v3578, 0
        %v3634 = vsel %vm760, %v3579, 0
        %v3637 = vsel %vm760, %v3580, 0
        %v3640 = vsel %vm760, %v3581, 0
        %3642 = vmatprep.subr.bf16.mxu0 0
        %3643 = vmatpush1.bf16.msra.mxu0 %v3590
        %3644 = vmatprep.subr.bf16.mxu0 0
        %3645 = vmatpush1.bf16.msra.mxu0 %v3591
        %3646 = vmatprep.subr.bf16.mxu0 0
        %3647 = vmatpush1.bf16.msra.mxu0 0
        %3648 = vmatprep.subr.bf16.mxu0 0
        %3649 = vmatpush1.bf16.msra.mxu0 0
        %3650 = vmatprep.subr.bf16.mxu0 0
        %3651 = vmatpush1.bf16.msra.mxu0 0
        %3652 = vmatprep.subr.bf16.mxu0 0
        %3653 = vmatpush1.bf16.msra.mxu0 0
        %3654 = vmatprep.subr.bf16.mxu0 0
        %3655 = vmatpush1.bf16.msra.mxu0 0
        %3656 = vmatprep.subr.bf16.mxu0 0
        %3657 = vmatpush1.bf16.msra.mxu0 0
        %3658 = vmatprep.subr.bf16.mxu0 0
        %3659 = vmatpush1.bf16.msra.mxu0 0
        %3660 = vmatprep.subr.bf16.mxu0 0
        %3661 = vmatpush1.bf16.msra.mxu0 0
        %3662 = vmatprep.subr.bf16.mxu0 0
        %3663 = vmatpush1.bf16.msra.mxu0 0
        %3664 = vmatprep.subr.bf16.mxu0 0
        %3665 = vmatpush1.bf16.msra.mxu0 0
        %3666 = vmatprep.subr.bf16.mxu0 0
        %3667 = vmatpush1.bf16.msra.mxu0 0
        %3668 = vmatprep.subr.bf16.mxu0 0
        %3669 = vmatpush1.bf16.msra.mxu0 0
        %3670 = vmatprep.subr.bf16.mxu0 0
        %3671 = vmatpush1.bf16.msra.mxu0 0
        %3672 = vmatprep.subr.bf16.mxu0 0
        %3673 = vmatpush1.bf16.msra.mxu0 0
        %3674 = vmatprep.mubr.bf16.mxu0 0
        %3675 = vmatmul.mubr.bf16.gmra.mrb[0].mxu0 %v3595
        %v3676 = vpop.f32.mrb[0].mxu0
        %v3677 = vadd.f32 %v3408, %v3676
        %v3678 = vpop.f32.mrb[0].mxu0
        %v3679 = vpop.f32.mrb[0].mxu0
        %v3680 = vadd.f32 %v3411, %v3679
        %v3681 = vpop.f32.mrb[0].mxu0
        %3682 = vmatprep.mubr.bf16.mxu0 0
        %3683 = vmatmul.mubr.bf16.gmra.mrb[0].mxu0 %v3598
        %v3684 = vpop.f32.mrb[0].mxu0
        %v3685 = vadd.f32 %v3416, %v3684
        %v3686 = vpop.f32.mrb[0].mxu0
        %v3687 = vpop.f32.mrb[0].mxu0
        %v3688 = vadd.f32 %v3419, %v3687
        %v3689 = vpop.f32.mrb[0].mxu0
        %3690 = vmatprep.mubr.bf16.mxu0 0
        %3691 = vmatmul.mubr.bf16.gmra.mrb[0].mxu0 %v3601
        %v3692 = vpop.f32.mrb[0].mxu0
        %v3693 = vadd.f32 %v3424, %v3692
        %v3694 = vpop.f32.mrb[0].mxu0
        %v3695 = vpop.f32.mrb[0].mxu0
        %v3696 = vadd.f32 %v3427, %v3695
        %v3697 = vpop.f32.mrb[0].mxu0
        %3698 = vmatprep.mubr.bf16.mxu0 0
        %3699 = vmatmul.mubr.bf16.gmra.mrb[0].mxu0 %v3604
        %v3700 = vpop.f32.mrb[0].mxu0
        %v3701 = vadd.f32 %v3432, %v3700
        %v3702 = vpop.f32.mrb[0].mxu0
        %v3703 = vpop.f32.mrb[0].mxu0
        %v3704 = vadd.f32 %v3435, %v3703
        %v3705 = vpop.f32.mrb[0].mxu0
        %3706 = vmatprep.mubr.bf16.mxu0 0
        %3707 = vmatmul.mubr.bf16.gmra.mrb[0].mxu0 %v3607
        %v3708 = vpop.f32.mrb[0].mxu0
        %v3709 = vadd.f32 %v3440, %v3708
        %v3710 = vpop.f32.mrb[0].mxu0
        %v3711 = vpop.f32.mrb[0].mxu0
        %v3712 = vadd.f32 %v3443, %v3711
        %v3713 = vpop.f32.mrb[0].mxu0
        %3714 = vmatprep.mubr.bf16.mxu0 0
        %3715 = vmatmul.mubr.bf16.gmra.mrb[0].mxu0 %v3610
        %v3716 = vpop.f32.mrb[0].mxu0
        %v3717 = vadd.f32 %v3448, %v3716
        %v3718 = vpop.f32.mrb[0].mxu0
        %v3719 = vpop.f32.mrb[0].mxu0
        %v3720 = vadd.f32 %v3451, %v3719
        %v3721 = vpop.f32.mrb[0].mxu0
        %3722 = vmatprep.mubr.bf16.mxu0 0
        %3723 = vmatmul.mubr.bf16.gmra.mrb[0].mxu0 %v3613
        %v3724 = vpop.f32.mrb[0].mxu0
        %v3725 = vadd.f32 %v3456, %v3724
        %v3726 = vpop.f32.mrb[0].mxu0
        %v3727 = vpop.f32.mrb[0].mxu0
        %v3728 = vadd.f32 %v3459, %v3727
        %v3729 = vpop.f32.mrb[0].mxu0
        %3730 = vmatprep.mubr.bf16.mxu0 0
        %3731 = vmatmul.mubr.bf16.gmra.mrb[0].mxu0 %v3616
        %v3732 = vpop.f32.mrb[0].mxu0
        %v3733 = vadd.f32 %v3464, %v3732
        %v3734 = vpop.f32.mrb[0].mxu0
        %v3735 = vpop.f32.mrb[0].mxu0
        %v3736 = vadd.f32 %v3467, %v3735
        %v3737 = vpop.f32.mrb[0].mxu0
        %3738 = vmatprep.mubr.bf16.mxu0 0
        %3739 = vmatmul.mubr.bf16.gmra.mrb[0].mxu0 %v3619
        %v3740 = vpop.f32.mrb[0].mxu0
        %v3741 = vadd.f32 %v3472, %v3740
        %v3742 = vpop.f32.mrb[0].mxu0
        %v3743 = vpop.f32.mrb[0].mxu0
        %v3744 = vadd.f32 %v3475, %v3743
        %v3745 = vpop.f32.mrb[0].mxu0
        %3746 = vmatprep.mubr.bf16.mxu0 0
        %3747 = vmatmul.mubr.bf16.gmra.mrb[0].mxu0 %v3622
        %v3748 = vpop.f32.mrb[0].mxu0
        %v3749 = vadd.f32 %v3480, %v3748
        %v3750 = vpop.f32.mrb[0].mxu0
        %v3751 = vpop.f32.mrb[0].mxu0
        %v3752 = vadd.f32 %v3483, %v3751
        %v3753 = vpop.f32.mrb[0].mxu0
        %3754 = vmatprep.mubr.bf16.mxu0 0
        %3755 = vmatmul.mubr.bf16.gmra.mrb[0].mxu0 %v3625
        %v3756 = vpop.f32.mrb[0].mxu0
        %v3757 = vadd.f32 %v3488, %v3756
        %v3758 = vpop.f32.mrb[0].mxu0
        %v3759 = vpop.f32.mrb[0].mxu0
        %v3760 = vadd.f32 %v3491, %v3759
        %v3761 = vpop.f32.mrb[0].mxu0
        %3762 = vmatprep.mubr.bf16.mxu0 0
        %3763 = vmatmul.mubr.bf16.gmra.mrb[0].mxu0 %v3628
        %v3764 = vpop.f32.mrb[0].mxu0
        %v3765 = vadd.f32 %v3496, %v3764
        %v3766 = vpop.f32.mrb[0].mxu0
        %v3767 = vpop.f32.mrb[0].mxu0
        %v3768 = vadd.f32 %v3499, %v3767
        %v3769 = vpop.f32.mrb[0].mxu0
        %3770 = vmatprep.mubr.bf16.mxu0 0
        %3771 = vmatmul.mubr.bf16.gmra.mrb[0].mxu0 %v3631
        %v3772 = vpop.f32.mrb[0].mxu0
        %v3773 = vadd.f32 %v3504, %v3772
        %v3774 = vpop.f32.mrb[0].mxu0
        %v3775 = vpop.f32.mrb[0].mxu0
        %v3776 = vadd.f32 %v3507, %v3775
        %v3777 = vpop.f32.mrb[0].mxu0
        %3778 = vmatprep.mubr.bf16.mxu0 0
        %3779 = vmatmul.mubr.bf16.gmra.mrb[0].mxu0 %v3634
        %v3780 = vpop.f32.mrb[0].mxu0
        %v3781 = vadd.f32 %v3512, %v3780
        %v3782 = vpop.f32.mrb[0].mxu0
        %v3783 = vpop.f32.mrb[0].mxu0
        %v3784 = vadd.f32 %v3515, %v3783
        %v3785 = vpop.f32.mrb[0].mxu0
        %3786 = vmatprep.mubr.bf16.mxu0 0
        %3787 = vmatmul.mubr.bf16.gmra.mrb[0].mxu0 %v3637
        %v3788 = vpop.f32.mrb[0].mxu0
        %v3789 = vadd.f32 %v3520, %v3788
        %v3790 = vpop.f32.mrb[0].mxu0
        %v3791 = vpop.f32.mrb[0].mxu0
        %v3792 = vadd.f32 %v3523, %v3791
        %v3793 = vpop.f32.mrb[0].mxu0
        %3794 = vmatprep.mubr.bf16.mxu0 0
        %3795 = vmatmul.mubr.bf16.gmra.mrb[0].mxu0 %v3640
        %v3796 = vpop.f32.mrb[0].mxu0
        %v3797 = vadd.f32 %v3528, %v3796
        %v3798 = vpop.f32.mrb[0].mxu0
        %v3799 = vpop.f32.mrb[0].mxu0
        %v3800 = vadd.f32 %v3531, %v3799
        %v3801 = vpop.f32.mrb[0].mxu0
        %3802 = vdwg.mxu0
        %v3803 = vld [vmem:[%s1271] sm:$0xf]
        %v3804 = vld [vmem:[%s1271 + $0x4] sm:$0xf]
        %v3805 = vld [vmem:[%s1271 + $0x8] sm:$0x1]
        %v3806 = vld [vmem:[%s1271 + $0xc] sm:$0xf]
        %v3807 = vld [vmem:[%s1271 + $0x10] sm:$0xf]
        %v3808 = vld [vmem:[%s1271 + $0x14] sm:$0x1]
        %v3809 = vld [vmem:[%s1271 + $0x18] sm:$0xf]
        %v3810 = vld [vmem:[%s1271 + $0x1c] sm:$0xf]
        %v3811 = vld [vmem:[%s1271 + $0x20] sm:$0x1]
        %v3812 = vld [vmem:[%s1271 + $0x24] sm:$0xf]
        %v3813 = vld [vmem:[%s1271 + $0x28] sm:$0xf]
        %v3814 = vld [vmem:[%s1271 + $0x2c] sm:$0x1]
        %v3815 = vld [vmem:[%s1271 + $0x30] sm:$0xf]
        %v3816 = vld [vmem:[%s1271 + $0x34] sm:$0xf]
        %v3817 = vld [vmem:[%s1271 + $0x38] sm:$0x1]
        %v3818 = vld [vmem:[%s1271 + $0x3c] sm:$0xf]
        %v3819 = vld [vmem:[%s1271 + $0x40] sm:$0xf]
        %v3820 = vld [vmem:[%s1271 + $0x44] sm:$0x1]
        %v3821 = vld [vmem:[%s1271 + $0x48] sm:$0xf]
        %v3822 = vld [vmem:[%s1271 + $0x4c] sm:$0xf]
        %v3823 = vld [vmem:[%s1271 + $0x50] sm:$0x1]
        %v3824 = vld [vmem:[%s1271 + $0x54] sm:$0xf]
        %v3825 = vld [vmem:[%s1271 + $0x58] sm:$0xf]
        %v3826 = vld [vmem:[%s1271 + $0x5c] sm:$0x1]
        %v3827 = vld [vmem:[%s1271 + $0x60] sm:$0xf]
        %v3828 = vld [vmem:[%s1271 + $0x64] sm:$0xf]
        %v3829 = vld [vmem:[%s1271 + $0x68] sm:$0x1]
        %v3830 = vld [vmem:[%s1271 + $0x6c] sm:$0xf]
        %v3831 = vld [vmem:[%s1271 + $0x70] sm:$0xf]
        %v3832 = vld [vmem:[%s1271 + $0x74] sm:$0x1]
        %v3833 = vld [vmem:[%s1271 + $0x78] sm:$0xf]
        %v3834 = vld [vmem:[%s1271 + $0x7c] sm:$0xf]
        %v3835 = vld [vmem:[%s1271 + $0x80] sm:$0x1]
        %v3836 = vld [vmem:[%s1271 + $0x84] sm:$0xf]
        %v3837 = vld [vmem:[%s1271 + $0x88] sm:$0xf]
        %v3838 = vld [vmem:[%s1271 + $0x8c] sm:$0x1]
        %v3839 = vld [vmem:[%s1271 + $0x90] sm:$0xf]
        %v3840 = vld [vmem:[%s1271 + $0x94] sm:$0xf]
        %v3841 = vld [vmem:[%s1271 + $0x98] sm:$0x1]
        %v3842 = vld [vmem:[%s1271 + $0x9c] sm:$0xf]
        %v3843 = vld [vmem:[%s1271 + $0xa0] sm:$0xf]
        %v3844 = vld [vmem:[%s1271 + $0xa4] sm:$0x1]
        %v3845 = vld [vmem:[%s1271 + $0xa8] sm:$0xf]
        %v3846 = vld [vmem:[%s1271 + $0xac] sm:$0xf]
        %v3847 = vld [vmem:[%s1271 + $0xb0] sm:$0x1]
        %v3848 = vld [vmem:[%s1271 + $0xb4] sm:$0xf]
        %v3849 = vld [vmem:[%s1271 + $0xb8] sm:$0xf]
        %v3850 = vld [vmem:[%s1271 + $0xbc] sm:$0x1]
        %v3851 = vld [vmem:[%s243 + $0x60] sm:$0xf]
        %v3852 = vld [vmem:[%s243 + $0x64] sm:$0xf]
        %v3853 = vld [vmem:[%s243 + $0x68] sm:$0xf]
        %v3854 = vld [vmem:[%s243 + $0x6c] sm:$0xf]
        %v3856 = vshrl.u32 %v3803, 16
        %v3858 = vrot.slane %v3856, 4
        %v3859 = vshll.u32 %v3803, 16
        %v3861 = vrot.slane %v3859, 5
        %v3862 = vor.u32 %v3858, %v3861
        %v3863 = vrot.slane %v3862, 4
        %v3865 = vshll.u32 %v3804, 16
        %v3867 = vrot.slane %v3865, 5
        %v3868 = vsel %vm315, %v3863, %v3867
        %v3869 = vshrl.u32 %v3804, 16
        %v3871 = vrot.slane %v3869, 4
        %v3872 = vor.u32 %v3871, %v3867
        %v3873 = vrot.slane %v3872, 4
        %v3875 = vshll.u32 %v3805, 16
        %v3877 = vrot.slane %v3875, 5
        %v3878 = vsel %vm315, %v3873, %v3877
        %v3880 = vshrl.u32 %v3806, 16
        %v3882 = vrot.slane %v3880, 4
        %v3883 = vshll.u32 %v3806, 16
        %v3885 = vrot.slane %v3883, 5
        %v3886 = vor.u32 %v3882, %v3885
        %v3887 = vrot.slane %v3886, 4
        %v3889 = vshll.u32 %v3807, 16
        %v3891 = vrot.slane %v3889, 5
        %v3892 = vsel %vm315, %v3887, %v3891
        %v3893 = vshrl.u32 %v3807, 16
        %v3895 = vrot.slane %v3893, 4
        %v3896 = vor.u32 %v3895, %v3891
        %v3897 = vrot.slane %v3896, 4
        %v3899 = vshll.u32 %v3808, 16
        %v3901 = vrot.slane %v3899, 5
        %v3902 = vsel %vm315, %v3897, %v3901
        %v3904 = vshrl.u32 %v3809, 16
        %v3906 = vrot.slane %v3904, 4
        %v3907 = vshll.u32 %v3809, 16
        %v3909 = vrot.slane %v3907, 5
        %v3910 = vor.u32 %v3906, %v3909
        %v3911 = vrot.slane %v3910, 4
        %v3913 = vshll.u32 %v3810, 16
        %v3915 = vrot.slane %v3913, 5
        %v3916 = vsel %vm315, %v3911, %v3915
        %v3917 = vshrl.u32 %v3810, 16
        %v3919 = vrot.slane %v3917, 4
        %v3920 = vor.u32 %v3919, %v3915
        %v3921 = vrot.slane %v3920, 4
        %v3923 = vshll.u32 %v3811, 16
        %v3925 = vrot.slane %v3923, 5
        %v3926 = vsel %vm315, %v3921, %v3925
        %v3928 = vshrl.u32 %v3812, 16
        %v3930 = vrot.slane %v3928, 4
        %v3931 = vshll.u32 %v3812, 16
        %v3933 = vrot.slane %v3931, 5
        %v3934 = vor.u32 %v3930, %v3933
        %v3935 = vrot.slane %v3934, 4
        %v3937 = vshll.u32 %v3813, 16
        %v3939 = vrot.slane %v3937, 5
        %v3940 = vsel %vm315, %v3935, %v3939
        %v3941 = vshrl.u32 %v3813, 16
        %v3943 = vrot.slane %v3941, 4
        %v3944 = vor.u32 %v3943, %v3939
        %v3945 = vrot.slane %v3944, 4
        %v3947 = vshll.u32 %v3814, 16
        %v3949 = vrot.slane %v3947, 5
        %v3950 = vsel %vm315, %v3945, %v3949
        %v3952 = vshrl.u32 %v3815, 16
        %v3954 = vrot.slane %v3952, 4
        %v3955 = vshll.u32 %v3815, 16
        %v3957 = vrot.slane %v3955, 5
        %v3958 = vor.u32 %v3954, %v3957
        %v3959 = vrot.slane %v3958, 4
        %v3961 = vshll.u32 %v3816, 16
        %v3963 = vrot.slane %v3961, 5
        %v3964 = vsel %vm315, %v3959, %v3963
        %v3965 = vshrl.u32 %v3816, 16
        %v3967 = vrot.slane %v3965, 4
        %v3968 = vor.u32 %v3967, %v3963
        %v3969 = vrot.slane %v3968, 4
        %v3971 = vshll.u32 %v3817, 16
        %v3973 = vrot.slane %v3971, 5
        %v3974 = vsel %vm315, %v3969, %v3973
        %v3976 = vshrl.u32 %v3818, 16
        %v3978 = vrot.slane %v3976, 4
        %v3979 = vshll.u32 %v3818, 16
        %v3981 = vrot.slane %v3979, 5
        %v3982 = vor.u32 %v3978, %v3981
        %v3983 = vrot.slane %v3982, 4
        %v3985 = vshll.u32 %v3819, 16
        %v3987 = vrot.slane %v3985, 5
        %v3988 = vsel %vm315, %v3983, %v3987
        %v3989 = vshrl.u32 %v3819, 16
        %v3991 = vrot.slane %v3989, 4
        %v3992 = vor.u32 %v3991, %v3987
        %v3993 = vrot.slane %v3992, 4
        %v3995 = vshll.u32 %v3820, 16
        %v3997 = vrot.slane %v3995, 5
        %v3998 = vsel %vm315, %v3993, %v3997
        %v4000 = vshrl.u32 %v3821, 16
        %v4002 = vrot.slane %v4000, 4
        %v4003 = vshll.u32 %v3821, 16
        %v4005 = vrot.slane %v4003, 5
        %v4006 = vor.u32 %v4002, %v4005
        %v4007 = vrot.slane %v4006, 4
        %v4009 = vshll.u32 %v3822, 16
        %v4011 = vrot.slane %v4009, 5
        %v4012 = vsel %vm315, %v4007, %v4011
        %v4013 = vshrl.u32 %v3822, 16
        %v4015 = vrot.slane %v4013, 4
        %v4016 = vor.u32 %v4015, %v4011
        %v4017 = vrot.slane %v4016, 4
        %v4019 = vshll.u32 %v3823, 16
        %v4021 = vrot.slane %v4019, 5
        %v4022 = vsel %vm315, %v4017, %v4021
        %v4024 = vshrl.u32 %v3824, 16
        %v4026 = vrot.slane %v4024, 4
        %v4027 = vshll.u32 %v3824, 16
        %v4029 = vrot.slane %v4027, 5
        %v4030 = vor.u32 %v4026, %v4029
        %v4031 = vrot.slane %v4030, 4
        %v4033 = vshll.u32 %v3825, 16
        %v4035 = vrot.slane %v4033, 5
        %v4036 = vsel %vm315, %v4031, %v4035
        %v4037 = vshrl.u32 %v3825, 16
        %v4039 = vrot.slane %v4037, 4
        %v4040 = vor.u32 %v4039, %v4035
        %v4041 = vrot.slane %v4040, 4
        %v4043 = vshll.u32 %v3826, 16
        %v4045 = vrot.slane %v4043, 5
        %v4046 = vsel %vm315, %v4041, %v4045
        %v4048 = vshrl.u32 %v3827, 16
        %v4050 = vrot.slane %v4048, 4
        %v4051 = vshll.u32 %v3827, 16
        %v4053 = vrot.slane %v4051, 5
        %v4054 = vor.u32 %v4050, %v4053
        %v4055 = vrot.slane %v4054, 4
        %v4057 = vshll.u32 %v3828, 16
        %v4059 = vrot.slane %v4057, 5
        %v4060 = vsel %vm315, %v4055, %v4059
        %v4061 = vshrl.u32 %v3828, 16
        %v4063 = vrot.slane %v4061, 4
        %v4064 = vor.u32 %v4063, %v4059
        %v4065 = vrot.slane %v4064, 4
        %v4067 = vshll.u32 %v3829, 16
        %v4069 = vrot.slane %v4067, 5
        %v4070 = vsel %vm315, %v4065, %v4069
        %v4072 = vshrl.u32 %v3830, 16
        %v4074 = vrot.slane %v4072, 4
        %v4075 = vshll.u32 %v3830, 16
        %v4077 = vrot.slane %v4075, 5
        %v4078 = vor.u32 %v4074, %v4077
        %v4079 = vrot.slane %v4078, 4
        %v4081 = vshll.u32 %v3831, 16
        %v4083 = vrot.slane %v4081, 5
        %v4084 = vsel %vm315, %v4079, %v4083
        %v4085 = vshrl.u32 %v3831, 16
        %v4087 = vrot.slane %v4085, 4
        %v4088 = vor.u32 %v4087, %v4083
        %v4089 = vrot.slane %v4088, 4
        %v4091 = vshll.u32 %v3832, 16
        %v4093 = vrot.slane %v4091, 5
        %v4094 = vsel %vm315, %v4089, %v4093
        %v4096 = vshrl.u32 %v3833, 16
        %v4098 = vrot.slane %v4096, 4
        %v4099 = vshll.u32 %v3833, 16
        %v4101 = vrot.slane %v4099, 5
        %v4102 = vor.u32 %v4098, %v4101
        %v4103 = vrot.slane %v4102, 4
        %v4105 = vshll.u32 %v3834, 16
        %v4107 = vrot.slane %v4105, 5
        %v4108 = vsel %vm315, %v4103, %v4107
        %v4109 = vshrl.u32 %v3834, 16
        %v4111 = vrot.slane %v4109, 4
        %v4112 = vor.u32 %v4111, %v4107
        %v4113 = vrot.slane %v4112, 4
        %v4115 = vshll.u32 %v3835, 16
        %v4117 = vrot.slane %v4115, 5
        %v4118 = vsel %vm315, %v4113, %v4117
        %v4120 = vshrl.u32 %v3836, 16
        %v4122 = vrot.slane %v4120, 4
        %v4123 = vshll.u32 %v3836, 16
        %v4125 = vrot.slane %v4123, 5
        %v4126 = vor.u32 %v4122, %v4125
        %v4127 = vrot.slane %v4126, 4
        %v4129 = vshll.u32 %v3837, 16
        %v4131 = vrot.slane %v4129, 5
        %v4132 = vsel %vm315, %v4127, %v4131
        %v4133 = vshrl.u32 %v3837, 16
        %v4135 = vrot.slane %v4133, 4
        %v4136 = vor.u32 %v4135, %v4131
        %v4137 = vrot.slane %v4136, 4
        %v4139 = vshll.u32 %v3838, 16
        %v4141 = vrot.slane %v4139, 5
        %v4142 = vsel %vm315, %v4137, %v4141
        %v4144 = vshrl.u32 %v3839, 16
        %v4146 = vrot.slane %v4144, 4
        %v4147 = vshll.u32 %v3839, 16
        %v4149 = vrot.slane %v4147, 5
        %v4150 = vor.u32 %v4146, %v4149
        %v4151 = vrot.slane %v4150, 4
        %v4153 = vshll.u32 %v3840, 16
        %v4155 = vrot.slane %v4153, 5
        %v4156 = vsel %vm315, %v4151, %v4155
        %v4157 = vshrl.u32 %v3840, 16
        %v4159 = vrot.slane %v4157, 4
        %v4160 = vor.u32 %v4159, %v4155
        %v4161 = vrot.slane %v4160, 4
        %v4163 = vshll.u32 %v3841, 16
        %v4165 = vrot.slane %v4163, 5
        %v4166 = vsel %vm315, %v4161, %v4165
        %v4168 = vshrl.u32 %v3842, 16
        %v4170 = vrot.slane %v4168, 4
        %v4171 = vshll.u32 %v3842, 16
        %v4173 = vrot.slane %v4171, 5
        %v4174 = vor.u32 %v4170, %v4173
        %v4175 = vrot.slane %v4174, 4
        %v4177 = vshll.u32 %v3843, 16
        %v4179 = vrot.slane %v4177, 5
        %v4180 = vsel %vm315, %v4175, %v4179
        %v4181 = vshrl.u32 %v3843, 16
        %v4183 = vrot.slane %v4181, 4
        %v4184 = vor.u32 %v4183, %v4179
        %v4185 = vrot.slane %v4184, 4
        %v4187 = vshll.u32 %v3844, 16
        %v4189 = vrot.slane %v4187, 5
        %v4190 = vsel %vm315, %v4185, %v4189
        %v4192 = vshrl.u32 %v3845, 16
        %v4194 = vrot.slane %v4192, 4
        %v4195 = vshll.u32 %v3845, 16
        %v4197 = vrot.slane %v4195, 5
        %v4198 = vor.u32 %v4194, %v4197
        %v4199 = vrot.slane %v4198, 4
        %v4201 = vshll.u32 %v3846, 16
        %v4203 = vrot.slane %v4201, 5
        %v4204 = vsel %vm315, %v4199, %v4203
        %v4205 = vshrl.u32 %v3846, 16
        %v4207 = vrot.slane %v4205, 4
        %v4208 = vor.u32 %v4207, %v4203
        %v4209 = vrot.slane %v4208, 4
        %v4211 = vshll.u32 %v3847, 16
        %v4213 = vrot.slane %v4211, 5
        %v4214 = vsel %vm315, %v4209, %v4213
        %v4216 = vshrl.u32 %v3848, 16
        %v4218 = vrot.slane %v4216, 4
        %v4219 = vshll.u32 %v3848, 16
        %v4221 = vrot.slane %v4219, 5
        %v4222 = vor.u32 %v4218, %v4221
        %v4223 = vrot.slane %v4222, 4
        %v4225 = vshll.u32 %v3849, 16
        %v4227 = vrot.slane %v4225, 5
        %v4228 = vsel %vm315, %v4223, %v4227
        %v4229 = vshrl.u32 %v3849, 16
        %v4231 = vrot.slane %v4229, 4
        %v4232 = vor.u32 %v4231, %v4227
        %v4233 = vrot.slane %v4232, 4
        %v4235 = vshll.u32 %v3850, 16
        %v4237 = vrot.slane %v4235, 5
        %v4238 = vsel %vm315, %v4233, %v4237
        %v4239 = vunpack.c.l.b16 %v3868
        %v4240 = vunpack.c.l.b16 %v3878
        %v4241 = vunpack.c.l.b16 %v3892
        %v4242 = vunpack.c.l.b16 %v3902
        %v4243 = vunpack.c.l.b16 %v3916
        %v4244 = vunpack.c.l.b16 %v3926
        %v4245 = vunpack.c.l.b16 %v3940
        %v4246 = vunpack.c.l.b16 %v3950
        %v4247 = vunpack.c.l.b16 %v3964
        %v4248 = vunpack.c.l.b16 %v3974
        %v4249 = vunpack.c.l.b16 %v3988
        %v4250 = vunpack.c.l.b16 %v3998
        %v4251 = vunpack.c.l.b16 %v4012
        %v4252 = vunpack.c.l.b16 %v4022
        %v4253 = vunpack.c.l.b16 %v4036
        %v4254 = vunpack.c.l.b16 %v4046
        %v4255 = vunpack.c.l.b16 %v4060
        %v4256 = vunpack.c.l.b16 %v4070
        %v4257 = vunpack.c.l.b16 %v4084
        %v4258 = vunpack.c.l.b16 %v4094
        %v4259 = vunpack.c.l.b16 %v4108
        %v4260 = vunpack.c.l.b16 %v4118
        %v4261 = vunpack.c.l.b16 %v4132
        %v4262 = vunpack.c.l.b16 %v4142
        %v4263 = vunpack.c.l.b16 %v4156
        %v4264 = vunpack.c.l.b16 %v4166
        %v4265 = vunpack.c.l.b16 %v4180
        %v4266 = vunpack.c.l.b16 %v4190
        %v4267 = vunpack.c.l.b16 %v4204
        %v4268 = vunpack.c.l.b16 %v4214
        %v4269 = vunpack.c.l.b16 %v4228
        %v4270 = vunpack.c.l.b16 %v4238
        %v4271 = vpack.c.b16 %v4240, %v4239
        %v4272 = vpack.c.b16 %v4242, %v4241
        %v4273 = vpack.c.b16 %v4244, %v4243
        %v4274 = vpack.c.b16 %v4246, %v4245
        %v4275 = vpack.c.b16 %v4248, %v4247
        %v4276 = vpack.c.b16 %v4250, %v4249
        %v4277 = vpack.c.b16 %v4252, %v4251
        %v4278 = vpack.c.b16 %v4254, %v4253
        %v4279 = vpack.c.b16 %v4256, %v4255
        %v4280 = vpack.c.b16 %v4258, %v4257
        %v4281 = vpack.c.b16 %v4260, %v4259
        %v4282 = vpack.c.b16 %v4262, %v4261
        %v4283 = vpack.c.b16 %v4264, %v4263
        %v4284 = vpack.c.b16 %v4266, %v4265
        %v4285 = vpack.c.b16 %v4268, %v4267
        %v4286 = vpack.c.b16 %v4270, %v4269
        %v4291 = vunpack.c.l.b16 %v3851
        %v4292 = vunpack.c.l.b16 %v3852
        %v4293 = vunpack.c.l.b16 %v3853
        %v4294 = vunpack.c.l.b16 %v3854
        %v4295 = vpack.c.b16 %v4292, %v4291
        %v4296 = vpack.c.b16 %v4294, %v4293
        %v4300 = vsel %vm760, %v4271, 0
        %v4303 = vsel %vm760, %v4272, 0
        %v4306 = vsel %vm760, %v4273, 0
        %v4309 = vsel %vm760, %v4274, 0
        %v4312 = vsel %vm760, %v4275, 0
        %v4315 = vsel %vm760, %v4276, 0
        %v4318 = vsel %vm760, %v4277, 0
        %v4321 = vsel %vm760, %v4278, 0
        %v4324 = vsel %vm760, %v4279, 0
        %v4327 = vsel %vm760, %v4280, 0
        %v4330 = vsel %vm760, %v4281, 0
        %v4333 = vsel %vm760, %v4282, 0
        %v4336 = vsel %vm760, %v4283, 0
        %v4339 = vsel %vm760, %v4284, 0
        %v4342 = vsel %vm760, %v4285, 0
        %v4345 = vsel %vm760, %v4286, 0
        %4347 = vmatprep.subr.bf16.mxu0 0
        %4348 = vmatpush1.bf16.msra.mxu0 %v4295
        %4349 = vmatprep.subr.bf16.mxu0 0
        %4350 = vmatpush1.bf16.msra.mxu0 %v4296
        %4351 = vmatprep.subr.bf16.mxu0 0
        %4352 = vmatpush1.bf16.msra.mxu0 0
        %4353 = vmatprep.subr.bf16.mxu0 0
        %4354 = vmatpush1.bf16.msra.mxu0 0
        %4355 = vmatprep.subr.bf16.mxu0 0
        %4356 = vmatpush1.bf16.msra.mxu0 0
        %4357 = vmatprep.subr.bf16.mxu0 0
        %4358 = vmatpush1.bf16.msra.mxu0 0
        %4359 = vmatprep.subr.bf16.mxu0 0
        %4360 = vmatpush1.bf16.msra.mxu0 0
        %4361 = vmatprep.subr.bf16.mxu0 0
        %4362 = vmatpush1.bf16.msra.mxu0 0
        %4363 = vmatprep.subr.bf16.mxu0 0
        %4364 = vmatpush1.bf16.msra.mxu0 0
        %4365 = vmatprep.subr.bf16.mxu0 0
        %4366 = vmatpush1.bf16.msra.mxu0 0
        %4367 = vmatprep.subr.bf16.mxu0 0
        %4368 = vmatpush1.bf16.msra.mxu0 0
        %4369 = vmatprep.subr.bf16.mxu0 0
        %4370 = vmatpush1.bf16.msra.mxu0 0
        %4371 = vmatprep.subr.bf16.mxu0 0
        %4372 = vmatpush1.bf16.msra.mxu0 0
        %4373 = vmatprep.subr.bf16.mxu0 0
        %4374 = vmatpush1.bf16.msra.mxu0 0
        %4375 = vmatprep.subr.bf16.mxu0 0
        %4376 = vmatpush1.bf16.msra.mxu0 0
        %4377 = vmatprep.subr.bf16.mxu0 0
        %4378 = vmatpush1.bf16.msra.mxu0 0
        %4379 = vmatprep.mubr.bf16.mxu0 0
        %4380 = vmatmul.mubr.bf16.gmra.mrb[0].mxu0 %v4300
        %v4381 = vpop.f32.mrb[0].mxu0
        %v4382 = vadd.f32 0.0, %v4381
        %v4383 = vpop.f32.mrb[0].mxu0
        %v4384 = vpop.f32.mrb[0].mxu0
        %v4385 = vadd.f32 0.0, %v4384
        %v4386 = vpop.f32.mrb[0].mxu0
        %4387 = vmatprep.mubr.bf16.mxu0 0
        %4388 = vmatmul.mubr.bf16.gmra.mrb[0].mxu0 %v4303
        %v4389 = vpop.f32.mrb[0].mxu0
        %v4390 = vadd.f32 0.0, %v4389
        %v4391 = vpop.f32.mrb[0].mxu0
        %v4392 = vpop.f32.mrb[0].mxu0
        %v4393 = vadd.f32 0.0, %v4392
        %v4394 = vpop.f32.mrb[0].mxu0
        %4395 = vmatprep.mubr.bf16.mxu0 0
        %4396 = vmatmul.mubr.bf16.gmra.mrb[0].mxu0 %v4306
        %v4397 = vpop.f32.mrb[0].mxu0
        %v4398 = vadd.f32 0.0, %v4397
        %v4399 = vpop.f32.mrb[0].mxu0
        %v4400 = vpop.f32.mrb[0].mxu0
        %v4401 = vadd.f32 0.0, %v4400
        %v4402 = vpop.f32.mrb[0].mxu0
        %4403 = vmatprep.mubr.bf16.mxu0 0
        %4404 = vmatmul.mubr.bf16.gmra.mrb[0].mxu0 %v4309
        %v4405 = vpop.f32.mrb[0].mxu0
        %v4406 = vadd.f32 0.0, %v4405
        %v4407 = vpop.f32.mrb[0].mxu0
        %v4408 = vpop.f32.mrb[0].mxu0
        %v4409 = vadd.f32 0.0, %v4408
        %v4410 = vpop.f32.mrb[0].mxu0
        %4411 = vmatprep.mubr.bf16.mxu0 0
        %4412 = vmatmul.mubr.bf16.gmra.mrb[0].mxu0 %v4312
        %v4413 = vpop.f32.mrb[0].mxu0
        %v4414 = vadd.f32 0.0, %v4413
        %v4415 = vpop.f32.mrb[0].mxu0
        %v4416 = vpop.f32.mrb[0].mxu0
        %v4417 = vadd.f32 0.0, %v4416
        %v4418 = vpop.f32.mrb[0].mxu0
        %4419 = vmatprep.mubr.bf16.mxu0 0
        %4420 = vmatmul.mubr.bf16.gmra.mrb[0].mxu0 %v4315
        %v4421 = vpop.f32.mrb[0].mxu0
        %v4422 = vadd.f32 0.0, %v4421
        %v4423 = vpop.f32.mrb[0].mxu0
        %v4424 = vpop.f32.mrb[0].mxu0
        %v4425 = vadd.f32 0.0, %v4424
        %v4426 = vpop.f32.mrb[0].mxu0
        %4427 = vmatprep.mubr.bf16.mxu0 0
        %4428 = vmatmul.mubr.bf16.gmra.mrb[0].mxu0 %v4318
        %v4429 = vpop.f32.mrb[0].mxu0
        %v4430 = vadd.f32 0.0, %v4429
        %v4431 = vpop.f32.mrb[0].mxu0
        %v4432 = vpop.f32.mrb[0].mxu0
        %v4433 = vadd.f32 0.0, %v4432
        %v4434 = vpop.f32.mrb[0].mxu0
        %4435 = vmatprep.mubr.bf16.mxu0 0
        %4436 = vmatmul.mubr.bf16.gmra.mrb[0].mxu0 %v4321
        %v4437 = vpop.f32.mrb[0].mxu0
        %v4438 = vadd.f32 0.0, %v4437
        %v4439 = vpop.f32.mrb[0].mxu0
        %v4440 = vpop.f32.mrb[0].mxu0
        %v4441 = vadd.f32 0.0, %v4440
        %v4442 = vpop.f32.mrb[0].mxu0
        %4443 = vmatprep.mubr.bf16.mxu0 0
        %4444 = vmatmul.mubr.bf16.gmra.mrb[0].mxu0 %v4324
        %v4445 = vpop.f32.mrb[0].mxu0
        %v4446 = vadd.f32 0.0, %v4445
        %v4447 = vpop.f32.mrb[0].mxu0
        %v4448 = vpop.f32.mrb[0].mxu0
        %v4449 = vadd.f32 0.0, %v4448
        %v4450 = vpop.f32.mrb[0].mxu0
        %4451 = vmatprep.mubr.bf16.mxu0 0
        %4452 = vmatmul.mubr.bf16.gmra.mrb[0].mxu0 %v4327
        %v4453 = vpop.f32.mrb[0].mxu0
        %v4454 = vadd.f32 0.0, %v4453
        %v4455 = vpop.f32.mrb[0].mxu0
        %v4456 = vpop.f32.mrb[0].mxu0
        %v4457 = vadd.f32 0.0, %v4456
        %v4458 = vpop.f32.mrb[0].mxu0
        %4459 = vmatprep.mubr.bf16.mxu0 0
        %4460 = vmatmul.mubr.bf16.gmra.mrb[0].mxu0 %v4330
        %v4461 = vpop.f32.mrb[0].mxu0
        %v4462 = vadd.f32 0.0, %v4461
        %v4463 = vpop.f32.mrb[0].mxu0
        %v4464 = vpop.f32.mrb[0].mxu0
        %v4465 = vadd.f32 0.0, %v4464
        %v4466 = vpop.f32.mrb[0].mxu0
        %4467 = vmatprep.mubr.bf16.mxu0 0
        %4468 = vmatmul.mubr.bf16.gmra.mrb[0].mxu0 %v4333
        %v4469 = vpop.f32.mrb[0].mxu0
        %v4470 = vadd.f32 0.0, %v4469
        %v4471 = vpop.f32.mrb[0].mxu0
        %v4472 = vpop.f32.mrb[0].mxu0
        %v4473 = vadd.f32 0.0, %v4472
        %v4474 = vpop.f32.mrb[0].mxu0
        %4475 = vmatprep.mubr.bf16.mxu0 0
        %4476 = vmatmul.mubr.bf16.gmra.mrb[0].mxu0 %v4336
        %v4477 = vpop.f32.mrb[0].mxu0
        %v4478 = vadd.f32 0.0, %v4477
        %v4479 = vpop.f32.mrb[0].mxu0
        %v4480 = vpop.f32.mrb[0].mxu0
        %v4481 = vadd.f32 0.0, %v4480
        %v4482 = vpop.f32.mrb[0].mxu0
        %4483 = vmatprep.mubr.bf16.mxu0 0
        %4484 = vmatmul.mubr.bf16.gmra.mrb[0].mxu0 %v4339
        %v4485 = vpop.f32.mrb[0].mxu0
        %v4486 = vadd.f32 0.0, %v4485
        %v4487 = vpop.f32.mrb[0].mxu0
        %v4488 = vpop.f32.mrb[0].mxu0
        %v4489 = vadd.f32 0.0, %v4488
        %v4490 = vpop.f32.mrb[0].mxu0
        %4491 = vmatprep.mubr.bf16.mxu0 0
        %4492 = vmatmul.mubr.bf16.gmra.mrb[0].mxu0 %v4342
        %v4493 = vpop.f32.mrb[0].mxu0
        %v4494 = vadd.f32 0.0, %v4493
        %v4495 = vpop.f32.mrb[0].mxu0
        %v4496 = vpop.f32.mrb[0].mxu0
        %v4497 = vadd.f32 0.0, %v4496
        %v4498 = vpop.f32.mrb[0].mxu0
        %4499 = vmatprep.mubr.bf16.mxu0 0
        %4500 = vmatmul.mubr.bf16.gmra.mrb[0].mxu0 %v4345
        %v4501 = vpop.f32.mrb[0].mxu0
        %v4502 = vadd.f32 0.0, %v4501
        %v4503 = vpop.f32.mrb[0].mxu0
        %v4504 = vpop.f32.mrb[0].mxu0
        %v4505 = vadd.f32 0.0, %v4504
        %v4506 = vpop.f32.mrb[0].mxu0
        %4507 = vdwg.mxu0
        %v4508 = vadd.f32 %v3677, %v4382
        %v4509 = vadd.f32 %v3680, %v4385
        %v4510 = vadd.f32 %v3685, %v4390
        %v4511 = vadd.f32 %v3688, %v4393
        %v4512 = vadd.f32 %v3693, %v4398
        %v4513 = vadd.f32 %v3696, %v4401
        %v4514 = vadd.f32 %v3701, %v4406
        %v4515 = vadd.f32 %v3704, %v4409
        %v4516 = vadd.f32 %v3709, %v4414
        %v4517 = vadd.f32 %v3712, %v4417
        %v4518 = vadd.f32 %v3717, %v4422
        %v4519 = vadd.f32 %v3720, %v4425
        %v4520 = vadd.f32 %v3725, %v4430
        %v4521 = vadd.f32 %v3728, %v4433
        %v4522 = vadd.f32 %v3733, %v4438
        %v4523 = vadd.f32 %v3736, %v4441
        %v4524 = vadd.f32 %v3741, %v4446
        %v4525 = vadd.f32 %v3744, %v4449
        %v4526 = vadd.f32 %v3749, %v4454
        %v4527 = vadd.f32 %v3752, %v4457
        %v4528 = vadd.f32 %v3757, %v4462
        %v4529 = vadd.f32 %v3760, %v4465
        %v4530 = vadd.f32 %v3765, %v4470
        %v4531 = vadd.f32 %v3768, %v4473
        %v4532 = vadd.f32 %v3773, %v4478
        %v4533 = vadd.f32 %v3776, %v4481
        %v4534 = vadd.f32 %v3781, %v4486
        %v4535 = vadd.f32 %v3784, %v4489
        %v4536 = vadd.f32 %v3789, %v4494
        %v4537 = vadd.f32 %v3792, %v4497
        %v4538 = vadd.f32 %v3797, %v4502
        %v4539 = vadd.f32 %v3800, %v4505
        %v4540 = vld [vmem:[%s1271] sm:$0xe]
        %v4541 = vld [vmem:[%s1271 + $0xc] sm:$0xe]
        %v4542 = vld [vmem:[%s1271 + $0x18] sm:$0xe]
        %v4543 = vld [vmem:[%s1271 + $0x24] sm:$0xe]
        %v4544 = vld [vmem:[%s1271 + $0x30] sm:$0xe]
        %v4545 = vld [vmem:[%s1271 + $0x3c] sm:$0xe]
        %v4546 = vld [vmem:[%s1271 + $0x48] sm:$0xe]
        %v4547 = vld [vmem:[%s1271 + $0x54] sm:$0xe]
        %v4548 = vld [vmem:[%s1271 + $0x60] sm:$0xe]
        %v4549 = vld [vmem:[%s1271 + $0x6c] sm:$0xe]
        %v4550 = vld [vmem:[%s1271 + $0x78] sm:$0xe]
        %v4551 = vld [vmem:[%s1271 + $0x84] sm:$0xe]
        %v4552 = vld [vmem:[%s1271 + $0x90] sm:$0xe]
        %v4553 = vld [vmem:[%s1271 + $0x9c] sm:$0xe]
        %v4554 = vld [vmem:[%s1271 + $0xa8] sm:$0xe]
        %v4555 = vld [vmem:[%s1271 + $0xb4] sm:$0xe]
        %v4556 = vld [vmem:[%s243 + $0x70] sm:$0xf]
        %v4557 = vld [vmem:[%s243 + $0x74] sm:$0xf]
        %v4558 = vld [vmem:[%s243 + $0x78] sm:$0xf]
        %v4559 = vld [vmem:[%s243 + $0x7c] sm:$0xf]
        %v4608 = vrot.slane %v4540, 5
        %v4609 = vrot.slane %v4608, 4
        %v4610 = vrot.slane %v3804, 5
        %v4611 = vsel %vm3152, %v4609, %v4610
        %v4612 = vrot.slane %v4610, 4
        %v4613 = vrot.slane %v3805, 5
        %v4614 = vsel %vm3152, %v4612, %v4613
        %v4615 = vrot.slane %v4541, 5
        %v4616 = vrot.slane %v4615, 4
        %v4617 = vrot.slane %v3807, 5
        %v4618 = vsel %vm3152, %v4616, %v4617
        %v4619 = vrot.slane %v4617, 4
        %v4620 = vrot.slane %v3808, 5
        %v4621 = vsel %vm3152, %v4619, %v4620
        %v4622 = vrot.slane %v4542, 5
        %v4623 = vrot.slane %v4622, 4
        %v4624 = vrot.slane %v3810, 5
        %v4625 = vsel %vm3152, %v4623, %v4624
        %v4626 = vrot.slane %v4624, 4
        %v4627 = vrot.slane %v3811, 5
        %v4628 = vsel %vm3152, %v4626, %v4627
        %v4629 = vrot.slane %v4543, 5
        %v4630 = vrot.slane %v4629, 4
        %v4631 = vrot.slane %v3813, 5
        %v4632 = vsel %vm3152, %v4630, %v4631
        %v4633 = vrot.slane %v4631, 4
        %v4634 = vrot.slane %v3814, 5
        %v4635 = vsel %vm3152, %v4633, %v4634
        %v4636 = vrot.slane %v4544, 5
        %v4637 = vrot.slane %v4636, 4
        %v4638 = vrot.slane %v3816, 5
        %v4639 = vsel %vm3152, %v4637, %v4638
        %v4640 = vrot.slane %v4638, 4
        %v4641 = vrot.slane %v3817, 5
        %v4642 = vsel %vm3152, %v4640, %v4641
        %v4643 = vrot.slane %v4545, 5
        %v4644 = vrot.slane %v4643, 4
        %v4645 = vrot.slane %v3819, 5
        %v4646 = vsel %vm3152, %v4644, %v4645
        %v4647 = vrot.slane %v4645, 4
        %v4648 = vrot.slane %v3820, 5
        %v4649 = vsel %vm3152, %v4647, %v4648
        %v4650 = vrot.slane %v4546, 5
        %v4651 = vrot.slane %v4650, 4
        %v4652 = vrot.slane %v3822, 5
        %v4653 = vsel %vm3152, %v4651, %v4652
        %v4654 = vrot.slane %v4652, 4
        %v4655 = vrot.slane %v3823, 5
        %v4656 = vsel %vm3152, %v4654, %v4655
        %v4657 = vrot.slane %v4547, 5
        %v4658 = vrot.slane %v4657, 4
        %v4659 = vrot.slane %v3825, 5
        %v4660 = vsel %vm3152, %v4658, %v4659
        %v4661 = vrot.slane %v4659, 4
        %v4662 = vrot.slane %v3826, 5
        %v4663 = vsel %vm3152, %v4661, %v4662
        %v4664 = vrot.slane %v4548, 5
        %v4665 = vrot.slane %v4664, 4
        %v4666 = vrot.slane %v3828, 5
        %v4667 = vsel %vm3152, %v4665, %v4666
        %v4668 = vrot.slane %v4666, 4
        %v4669 = vrot.slane %v3829, 5
        %v4670 = vsel %vm3152, %v4668, %v4669
        %v4671 = vrot.slane %v4549, 5
        %v4672 = vrot.slane %v4671, 4
        %v4673 = vrot.slane %v3831, 5
        %v4674 = vsel %vm3152, %v4672, %v4673
        %v4675 = vrot.slane %v4673, 4
        %v4676 = vrot.slane %v3832, 5
        %v4677 = vsel %vm3152, %v4675, %v4676
        %v4678 = vrot.slane %v4550, 5
        %v4679 = vrot.slane %v4678, 4
        %v4680 = vrot.slane %v3834, 5
        %v4681 = vsel %vm3152, %v4679, %v4680
        %v4682 = vrot.slane %v4680, 4
        %v4683 = vrot.slane %v3835, 5
        %v4684 = vsel %vm3152, %v4682, %v4683
        %v4685 = vrot.slane %v4551, 5
        %v4686 = vrot.slane %v4685, 4
        %v4687 = vrot.slane %v3837, 5
        %v4688 = vsel %vm3152, %v4686, %v4687
        %v4689 = vrot.slane %v4687, 4
        %v4690 = vrot.slane %v3838, 5
        %v4691 = vsel %vm3152, %v4689, %v4690
        %v4692 = vrot.slane %v4552, 5
        %v4693 = vrot.slane %v4692, 4
        %v4694 = vrot.slane %v3840, 5
        %v4695 = vsel %vm3152, %v4693, %v4694
        %v4696 = vrot.slane %v4694, 4
        %v4697 = vrot.slane %v3841, 5
        %v4698 = vsel %vm3152, %v4696, %v4697
        %v4699 = vrot.slane %v4553, 5
        %v4700 = vrot.slane %v4699, 4
        %v4701 = vrot.slane %v3843, 5
        %v4702 = vsel %vm3152, %v4700, %v4701
        %v4703 = vrot.slane %v4701, 4
        %v4704 = vrot.slane %v3844, 5
        %v4705 = vsel %vm3152, %v4703, %v4704
        %v4706 = vrot.slane %v4554, 5
        %v4707 = vrot.slane %v4706, 4
        %v4708 = vrot.slane %v3846, 5
        %v4709 = vsel %vm3152, %v4707, %v4708
        %v4710 = vrot.slane %v4708, 4
        %v4711 = vrot.slane %v3847, 5
        %v4712 = vsel %vm3152, %v4710, %v4711
        %v4713 = vrot.slane %v4555, 5
        %v4714 = vrot.slane %v4713, 4
        %v4715 = vrot.slane %v3849, 5
        %v4716 = vsel %vm3152, %v4714, %v4715
        %v4717 = vrot.slane %v4715, 4
        %v4718 = vrot.slane %v3850, 5
        %v4719 = vsel %vm3152, %v4717, %v4718
        %v4720 = vunpack.c.l.b16 %v4611
        %v4721 = vunpack.c.l.b16 %v4614
        %v4722 = vunpack.c.l.b16 %v4618
        %v4723 = vunpack.c.l.b16 %v4621
        %v4724 = vunpack.c.l.b16 %v4625
        %v4725 = vunpack.c.l.b16 %v4628
        %v4726 = vunpack.c.l.b16 %v4632
        %v4727 = vunpack.c.l.b16 %v4635
        %v4728 = vunpack.c.l.b16 %v4639
        %v4729 = vunpack.c.l.b16 %v4642
        %v4730 = vunpack.c.l.b16 %v4646
        %v4731 = vunpack.c.l.b16 %v4649
        %v4732 = vunpack.c.l.b16 %v4653
        %v4733 = vunpack.c.l.b16 %v4656
        %v4734 = vunpack.c.l.b16 %v4660
        %v4735 = vunpack.c.l.b16 %v4663
        %v4736 = vunpack.c.l.b16 %v4667
        %v4737 = vunpack.c.l.b16 %v4670
        %v4738 = vunpack.c.l.b16 %v4674
        %v4739 = vunpack.c.l.b16 %v4677
        %v4740 = vunpack.c.l.b16 %v4681
        %v4741 = vunpack.c.l.b16 %v4684
        %v4742 = vunpack.c.l.b16 %v4688
        %v4743 = vunpack.c.l.b16 %v4691
        %v4744 = vunpack.c.l.b16 %v4695
        %v4745 = vunpack.c.l.b16 %v4698
        %v4746 = vunpack.c.l.b16 %v4702
        %v4747 = vunpack.c.l.b16 %v4705
        %v4748 = vunpack.c.l.b16 %v4709
        %v4749 = vunpack.c.l.b16 %v4712
        %v4750 = vunpack.c.l.b16 %v4716
        %v4751 = vunpack.c.l.b16 %v4719
        %v4752 = vpack.c.b16 %v4721, %v4720
        %v4753 = vpack.c.b16 %v4723, %v4722
        %v4754 = vpack.c.b16 %v4725, %v4724
        %v4755 = vpack.c.b16 %v4727, %v4726
        %v4756 = vpack.c.b16 %v4729, %v4728
        %v4757 = vpack.c.b16 %v4731, %v4730
        %v4758 = vpack.c.b16 %v4733, %v4732
        %v4759 = vpack.c.b16 %v4735, %v4734
        %v4760 = vpack.c.b16 %v4737, %v4736
        %v4761 = vpack.c.b16 %v4739, %v4738
        %v4762 = vpack.c.b16 %v4741, %v4740
        %v4763 = vpack.c.b16 %v4743, %v4742
        %v4764 = vpack.c.b16 %v4745, %v4744
        %v4765 = vpack.c.b16 %v4747, %v4746
        %v4766 = vpack.c.b16 %v4749, %v4748
        %v4767 = vpack.c.b16 %v4751, %v4750
        %v4772 = vunpack.c.l.b16 %v4556
        %v4773 = vunpack.c.l.b16 %v4557
        %v4774 = vunpack.c.l.b16 %v4558
        %v4775 = vunpack.c.l.b16 %v4559
        %v4776 = vpack.c.b16 %v4773, %v4772
        %v4777 = vpack.c.b16 %v4775, %v4774
        %v4781 = vsel %vm760, %v4752, 0
        %v4784 = vsel %vm760, %v4753, 0
        %v4787 = vsel %vm760, %v4754, 0
        %v4790 = vsel %vm760, %v4755, 0
        %v4793 = vsel %vm760, %v4756, 0
        %v4796 = vsel %vm760, %v4757, 0
        %v4799 = vsel %vm760, %v4758, 0
        %v4802 = vsel %vm760, %v4759, 0
        %v4805 = vsel %vm760, %v4760, 0
        %v4808 = vsel %vm760, %v4761, 0
        %v4811 = vsel %vm760, %v4762, 0
        %v4814 = vsel %vm760, %v4763, 0
        %v4817 = vsel %vm760, %v4764, 0
        %v4820 = vsel %vm760, %v4765, 0
        %v4823 = vsel %vm760, %v4766, 0
        %v4826 = vsel %vm760, %v4767, 0
        %4828 = vmatprep.subr.bf16.mxu0 0
        %4829 = vmatpush1.bf16.msra.mxu0 %v4776
        %4830 = vmatprep.subr.bf16.mxu0 0
        %4831 = vmatpush1.bf16.msra.mxu0 %v4777
        %4832 = vmatprep.subr.bf16.mxu0 0
        %4833 = vmatpush1.bf16.msra.mxu0 0
        %4834 = vmatprep.subr.bf16.mxu0 0
        %4835 = vmatpush1.bf16.msra.mxu0 0
        %4836 = vmatprep.subr.bf16.mxu0 0
        %4837 = vmatpush1.bf16.msra.mxu0 0
        %4838 = vmatprep.subr.bf16.mxu0 0
        %4839 = vmatpush1.bf16.msra.mxu0 0
        %4840 = vmatprep.subr.bf16.mxu0 0
        %4841 = vmatpush1.bf16.msra.mxu0 0
        %4842 = vmatprep.subr.bf16.mxu0 0
        %4843 = vmatpush1.bf16.msra.mxu0 0
        %4844 = vmatprep.subr.bf16.mxu0 0
        %4845 = vmatpush1.bf16.msra.mxu0 0
        %4846 = vmatprep.subr.bf16.mxu0 0
        %4847 = vmatpush1.bf16.msra.mxu0 0
        %4848 = vmatprep.subr.bf16.mxu0 0
        %4849 = vmatpush1.bf16.msra.mxu0 0
        %4850 = vmatprep.subr.bf16.mxu0 0
        %4851 = vmatpush1.bf16.msra.mxu0 0
        %4852 = vmatprep.subr.bf16.mxu0 0
        %4853 = vmatpush1.bf16.msra.mxu0 0
        %4854 = vmatprep.subr.bf16.mxu0 0
        %4855 = vmatpush1.bf16.msra.mxu0 0
        %4856 = vmatprep.subr.bf16.mxu0 0
        %4857 = vmatpush1.bf16.msra.mxu0 0
        %4858 = vmatprep.subr.bf16.mxu0 0
        %4859 = vmatpush1.bf16.msra.mxu0 0
        %4860 = vmatprep.mubr.bf16.mxu0 0
        %4861 = vmatmul.mubr.bf16.gmra.mrb[0].mxu0 %v4781
        %v4862 = vpop.f32.mrb[0].mxu0
        %v4863 = vadd.f32 0.0, %v4862
        %v4864 = vpop.f32.mrb[0].mxu0
        %v4865 = vpop.f32.mrb[0].mxu0
        %v4866 = vadd.f32 0.0, %v4865
        %v4867 = vpop.f32.mrb[0].mxu0
        %4868 = vmatprep.mubr.bf16.mxu0 0
        %4869 = vmatmul.mubr.bf16.gmra.mrb[0].mxu0 %v4784
        %v4870 = vpop.f32.mrb[0].mxu0
        %v4871 = vadd.f32 0.0, %v4870
        %v4872 = vpop.f32.mrb[0].mxu0
        %v4873 = vpop.f32.mrb[0].mxu0
        %v4874 = vadd.f32 0.0, %v4873
        %v4875 = vpop.f32.mrb[0].mxu0
        %4876 = vmatprep.mubr.bf16.mxu0 0
        %4877 = vmatmul.mubr.bf16.gmra.mrb[0].mxu0 %v4787
        %v4878 = vpop.f32.mrb[0].mxu0
        %v4879 = vadd.f32 0.0, %v4878
        %v4880 = vpop.f32.mrb[0].mxu0
        %v4881 = vpop.f32.mrb[0].mxu0
        %v4882 = vadd.f32 0.0, %v4881
        %v4883 = vpop.f32.mrb[0].mxu0
        %4884 = vmatprep.mubr.bf16.mxu0 0
        %4885 = vmatmul.mubr.bf16.gmra.mrb[0].mxu0 %v4790
        %v4886 = vpop.f32.mrb[0].mxu0
        %v4887 = vadd.f32 0.0, %v4886
        %v4888 = vpop.f32.mrb[0].mxu0
        %v4889 = vpop.f32.mrb[0].mxu0
        %v4890 = vadd.f32 0.0, %v4889
        %v4891 = vpop.f32.mrb[0].mxu0
        %4892 = vmatprep.mubr.bf16.mxu0 0
        %4893 = vmatmul.mubr.bf16.gmra.mrb[0].mxu0 %v4793
        %v4894 = vpop.f32.mrb[0].mxu0
        %v4895 = vadd.f32 0.0, %v4894
        %v4896 = vpop.f32.mrb[0].mxu0
        %v4897 = vpop.f32.mrb[0].mxu0
        %v4898 = vadd.f32 0.0, %v4897
        %v4899 = vpop.f32.mrb[0].mxu0
        %4900 = vmatprep.mubr.bf16.mxu0 0
        %4901 = vmatmul.mubr.bf16.gmra.mrb[0].mxu0 %v4796
        %v4902 = vpop.f32.mrb[0].mxu0
        %v4903 = vadd.f32 0.0, %v4902
        %v4904 = vpop.f32.mrb[0].mxu0
        %v4905 = vpop.f32.mrb[0].mxu0
        %v4906 = vadd.f32 0.0, %v4905
        %v4907 = vpop.f32.mrb[0].mxu0
        %4908 = vmatprep.mubr.bf16.mxu0 0
        %4909 = vmatmul.mubr.bf16.gmra.mrb[0].mxu0 %v4799
        %v4910 = vpop.f32.mrb[0].mxu0
        %v4911 = vadd.f32 0.0, %v4910
        %v4912 = vpop.f32.mrb[0].mxu0
        %v4913 = vpop.f32.mrb[0].mxu0
        %v4914 = vadd.f32 0.0, %v4913
        %v4915 = vpop.f32.mrb[0].mxu0
        %4916 = vmatprep.mubr.bf16.mxu0 0
        %4917 = vmatmul.mubr.bf16.gmra.mrb[0].mxu0 %v4802
        %v4918 = vpop.f32.mrb[0].mxu0
        %v4919 = vadd.f32 0.0, %v4918
        %v4920 = vpop.f32.mrb[0].mxu0
        %v4921 = vpop.f32.mrb[0].mxu0
        %v4922 = vadd.f32 0.0, %v4921
        %v4923 = vpop.f32.mrb[0].mxu0
        %4924 = vmatprep.mubr.bf16.mxu0 0
        %4925 = vmatmul.mubr.bf16.gmra.mrb[0].mxu0 %v4805
        %v4926 = vpop.f32.mrb[0].mxu0
        %v4927 = vadd.f32 0.0, %v4926
        %v4928 = vpop.f32.mrb[0].mxu0
        %v4929 = vpop.f32.mrb[0].mxu0
        %v4930 = vadd.f32 0.0, %v4929
        %v4931 = vpop.f32.mrb[0].mxu0
        %4932 = vmatprep.mubr.bf16.mxu0 0
        %4933 = vmatmul.mubr.bf16.gmra.mrb[0].mxu0 %v4808
        %v4934 = vpop.f32.mrb[0].mxu0
        %v4935 = vadd.f32 0.0, %v4934
        %v4936 = vpop.f32.mrb[0].mxu0
        %v4937 = vpop.f32.mrb[0].mxu0
        %v4938 = vadd.f32 0.0, %v4937
        %v4939 = vpop.f32.mrb[0].mxu0
        %4940 = vmatprep.mubr.bf16.mxu0 0
        %4941 = vmatmul.mubr.bf16.gmra.mrb[0].mxu0 %v4811
        %v4942 = vpop.f32.mrb[0].mxu0
        %v4943 = vadd.f32 0.0, %v4942
        %v4944 = vpop.f32.mrb[0].mxu0
        %v4945 = vpop.f32.mrb[0].mxu0
        %v4946 = vadd.f32 0.0, %v4945
        %v4947 = vpop.f32.mrb[0].mxu0
        %4948 = vmatprep.mubr.bf16.mxu0 0
        %4949 = vmatmul.mubr.bf16.gmra.mrb[0].mxu0 %v4814
        %v4950 = vpop.f32.mrb[0].mxu0
        %v4951 = vadd.f32 0.0, %v4950
        %v4952 = vpop.f32.mrb[0].mxu0
        %v4953 = vpop.f32.mrb[0].mxu0
        %v4954 = vadd.f32 0.0, %v4953
        %v4955 = vpop.f32.mrb[0].mxu0
        %4956 = vmatprep.mubr.bf16.mxu0 0
        %4957 = vmatmul.mubr.bf16.gmra.mrb[0].mxu0 %v4817
        %v4958 = vpop.f32.mrb[0].mxu0
        %v4959 = vadd.f32 0.0, %v4958
        %v4960 = vpop.f32.mrb[0].mxu0
        %v4961 = vpop.f32.mrb[0].mxu0
        %v4962 = vadd.f32 0.0, %v4961
        %v4963 = vpop.f32.mrb[0].mxu0
        %4964 = vmatprep.mubr.bf16.mxu0 0
        %4965 = vmatmul.mubr.bf16.gmra.mrb[0].mxu0 %v4820
        %v4966 = vpop.f32.mrb[0].mxu0
        %v4967 = vadd.f32 0.0, %v4966
        %v4968 = vpop.f32.mrb[0].mxu0
        %v4969 = vpop.f32.mrb[0].mxu0
        %v4970 = vadd.f32 0.0, %v4969
        %v4971 = vpop.f32.mrb[0].mxu0
        %4972 = vmatprep.mubr.bf16.mxu0 0
        %4973 = vmatmul.mubr.bf16.gmra.mrb[0].mxu0 %v4823
        %v4974 = vpop.f32.mrb[0].mxu0
        %v4975 = vadd.f32 0.0, %v4974
        %v4976 = vpop.f32.mrb[0].mxu0
        %v4977 = vpop.f32.mrb[0].mxu0
        %v4978 = vadd.f32 0.0, %v4977
        %v4979 = vpop.f32.mrb[0].mxu0
        %4980 = vmatprep.mubr.bf16.mxu0 0
        %4981 = vmatmul.mubr.bf16.gmra.mrb[0].mxu0 %v4826
        %v4982 = vpop.f32.mrb[0].mxu0
        %v4983 = vadd.f32 0.0, %v4982
        %v4984 = vpop.f32.mrb[0].mxu0
        %v4985 = vpop.f32.mrb[0].mxu0
        %v4986 = vadd.f32 0.0, %v4985
        %v4987 = vpop.f32.mrb[0].mxu0
        %4988 = vdwg.mxu0
        %v4989 = vadd.f32 %v4508, %v4863
        %v4990 = vadd.f32 %v4509, %v4866
        %v4991 = vadd.f32 %v4510, %v4871
        %v4992 = vadd.f32 %v4511, %v4874
        %v4993 = vadd.f32 %v4512, %v4879
        %v4994 = vadd.f32 %v4513, %v4882
        %v4995 = vadd.f32 %v4514, %v4887
        %v4996 = vadd.f32 %v4515, %v4890
        %v4997 = vadd.f32 %v4516, %v4895
        %v4998 = vadd.f32 %v4517, %v4898
        %v4999 = vadd.f32 %v4518, %v4903
        %v5000 = vadd.f32 %v4519, %v4906
        %v5001 = vadd.f32 %v4520, %v4911
        %v5002 = vadd.f32 %v4521, %v4914
        %v5003 = vadd.f32 %v4522, %v4919
        %v5004 = vadd.f32 %v4523, %v4922
        %v5005 = vadd.f32 %v4524, %v4927
        %v5006 = vadd.f32 %v4525, %v4930
        %v5007 = vadd.f32 %v4526, %v4935
        %v5008 = vadd.f32 %v4527, %v4938
        %v5009 = vadd.f32 %v4528, %v4943
        %v5010 = vadd.f32 %v4529, %v4946
        %v5011 = vadd.f32 %v4530, %v4951
        %v5012 = vadd.f32 %v4531, %v4954
        %v5013 = vadd.f32 %v4532, %v4959
        %v5014 = vadd.f32 %v4533, %v4962
        %v5015 = vadd.f32 %v4534, %v4967
        %v5016 = vadd.f32 %v4535, %v4970
        %v5017 = vadd.f32 %v4536, %v4975
        %v5018 = vadd.f32 %v4537, %v4978
        %v5019 = vadd.f32 %v4538, %v4983
        %v5020 = vadd.f32 %v4539, %v4986
        %v5021 = vpack.c.bf16 %v4990, %v4989
        %v5022 = vpack.c.bf16 %v4992, %v4991
        %v5023 = vpack.c.bf16 %v4994, %v4993
        %v5024 = vpack.c.bf16 %v4996, %v4995
        %v5025 = vpack.c.bf16 %v4998, %v4997
        %v5026 = vpack.c.bf16 %v5000, %v4999
        %v5027 = vpack.c.bf16 %v5002, %v5001
        %v5028 = vpack.c.bf16 %v5004, %v5003
        %v5029 = vpack.c.bf16 %v5006, %v5005
        %v5030 = vpack.c.bf16 %v5008, %v5007
        %v5031 = vpack.c.bf16 %v5010, %v5009
        %v5032 = vpack.c.bf16 %v5012, %v5011
        %v5033 = vpack.c.bf16 %v5014, %v5013
        %v5034 = vpack.c.bf16 %v5016, %v5015
        %v5035 = vpack.c.bf16 %v5018, %v5017
        %v5036 = vpack.c.bf16 %v5020, %v5019
        %v5053 = vunpack.c.l.b16 %v5021
        %v5054 = vunpack.c.h.b16 %v5021
        %v5055 = vunpack.c.l.b16 %v5022
        %v5056 = vunpack.c.h.b16 %v5022
        %v5057 = vunpack.c.l.b16 %v5023
        %v5058 = vunpack.c.h.b16 %v5023
        %v5059 = vunpack.c.l.b16 %v5024
        %v5060 = vunpack.c.h.b16 %v5024
        %v5061 = vunpack.c.l.b16 %v5025
        %v5062 = vunpack.c.h.b16 %v5025
        %v5063 = vunpack.c.l.b16 %v5026
        %v5064 = vunpack.c.h.b16 %v5026
        %v5065 = vunpack.c.l.b16 %v5027
        %v5066 = vunpack.c.h.b16 %v5027
        %v5067 = vunpack.c.l.b16 %v5028
        %v5068 = vunpack.c.h.b16 %v5028
        %v5069 = vunpack.c.l.b16 %v5029
        %v5070 = vunpack.c.h.b16 %v5029
        %v5071 = vunpack.c.l.b16 %v5030
        %v5072 = vunpack.c.h.b16 %v5030
        %v5073 = vunpack.c.l.b16 %v5031
        %v5074 = vunpack.c.h.b16 %v5031
        %v5075 = vunpack.c.l.b16 %v5032
        %v5076 = vunpack.c.h.b16 %v5032
        %v5077 = vunpack.c.l.b16 %v5033
        %v5078 = vunpack.c.h.b16 %v5033
        %v5079 = vunpack.c.l.b16 %v5034
        %v5080 = vunpack.c.h.b16 %v5034
        %v5081 = vunpack.c.l.b16 %v5035
        %v5082 = vunpack.c.h.b16 %v5035
        %v5083 = vunpack.c.l.b16 %v5036
        %v5084 = vunpack.c.h.b16 %v5036
        %v5085 = vpack.c.b16 %v5053, %v5053
        %v5086 = vpack.c.b16 %v5054, %v5054
        %v5087 = vpack.c.b16 %v5055, %v5055
        %v5088 = vpack.c.b16 %v5056, %v5056
        %v5089 = vpack.c.b16 %v5057, %v5057
        %v5090 = vpack.c.b16 %v5058, %v5058
        %v5091 = vpack.c.b16 %v5059, %v5059
        %v5092 = vpack.c.b16 %v5060, %v5060
        %v5093 = vpack.c.b16 %v5061, %v5061
        %v5094 = vpack.c.b16 %v5062, %v5062
        %v5095 = vpack.c.b16 %v5063, %v5063
        %v5096 = vpack.c.b16 %v5064, %v5064
        %v5097 = vpack.c.b16 %v5065, %v5065
        %v5098 = vpack.c.b16 %v5066, %v5066
        %v5099 = vpack.c.b16 %v5067, %v5067
        %v5100 = vpack.c.b16 %v5068, %v5068
        %v5101 = vpack.c.b16 %v5069, %v5069
        %v5102 = vpack.c.b16 %v5070, %v5070
        %v5103 = vpack.c.b16 %v5071, %v5071
        %v5104 = vpack.c.b16 %v5072, %v5072
        %v5105 = vpack.c.b16 %v5073, %v5073
        %v5106 = vpack.c.b16 %v5074, %v5074
        %v5107 = vpack.c.b16 %v5075, %v5075
        %v5108 = vpack.c.b16 %v5076, %v5076
        %v5109 = vpack.c.b16 %v5077, %v5077
        %v5110 = vpack.c.b16 %v5078, %v5078
        %v5111 = vpack.c.b16 %v5079, %v5079
        %v5112 = vpack.c.b16 %v5080, %v5080
        %v5113 = vpack.c.b16 %v5081, %v5081
        %v5114 = vpack.c.b16 %v5082, %v5082
        %v5115 = vpack.c.b16 %v5083, %v5083
        %v5116 = vpack.c.b16 %v5084, %v5084
        %s5149 = scalar_lea.vmem %s218, 128 [#allocation2]
        %5150 = vst [vmem:[%s5149] sm:$0xf] %v5085
        %5151 = vst [vmem:[%s5149 + $0x4] sm:$0xf] %v5086
        %5152 = vst [vmem:[%s5149 + $0x8] sm:$0xf] %v5087
        %5153 = vst [vmem:[%s5149 + $0xc] sm:$0xf] %v5088
        %5154 = vst [vmem:[%s5149 + $0x10] sm:$0xf] %v5089
        %5155 = vst [vmem:[%s5149 + $0x14] sm:$0xf] %v5090
        %5156 = vst [vmem:[%s5149 + $0x18] sm:$0xf] %v5091
        %5157 = vst [vmem:[%s5149 + $0x1c] sm:$0xf] %v5092
        %5158 = vst [vmem:[%s5149 + $0x20] sm:$0xf] %v5093
        %5159 = vst [vmem:[%s5149 + $0x24] sm:$0xf] %v5094
        %5160 = vst [vmem:[%s5149 + $0x28] sm:$0xf] %v5095
        %5161 = vst [vmem:[%s5149 + $0x2c] sm:$0xf] %v5096
        %5162 = vst [vmem:[%s5149 + $0x30] sm:$0xf] %v5097
        %5163 = vst [vmem:[%s5149 + $0x34] sm:$0xf] %v5098
        %5164 = vst [vmem:[%s5149 + $0x38] sm:$0xf] %v5099
        %5165 = vst [vmem:[%s5149 + $0x3c] sm:$0xf] %v5100
        %5166 = vst [vmem:[%s5149 + $0x40] sm:$0xf] %v5101
        %5167 = vst [vmem:[%s5149 + $0x44] sm:$0xf] %v5102
        %5168 = vst [vmem:[%s5149 + $0x48] sm:$0xf] %v5103
        %5169 = vst [vmem:[%s5149 + $0x4c] sm:$0xf] %v5104
        %5170 = vst [vmem:[%s5149 + $0x50] sm:$0xf] %v5105
        %5171 = vst [vmem:[%s5149 + $0x54] sm:$0xf] %v5106
        %5172 = vst [vmem:[%s5149 + $0x58] sm:$0xf] %v5107
        %5173 = vst [vmem:[%s5149 + $0x5c] sm:$0xf] %v5108
        %5174 = vst [vmem:[%s5149 + $0x60] sm:$0xf] %v5109
        %5175 = vst [vmem:[%s5149 + $0x64] sm:$0xf] %v5110
        %5176 = vst [vmem:[%s5149 + $0x68] sm:$0xf] %v5111
        %5177 = vst [vmem:[%s5149 + $0x6c] sm:$0xf] %v5112
        %5178 = vst [vmem:[%s5149 + $0x70] sm:$0xf] %v5113
        %5179 = vst [vmem:[%s5149 + $0x74] sm:$0xf] %v5114
        %5180 = vst [vmem:[%s5149 + $0x78] sm:$0xf] %v5115
        %5181 = vst [vmem:[%s5149 + $0x7c] sm:$0xf] %v5116
        %v5182 = vadd.f32 %v4989, %v4990
        %v5183 = vadd.f32 %v5182, %v4991
        %v5184 = vadd.f32 %v5183, %v4992
        %v5185 = vadd.f32 %v5184, %v4993
        %v5186 = vadd.f32 %v5185, %v4994
        %v5187 = vadd.f32 %v5186, %v4995
        %v5188 = vadd.f32 %v5187, %v4996
        %v5189 = vadd.f32 %v5188, %v4997
        %v5190 = vadd.f32 %v5189, %v4998
        %v5191 = vadd.f32 %v5190, %v4999
        %v5192 = vadd.f32 %v5191, %v5000
        %v5193 = vadd.f32 %v5192, %v5001
        %v5194 = vadd.f32 %v5193, %v5002
        %v5195 = vadd.f32 %v5194, %v5003
        %v5196 = vadd.f32 %v5195, %v5004
        %v5197 = vadd.f32 %v5196, %v5005
        %v5198 = vadd.f32 %v5197, %v5006
        %v5199 = vadd.f32 %v5198, %v5007
        %v5200 = vadd.f32 %v5199, %v5008
        %v5201 = vadd.f32 %v5200, %v5009
        %v5202 = vadd.f32 %v5201, %v5010
        %v5203 = vadd.f32 %v5202, %v5011
        %v5204 = vadd.f32 %v5203, %v5012
        %v5205 = vadd.f32 %v5204, %v5013
        %v5206 = vadd.f32 %v5205, %v5014
        %v5207 = vadd.f32 %v5206, %v5015
        %v5208 = vadd.f32 %v5207, %v5016
        %v5209 = vadd.f32 %v5208, %v5017
        %v5210 = vadd.f32 %v5209, %v5018
        %v5211 = vadd.f32 %v5210, %v5019
        %v5212 = vadd.f32 %v5211, %v5020
        %v5213 = vrot.slane %v5212, 4
        %v5214 = vadd.f32 %v5212, %v5213
        %v5215 = vrot.slane %v5214, 2
        %v5216 = vadd.f32 %v5214, %v5215
        %v5217 = vrot.slane %v5216, 1
        %v5218 = vadd.f32 %v5216, %v5217
        %v5219 = vadd.f32 %v2575, %v5218
        %v5220 = vmul.f32 %v4989, %v4989
        %v5221 = vmul.f32 %v4990, %v4990
        %v5222 = vmul.f32 %v4991, %v4991
        %v5223 = vmul.f32 %v4992, %v4992
        %v5224 = vmul.f32 %v4993, %v4993
        %v5225 = vmul.f32 %v4994, %v4994
        %v5226 = vmul.f32 %v4995, %v4995
        %v5227 = vmul.f32 %v4996, %v4996
        %v5228 = vmul.f32 %v4997, %v4997
        %v5229 = vmul.f32 %v4998, %v4998
        %v5230 = vmul.f32 %v4999, %v4999
        %v5231 = vmul.f32 %v5000, %v5000
        %v5232 = vmul.f32 %v5001, %v5001
        %v5233 = vmul.f32 %v5002, %v5002
        %v5234 = vmul.f32 %v5003, %v5003
        %v5235 = vmul.f32 %v5004, %v5004
        %v5236 = vmul.f32 %v5005, %v5005
        %v5237 = vmul.f32 %v5006, %v5006
        %v5238 = vmul.f32 %v5007, %v5007
        %v5239 = vmul.f32 %v5008, %v5008
        %v5240 = vmul.f32 %v5009, %v5009
        %v5241 = vmul.f32 %v5010, %v5010
        %v5242 = vmul.f32 %v5011, %v5011
        %v5243 = vmul.f32 %v5012, %v5012
        %v5244 = vmul.f32 %v5013, %v5013
        %v5245 = vmul.f32 %v5014, %v5014
        %v5246 = vmul.f32 %v5015, %v5015
        %v5247 = vmul.f32 %v5016, %v5016
        %v5248 = vmul.f32 %v5017, %v5017
        %v5249 = vmul.f32 %v5018, %v5018
        %v5250 = vmul.f32 %v5019, %v5019
        %v5251 = vmul.f32 %v5020, %v5020
        %v5252 = vadd.f32 %v5220, %v5221
        %v5253 = vadd.f32 %v5252, %v5222
        %v5254 = vadd.f32 %v5253, %v5223
        %v5255 = vadd.f32 %v5254, %v5224
        %v5256 = vadd.f32 %v5255, %v5225
        %v5257 = vadd.f32 %v5256, %v5226
        %v5258 = vadd.f32 %v5257, %v5227
        %v5259 = vadd.f32 %v5258, %v5228
        %v5260 = vadd.f32 %v5259, %v5229
        %v5261 = vadd.f32 %v5260, %v5230
        %v5262 = vadd.f32 %v5261, %v5231
        %v5263 = vadd.f32 %v5262, %v5232
        %v5264 = vadd.f32 %v5263, %v5233
        %v5265 = vadd.f32 %v5264, %v5234
        %v5266 = vadd.f32 %v5265, %v5235
        %v5267 = vadd.f32 %v5266, %v5236
        %v5268 = vadd.f32 %v5267, %v5237
        %v5269 = vadd.f32 %v5268, %v5238
        %v5270 = vadd.f32 %v5269, %v5239
        %v5271 = vadd.f32 %v5270, %v5240
        %v5272 = vadd.f32 %v5271, %v5241
        %v5273 = vadd.f32 %v5272, %v5242
        %v5274 = vadd.f32 %v5273, %v5243
        %v5275 = vadd.f32 %v5274, %v5244
        %v5276 = vadd.f32 %v5275, %v5245
        %v5277 = vadd.f32 %v5276, %v5246
        %v5278 = vadd.f32 %v5277, %v5247
        %v5279 = vadd.f32 %v5278, %v5248
        %v5280 = vadd.f32 %v5279, %v5249
        %v5281 = vadd.f32 %v5280, %v5250
        %v5282 = vadd.f32 %v5281, %v5251
        %v5283 = vrot.slane %v5282, 4
        %v5284 = vadd.f32 %v5282, %v5283
        %v5285 = vrot.slane %v5284, 2
        %v5286 = vadd.f32 %v5284, %v5285
        %v5287 = vrot.slane %v5286, 1
        %v5288 = vadd.f32 %v5286, %v5287
        %v5289 = vadd.f32 %v2645, %v5288
        %v5290 = vld [vmem:[%s1271] sm:$0xf]
        %v5291 = vld [vmem:[%s1271 + $0x4] sm:$0xf]
        %v5292 = vld [vmem:[%s1271 + $0xc] sm:$0xf]
        %v5293 = vld [vmem:[%s1271 + $0x10] sm:$0xf]
        %v5294 = vld [vmem:[%s1271 + $0x18] sm:$0xf]
        %v5295 = vld [vmem:[%s1271 + $0x1c] sm:$0xf]
        %v5296 = vld [vmem:[%s1271 + $0x24] sm:$0xf]
        %v5297 = vld [vmem:[%s1271 + $0x28] sm:$0xf]
        %v5298 = vld [vmem:[%s1271 + $0x30] sm:$0xf]
        %v5299 = vld [vmem:[%s1271 + $0x34] sm:$0xf]
        %v5300 = vld [vmem:[%s1271 + $0x3c] sm:$0xf]
        %v5301 = vld [vmem:[%s1271 + $0x40] sm:$0xf]
        %v5302 = vld [vmem:[%s1271 + $0x48] sm:$0xf]
        %v5303 = vld [vmem:[%s1271 + $0x4c] sm:$0xf]
        %v5304 = vld [vmem:[%s1271 + $0x54] sm:$0xf]
        %v5305 = vld [vmem:[%s1271 + $0x58] sm:$0xf]
        %v5306 = vld [vmem:[%s1271 + $0x60] sm:$0xf]
        %v5307 = vld [vmem:[%s1271 + $0x64] sm:$0xf]
        %v5308 = vld [vmem:[%s1271 + $0x6c] sm:$0xf]
        %v5309 = vld [vmem:[%s1271 + $0x70] sm:$0xf]
        %v5310 = vld [vmem:[%s1271 + $0x78] sm:$0xf]
        %v5311 = vld [vmem:[%s1271 + $0x7c] sm:$0xf]
        %v5312 = vld [vmem:[%s1271 + $0x84] sm:$0xf]
        %v5313 = vld [vmem:[%s1271 + $0x88] sm:$0xf]
        %v5314 = vld [vmem:[%s1271 + $0x90] sm:$0xf]
        %v5315 = vld [vmem:[%s1271 + $0x94] sm:$0xf]
        %v5316 = vld [vmem:[%s1271 + $0x9c] sm:$0xf]
        %v5317 = vld [vmem:[%s1271 + $0xa0] sm:$0xf]
        %v5318 = vld [vmem:[%s1271 + $0xa8] sm:$0xf]
        %v5319 = vld [vmem:[%s1271 + $0xac] sm:$0xf]
        %v5320 = vld [vmem:[%s1271 + $0xb4] sm:$0xf]
        %v5321 = vld [vmem:[%s1271 + $0xb8] sm:$0xf]
        %v5322 = vld [vmem:[%s243 + $0x80] sm:$0xf]
        %v5323 = vld [vmem:[%s243 + $0x84] sm:$0xf]
        %v5324 = vld [vmem:[%s243 + $0x88] sm:$0xf]
        %v5325 = vld [vmem:[%s243 + $0x8c] sm:$0xf]
        %v5326 = vld [vmem:[%s1271 + $0x8] sm:$0x1]
        %v5327 = vld [vmem:[%s1271 + $0x14] sm:$0x1]
        %v5328 = vld [vmem:[%s1271 + $0x20] sm:$0x1]
        %v5329 = vld [vmem:[%s1271 + $0x2c] sm:$0x1]
        %v5330 = vld [vmem:[%s1271 + $0x38] sm:$0x1]
        %v5331 = vld [vmem:[%s1271 + $0x44] sm:$0x1]
        %v5332 = vld [vmem:[%s1271 + $0x50] sm:$0x1]
        %v5333 = vld [vmem:[%s1271 + $0x5c] sm:$0x1]
        %v5334 = vld [vmem:[%s1271 + $0x68] sm:$0x1]
        %v5335 = vld [vmem:[%s1271 + $0x74] sm:$0x1]
        %v5336 = vld [vmem:[%s1271 + $0x80] sm:$0x1]
        %v5337 = vld [vmem:[%s1271 + $0x8c] sm:$0x1]
        %v5338 = vld [vmem:[%s1271 + $0x98] sm:$0x1]
        %v5339 = vld [vmem:[%s1271 + $0xa4] sm:$0x1]
        %v5340 = vld [vmem:[%s1271 + $0xb0] sm:$0x1]
        %v5341 = vld [vmem:[%s1271 + $0xbc] sm:$0x1]
        %v5342 = vld [vmem:[%s243 + $0x90] sm:$0xf]
        %v5343 = vld [vmem:[%s243 + $0x94] sm:$0xf]
        %v5344 = vld [vmem:[%s243 + $0x98] sm:$0xf]
        %v5345 = vld [vmem:[%s243 + $0x9c] sm:$0xf]
        %v5347 = vshrl.u32 %v5290, 16
        %v5349 = vrot.slane %v5347, 4
        %v5350 = vshll.u32 %v5290, 16
        %v5352 = vrot.slane %v5350, 5
        %v5353 = vor.u32 %v5349, %v5352
        %v5354 = vrot.slane %v5353, 4
        %v5356 = vshll.u32 %v5291, 16
        %v5358 = vrot.slane %v5356, 5
        %v5359 = vsel %vm315, %v5354, %v5358
        %v5360 = vshrl.u32 %v5291, 16
        %v5362 = vrot.slane %v5360, 4
        %v5363 = vor.u32 %v5362, %v5358
        %v5364 = vrot.slane %v5363, 4
        %v5366 = vshll.u32 %v5326, 16
        %v5368 = vrot.slane %v5366, 5
        %v5369 = vsel %vm315, %v5364, %v5368
        %v5371 = vshrl.u32 %v5292, 16
        %v5373 = vrot.slane %v5371, 4
        %v5374 = vshll.u32 %v5292, 16
        %v5376 = vrot.slane %v5374, 5
        %v5377 = vor.u32 %v5373, %v5376
        %v5378 = vrot.slane %v5377, 4
        %v5380 = vshll.u32 %v5293, 16
        %v5382 = vrot.slane %v5380, 5
        %v5383 = vsel %vm315, %v5378, %v5382
        %v5384 = vshrl.u32 %v5293, 16
        %v5386 = vrot.slane %v5384, 4
        %v5387 = vor.u32 %v5386, %v5382
        %v5388 = vrot.slane %v5387, 4
        %v5390 = vshll.u32 %v5327, 16
        %v5392 = vrot.slane %v5390, 5
        %v5393 = vsel %vm315, %v5388, %v5392
        %v5395 = vshrl.u32 %v5294, 16
        %v5397 = vrot.slane %v5395, 4
        %v5398 = vshll.u32 %v5294, 16
        %v5400 = vrot.slane %v5398, 5
        %v5401 = vor.u32 %v5397, %v5400
        %v5402 = vrot.slane %v5401, 4
        %v5404 = vshll.u32 %v5295, 16
        %v5406 = vrot.slane %v5404, 5
        %v5407 = vsel %vm315, %v5402, %v5406
        %v5408 = vshrl.u32 %v5295, 16
        %v5410 = vrot.slane %v5408, 4
        %v5411 = vor.u32 %v5410, %v5406
        %v5412 = vrot.slane %v5411, 4
        %v5414 = vshll.u32 %v5328, 16
        %v5416 = vrot.slane %v5414, 5
        %v5417 = vsel %vm315, %v5412, %v5416
        %v5419 = vshrl.u32 %v5296, 16
        %v5421 = vrot.slane %v5419, 4
        %v5422 = vshll.u32 %v5296, 16
        %v5424 = vrot.slane %v5422, 5
        %v5425 = vor.u32 %v5421, %v5424
        %v5426 = vrot.slane %v5425, 4
        %v5428 = vshll.u32 %v5297, 16
        %v5430 = vrot.slane %v5428, 5
        %v5431 = vsel %vm315, %v5426, %v5430
        %v5432 = vshrl.u32 %v5297, 16
        %v5434 = vrot.slane %v5432, 4
        %v5435 = vor.u32 %v5434, %v5430
        %v5436 = vrot.slane %v5435, 4
        %v5438 = vshll.u32 %v5329, 16
        %v5440 = vrot.slane %v5438, 5
        %v5441 = vsel %vm315, %v5436, %v5440
        %v5443 = vshrl.u32 %v5298, 16
        %v5445 = vrot.slane %v5443, 4
        %v5446 = vshll.u32 %v5298, 16
        %v5448 = vrot.slane %v5446, 5
        %v5449 = vor.u32 %v5445, %v5448
        %v5450 = vrot.slane %v5449, 4
        %v5452 = vshll.u32 %v5299, 16
        %v5454 = vrot.slane %v5452, 5
        %v5455 = vsel %vm315, %v5450, %v5454
        %v5456 = vshrl.u32 %v5299, 16
        %v5458 = vrot.slane %v5456, 4
        %v5459 = vor.u32 %v5458, %v5454
        %v5460 = vrot.slane %v5459, 4
        %v5462 = vshll.u32 %v5330, 16
        %v5464 = vrot.slane %v5462, 5
        %v5465 = vsel %vm315, %v5460, %v5464
        %v5467 = vshrl.u32 %v5300, 16
        %v5469 = vrot.slane %v5467, 4
        %v5470 = vshll.u32 %v5300, 16
        %v5472 = vrot.slane %v5470, 5
        %v5473 = vor.u32 %v5469, %v5472
        %v5474 = vrot.slane %v5473, 4
        %v5476 = vshll.u32 %v5301, 16
        %v5478 = vrot.slane %v5476, 5
        %v5479 = vsel %vm315, %v5474, %v5478
        %v5480 = vshrl.u32 %v5301, 16
        %v5482 = vrot.slane %v5480, 4
        %v5483 = vor.u32 %v5482, %v5478
        %v5484 = vrot.slane %v5483, 4
        %v5486 = vshll.u32 %v5331, 16
        %v5488 = vrot.slane %v5486, 5
        %v5489 = vsel %vm315, %v5484, %v5488
        %v5491 = vshrl.u32 %v5302, 16
        %v5493 = vrot.slane %v5491, 4
        %v5494 = vshll.u32 %v5302, 16
        %v5496 = vrot.slane %v5494, 5
        %v5497 = vor.u32 %v5493, %v5496
        %v5498 = vrot.slane %v5497, 4
        %v5500 = vshll.u32 %v5303, 16
        %v5502 = vrot.slane %v5500, 5
        %v5503 = vsel %vm315, %v5498, %v5502
        %v5504 = vshrl.u32 %v5303, 16
        %v5506 = vrot.slane %v5504, 4
        %v5507 = vor.u32 %v5506, %v5502
        %v5508 = vrot.slane %v5507, 4
        %v5510 = vshll.u32 %v5332, 16
        %v5512 = vrot.slane %v5510, 5
        %v5513 = vsel %vm315, %v5508, %v5512
        %v5515 = vshrl.u32 %v5304, 16
        %v5517 = vrot.slane %v5515, 4
        %v5518 = vshll.u32 %v5304, 16
        %v5520 = vrot.slane %v5518, 5
        %v5521 = vor.u32 %v5517, %v5520
        %v5522 = vrot.slane %v5521, 4
        %v5524 = vshll.u32 %v5305, 16
        %v5526 = vrot.slane %v5524, 5
        %v5527 = vsel %vm315, %v5522, %v5526
        %v5528 = vshrl.u32 %v5305, 16
        %v5530 = vrot.slane %v5528, 4
        %v5531 = vor.u32 %v5530, %v5526
        %v5532 = vrot.slane %v5531, 4
        %v5534 = vshll.u32 %v5333, 16
        %v5536 = vrot.slane %v5534, 5
        %v5537 = vsel %vm315, %v5532, %v5536
        %v5539 = vshrl.u32 %v5306, 16
        %v5541 = vrot.slane %v5539, 4
        %v5542 = vshll.u32 %v5306, 16
        %v5544 = vrot.slane %v5542, 5
        %v5545 = vor.u32 %v5541, %v5544
        %v5546 = vrot.slane %v5545, 4
        %v5548 = vshll.u32 %v5307, 16
        %v5550 = vrot.slane %v5548, 5
        %v5551 = vsel %vm315, %v5546, %v5550
        %v5552 = vshrl.u32 %v5307, 16
        %v5554 = vrot.slane %v5552, 4
        %v5555 = vor.u32 %v5554, %v5550
        %v5556 = vrot.slane %v5555, 4
        %v5558 = vshll.u32 %v5334, 16
        %v5560 = vrot.slane %v5558, 5
        %v5561 = vsel %vm315, %v5556, %v5560
        %v5563 = vshrl.u32 %v5308, 16
        %v5565 = vrot.slane %v5563, 4
        %v5566 = vshll.u32 %v5308, 16
        %v5568 = vrot.slane %v5566, 5
        %v5569 = vor.u32 %v5565, %v5568
        %v5570 = vrot.slane %v5569, 4
        %v5572 = vshll.u32 %v5309, 16
        %v5574 = vrot.slane %v5572, 5
        %v5575 = vsel %vm315, %v5570, %v5574
        %v5576 = vshrl.u32 %v5309, 16
        %v5578 = vrot.slane %v5576, 4
        %v5579 = vor.u32 %v5578, %v5574
        %v5580 = vrot.slane %v5579, 4
        %v5582 = vshll.u32 %v5335, 16
        %v5584 = vrot.slane %v5582, 5
        %v5585 = vsel %vm315, %v5580, %v5584
        %v5587 = vshrl.u32 %v5310, 16
        %v5589 = vrot.slane %v5587, 4
        %v5590 = vshll.u32 %v5310, 16
        %v5592 = vrot.slane %v5590, 5
        %v5593 = vor.u32 %v5589, %v5592
        %v5594 = vrot.slane %v5593, 4
        %v5596 = vshll.u32 %v5311, 16
        %v5598 = vrot.slane %v5596, 5
        %v5599 = vsel %vm315, %v5594, %v5598
        %v5600 = vshrl.u32 %v5311, 16
        %v5602 = vrot.slane %v5600, 4
        %v5603 = vor.u32 %v5602, %v5598
        %v5604 = vrot.slane %v5603, 4
        %v5606 = vshll.u32 %v5336, 16
        %v5608 = vrot.slane %v5606, 5
        %v5609 = vsel %vm315, %v5604, %v5608
        %v5611 = vshrl.u32 %v5312, 16
        %v5613 = vrot.slane %v5611, 4
        %v5614 = vshll.u32 %v5312, 16
        %v5616 = vrot.slane %v5614, 5
        %v5617 = vor.u32 %v5613, %v5616
        %v5618 = vrot.slane %v5617, 4
        %v5620 = vshll.u32 %v5313, 16
        %v5622 = vrot.slane %v5620, 5
        %v5623 = vsel %vm315, %v5618, %v5622
        %v5624 = vshrl.u32 %v5313, 16
        %v5626 = vrot.slane %v5624, 4
        %v5627 = vor.u32 %v5626, %v5622
        %v5628 = vrot.slane %v5627, 4
        %v5630 = vshll.u32 %v5337, 16
        %v5632 = vrot.slane %v5630, 5
        %v5633 = vsel %vm315, %v5628, %v5632
        %v5635 = vshrl.u32 %v5314, 16
        %v5637 = vrot.slane %v5635, 4
        %v5638 = vshll.u32 %v5314, 16
        %v5640 = vrot.slane %v5638, 5
        %v5641 = vor.u32 %v5637, %v5640
        %v5642 = vrot.slane %v5641, 4
        %v5644 = vshll.u32 %v5315, 16
        %v5646 = vrot.slane %v5644, 5
        %v5647 = vsel %vm315, %v5642, %v5646
        %v5648 = vshrl.u32 %v5315, 16
        %v5650 = vrot.slane %v5648, 4
        %v5651 = vor.u32 %v5650, %v5646
        %v5652 = vrot.slane %v5651, 4
        %v5654 = vshll.u32 %v5338, 16
        %v5656 = vrot.slane %v5654, 5
        %v5657 = vsel %vm315, %v5652, %v5656
        %v5659 = vshrl.u32 %v5316, 16
        %v5661 = vrot.slane %v5659, 4
        %v5662 = vshll.u32 %v5316, 16
        %v5664 = vrot.slane %v5662, 5
        %v5665 = vor.u32 %v5661, %v5664
        %v5666 = vrot.slane %v5665, 4
        %v5668 = vshll.u32 %v5317, 16
        %v5670 = vrot.slane %v5668, 5
        %v5671 = vsel %vm315, %v5666, %v5670
        %v5672 = vshrl.u32 %v5317, 16
        %v5674 = vrot.slane %v5672, 4
        %v5675 = vor.u32 %v5674, %v5670
        %v5676 = vrot.slane %v5675, 4
        %v5678 = vshll.u32 %v5339, 16
        %v5680 = vrot.slane %v5678, 5
        %v5681 = vsel %vm315, %v5676, %v5680
        %v5683 = vshrl.u32 %v5318, 16
        %v5685 = vrot.slane %v5683, 4
        %v5686 = vshll.u32 %v5318, 16
        %v5688 = vrot.slane %v5686, 5
        %v5689 = vor.u32 %v5685, %v5688
        %v5690 = vrot.slane %v5689, 4
        %v5692 = vshll.u32 %v5319, 16
        %v5694 = vrot.slane %v5692, 5
        %v5695 = vsel %vm315, %v5690, %v5694
        %v5696 = vshrl.u32 %v5319, 16
        %v5698 = vrot.slane %v5696, 4
        %v5699 = vor.u32 %v5698, %v5694
        %v5700 = vrot.slane %v5699, 4
        %v5702 = vshll.u32 %v5340, 16
        %v5704 = vrot.slane %v5702, 5
        %v5705 = vsel %vm315, %v5700, %v5704
        %v5707 = vshrl.u32 %v5320, 16
        %v5709 = vrot.slane %v5707, 4
        %v5710 = vshll.u32 %v5320, 16
        %v5712 = vrot.slane %v5710, 5
        %v5713 = vor.u32 %v5709, %v5712
        %v5714 = vrot.slane %v5713, 4
        %v5716 = vshll.u32 %v5321, 16
        %v5718 = vrot.slane %v5716, 5
        %v5719 = vsel %vm315, %v5714, %v5718
        %v5720 = vshrl.u32 %v5321, 16
        %v5722 = vrot.slane %v5720, 4
        %v5723 = vor.u32 %v5722, %v5718
        %v5724 = vrot.slane %v5723, 4
        %v5726 = vshll.u32 %v5341, 16
        %v5728 = vrot.slane %v5726, 5
        %v5729 = vsel %vm315, %v5724, %v5728
        %v5730 = vunpack.c.l.b16 %v5359
        %v5731 = vunpack.c.l.b16 %v5369
        %v5732 = vunpack.c.l.b16 %v5383
        %v5733 = vunpack.c.l.b16 %v5393
        %v5734 = vunpack.c.l.b16 %v5407
        %v5735 = vunpack.c.l.b16 %v5417
        %v5736 = vunpack.c.l.b16 %v5431
        %v5737 = vunpack.c.l.b16 %v5441
        %v5738 = vunpack.c.l.b16 %v5455
        %v5739 = vunpack.c.l.b16 %v5465
        %v5740 = vunpack.c.l.b16 %v5479
        %v5741 = vunpack.c.l.b16 %v5489
        %v5742 = vunpack.c.l.b16 %v5503
        %v5743 = vunpack.c.l.b16 %v5513
        %v5744 = vunpack.c.l.b16 %v5527
        %v5745 = vunpack.c.l.b16 %v5537
        %v5746 = vunpack.c.l.b16 %v5551
        %v5747 = vunpack.c.l.b16 %v5561
        %v5748 = vunpack.c.l.b16 %v5575
        %v5749 = vunpack.c.l.b16 %v5585
        %v5750 = vunpack.c.l.b16 %v5599
        %v5751 = vunpack.c.l.b16 %v5609
        %v5752 = vunpack.c.l.b16 %v5623
        %v5753 = vunpack.c.l.b16 %v5633
        %v5754 = vunpack.c.l.b16 %v5647
        %v5755 = vunpack.c.l.b16 %v5657
        %v5756 = vunpack.c.l.b16 %v5671
        %v5757 = vunpack.c.l.b16 %v5681
        %v5758 = vunpack.c.l.b16 %v5695
        %v5759 = vunpack.c.l.b16 %v5705
        %v5760 = vunpack.c.l.b16 %v5719
        %v5761 = vunpack.c.l.b16 %v5729
        %v5762 = vpack.c.b16 %v5731, %v5730
        %v5763 = vpack.c.b16 %v5733, %v5732
        %v5764 = vpack.c.b16 %v5735, %v5734
        %v5765 = vpack.c.b16 %v5737, %v5736
        %v5766 = vpack.c.b16 %v5739, %v5738
        %v5767 = vpack.c.b16 %v5741, %v5740
        %v5768 = vpack.c.b16 %v5743, %v5742
        %v5769 = vpack.c.b16 %v5745, %v5744
        %v5770 = vpack.c.b16 %v5747, %v5746
        %v5771 = vpack.c.b16 %v5749, %v5748
        %v5772 = vpack.c.b16 %v5751, %v5750
        %v5773 = vpack.c.b16 %v5753, %v5752
        %v5774 = vpack.c.b16 %v5755, %v5754
        %v5775 = vpack.c.b16 %v5757, %v5756
        %v5776 = vpack.c.b16 %v5759, %v5758
        %v5777 = vpack.c.b16 %v5761, %v5760
        %v5782 = vunpack.c.l.b16 %v5342
        %v5783 = vunpack.c.l.b16 %v5343
        %v5784 = vunpack.c.l.b16 %v5344
        %v5785 = vunpack.c.l.b16 %v5345
        %v5786 = vpack.c.b16 %v5783, %v5782
        %v5787 = vpack.c.b16 %v5785, %v5784
        %v5791 = vsel %vm760, %v5762, 0
        %v5794 = vsel %vm760, %v5763, 0
        %v5797 = vsel %vm760, %v5764, 0
        %v5800 = vsel %vm760, %v5765, 0
        %v5803 = vsel %vm760, %v5766, 0
        %v5806 = vsel %vm760, %v5767, 0
        %v5809 = vsel %vm760, %v5768, 0
        %v5812 = vsel %vm760, %v5769, 0
        %v5815 = vsel %vm760, %v5770, 0
        %v5818 = vsel %vm760, %v5771, 0
        %v5821 = vsel %vm760, %v5772, 0
        %v5824 = vsel %vm760, %v5773, 0
        %v5827 = vsel %vm760, %v5774, 0
        %v5830 = vsel %vm760, %v5775, 0
        %v5833 = vsel %vm760, %v5776, 0
        %v5836 = vsel %vm760, %v5777, 0
        %5838 = vmatprep.subr.bf16.mxu0 0
        %5839 = vmatpush1.bf16.msra.mxu0 %v5786
        %5840 = vmatprep.subr.bf16.mxu0 0
        %5841 = vmatpush1.bf16.msra.mxu0 %v5787
        %5842 = vmatprep.subr.bf16.mxu0 0
        %5843 = vmatpush1.bf16.msra.mxu0 0
        %5844 = vmatprep.subr.bf16.mxu0 0
        %5845 = vmatpush1.bf16.msra.mxu0 0
        %5846 = vmatprep.subr.bf16.mxu0 0
        %5847 = vmatpush1.bf16.msra.mxu0 0
        %5848 = vmatprep.subr.bf16.mxu0 0
        %5849 = vmatpush1.bf16.msra.mxu0 0
        %5850 = vmatprep.subr.bf16.mxu0 0
        %5851 = vmatpush1.bf16.msra.mxu0 0
        %5852 = vmatprep.subr.bf16.mxu0 0
        %5853 = vmatpush1.bf16.msra.mxu0 0
        %5854 = vmatprep.subr.bf16.mxu0 0
        %5855 = vmatpush1.bf16.msra.mxu0 0
        %5856 = vmatprep.subr.bf16.mxu0 0
        %5857 = vmatpush1.bf16.msra.mxu0 0
        %5858 = vmatprep.subr.bf16.mxu0 0
        %5859 = vmatpush1.bf16.msra.mxu0 0
        %5860 = vmatprep.subr.bf16.mxu0 0
        %5861 = vmatpush1.bf16.msra.mxu0 0
        %5862 = vmatprep.subr.bf16.mxu0 0
        %5863 = vmatpush1.bf16.msra.mxu0 0
        %5864 = vmatprep.subr.bf16.mxu0 0
        %5865 = vmatpush1.bf16.msra.mxu0 0
        %5866 = vmatprep.subr.bf16.mxu0 0
        %5867 = vmatpush1.bf16.msra.mxu0 0
        %5868 = vmatprep.subr.bf16.mxu0 0
        %5869 = vmatpush1.bf16.msra.mxu0 0
        %5870 = vmatprep.mubr.bf16.mxu0 0
        %5871 = vmatmul.mubr.bf16.gmra.mrb[0].mxu0 %v5791
        %v5872 = vpop.f32.mrb[0].mxu0
        %v5873 = vadd.f32 0.0, %v5872
        %v5874 = vpop.f32.mrb[0].mxu0
        %v5875 = vpop.f32.mrb[0].mxu0
        %v5876 = vadd.f32 0.0, %v5875
        %v5877 = vpop.f32.mrb[0].mxu0
        %5878 = vmatprep.mubr.bf16.mxu0 0
        %5879 = vmatmul.mubr.bf16.gmra.mrb[0].mxu0 %v5794
        %v5880 = vpop.f32.mrb[0].mxu0
        %v5881 = vadd.f32 0.0, %v5880
        %v5882 = vpop.f32.mrb[0].mxu0
        %v5883 = vpop.f32.mrb[0].mxu0
        %v5884 = vadd.f32 0.0, %v5883
        %v5885 = vpop.f32.mrb[0].mxu0
        %5886 = vmatprep.mubr.bf16.mxu0 0
        %5887 = vmatmul.mubr.bf16.gmra.mrb[0].mxu0 %v5797
        %v5888 = vpop.f32.mrb[0].mxu0
        %v5889 = vadd.f32 0.0, %v5888
        %v5890 = vpop.f32.mrb[0].mxu0
        %v5891 = vpop.f32.mrb[0].mxu0
        %v5892 = vadd.f32 0.0, %v5891
        %v5893 = vpop.f32.mrb[0].mxu0
        %5894 = vmatprep.mubr.bf16.mxu0 0
        %5895 = vmatmul.mubr.bf16.gmra.mrb[0].mxu0 %v5800
        %v5896 = vpop.f32.mrb[0].mxu0
        %v5897 = vadd.f32 0.0, %v5896
        %v5898 = vpop.f32.mrb[0].mxu0
        %v5899 = vpop.f32.mrb[0].mxu0
        %v5900 = vadd.f32 0.0, %v5899
        %v5901 = vpop.f32.mrb[0].mxu0
        %5902 = vmatprep.mubr.bf16.mxu0 0
        %5903 = vmatmul.mubr.bf16.gmra.mrb[0].mxu0 %v5803
        %v5904 = vpop.f32.mrb[0].mxu0
        %v5905 = vadd.f32 0.0, %v5904
        %v5906 = vpop.f32.mrb[0].mxu0
        %v5907 = vpop.f32.mrb[0].mxu0
        %v5908 = vadd.f32 0.0, %v5907
        %v5909 = vpop.f32.mrb[0].mxu0
        %5910 = vmatprep.mubr.bf16.mxu0 0
        %5911 = vmatmul.mubr.bf16.gmra.mrb[0].mxu0 %v5806
        %v5912 = vpop.f32.mrb[0].mxu0
        %v5913 = vadd.f32 0.0, %v5912
        %v5914 = vpop.f32.mrb[0].mxu0
        %v5915 = vpop.f32.mrb[0].mxu0
        %v5916 = vadd.f32 0.0, %v5915
        %v5917 = vpop.f32.mrb[0].mxu0
        %5918 = vmatprep.mubr.bf16.mxu0 0
        %5919 = vmatmul.mubr.bf16.gmra.mrb[0].mxu0 %v5809
        %v5920 = vpop.f32.mrb[0].mxu0
        %v5921 = vadd.f32 0.0, %v5920
        %v5922 = vpop.f32.mrb[0].mxu0
        %v5923 = vpop.f32.mrb[0].mxu0
        %v5924 = vadd.f32 0.0, %v5923
        %v5925 = vpop.f32.mrb[0].mxu0
        %5926 = vmatprep.mubr.bf16.mxu0 0
        %5927 = vmatmul.mubr.bf16.gmra.mrb[0].mxu0 %v5812
        %v5928 = vpop.f32.mrb[0].mxu0
        %v5929 = vadd.f32 0.0, %v5928
        %v5930 = vpop.f32.mrb[0].mxu0
        %v5931 = vpop.f32.mrb[0].mxu0
        %v5932 = vadd.f32 0.0, %v5931
        %v5933 = vpop.f32.mrb[0].mxu0
        %5934 = vmatprep.mubr.bf16.mxu0 0
        %5935 = vmatmul.mubr.bf16.gmra.mrb[0].mxu0 %v5815
        %v5936 = vpop.f32.mrb[0].mxu0
        %v5937 = vadd.f32 0.0, %v5936
        %v5938 = vpop.f32.mrb[0].mxu0
        %v5939 = vpop.f32.mrb[0].mxu0
        %v5940 = vadd.f32 0.0, %v5939
        %v5941 = vpop.f32.mrb[0].mxu0
        %5942 = vmatprep.mubr.bf16.mxu0 0
        %5943 = vmatmul.mubr.bf16.gmra.mrb[0].mxu0 %v5818
        %v5944 = vpop.f32.mrb[0].mxu0
        %v5945 = vadd.f32 0.0, %v5944
        %v5946 = vpop.f32.mrb[0].mxu0
        %v5947 = vpop.f32.mrb[0].mxu0
        %v5948 = vadd.f32 0.0, %v5947
        %v5949 = vpop.f32.mrb[0].mxu0
        %5950 = vmatprep.mubr.bf16.mxu0 0
        %5951 = vmatmul.mubr.bf16.gmra.mrb[0].mxu0 %v5821
        %v5952 = vpop.f32.mrb[0].mxu0
        %v5953 = vadd.f32 0.0, %v5952
        %v5954 = vpop.f32.mrb[0].mxu0
        %v5955 = vpop.f32.mrb[0].mxu0
        %v5956 = vadd.f32 0.0, %v5955
        %v5957 = vpop.f32.mrb[0].mxu0
        %5958 = vmatprep.mubr.bf16.mxu0 0
        %5959 = vmatmul.mubr.bf16.gmra.mrb[0].mxu0 %v5824
        %v5960 = vpop.f32.mrb[0].mxu0
        %v5961 = vadd.f32 0.0, %v5960
        %v5962 = vpop.f32.mrb[0].mxu0
        %v5963 = vpop.f32.mrb[0].mxu0
        %v5964 = vadd.f32 0.0, %v5963
        %v5965 = vpop.f32.mrb[0].mxu0
        %5966 = vmatprep.mubr.bf16.mxu0 0
        %5967 = vmatmul.mubr.bf16.gmra.mrb[0].mxu0 %v5827
        %v5968 = vpop.f32.mrb[0].mxu0
        %v5969 = vadd.f32 0.0, %v5968
        %v5970 = vpop.f32.mrb[0].mxu0
        %v5971 = vpop.f32.mrb[0].mxu0
        %v5972 = vadd.f32 0.0, %v5971
        %v5973 = vpop.f32.mrb[0].mxu0
        %5974 = vmatprep.mubr.bf16.mxu0 0
        %5975 = vmatmul.mubr.bf16.gmra.mrb[0].mxu0 %v5830
        %v5976 = vpop.f32.mrb[0].mxu0
        %v5977 = vadd.f32 0.0, %v5976
        %v5978 = vpop.f32.mrb[0].mxu0
        %v5979 = vpop.f32.mrb[0].mxu0
        %v5980 = vadd.f32 0.0, %v5979
        %v5981 = vpop.f32.mrb[0].mxu0
        %5982 = vmatprep.mubr.bf16.mxu0 0
        %5983 = vmatmul.mubr.bf16.gmra.mrb[0].mxu0 %v5833
        %v5984 = vpop.f32.mrb[0].mxu0
        %v5985 = vadd.f32 0.0, %v5984
        %v5986 = vpop.f32.mrb[0].mxu0
        %v5987 = vpop.f32.mrb[0].mxu0
        %v5988 = vadd.f32 0.0, %v5987
        %v5989 = vpop.f32.mrb[0].mxu0
        %5990 = vmatprep.mubr.bf16.mxu0 0
        %5991 = vmatmul.mubr.bf16.gmra.mrb[0].mxu0 %v5836
        %v5992 = vpop.f32.mrb[0].mxu0
        %v5993 = vadd.f32 0.0, %v5992
        %v5994 = vpop.f32.mrb[0].mxu0
        %v5995 = vpop.f32.mrb[0].mxu0
        %v5996 = vadd.f32 0.0, %v5995
        %v5997 = vpop.f32.mrb[0].mxu0
        %5998 = vdwg.mxu0
        %v6031 = vunpack.c.l.b16 %v5290
        %v6032 = vunpack.c.l.b16 %v5291
        %v6033 = vunpack.c.l.b16 %v5292
        %v6034 = vunpack.c.l.b16 %v5293
        %v6035 = vunpack.c.l.b16 %v5294
        %v6036 = vunpack.c.l.b16 %v5295
        %v6037 = vunpack.c.l.b16 %v5296
        %v6038 = vunpack.c.l.b16 %v5297
        %v6039 = vunpack.c.l.b16 %v5298
        %v6040 = vunpack.c.l.b16 %v5299
        %v6041 = vunpack.c.l.b16 %v5300
        %v6042 = vunpack.c.l.b16 %v5301
        %v6043 = vunpack.c.l.b16 %v5302
        %v6044 = vunpack.c.l.b16 %v5303
        %v6045 = vunpack.c.l.b16 %v5304
        %v6046 = vunpack.c.l.b16 %v5305
        %v6047 = vunpack.c.l.b16 %v5306
        %v6048 = vunpack.c.l.b16 %v5307
        %v6049 = vunpack.c.l.b16 %v5308
        %v6050 = vunpack.c.l.b16 %v5309
        %v6051 = vunpack.c.l.b16 %v5310
        %v6052 = vunpack.c.l.b16 %v5311
        %v6053 = vunpack.c.l.b16 %v5312
        %v6054 = vunpack.c.l.b16 %v5313
        %v6055 = vunpack.c.l.b16 %v5314
        %v6056 = vunpack.c.l.b16 %v5315
        %v6057 = vunpack.c.l.b16 %v5316
        %v6058 = vunpack.c.l.b16 %v5317
        %v6059 = vunpack.c.l.b16 %v5318
        %v6060 = vunpack.c.l.b16 %v5319
        %v6061 = vunpack.c.l.b16 %v5320
        %v6062 = vunpack.c.l.b16 %v5321
        %v6063 = vpack.c.b16 %v6032, %v6031
        %v6064 = vpack.c.b16 %v6034, %v6033
        %v6065 = vpack.c.b16 %v6036, %v6035
        %v6066 = vpack.c.b16 %v6038, %v6037
        %v6067 = vpack.c.b16 %v6040, %v6039
        %v6068 = vpack.c.b16 %v6042, %v6041
        %v6069 = vpack.c.b16 %v6044, %v6043
        %v6070 = vpack.c.b16 %v6046, %v6045
        %v6071 = vpack.c.b16 %v6048, %v6047
        %v6072 = vpack.c.b16 %v6050, %v6049
        %v6073 = vpack.c.b16 %v6052, %v6051
        %v6074 = vpack.c.b16 %v6054, %v6053
        %v6075 = vpack.c.b16 %v6056, %v6055
        %v6076 = vpack.c.b16 %v6058, %v6057
        %v6077 = vpack.c.b16 %v6060, %v6059
        %v6078 = vpack.c.b16 %v6062, %v6061
        %v6083 = vunpack.c.l.b16 %v5322
        %v6084 = vunpack.c.l.b16 %v5323
        %v6085 = vunpack.c.l.b16 %v5324
        %v6086 = vunpack.c.l.b16 %v5325
        %v6087 = vpack.c.b16 %v6084, %v6083
        %v6088 = vpack.c.b16 %v6086, %v6085
        %v6092 = vsel %vm760, %v6063, 0
        %v6095 = vsel %vm760, %v6064, 0
        %v6098 = vsel %vm760, %v6065, 0
        %v6101 = vsel %vm760, %v6066, 0
        %v6104 = vsel %vm760, %v6067, 0
        %v6107 = vsel %vm760, %v6068, 0
        %v6110 = vsel %vm760, %v6069, 0
        %v6113 = vsel %vm760, %v6070, 0
        %v6116 = vsel %vm760, %v6071, 0
        %v6119 = vsel %vm760, %v6072, 0
        %v6122 = vsel %vm760, %v6073, 0
        %v6125 = vsel %vm760, %v6074, 0
        %v6128 = vsel %vm760, %v6075, 0
        %v6131 = vsel %vm760, %v6076, 0
        %v6134 = vsel %vm760, %v6077, 0
        %v6137 = vsel %vm760, %v6078, 0
        %6139 = vmatprep.subr.bf16.mxu0 0
        %6140 = vmatpush1.bf16.msra.mxu0 %v6087
        %6141 = vmatprep.subr.bf16.mxu0 0
        %6142 = vmatpush1.bf16.msra.mxu0 %v6088
        %6143 = vmatprep.subr.bf16.mxu0 0
        %6144 = vmatpush1.bf16.msra.mxu0 0
        %6145 = vmatprep.subr.bf16.mxu0 0
        %6146 = vmatpush1.bf16.msra.mxu0 0
        %6147 = vmatprep.subr.bf16.mxu0 0
        %6148 = vmatpush1.bf16.msra.mxu0 0
        %6149 = vmatprep.subr.bf16.mxu0 0
        %6150 = vmatpush1.bf16.msra.mxu0 0
        %6151 = vmatprep.subr.bf16.mxu0 0
        %6152 = vmatpush1.bf16.msra.mxu0 0
        %6153 = vmatprep.subr.bf16.mxu0 0
        %6154 = vmatpush1.bf16.msra.mxu0 0
        %6155 = vmatprep.subr.bf16.mxu0 0
        %6156 = vmatpush1.bf16.msra.mxu0 0
        %6157 = vmatprep.subr.bf16.mxu0 0
        %6158 = vmatpush1.bf16.msra.mxu0 0
        %6159 = vmatprep.subr.bf16.mxu0 0
        %6160 = vmatpush1.bf16.msra.mxu0 0
        %6161 = vmatprep.subr.bf16.mxu0 0
        %6162 = vmatpush1.bf16.msra.mxu0 0
        %6163 = vmatprep.subr.bf16.mxu0 0
        %6164 = vmatpush1.bf16.msra.mxu0 0
        %6165 = vmatprep.subr.bf16.mxu0 0
        %6166 = vmatpush1.bf16.msra.mxu0 0
        %6167 = vmatprep.subr.bf16.mxu0 0
        %6168 = vmatpush1.bf16.msra.mxu0 0
        %6169 = vmatprep.subr.bf16.mxu0 0
        %6170 = vmatpush1.bf16.msra.mxu0 0
        %6171 = vmatprep.mubr.bf16.mxu0 0
        %6172 = vmatmul.mubr.bf16.gmra.mrb[0].mxu0 %v6092
        %v6173 = vpop.f32.mrb[0].mxu0
        %v6174 = vadd.f32 %v5873, %v6173
        %v6175 = vpop.f32.mrb[0].mxu0
        %v6176 = vpop.f32.mrb[0].mxu0
        %v6177 = vadd.f32 %v5876, %v6176
        %v6178 = vpop.f32.mrb[0].mxu0
        %6179 = vmatprep.mubr.bf16.mxu0 0
        %6180 = vmatmul.mubr.bf16.gmra.mrb[0].mxu0 %v6095
        %v6181 = vpop.f32.mrb[0].mxu0
        %v6182 = vadd.f32 %v5881, %v6181
        %v6183 = vpop.f32.mrb[0].mxu0
        %v6184 = vpop.f32.mrb[0].mxu0
        %v6185 = vadd.f32 %v5884, %v6184
        %v6186 = vpop.f32.mrb[0].mxu0
        %6187 = vmatprep.mubr.bf16.mxu0 0
        %6188 = vmatmul.mubr.bf16.gmra.mrb[0].mxu0 %v6098
        %v6189 = vpop.f32.mrb[0].mxu0
        %v6190 = vadd.f32 %v5889, %v6189
        %v6191 = vpop.f32.mrb[0].mxu0
        %v6192 = vpop.f32.mrb[0].mxu0
        %v6193 = vadd.f32 %v5892, %v6192
        %v6194 = vpop.f32.mrb[0].mxu0
        %6195 = vmatprep.mubr.bf16.mxu0 0
        %6196 = vmatmul.mubr.bf16.gmra.mrb[0].mxu0 %v6101
        %v6197 = vpop.f32.mrb[0].mxu0
        %v6198 = vadd.f32 %v5897, %v6197
        %v6199 = vpop.f32.mrb[0].mxu0
        %v6200 = vpop.f32.mrb[0].mxu0
        %v6201 = vadd.f32 %v5900, %v6200
        %v6202 = vpop.f32.mrb[0].mxu0
        %6203 = vmatprep.mubr.bf16.mxu0 0
        %6204 = vmatmul.mubr.bf16.gmra.mrb[0].mxu0 %v6104
        %v6205 = vpop.f32.mrb[0].mxu0
        %v6206 = vadd.f32 %v5905, %v6205
        %v6207 = vpop.f32.mrb[0].mxu0
        %v6208 = vpop.f32.mrb[0].mxu0
        %v6209 = vadd.f32 %v5908, %v6208
        %v6210 = vpop.f32.mrb[0].mxu0
        %6211 = vmatprep.mubr.bf16.mxu0 0
        %6212 = vmatmul.mubr.bf16.gmra.mrb[0].mxu0 %v6107
        %v6213 = vpop.f32.mrb[0].mxu0
        %v6214 = vadd.f32 %v5913, %v6213
        %v6215 = vpop.f32.mrb[0].mxu0
        %v6216 = vpop.f32.mrb[0].mxu0
        %v6217 = vadd.f32 %v5916, %v6216
        %v6218 = vpop.f32.mrb[0].mxu0
        %6219 = vmatprep.mubr.bf16.mxu0 0
        %6220 = vmatmul.mubr.bf16.gmra.mrb[0].mxu0 %v6110
        %v6221 = vpop.f32.mrb[0].mxu0
        %v6222 = vadd.f32 %v5921, %v6221
        %v6223 = vpop.f32.mrb[0].mxu0
        %v6224 = vpop.f32.mrb[0].mxu0
        %v6225 = vadd.f32 %v5924, %v6224
        %v6226 = vpop.f32.mrb[0].mxu0
        %6227 = vmatprep.mubr.bf16.mxu0 0
        %6228 = vmatmul.mubr.bf16.gmra.mrb[0].mxu0 %v6113
        %v6229 = vpop.f32.mrb[0].mxu0
        %v6230 = vadd.f32 %v5929, %v6229
        %v6231 = vpop.f32.mrb[0].mxu0
        %v6232 = vpop.f32.mrb[0].mxu0
        %v6233 = vadd.f32 %v5932, %v6232
        %v6234 = vpop.f32.mrb[0].mxu0
        %6235 = vmatprep.mubr.bf16.mxu0 0
        %6236 = vmatmul.mubr.bf16.gmra.mrb[0].mxu0 %v6116
        %v6237 = vpop.f32.mrb[0].mxu0
        %v6238 = vadd.f32 %v5937, %v6237
        %v6239 = vpop.f32.mrb[0].mxu0
        %v6240 = vpop.f32.mrb[0].mxu0
        %v6241 = vadd.f32 %v5940, %v6240
        %v6242 = vpop.f32.mrb[0].mxu0
        %6243 = vmatprep.mubr.bf16.mxu0 0
        %6244 = vmatmul.mubr.bf16.gmra.mrb[0].mxu0 %v6119
        %v6245 = vpop.f32.mrb[0].mxu0
        %v6246 = vadd.f32 %v5945, %v6245
        %v6247 = vpop.f32.mrb[0].mxu0
        %v6248 = vpop.f32.mrb[0].mxu0
        %v6249 = vadd.f32 %v5948, %v6248
        %v6250 = vpop.f32.mrb[0].mxu0
        %6251 = vmatprep.mubr.bf16.mxu0 0
        %6252 = vmatmul.mubr.bf16.gmra.mrb[0].mxu0 %v6122
        %v6253 = vpop.f32.mrb[0].mxu0
        %v6254 = vadd.f32 %v5953, %v6253
        %v6255 = vpop.f32.mrb[0].mxu0
        %v6256 = vpop.f32.mrb[0].mxu0
        %v6257 = vadd.f32 %v5956, %v6256
        %v6258 = vpop.f32.mrb[0].mxu0
        %6259 = vmatprep.mubr.bf16.mxu0 0
        %6260 = vmatmul.mubr.bf16.gmra.mrb[0].mxu0 %v6125
        %v6261 = vpop.f32.mrb[0].mxu0
        %v6262 = vadd.f32 %v5961, %v6261
        %v6263 = vpop.f32.mrb[0].mxu0
        %v6264 = vpop.f32.mrb[0].mxu0
        %v6265 = vadd.f32 %v5964, %v6264
        %v6266 = vpop.f32.mrb[0].mxu0
        %6267 = vmatprep.mubr.bf16.mxu0 0
        %6268 = vmatmul.mubr.bf16.gmra.mrb[0].mxu0 %v6128
        %v6269 = vpop.f32.mrb[0].mxu0
        %v6270 = vadd.f32 %v5969, %v6269
        %v6271 = vpop.f32.mrb[0].mxu0
        %v6272 = vpop.f32.mrb[0].mxu0
        %v6273 = vadd.f32 %v5972, %v6272
        %v6274 = vpop.f32.mrb[0].mxu0
        %6275 = vmatprep.mubr.bf16.mxu0 0
        %6276 = vmatmul.mubr.bf16.gmra.mrb[0].mxu0 %v6131
        %v6277 = vpop.f32.mrb[0].mxu0
        %v6278 = vadd.f32 %v5977, %v6277
        %v6279 = vpop.f32.mrb[0].mxu0
        %v6280 = vpop.f32.mrb[0].mxu0
        %v6281 = vadd.f32 %v5980, %v6280
        %v6282 = vpop.f32.mrb[0].mxu0
        %6283 = vmatprep.mubr.bf16.mxu0 0
        %6284 = vmatmul.mubr.bf16.gmra.mrb[0].mxu0 %v6134
        %v6285 = vpop.f32.mrb[0].mxu0
        %v6286 = vadd.f32 %v5985, %v6285
        %v6287 = vpop.f32.mrb[0].mxu0
        %v6288 = vpop.f32.mrb[0].mxu0
        %v6289 = vadd.f32 %v5988, %v6288
        %v6290 = vpop.f32.mrb[0].mxu0
        %6291 = vmatprep.mubr.bf16.mxu0 0
        %6292 = vmatmul.mubr.bf16.gmra.mrb[0].mxu0 %v6137
        %v6293 = vpop.f32.mrb[0].mxu0
        %v6294 = vadd.f32 %v5993, %v6293
        %v6295 = vpop.f32.mrb[0].mxu0
        %v6296 = vpop.f32.mrb[0].mxu0
        %v6297 = vadd.f32 %v5996, %v6296
        %v6298 = vpop.f32.mrb[0].mxu0
        %6299 = vdwg.mxu0
        %s6300 = scalar_lea.vmem %s239, 24
        %v6301 = vld [vmem:[%s6300] sm:$0xf]
        %v6302 = vld [vmem:[%s6300 + $0x4] sm:$0xf]
        %v6303 = vld [vmem:[%s6300 + $0xc] sm:$0xf]
        %v6304 = vld [vmem:[%s6300 + $0x10] sm:$0xf]
        %v6305 = vld [vmem:[%s6300 + $0x18] sm:$0xf]
        %v6306 = vld [vmem:[%s6300 + $0x1c] sm:$0xf]
        %v6307 = vld [vmem:[%s6300 + $0x24] sm:$0xf]
        %v6308 = vld [vmem:[%s6300 + $0x28] sm:$0xf]
        %v6309 = vld [vmem:[%s6300 + $0x30] sm:$0xf]
        %v6310 = vld [vmem:[%s6300 + $0x34] sm:$0xf]
        %v6311 = vld [vmem:[%s6300 + $0x3c] sm:$0xf]
        %v6312 = vld [vmem:[%s6300 + $0x40] sm:$0xf]
        %v6313 = vld [vmem:[%s6300 + $0x48] sm:$0xf]
        %v6314 = vld [vmem:[%s6300 + $0x4c] sm:$0xf]
        %v6315 = vld [vmem:[%s6300 + $0x54] sm:$0xf]
        %v6316 = vld [vmem:[%s6300 + $0x58] sm:$0xf]
        %v6317 = vld [vmem:[%s6300 + $0x60] sm:$0xf]
        %v6318 = vld [vmem:[%s6300 + $0x64] sm:$0xf]
        %v6319 = vld [vmem:[%s6300 + $0x6c] sm:$0xf]
        %v6320 = vld [vmem:[%s6300 + $0x70] sm:$0xf]
        %v6321 = vld [vmem:[%s6300 + $0x78] sm:$0xf]
        %v6322 = vld [vmem:[%s6300 + $0x7c] sm:$0xf]
        %v6323 = vld [vmem:[%s6300 + $0x84] sm:$0xf]
        %v6324 = vld [vmem:[%s6300 + $0x88] sm:$0xf]
        %v6325 = vld [vmem:[%s6300 + $0x90] sm:$0xf]
        %v6326 = vld [vmem:[%s6300 + $0x94] sm:$0xf]
        %v6327 = vld [vmem:[%s6300 + $0x9c] sm:$0xf]
        %v6328 = vld [vmem:[%s6300 + $0xa0] sm:$0xf]
        %v6329 = vld [vmem:[%s6300 + $0xa8] sm:$0xf]
        %v6330 = vld [vmem:[%s6300 + $0xac] sm:$0xf]
        %v6331 = vld [vmem:[%s6300 + $0xb4] sm:$0xf]
        %v6332 = vld [vmem:[%s6300 + $0xb8] sm:$0xf]
        %v6333 = vld [vmem:[%s243 + $0xa0] sm:$0xf]
        %v6334 = vld [vmem:[%s243 + $0xa4] sm:$0xf]
        %v6335 = vld [vmem:[%s243 + $0xa8] sm:$0xf]
        %v6336 = vld [vmem:[%s243 + $0xac] sm:$0xf]
        %v6369 = vunpack.c.l.b16 %v6301
        %v6370 = vunpack.c.l.b16 %v6302
        %v6371 = vunpack.c.l.b16 %v6303
        %v6372 = vunpack.c.l.b16 %v6304
        %v6373 = vunpack.c.l.b16 %v6305
        %v6374 = vunpack.c.l.b16 %v6306
        %v6375 = vunpack.c.l.b16 %v6307
        %v6376 = vunpack.c.l.b16 %v6308
        %v6377 = vunpack.c.l.b16 %v6309
        %v6378 = vunpack.c.l.b16 %v6310
        %v6379 = vunpack.c.l.b16 %v6311
        %v6380 = vunpack.c.l.b16 %v6312
        %v6381 = vunpack.c.l.b16 %v6313
        %v6382 = vunpack.c.l.b16 %v6314
        %v6383 = vunpack.c.l.b16 %v6315
        %v6384 = vunpack.c.l.b16 %v6316
        %v6385 = vunpack.c.l.b16 %v6317
        %v6386 = vunpack.c.l.b16 %v6318
        %v6387 = vunpack.c.l.b16 %v6319
        %v6388 = vunpack.c.l.b16 %v6320
        %v6389 = vunpack.c.l.b16 %v6321
        %v6390 = vunpack.c.l.b16 %v6322
        %v6391 = vunpack.c.l.b16 %v6323
        %v6392 = vunpack.c.l.b16 %v6324
        %v6393 = vunpack.c.l.b16 %v6325
        %v6394 = vunpack.c.l.b16 %v6326
        %v6395 = vunpack.c.l.b16 %v6327
        %v6396 = vunpack.c.l.b16 %v6328
        %v6397 = vunpack.c.l.b16 %v6329
        %v6398 = vunpack.c.l.b16 %v6330
        %v6399 = vunpack.c.l.b16 %v6331
        %v6400 = vunpack.c.l.b16 %v6332
        %v6401 = vpack.c.b16 %v6370, %v6369
        %v6402 = vpack.c.b16 %v6372, %v6371
        %v6403 = vpack.c.b16 %v6374, %v6373
        %v6404 = vpack.c.b16 %v6376, %v6375
        %v6405 = vpack.c.b16 %v6378, %v6377
        %v6406 = vpack.c.b16 %v6380, %v6379
        %v6407 = vpack.c.b16 %v6382, %v6381
        %v6408 = vpack.c.b16 %v6384, %v6383
        %v6409 = vpack.c.b16 %v6386, %v6385
        %v6410 = vpack.c.b16 %v6388, %v6387
        %v6411 = vpack.c.b16 %v6390, %v6389
        %v6412 = vpack.c.b16 %v6392, %v6391
        %v6413 = vpack.c.b16 %v6394, %v6393
        %v6414 = vpack.c.b16 %v6396, %v6395
        %v6415 = vpack.c.b16 %v6398, %v6397
        %v6416 = vpack.c.b16 %v6400, %v6399
        %v6421 = vunpack.c.l.b16 %v6333
        %v6422 = vunpack.c.l.b16 %v6334
        %v6423 = vunpack.c.l.b16 %v6335
        %v6424 = vunpack.c.l.b16 %v6336
        %v6425 = vpack.c.b16 %v6422, %v6421
        %v6426 = vpack.c.b16 %v6424, %v6423
        %v6430 = vsel %vm760, %v6401, 0
        %v6433 = vsel %vm760, %v6402, 0
        %v6436 = vsel %vm760, %v6403, 0
        %v6439 = vsel %vm760, %v6404, 0
        %v6442 = vsel %vm760, %v6405, 0
        %v6445 = vsel %vm760, %v6406, 0
        %v6448 = vsel %vm760, %v6407, 0
        %v6451 = vsel %vm760, %v6408, 0
        %v6454 = vsel %vm760, %v6409, 0
        %v6457 = vsel %vm760, %v6410, 0
        %v6460 = vsel %vm760, %v6411, 0
        %v6463 = vsel %vm760, %v6412, 0
        %v6466 = vsel %vm760, %v6413, 0
        %v6469 = vsel %vm760, %v6414, 0
        %v6472 = vsel %vm760, %v6415, 0
        %v6475 = vsel %vm760, %v6416, 0
        %6477 = vmatprep.subr.bf16.mxu0 0
        %6478 = vmatpush1.bf16.msra.mxu0 %v6425
        %6479 = vmatprep.subr.bf16.mxu0 0
        %6480 = vmatpush1.bf16.msra.mxu0 %v6426
        %6481 = vmatprep.subr.bf16.mxu0 0
        %6482 = vmatpush1.bf16.msra.mxu0 0
        %6483 = vmatprep.subr.bf16.mxu0 0
        %6484 = vmatpush1.bf16.msra.mxu0 0
        %6485 = vmatprep.subr.bf16.mxu0 0
        %6486 = vmatpush1.bf16.msra.mxu0 0
        %6487 = vmatprep.subr.bf16.mxu0 0
        %6488 = vmatpush1.bf16.msra.mxu0 0
        %6489 = vmatprep.subr.bf16.mxu0 0
        %6490 = vmatpush1.bf16.msra.mxu0 0
        %6491 = vmatprep.subr.bf16.mxu0 0
        %6492 = vmatpush1.bf16.msra.mxu0 0
        %6493 = vmatprep.subr.bf16.mxu0 0
        %6494 = vmatpush1.bf16.msra.mxu0 0
        %6495 = vmatprep.subr.bf16.mxu0 0
        %6496 = vmatpush1.bf16.msra.mxu0 0
        %6497 = vmatprep.subr.bf16.mxu0 0
        %6498 = vmatpush1.bf16.msra.mxu0 0
        %6499 = vmatprep.subr.bf16.mxu0 0
        %6500 = vmatpush1.bf16.msra.mxu0 0
        %6501 = vmatprep.subr.bf16.mxu0 0
        %6502 = vmatpush1.bf16.msra.mxu0 0
        %6503 = vmatprep.subr.bf16.mxu0 0
        %6504 = vmatpush1.bf16.msra.mxu0 0
        %6505 = vmatprep.subr.bf16.mxu0 0
        %6506 = vmatpush1.bf16.msra.mxu0 0
        %6507 = vmatprep.subr.bf16.mxu0 0
        %6508 = vmatpush1.bf16.msra.mxu0 0
        %6509 = vmatprep.mubr.bf16.mxu0 0
        %6510 = vmatmul.mubr.bf16.gmra.mrb[0].mxu0 %v6430
        %v6511 = vpop.f32.mrb[0].mxu0
        %v6512 = vadd.f32 0.0, %v6511
        %v6513 = vpop.f32.mrb[0].mxu0
        %v6514 = vpop.f32.mrb[0].mxu0
        %v6515 = vadd.f32 0.0, %v6514
        %v6516 = vpop.f32.mrb[0].mxu0
        %6517 = vmatprep.mubr.bf16.mxu0 0
        %6518 = vmatmul.mubr.bf16.gmra.mrb[0].mxu0 %v6433
        %v6519 = vpop.f32.mrb[0].mxu0
        %v6520 = vadd.f32 0.0, %v6519
        %v6521 = vpop.f32.mrb[0].mxu0
        %v6522 = vpop.f32.mrb[0].mxu0
        %v6523 = vadd.f32 0.0, %v6522
        %v6524 = vpop.f32.mrb[0].mxu0
        %6525 = vmatprep.mubr.bf16.mxu0 0
        %6526 = vmatmul.mubr.bf16.gmra.mrb[0].mxu0 %v6436
        %v6527 = vpop.f32.mrb[0].mxu0
        %v6528 = vadd.f32 0.0, %v6527
        %v6529 = vpop.f32.mrb[0].mxu0
        %v6530 = vpop.f32.mrb[0].mxu0
        %v6531 = vadd.f32 0.0, %v6530
        %v6532 = vpop.f32.mrb[0].mxu0
        %6533 = vmatprep.mubr.bf16.mxu0 0
        %6534 = vmatmul.mubr.bf16.gmra.mrb[0].mxu0 %v6439
        %v6535 = vpop.f32.mrb[0].mxu0
        %v6536 = vadd.f32 0.0, %v6535
        %v6537 = vpop.f32.mrb[0].mxu0
        %v6538 = vpop.f32.mrb[0].mxu0
        %v6539 = vadd.f32 0.0, %v6538
        %v6540 = vpop.f32.mrb[0].mxu0
        %6541 = vmatprep.mubr.bf16.mxu0 0
        %6542 = vmatmul.mubr.bf16.gmra.mrb[0].mxu0 %v6442
        %v6543 = vpop.f32.mrb[0].mxu0
        %v6544 = vadd.f32 0.0, %v6543
        %v6545 = vpop.f32.mrb[0].mxu0
        %v6546 = vpop.f32.mrb[0].mxu0
        %v6547 = vadd.f32 0.0, %v6546
        %v6548 = vpop.f32.mrb[0].mxu0
        %6549 = vmatprep.mubr.bf16.mxu0 0
        %6550 = vmatmul.mubr.bf16.gmra.mrb[0].mxu0 %v6445
        %v6551 = vpop.f32.mrb[0].mxu0
        %v6552 = vadd.f32 0.0, %v6551
        %v6553 = vpop.f32.mrb[0].mxu0
        %v6554 = vpop.f32.mrb[0].mxu0
        %v6555 = vadd.f32 0.0, %v6554
        %v6556 = vpop.f32.mrb[0].mxu0
        %6557 = vmatprep.mubr.bf16.mxu0 0
        %6558 = vmatmul.mubr.bf16.gmra.mrb[0].mxu0 %v6448
        %v6559 = vpop.f32.mrb[0].mxu0
        %v6560 = vadd.f32 0.0, %v6559
        %v6561 = vpop.f32.mrb[0].mxu0
        %v6562 = vpop.f32.mrb[0].mxu0
        %v6563 = vadd.f32 0.0, %v6562
        %v6564 = vpop.f32.mrb[0].mxu0
        %6565 = vmatprep.mubr.bf16.mxu0 0
        %6566 = vmatmul.mubr.bf16.gmra.mrb[0].mxu0 %v6451
        %v6567 = vpop.f32.mrb[0].mxu0
        %v6568 = vadd.f32 0.0, %v6567
        %v6569 = vpop.f32.mrb[0].mxu0
        %v6570 = vpop.f32.mrb[0].mxu0
        %v6571 = vadd.f32 0.0, %v6570
        %v6572 = vpop.f32.mrb[0].mxu0
        %6573 = vmatprep.mubr.bf16.mxu0 0
        %6574 = vmatmul.mubr.bf16.gmra.mrb[0].mxu0 %v6454
        %v6575 = vpop.f32.mrb[0].mxu0
        %v6576 = vadd.f32 0.0, %v6575
        %v6577 = vpop.f32.mrb[0].mxu0
        %v6578 = vpop.f32.mrb[0].mxu0
        %v6579 = vadd.f32 0.0, %v6578
        %v6580 = vpop.f32.mrb[0].mxu0
        %6581 = vmatprep.mubr.bf16.mxu0 0
        %6582 = vmatmul.mubr.bf16.gmra.mrb[0].mxu0 %v6457
        %v6583 = vpop.f32.mrb[0].mxu0
        %v6584 = vadd.f32 0.0, %v6583
        %v6585 = vpop.f32.mrb[0].mxu0
        %v6586 = vpop.f32.mrb[0].mxu0
        %v6587 = vadd.f32 0.0, %v6586
        %v6588 = vpop.f32.mrb[0].mxu0
        %6589 = vmatprep.mubr.bf16.mxu0 0
        %6590 = vmatmul.mubr.bf16.gmra.mrb[0].mxu0 %v6460
        %v6591 = vpop.f32.mrb[0].mxu0
        %v6592 = vadd.f32 0.0, %v6591
        %v6593 = vpop.f32.mrb[0].mxu0
        %v6594 = vpop.f32.mrb[0].mxu0
        %v6595 = vadd.f32 0.0, %v6594
        %v6596 = vpop.f32.mrb[0].mxu0
        %6597 = vmatprep.mubr.bf16.mxu0 0
        %6598 = vmatmul.mubr.bf16.gmra.mrb[0].mxu0 %v6463
        %v6599 = vpop.f32.mrb[0].mxu0
        %v6600 = vadd.f32 0.0, %v6599
        %v6601 = vpop.f32.mrb[0].mxu0
        %v6602 = vpop.f32.mrb[0].mxu0
        %v6603 = vadd.f32 0.0, %v6602
        %v6604 = vpop.f32.mrb[0].mxu0
        %6605 = vmatprep.mubr.bf16.mxu0 0
        %6606 = vmatmul.mubr.bf16.gmra.mrb[0].mxu0 %v6466
        %v6607 = vpop.f32.mrb[0].mxu0
        %v6608 = vadd.f32 0.0, %v6607
        %v6609 = vpop.f32.mrb[0].mxu0
        %v6610 = vpop.f32.mrb[0].mxu0
        %v6611 = vadd.f32 0.0, %v6610
        %v6612 = vpop.f32.mrb[0].mxu0
        %6613 = vmatprep.mubr.bf16.mxu0 0
        %6614 = vmatmul.mubr.bf16.gmra.mrb[0].mxu0 %v6469
        %v6615 = vpop.f32.mrb[0].mxu0
        %v6616 = vadd.f32 0.0, %v6615
        %v6617 = vpop.f32.mrb[0].mxu0
        %v6618 = vpop.f32.mrb[0].mxu0
        %v6619 = vadd.f32 0.0, %v6618
        %v6620 = vpop.f32.mrb[0].mxu0
        %6621 = vmatprep.mubr.bf16.mxu0 0
        %6622 = vmatmul.mubr.bf16.gmra.mrb[0].mxu0 %v6472
        %v6623 = vpop.f32.mrb[0].mxu0
        %v6624 = vadd.f32 0.0, %v6623
        %v6625 = vpop.f32.mrb[0].mxu0
        %v6626 = vpop.f32.mrb[0].mxu0
        %v6627 = vadd.f32 0.0, %v6626
        %v6628 = vpop.f32.mrb[0].mxu0
        %6629 = vmatprep.mubr.bf16.mxu0 0
        %6630 = vmatmul.mubr.bf16.gmra.mrb[0].mxu0 %v6475
        %v6631 = vpop.f32.mrb[0].mxu0
        %v6632 = vadd.f32 0.0, %v6631
        %v6633 = vpop.f32.mrb[0].mxu0
        %v6634 = vpop.f32.mrb[0].mxu0
        %v6635 = vadd.f32 0.0, %v6634
        %v6636 = vpop.f32.mrb[0].mxu0
        %6637 = vdwg.mxu0
        %v6638 = vadd.f32 %v6174, %v6512
        %v6639 = vadd.f32 %v6177, %v6515
        %v6640 = vadd.f32 %v6182, %v6520
        %v6641 = vadd.f32 %v6185, %v6523
        %v6642 = vadd.f32 %v6190, %v6528
        %v6643 = vadd.f32 %v6193, %v6531
        %v6644 = vadd.f32 %v6198, %v6536
        %v6645 = vadd.f32 %v6201, %v6539
        %v6646 = vadd.f32 %v6206, %v6544
        %v6647 = vadd.f32 %v6209, %v6547
        %v6648 = vadd.f32 %v6214, %v6552
        %v6649 = vadd.f32 %v6217, %v6555
        %v6650 = vadd.f32 %v6222, %v6560
        %v6651 = vadd.f32 %v6225, %v6563
        %v6652 = vadd.f32 %v6230, %v6568
        %v6653 = vadd.f32 %v6233, %v6571
        %v6654 = vadd.f32 %v6238, %v6576
        %v6655 = vadd.f32 %v6241, %v6579
        %v6656 = vadd.f32 %v6246, %v6584
        %v6657 = vadd.f32 %v6249, %v6587
        %v6658 = vadd.f32 %v6254, %v6592
        %v6659 = vadd.f32 %v6257, %v6595
        %v6660 = vadd.f32 %v6262, %v6600
        %v6661 = vadd.f32 %v6265, %v6603
        %v6662 = vadd.f32 %v6270, %v6608
        %v6663 = vadd.f32 %v6273, %v6611
        %v6664 = vadd.f32 %v6278, %v6616
        %v6665 = vadd.f32 %v6281, %v6619
        %v6666 = vadd.f32 %v6286, %v6624
        %v6667 = vadd.f32 %v6289, %v6627
        %v6668 = vadd.f32 %v6294, %v6632
        %v6669 = vadd.f32 %v6297, %v6635
        %v6670 = vld [vmem:[%s6300] sm:$0xf]
        %v6671 = vld [vmem:[%s6300 + $0x4] sm:$0xf]
        %v6672 = vld [vmem:[%s6300 + $0x8] sm:$0x1]
        %v6673 = vld [vmem:[%s6300 + $0xc] sm:$0xf]
        %v6674 = vld [vmem:[%s6300 + $0x10] sm:$0xf]
        %v6675 = vld [vmem:[%s6300 + $0x14] sm:$0x1]
        %v6676 = vld [vmem:[%s6300 + $0x18] sm:$0xf]
        %v6677 = vld [vmem:[%s6300 + $0x1c] sm:$0xf]
        %v6678 = vld [vmem:[%s6300 + $0x20] sm:$0x1]
        %v6679 = vld [vmem:[%s6300 + $0x24] sm:$0xf]
        %v6680 = vld [vmem:[%s6300 + $0x28] sm:$0xf]
        %v6681 = vld [vmem:[%s6300 + $0x2c] sm:$0x1]
        %v6682 = vld [vmem:[%s6300 + $0x30] sm:$0xf]
        %v6683 = vld [vmem:[%s6300 + $0x34] sm:$0xf]
        %v6684 = vld [vmem:[%s6300 + $0x38] sm:$0x1]
        %v6685 = vld [vmem:[%s6300 + $0x3c] sm:$0xf]
        %v6686 = vld [vmem:[%s6300 + $0x40] sm:$0xf]
        %v6687 = vld [vmem:[%s6300 + $0x44] sm:$0x1]
        %v6688 = vld [vmem:[%s6300 + $0x48] sm:$0xf]
        %v6689 = vld [vmem:[%s6300 + $0x4c] sm:$0xf]
        %v6690 = vld [vmem:[%s6300 + $0x50] sm:$0x1]
        %v6691 = vld [vmem:[%s6300 + $0x54] sm:$0xf]
        %v6692 = vld [vmem:[%s6300 + $0x58] sm:$0xf]
        %v6693 = vld [vmem:[%s6300 + $0x5c] sm:$0x1]
        %v6694 = vld [vmem:[%s6300 + $0x60] sm:$0xf]
        %v6695 = vld [vmem:[%s6300 + $0x64] sm:$0xf]
        %v6696 = vld [vmem:[%s6300 + $0x68] sm:$0x1]
        %v6697 = vld [vmem:[%s6300 + $0x6c] sm:$0xf]
        %v6698 = vld [vmem:[%s6300 + $0x70] sm:$0xf]
        %v6699 = vld [vmem:[%s6300 + $0x74] sm:$0x1]
        %v6700 = vld [vmem:[%s6300 + $0x78] sm:$0xf]
        %v6701 = vld [vmem:[%s6300 + $0x7c] sm:$0xf]
        %v6702 = vld [vmem:[%s6300 + $0x80] sm:$0x1]
        %v6703 = vld [vmem:[%s6300 + $0x84] sm:$0xf]
        %v6704 = vld [vmem:[%s6300 + $0x88] sm:$0xf]
        %v6705 = vld [vmem:[%s6300 + $0x8c] sm:$0x1]
        %v6706 = vld [vmem:[%s6300 + $0x90] sm:$0xf]
        %v6707 = vld [vmem:[%s6300 + $0x94] sm:$0xf]
        %v6708 = vld [vmem:[%s6300 + $0x98] sm:$0x1]
        %v6709 = vld [vmem:[%s6300 + $0x9c] sm:$0xf]
        %v6710 = vld [vmem:[%s6300 + $0xa0] sm:$0xf]
        %v6711 = vld [vmem:[%s6300 + $0xa4] sm:$0x1]
        %v6712 = vld [vmem:[%s6300 + $0xa8] sm:$0xf]
        %v6713 = vld [vmem:[%s6300 + $0xac] sm:$0xf]
        %v6714 = vld [vmem:[%s6300 + $0xb0] sm:$0x1]
        %v6715 = vld [vmem:[%s6300 + $0xb4] sm:$0xf]
        %v6716 = vld [vmem:[%s6300 + $0xb8] sm:$0xf]
        %v6717 = vld [vmem:[%s6300 + $0xbc] sm:$0x1]
        %v6718 = vld [vmem:[%s243 + $0xb0] sm:$0xf]
        %v6719 = vld [vmem:[%s243 + $0xb4] sm:$0xf]
        %v6720 = vld [vmem:[%s243 + $0xb8] sm:$0xf]
        %v6721 = vld [vmem:[%s243 + $0xbc] sm:$0xf]
        %v6723 = vshrl.u32 %v6670, 16
        %v6725 = vrot.slane %v6723, 4
        %v6726 = vshll.u32 %v6670, 16
        %v6728 = vrot.slane %v6726, 5
        %v6729 = vor.u32 %v6725, %v6728
        %v6730 = vrot.slane %v6729, 4
        %v6732 = vshll.u32 %v6671, 16
        %v6734 = vrot.slane %v6732, 5
        %v6735 = vsel %vm315, %v6730, %v6734
        %v6736 = vshrl.u32 %v6671, 16
        %v6738 = vrot.slane %v6736, 4
        %v6739 = vor.u32 %v6738, %v6734
        %v6740 = vrot.slane %v6739, 4
        %v6742 = vshll.u32 %v6672, 16
        %v6744 = vrot.slane %v6742, 5
        %v6745 = vsel %vm315, %v6740, %v6744
        %v6747 = vshrl.u32 %v6673, 16
        %v6749 = vrot.slane %v6747, 4
        %v6750 = vshll.u32 %v6673, 16
        %v6752 = vrot.slane %v6750, 5
        %v6753 = vor.u32 %v6749, %v6752
        %v6754 = vrot.slane %v6753, 4
        %v6756 = vshll.u32 %v6674, 16
        %v6758 = vrot.slane %v6756, 5
        %v6759 = vsel %vm315, %v6754, %v6758
        %v6760 = vshrl.u32 %v6674, 16
        %v6762 = vrot.slane %v6760, 4
        %v6763 = vor.u32 %v6762, %v6758
        %v6764 = vrot.slane %v6763, 4
        %v6766 = vshll.u32 %v6675, 16
        %v6768 = vrot.slane %v6766, 5
        %v6769 = vsel %vm315, %v6764, %v6768
        %v6771 = vshrl.u32 %v6676, 16
        %v6773 = vrot.slane %v6771, 4
        %v6774 = vshll.u32 %v6676, 16
        %v6776 = vrot.slane %v6774, 5
        %v6777 = vor.u32 %v6773, %v6776
        %v6778 = vrot.slane %v6777, 4
        %v6780 = vshll.u32 %v6677, 16
        %v6782 = vrot.slane %v6780, 5
        %v6783 = vsel %vm315, %v6778, %v6782
        %v6784 = vshrl.u32 %v6677, 16
        %v6786 = vrot.slane %v6784, 4
        %v6787 = vor.u32 %v6786, %v6782
        %v6788 = vrot.slane %v6787, 4
        %v6790 = vshll.u32 %v6678, 16
        %v6792 = vrot.slane %v6790, 5
        %v6793 = vsel %vm315, %v6788, %v6792
        %v6795 = vshrl.u32 %v6679, 16
        %v6797 = vrot.slane %v6795, 4
        %v6798 = vshll.u32 %v6679, 16
        %v6800 = vrot.slane %v6798, 5
        %v6801 = vor.u32 %v6797, %v6800
        %v6802 = vrot.slane %v6801, 4
        %v6804 = vshll.u32 %v6680, 16
        %v6806 = vrot.slane %v6804, 5
        %v6807 = vsel %vm315, %v6802, %v6806
        %v6808 = vshrl.u32 %v6680, 16
        %v6810 = vrot.slane %v6808, 4
        %v6811 = vor.u32 %v6810, %v6806
        %v6812 = vrot.slane %v6811, 4
        %v6814 = vshll.u32 %v6681, 16
        %v6816 = vrot.slane %v6814, 5
        %v6817 = vsel %vm315, %v6812, %v6816
        %v6819 = vshrl.u32 %v6682, 16
        %v6821 = vrot.slane %v6819, 4
        %v6822 = vshll.u32 %v6682, 16
        %v6824 = vrot.slane %v6822, 5
        %v6825 = vor.u32 %v6821, %v6824
        %v6826 = vrot.slane %v6825, 4
        %v6828 = vshll.u32 %v6683, 16
        %v6830 = vrot.slane %v6828, 5
        %v6831 = vsel %vm315, %v6826, %v6830
        %v6832 = vshrl.u32 %v6683, 16
        %v6834 = vrot.slane %v6832, 4
        %v6835 = vor.u32 %v6834, %v6830
        %v6836 = vrot.slane %v6835, 4
        %v6838 = vshll.u32 %v6684, 16
        %v6840 = vrot.slane %v6838, 5
        %v6841 = vsel %vm315, %v6836, %v6840
        %v6843 = vshrl.u32 %v6685, 16
        %v6845 = vrot.slane %v6843, 4
        %v6846 = vshll.u32 %v6685, 16
        %v6848 = vrot.slane %v6846, 5
        %v6849 = vor.u32 %v6845, %v6848
        %v6850 = vrot.slane %v6849, 4
        %v6852 = vshll.u32 %v6686, 16
        %v6854 = vrot.slane %v6852, 5
        %v6855 = vsel %vm315, %v6850, %v6854
        %v6856 = vshrl.u32 %v6686, 16
        %v6858 = vrot.slane %v6856, 4
        %v6859 = vor.u32 %v6858, %v6854
        %v6860 = vrot.slane %v6859, 4
        %v6862 = vshll.u32 %v6687, 16
        %v6864 = vrot.slane %v6862, 5
        %v6865 = vsel %vm315, %v6860, %v6864
        %v6867 = vshrl.u32 %v6688, 16
        %v6869 = vrot.slane %v6867, 4
        %v6870 = vshll.u32 %v6688, 16
        %v6872 = vrot.slane %v6870, 5
        %v6873 = vor.u32 %v6869, %v6872
        %v6874 = vrot.slane %v6873, 4
        %v6876 = vshll.u32 %v6689, 16
        %v6878 = vrot.slane %v6876, 5
        %v6879 = vsel %vm315, %v6874, %v6878
        %v6880 = vshrl.u32 %v6689, 16
        %v6882 = vrot.slane %v6880, 4
        %v6883 = vor.u32 %v6882, %v6878
        %v6884 = vrot.slane %v6883, 4
        %v6886 = vshll.u32 %v6690, 16
        %v6888 = vrot.slane %v6886, 5
        %v6889 = vsel %vm315, %v6884, %v6888
        %v6891 = vshrl.u32 %v6691, 16
        %v6893 = vrot.slane %v6891, 4
        %v6894 = vshll.u32 %v6691, 16
        %v6896 = vrot.slane %v6894, 5
        %v6897 = vor.u32 %v6893, %v6896
        %v6898 = vrot.slane %v6897, 4
        %v6900 = vshll.u32 %v6692, 16
        %v6902 = vrot.slane %v6900, 5
        %v6903 = vsel %vm315, %v6898, %v6902
        %v6904 = vshrl.u32 %v6692, 16
        %v6906 = vrot.slane %v6904, 4
        %v6907 = vor.u32 %v6906, %v6902
        %v6908 = vrot.slane %v6907, 4
        %v6910 = vshll.u32 %v6693, 16
        %v6912 = vrot.slane %v6910, 5
        %v6913 = vsel %vm315, %v6908, %v6912
        %v6915 = vshrl.u32 %v6694, 16
        %v6917 = vrot.slane %v6915, 4
        %v6918 = vshll.u32 %v6694, 16
        %v6920 = vrot.slane %v6918, 5
        %v6921 = vor.u32 %v6917, %v6920
        %v6922 = vrot.slane %v6921, 4
        %v6924 = vshll.u32 %v6695, 16
        %v6926 = vrot.slane %v6924, 5
        %v6927 = vsel %vm315, %v6922, %v6926
        %v6928 = vshrl.u32 %v6695, 16
        %v6930 = vrot.slane %v6928, 4
        %v6931 = vor.u32 %v6930, %v6926
        %v6932 = vrot.slane %v6931, 4
        %v6934 = vshll.u32 %v6696, 16
        %v6936 = vrot.slane %v6934, 5
        %v6937 = vsel %vm315, %v6932, %v6936
        %v6939 = vshrl.u32 %v6697, 16
        %v6941 = vrot.slane %v6939, 4
        %v6942 = vshll.u32 %v6697, 16
        %v6944 = vrot.slane %v6942, 5
        %v6945 = vor.u32 %v6941, %v6944
        %v6946 = vrot.slane %v6945, 4
        %v6948 = vshll.u32 %v6698, 16
        %v6950 = vrot.slane %v6948, 5
        %v6951 = vsel %vm315, %v6946, %v6950
        %v6952 = vshrl.u32 %v6698, 16
        %v6954 = vrot.slane %v6952, 4
        %v6955 = vor.u32 %v6954, %v6950
        %v6956 = vrot.slane %v6955, 4
        %v6958 = vshll.u32 %v6699, 16
        %v6960 = vrot.slane %v6958, 5
        %v6961 = vsel %vm315, %v6956, %v6960
        %v6963 = vshrl.u32 %v6700, 16
        %v6965 = vrot.slane %v6963, 4
        %v6966 = vshll.u32 %v6700, 16
        %v6968 = vrot.slane %v6966, 5
        %v6969 = vor.u32 %v6965, %v6968
        %v6970 = vrot.slane %v6969, 4
        %v6972 = vshll.u32 %v6701, 16
        %v6974 = vrot.slane %v6972, 5
        %v6975 = vsel %vm315, %v6970, %v6974
        %v6976 = vshrl.u32 %v6701, 16
        %v6978 = vrot.slane %v6976, 4
        %v6979 = vor.u32 %v6978, %v6974
        %v6980 = vrot.slane %v6979, 4
        %v6982 = vshll.u32 %v6702, 16
        %v6984 = vrot.slane %v6982, 5
        %v6985 = vsel %vm315, %v6980, %v6984
        %v6987 = vshrl.u32 %v6703, 16
        %v6989 = vrot.slane %v6987, 4
        %v6990 = vshll.u32 %v6703, 16
        %v6992 = vrot.slane %v6990, 5
        %v6993 = vor.u32 %v6989, %v6992
        %v6994 = vrot.slane %v6993, 4
        %v6996 = vshll.u32 %v6704, 16
        %v6998 = vrot.slane %v6996, 5
        %v6999 = vsel %vm315, %v6994, %v6998
        %v7000 = vshrl.u32 %v6704, 16
        %v7002 = vrot.slane %v7000, 4
        %v7003 = vor.u32 %v7002, %v6998
        %v7004 = vrot.slane %v7003, 4
        %v7006 = vshll.u32 %v6705, 16
        %v7008 = vrot.slane %v7006, 5
        %v7009 = vsel %vm315, %v7004, %v7008
        %v7011 = vshrl.u32 %v6706, 16
        %v7013 = vrot.slane %v7011, 4
        %v7014 = vshll.u32 %v6706, 16
        %v7016 = vrot.slane %v7014, 5
        %v7017 = vor.u32 %v7013, %v7016
        %v7018 = vrot.slane %v7017, 4
        %v7020 = vshll.u32 %v6707, 16
        %v7022 = vrot.slane %v7020, 5
        %v7023 = vsel %vm315, %v7018, %v7022
        %v7024 = vshrl.u32 %v6707, 16
        %v7026 = vrot.slane %v7024, 4
        %v7027 = vor.u32 %v7026, %v7022
        %v7028 = vrot.slane %v7027, 4
        %v7030 = vshll.u32 %v6708, 16
        %v7032 = vrot.slane %v7030, 5
        %v7033 = vsel %vm315, %v7028, %v7032
        %v7035 = vshrl.u32 %v6709, 16
        %v7037 = vrot.slane %v7035, 4
        %v7038 = vshll.u32 %v6709, 16
        %v7040 = vrot.slane %v7038, 5
        %v7041 = vor.u32 %v7037, %v7040
        %v7042 = vrot.slane %v7041, 4
        %v7044 = vshll.u32 %v6710, 16
        %v7046 = vrot.slane %v7044, 5
        %v7047 = vsel %vm315, %v7042, %v7046
        %v7048 = vshrl.u32 %v6710, 16
        %v7050 = vrot.slane %v7048, 4
        %v7051 = vor.u32 %v7050, %v7046
        %v7052 = vrot.slane %v7051, 4
        %v7054 = vshll.u32 %v6711, 16
        %v7056 = vrot.slane %v7054, 5
        %v7057 = vsel %vm315, %v7052, %v7056
        %v7059 = vshrl.u32 %v6712, 16
        %v7061 = vrot.slane %v7059, 4
        %v7062 = vshll.u32 %v6712, 16
        %v7064 = vrot.slane %v7062, 5
        %v7065 = vor.u32 %v7061, %v7064
        %v7066 = vrot.slane %v7065, 4
        %v7068 = vshll.u32 %v6713, 16
        %v7070 = vrot.slane %v7068, 5
        %v7071 = vsel %vm315, %v7066, %v7070
        %v7072 = vshrl.u32 %v6713, 16
        %v7074 = vrot.slane %v7072, 4
        %v7075 = vor.u32 %v7074, %v7070
        %v7076 = vrot.slane %v7075, 4
        %v7078 = vshll.u32 %v6714, 16
        %v7080 = vrot.slane %v7078, 5
        %v7081 = vsel %vm315, %v7076, %v7080
        %v7083 = vshrl.u32 %v6715, 16
        %v7085 = vrot.slane %v7083, 4
        %v7086 = vshll.u32 %v6715, 16
        %v7088 = vrot.slane %v7086, 5
        %v7089 = vor.u32 %v7085, %v7088
        %v7090 = vrot.slane %v7089, 4
        %v7092 = vshll.u32 %v6716, 16
        %v7094 = vrot.slane %v7092, 5
        %v7095 = vsel %vm315, %v7090, %v7094
        %v7096 = vshrl.u32 %v6716, 16
        %v7098 = vrot.slane %v7096, 4
        %v7099 = vor.u32 %v7098, %v7094
        %v7100 = vrot.slane %v7099, 4
        %v7102 = vshll.u32 %v6717, 16
        %v7104 = vrot.slane %v7102, 5
        %v7105 = vsel %vm315, %v7100, %v7104
        %v7106 = vunpack.c.l.b16 %v6735
        %v7107 = vunpack.c.l.b16 %v6745
        %v7108 = vunpack.c.l.b16 %v6759
        %v7109 = vunpack.c.l.b16 %v6769
        %v7110 = vunpack.c.l.b16 %v6783
        %v7111 = vunpack.c.l.b16 %v6793
        %v7112 = vunpack.c.l.b16 %v6807
        %v7113 = vunpack.c.l.b16 %v6817
        %v7114 = vunpack.c.l.b16 %v6831
        %v7115 = vunpack.c.l.b16 %v6841
        %v7116 = vunpack.c.l.b16 %v6855
        %v7117 = vunpack.c.l.b16 %v6865
        %v7118 = vunpack.c.l.b16 %v6879
        %v7119 = vunpack.c.l.b16 %v6889
        %v7120 = vunpack.c.l.b16 %v6903
        %v7121 = vunpack.c.l.b16 %v6913
        %v7122 = vunpack.c.l.b16 %v6927
        %v7123 = vunpack.c.l.b16 %v6937
        %v7124 = vunpack.c.l.b16 %v6951
        %v7125 = vunpack.c.l.b16 %v6961
        %v7126 = vunpack.c.l.b16 %v6975
        %v7127 = vunpack.c.l.b16 %v6985
        %v7128 = vunpack.c.l.b16 %v6999
        %v7129 = vunpack.c.l.b16 %v7009
        %v7130 = vunpack.c.l.b16 %v7023
        %v7131 = vunpack.c.l.b16 %v7033
        %v7132 = vunpack.c.l.b16 %v7047
        %v7133 = vunpack.c.l.b16 %v7057
        %v7134 = vunpack.c.l.b16 %v7071
        %v7135 = vunpack.c.l.b16 %v7081
        %v7136 = vunpack.c.l.b16 %v7095
        %v7137 = vunpack.c.l.b16 %v7105
        %v7138 = vpack.c.b16 %v7107, %v7106
        %v7139 = vpack.c.b16 %v7109, %v7108
        %v7140 = vpack.c.b16 %v7111, %v7110
        %v7141 = vpack.c.b16 %v7113, %v7112
        %v7142 = vpack.c.b16 %v7115, %v7114
        %v7143 = vpack.c.b16 %v7117, %v7116
        %v7144 = vpack.c.b16 %v7119, %v7118
        %v7145 = vpack.c.b16 %v7121, %v7120
        %v7146 = vpack.c.b16 %v7123, %v7122
        %v7147 = vpack.c.b16 %v7125, %v7124
        %v7148 = vpack.c.b16 %v7127, %v7126
        %v7149 = vpack.c.b16 %v7129, %v7128
        %v7150 = vpack.c.b16 %v7131, %v7130
        %v7151 = vpack.c.b16 %v7133, %v7132
        %v7152 = vpack.c.b16 %v7135, %v7134
        %v7153 = vpack.c.b16 %v7137, %v7136
        %v7158 = vunpack.c.l.b16 %v6718
        %v7159 = vunpack.c.l.b16 %v6719
        %v7160 = vunpack.c.l.b16 %v6720
        %v7161 = vunpack.c.l.b16 %v6721
        %v7162 = vpack.c.b16 %v7159, %v7158
        %v7163 = vpack.c.b16 %v7161, %v7160
        %v7167 = vsel %vm760, %v7138, 0
        %v7170 = vsel %vm760, %v7139, 0
        %v7173 = vsel %vm760, %v7140, 0
        %v7176 = vsel %vm760, %v7141, 0
        %v7179 = vsel %vm760, %v7142, 0
        %v7182 = vsel %vm760, %v7143, 0
        %v7185 = vsel %vm760, %v7144, 0
        %v7188 = vsel %vm760, %v7145, 0
        %v7191 = vsel %vm760, %v7146, 0
        %v7194 = vsel %vm760, %v7147, 0
        %v7197 = vsel %vm760, %v7148, 0
        %v7200 = vsel %vm760, %v7149, 0
        %v7203 = vsel %vm760, %v7150, 0
        %v7206 = vsel %vm760, %v7151, 0
        %v7209 = vsel %vm760, %v7152, 0
        %v7212 = vsel %vm760, %v7153, 0
        %7214 = vmatprep.subr.bf16.mxu0 0
        %7215 = vmatpush1.bf16.msra.mxu0 %v7162
        %7216 = vmatprep.subr.bf16.mxu0 0
        %7217 = vmatpush1.bf16.msra.mxu0 %v7163
        %7218 = vmatprep.subr.bf16.mxu0 0
        %7219 = vmatpush1.bf16.msra.mxu0 0
        %7220 = vmatprep.subr.bf16.mxu0 0
        %7221 = vmatpush1.bf16.msra.mxu0 0
        %7222 = vmatprep.subr.bf16.mxu0 0
        %7223 = vmatpush1.bf16.msra.mxu0 0
        %7224 = vmatprep.subr.bf16.mxu0 0
        %7225 = vmatpush1.bf16.msra.mxu0 0
        %7226 = vmatprep.subr.bf16.mxu0 0
        %7227 = vmatpush1.bf16.msra.mxu0 0
        %7228 = vmatprep.subr.bf16.mxu0 0
        %7229 = vmatpush1.bf16.msra.mxu0 0
        %7230 = vmatprep.subr.bf16.mxu0 0
        %7231 = vmatpush1.bf16.msra.mxu0 0
        %7232 = vmatprep.subr.bf16.mxu0 0
        %7233 = vmatpush1.bf16.msra.mxu0 0
        %7234 = vmatprep.subr.bf16.mxu0 0
        %7235 = vmatpush1.bf16.msra.mxu0 0
        %7236 = vmatprep.subr.bf16.mxu0 0
        %7237 = vmatpush1.bf16.msra.mxu0 0
        %7238 = vmatprep.subr.bf16.mxu0 0
        %7239 = vmatpush1.bf16.msra.mxu0 0
        %7240 = vmatprep.subr.bf16.mxu0 0
        %7241 = vmatpush1.bf16.msra.mxu0 0
        %7242 = vmatprep.subr.bf16.mxu0 0
        %7243 = vmatpush1.bf16.msra.mxu0 0
        %7244 = vmatprep.subr.bf16.mxu0 0
        %7245 = vmatpush1.bf16.msra.mxu0 0
        %7246 = vmatprep.mubr.bf16.mxu0 0
        %7247 = vmatmul.mubr.bf16.gmra.mrb[0].mxu0 %v7167
        %v7248 = vpop.f32.mrb[0].mxu0
        %v7249 = vadd.f32 0.0, %v7248
        %v7250 = vpop.f32.mrb[0].mxu0
        %v7251 = vpop.f32.mrb[0].mxu0
        %v7252 = vadd.f32 0.0, %v7251
        %v7253 = vpop.f32.mrb[0].mxu0
        %7254 = vmatprep.mubr.bf16.mxu0 0
        %7255 = vmatmul.mubr.bf16.gmra.mrb[0].mxu0 %v7170
        %v7256 = vpop.f32.mrb[0].mxu0
        %v7257 = vadd.f32 0.0, %v7256
        %v7258 = vpop.f32.mrb[0].mxu0
        %v7259 = vpop.f32.mrb[0].mxu0
        %v7260 = vadd.f32 0.0, %v7259
        %v7261 = vpop.f32.mrb[0].mxu0
        %7262 = vmatprep.mubr.bf16.mxu0 0
        %7263 = vmatmul.mubr.bf16.gmra.mrb[0].mxu0 %v7173
        %v7264 = vpop.f32.mrb[0].mxu0
        %v7265 = vadd.f32 0.0, %v7264
        %v7266 = vpop.f32.mrb[0].mxu0
        %v7267 = vpop.f32.mrb[0].mxu0
        %v7268 = vadd.f32 0.0, %v7267
        %v7269 = vpop.f32.mrb[0].mxu0
        %7270 = vmatprep.mubr.bf16.mxu0 0
        %7271 = vmatmul.mubr.bf16.gmra.mrb[0].mxu0 %v7176
        %v7272 = vpop.f32.mrb[0].mxu0
        %v7273 = vadd.f32 0.0, %v7272
        %v7274 = vpop.f32.mrb[0].mxu0
        %v7275 = vpop.f32.mrb[0].mxu0
        %v7276 = vadd.f32 0.0, %v7275
        %v7277 = vpop.f32.mrb[0].mxu0
        %7278 = vmatprep.mubr.bf16.mxu0 0
        %7279 = vmatmul.mubr.bf16.gmra.mrb[0].mxu0 %v7179
        %v7280 = vpop.f32.mrb[0].mxu0
        %v7281 = vadd.f32 0.0, %v7280
        %v7282 = vpop.f32.mrb[0].mxu0
        %v7283 = vpop.f32.mrb[0].mxu0
        %v7284 = vadd.f32 0.0, %v7283
        %v7285 = vpop.f32.mrb[0].mxu0
        %7286 = vmatprep.mubr.bf16.mxu0 0
        %7287 = vmatmul.mubr.bf16.gmra.mrb[0].mxu0 %v7182
        %v7288 = vpop.f32.mrb[0].mxu0
        %v7289 = vadd.f32 0.0, %v7288
        %v7290 = vpop.f32.mrb[0].mxu0
        %v7291 = vpop.f32.mrb[0].mxu0
        %v7292 = vadd.f32 0.0, %v7291
        %v7293 = vpop.f32.mrb[0].mxu0
        %7294 = vmatprep.mubr.bf16.mxu0 0
        %7295 = vmatmul.mubr.bf16.gmra.mrb[0].mxu0 %v7185
        %v7296 = vpop.f32.mrb[0].mxu0
        %v7297 = vadd.f32 0.0, %v7296
        %v7298 = vpop.f32.mrb[0].mxu0
        %v7299 = vpop.f32.mrb[0].mxu0
        %v7300 = vadd.f32 0.0, %v7299
        %v7301 = vpop.f32.mrb[0].mxu0
        %7302 = vmatprep.mubr.bf16.mxu0 0
        %7303 = vmatmul.mubr.bf16.gmra.mrb[0].mxu0 %v7188
        %v7304 = vpop.f32.mrb[0].mxu0
        %v7305 = vadd.f32 0.0, %v7304
        %v7306 = vpop.f32.mrb[0].mxu0
        %v7307 = vpop.f32.mrb[0].mxu0
        %v7308 = vadd.f32 0.0, %v7307
        %v7309 = vpop.f32.mrb[0].mxu0
        %7310 = vmatprep.mubr.bf16.mxu0 0
        %7311 = vmatmul.mubr.bf16.gmra.mrb[0].mxu0 %v7191
        %v7312 = vpop.f32.mrb[0].mxu0
        %v7313 = vadd.f32 0.0, %v7312
        %v7314 = vpop.f32.mrb[0].mxu0
        %v7315 = vpop.f32.mrb[0].mxu0
        %v7316 = vadd.f32 0.0, %v7315
        %v7317 = vpop.f32.mrb[0].mxu0
        %7318 = vmatprep.mubr.bf16.mxu0 0
        %7319 = vmatmul.mubr.bf16.gmra.mrb[0].mxu0 %v7194
        %v7320 = vpop.f32.mrb[0].mxu0
        %v7321 = vadd.f32 0.0, %v7320
        %v7322 = vpop.f32.mrb[0].mxu0
        %v7323 = vpop.f32.mrb[0].mxu0
        %v7324 = vadd.f32 0.0, %v7323
        %v7325 = vpop.f32.mrb[0].mxu0
        %7326 = vmatprep.mubr.bf16.mxu0 0
        %7327 = vmatmul.mubr.bf16.gmra.mrb[0].mxu0 %v7197
        %v7328 = vpop.f32.mrb[0].mxu0
        %v7329 = vadd.f32 0.0, %v7328
        %v7330 = vpop.f32.mrb[0].mxu0
        %v7331 = vpop.f32.mrb[0].mxu0
        %v7332 = vadd.f32 0.0, %v7331
        %v7333 = vpop.f32.mrb[0].mxu0
        %7334 = vmatprep.mubr.bf16.mxu0 0
        %7335 = vmatmul.mubr.bf16.gmra.mrb[0].mxu0 %v7200
        %v7336 = vpop.f32.mrb[0].mxu0
        %v7337 = vadd.f32 0.0, %v7336
        %v7338 = vpop.f32.mrb[0].mxu0
        %v7339 = vpop.f32.mrb[0].mxu0
        %v7340 = vadd.f32 0.0, %v7339
        %v7341 = vpop.f32.mrb[0].mxu0
        %7342 = vmatprep.mubr.bf16.mxu0 0
        %7343 = vmatmul.mubr.bf16.gmra.mrb[0].mxu0 %v7203
        %v7344 = vpop.f32.mrb[0].mxu0
        %v7345 = vadd.f32 0.0, %v7344
        %v7346 = vpop.f32.mrb[0].mxu0
        %v7347 = vpop.f32.mrb[0].mxu0
        %v7348 = vadd.f32 0.0, %v7347
        %v7349 = vpop.f32.mrb[0].mxu0
        %7350 = vmatprep.mubr.bf16.mxu0 0
        %7351 = vmatmul.mubr.bf16.gmra.mrb[0].mxu0 %v7206
        %v7352 = vpop.f32.mrb[0].mxu0
        %v7353 = vadd.f32 0.0, %v7352
        %v7354 = vpop.f32.mrb[0].mxu0
        %v7355 = vpop.f32.mrb[0].mxu0
        %v7356 = vadd.f32 0.0, %v7355
        %v7357 = vpop.f32.mrb[0].mxu0
        %7358 = vmatprep.mubr.bf16.mxu0 0
        %7359 = vmatmul.mubr.bf16.gmra.mrb[0].mxu0 %v7209
        %v7360 = vpop.f32.mrb[0].mxu0
        %v7361 = vadd.f32 0.0, %v7360
        %v7362 = vpop.f32.mrb[0].mxu0
        %v7363 = vpop.f32.mrb[0].mxu0
        %v7364 = vadd.f32 0.0, %v7363
        %v7365 = vpop.f32.mrb[0].mxu0
        %7366 = vmatprep.mubr.bf16.mxu0 0
        %7367 = vmatmul.mubr.bf16.gmra.mrb[0].mxu0 %v7212
        %v7368 = vpop.f32.mrb[0].mxu0
        %v7369 = vadd.f32 0.0, %v7368
        %v7370 = vpop.f32.mrb[0].mxu0
        %v7371 = vpop.f32.mrb[0].mxu0
        %v7372 = vadd.f32 0.0, %v7371
        %v7373 = vpop.f32.mrb[0].mxu0
        %7374 = vdwg.mxu0
        %v7375 = vadd.f32 %v6638, %v7249
        %v7376 = vadd.f32 %v6639, %v7252
        %v7377 = vadd.f32 %v6640, %v7257
        %v7378 = vadd.f32 %v6641, %v7260
        %v7379 = vadd.f32 %v6642, %v7265
        %v7380 = vadd.f32 %v6643, %v7268
        %v7381 = vadd.f32 %v6644, %v7273
        %v7382 = vadd.f32 %v6645, %v7276
        %v7383 = vadd.f32 %v6646, %v7281
        %v7384 = vadd.f32 %v6647, %v7284
        %v7385 = vadd.f32 %v6648, %v7289
        %v7386 = vadd.f32 %v6649, %v7292
        %v7387 = vadd.f32 %v6650, %v7297
        %v7388 = vadd.f32 %v6651, %v7300
        %v7389 = vadd.f32 %v6652, %v7305
        %v7390 = vadd.f32 %v6653, %v7308
        %v7391 = vadd.f32 %v6654, %v7313
        %v7392 = vadd.f32 %v6655, %v7316
        %v7393 = vadd.f32 %v6656, %v7321
        %v7394 = vadd.f32 %v6657, %v7324
        %v7395 = vadd.f32 %v6658, %v7329
        %v7396 = vadd.f32 %v6659, %v7332
        %v7397 = vadd.f32 %v6660, %v7337
        %v7398 = vadd.f32 %v6661, %v7340
        %v7399 = vadd.f32 %v6662, %v7345
        %v7400 = vadd.f32 %v6663, %v7348
        %v7401 = vadd.f32 %v6664, %v7353
        %v7402 = vadd.f32 %v6665, %v7356
        %v7403 = vadd.f32 %v6666, %v7361
        %v7404 = vadd.f32 %v6667, %v7364
        %v7405 = vadd.f32 %v6668, %v7369
        %v7406 = vadd.f32 %v6669, %v7372
        %v7407 = vpack.c.bf16 %v7376, %v7375
        %v7408 = vpack.c.bf16 %v7378, %v7377
        %v7409 = vpack.c.bf16 %v7380, %v7379
        %v7410 = vpack.c.bf16 %v7382, %v7381
        %v7411 = vpack.c.bf16 %v7384, %v7383
        %v7412 = vpack.c.bf16 %v7386, %v7385
        %v7413 = vpack.c.bf16 %v7388, %v7387
        %v7414 = vpack.c.bf16 %v7390, %v7389
        %v7415 = vpack.c.bf16 %v7392, %v7391
        %v7416 = vpack.c.bf16 %v7394, %v7393
        %v7417 = vpack.c.bf16 %v7396, %v7395
        %v7418 = vpack.c.bf16 %v7398, %v7397
        %v7419 = vpack.c.bf16 %v7400, %v7399
        %v7420 = vpack.c.bf16 %v7402, %v7401
        %v7421 = vpack.c.bf16 %v7404, %v7403
        %v7422 = vpack.c.bf16 %v7406, %v7405
        %v7439 = vunpack.c.l.b16 %v7407
        %v7440 = vunpack.c.h.b16 %v7407
        %v7441 = vunpack.c.l.b16 %v7408
        %v7442 = vunpack.c.h.b16 %v7408
        %v7443 = vunpack.c.l.b16 %v7409
        %v7444 = vunpack.c.h.b16 %v7409
        %v7445 = vunpack.c.l.b16 %v7410
        %v7446 = vunpack.c.h.b16 %v7410
        %v7447 = vunpack.c.l.b16 %v7411
        %v7448 = vunpack.c.h.b16 %v7411
        %v7449 = vunpack.c.l.b16 %v7412
        %v7450 = vunpack.c.h.b16 %v7412
        %v7451 = vunpack.c.l.b16 %v7413
        %v7452 = vunpack.c.h.b16 %v7413
        %v7453 = vunpack.c.l.b16 %v7414
        %v7454 = vunpack.c.h.b16 %v7414
        %v7455 = vunpack.c.l.b16 %v7415
        %v7456 = vunpack.c.h.b16 %v7415
        %v7457 = vunpack.c.l.b16 %v7416
        %v7458 = vunpack.c.h.b16 %v7416
        %v7459 = vunpack.c.l.b16 %v7417
        %v7460 = vunpack.c.h.b16 %v7417
        %v7461 = vunpack.c.l.b16 %v7418
        %v7462 = vunpack.c.h.b16 %v7418
        %v7463 = vunpack.c.l.b16 %v7419
        %v7464 = vunpack.c.h.b16 %v7419
        %v7465 = vunpack.c.l.b16 %v7420
        %v7466 = vunpack.c.h.b16 %v7420
        %v7467 = vunpack.c.l.b16 %v7421
        %v7468 = vunpack.c.h.b16 %v7421
        %v7469 = vunpack.c.l.b16 %v7422
        %v7470 = vunpack.c.h.b16 %v7422
        %v7471 = vpack.c.b16 %v7439, %v7439
        %v7472 = vpack.c.b16 %v7440, %v7440
        %v7473 = vpack.c.b16 %v7441, %v7441
        %v7474 = vpack.c.b16 %v7442, %v7442
        %v7475 = vpack.c.b16 %v7443, %v7443
        %v7476 = vpack.c.b16 %v7444, %v7444
        %v7477 = vpack.c.b16 %v7445, %v7445
        %v7478 = vpack.c.b16 %v7446, %v7446
        %v7479 = vpack.c.b16 %v7447, %v7447
        %v7480 = vpack.c.b16 %v7448, %v7448
        %v7481 = vpack.c.b16 %v7449, %v7449
        %v7482 = vpack.c.b16 %v7450, %v7450
        %v7483 = vpack.c.b16 %v7451, %v7451
        %v7484 = vpack.c.b16 %v7452, %v7452
        %v7485 = vpack.c.b16 %v7453, %v7453
        %v7486 = vpack.c.b16 %v7454, %v7454
        %v7487 = vpack.c.b16 %v7455, %v7455
        %v7488 = vpack.c.b16 %v7456, %v7456
        %v7489 = vpack.c.b16 %v7457, %v7457
        %v7490 = vpack.c.b16 %v7458, %v7458
        %v7491 = vpack.c.b16 %v7459, %v7459
        %v7492 = vpack.c.b16 %v7460, %v7460
        %v7493 = vpack.c.b16 %v7461, %v7461
        %v7494 = vpack.c.b16 %v7462, %v7462
        %v7495 = vpack.c.b16 %v7463, %v7463
        %v7496 = vpack.c.b16 %v7464, %v7464
        %v7497 = vpack.c.b16 %v7465, %v7465
        %v7498 = vpack.c.b16 %v7466, %v7466
        %v7499 = vpack.c.b16 %v7467, %v7467
        %v7500 = vpack.c.b16 %v7468, %v7468
        %v7501 = vpack.c.b16 %v7469, %v7469
        %v7502 = vpack.c.b16 %v7470, %v7470
        %s7535 = scalar_lea.vmem %s218, 256 [#allocation2]
        %7536 = vst [vmem:[%s7535] sm:$0xf] %v7471
        %7537 = vst [vmem:[%s7535 + $0x4] sm:$0xf] %v7472
        %7538 = vst [vmem:[%s7535 + $0x8] sm:$0xf] %v7473
        %7539 = vst [vmem:[%s7535 + $0xc] sm:$0xf] %v7474
        %7540 = vst [vmem:[%s7535 + $0x10] sm:$0xf] %v7475
        %7541 = vst [vmem:[%s7535 + $0x14] sm:$0xf] %v7476
        %7542 = vst [vmem:[%s7535 + $0x18] sm:$0xf] %v7477
        %7543 = vst [vmem:[%s7535 + $0x1c] sm:$0xf] %v7478
        %7544 = vst [vmem:[%s7535 + $0x20] sm:$0xf] %v7479
        %7545 = vst [vmem:[%s7535 + $0x24] sm:$0xf] %v7480
        %7546 = vst [vmem:[%s7535 + $0x28] sm:$0xf] %v7481
        %7547 = vst [vmem:[%s7535 + $0x2c] sm:$0xf] %v7482
        %7548 = vst [vmem:[%s7535 + $0x30] sm:$0xf] %v7483
        %7549 = vst [vmem:[%s7535 + $0x34] sm:$0xf] %v7484
        %7550 = vst [vmem:[%s7535 + $0x38] sm:$0xf] %v7485
        %7551 = vst [vmem:[%s7535 + $0x3c] sm:$0xf] %v7486
        %7552 = vst [vmem:[%s7535 + $0x40] sm:$0xf] %v7487
        %7553 = vst [vmem:[%s7535 + $0x44] sm:$0xf] %v7488
        %7554 = vst [vmem:[%s7535 + $0x48] sm:$0xf] %v7489
        %7555 = vst [vmem:[%s7535 + $0x4c] sm:$0xf] %v7490
        %7556 = vst [vmem:[%s7535 + $0x50] sm:$0xf] %v7491
        %7557 = vst [vmem:[%s7535 + $0x54] sm:$0xf] %v7492
        %7558 = vst [vmem:[%s7535 + $0x58] sm:$0xf] %v7493
        %7559 = vst [vmem:[%s7535 + $0x5c] sm:$0xf] %v7494
        %7560 = vst [vmem:[%s7535 + $0x60] sm:$0xf] %v7495
        %7561 = vst [vmem:[%s7535 + $0x64] sm:$0xf] %v7496
        %7562 = vst [vmem:[%s7535 + $0x68] sm:$0xf] %v7497
        %7563 = vst [vmem:[%s7535 + $0x6c] sm:$0xf] %v7498
        %7564 = vst [vmem:[%s7535 + $0x70] sm:$0xf] %v7499
        %7565 = vst [vmem:[%s7535 + $0x74] sm:$0xf] %v7500
        %7566 = vst [vmem:[%s7535 + $0x78] sm:$0xf] %v7501
        %7567 = vst [vmem:[%s7535 + $0x7c] sm:$0xf] %v7502
        %v7568 = vadd.f32 %v7375, %v7376
        %v7569 = vadd.f32 %v7568, %v7377
        %v7570 = vadd.f32 %v7569, %v7378
        %v7571 = vadd.f32 %v7570, %v7379
        %v7572 = vadd.f32 %v7571, %v7380
        %v7573 = vadd.f32 %v7572, %v7381
        %v7574 = vadd.f32 %v7573, %v7382
        %v7575 = vadd.f32 %v7574, %v7383
        %v7576 = vadd.f32 %v7575, %v7384
        %v7577 = vadd.f32 %v7576, %v7385
        %v7578 = vadd.f32 %v7577, %v7386
        %v7579 = vadd.f32 %v7578, %v7387
        %v7580 = vadd.f32 %v7579, %v7388
        %v7581 = vadd.f32 %v7580, %v7389
        %v7582 = vadd.f32 %v7581, %v7390
        %v7583 = vadd.f32 %v7582, %v7391
        %v7584 = vadd.f32 %v7583, %v7392
        %v7585 = vadd.f32 %v7584, %v7393
        %v7586 = vadd.f32 %v7585, %v7394
        %v7587 = vadd.f32 %v7586, %v7395
        %v7588 = vadd.f32 %v7587, %v7396
        %v7589 = vadd.f32 %v7588, %v7397
        %v7590 = vadd.f32 %v7589, %v7398
        %v7591 = vadd.f32 %v7590, %v7399
        %v7592 = vadd.f32 %v7591, %v7400
        %v7593 = vadd.f32 %v7592, %v7401
        %v7594 = vadd.f32 %v7593, %v7402
        %v7595 = vadd.f32 %v7594, %v7403
        %v7596 = vadd.f32 %v7595, %v7404
        %v7597 = vadd.f32 %v7596, %v7405
        %v7598 = vadd.f32 %v7597, %v7406
        %v7599 = vrot.slane %v7598, 4
        %v7600 = vadd.f32 %v7598, %v7599
        %v7601 = vrot.slane %v7600, 2
        %v7602 = vadd.f32 %v7600, %v7601
        %v7603 = vrot.slane %v7602, 1
        %v7604 = vadd.f32 %v7602, %v7603
        %v7605 = vadd.f32 %v5219, %v7604
        %v7606 = vmul.f32 %v7375, %v7375
        %v7607 = vmul.f32 %v7376, %v7376
        %v7608 = vmul.f32 %v7377, %v7377
        %v7609 = vmul.f32 %v7378, %v7378
        %v7610 = vmul.f32 %v7379, %v7379
        %v7611 = vmul.f32 %v7380, %v7380
        %v7612 = vmul.f32 %v7381, %v7381
        %v7613 = vmul.f32 %v7382, %v7382
        %v7614 = vmul.f32 %v7383, %v7383
        %v7615 = vmul.f32 %v7384, %v7384
        %v7616 = vmul.f32 %v7385, %v7385
        %v7617 = vmul.f32 %v7386, %v7386
        %v7618 = vmul.f32 %v7387, %v7387
        %v7619 = vmul.f32 %v7388, %v7388
        %v7620 = vmul.f32 %v7389, %v7389
        %v7621 = vmul.f32 %v7390, %v7390
        %v7622 = vmul.f32 %v7391, %v7391
        %v7623 = vmul.f32 %v7392, %v7392
        %v7624 = vmul.f32 %v7393, %v7393
        %v7625 = vmul.f32 %v7394, %v7394
        %v7626 = vmul.f32 %v7395, %v7395
        %v7627 = vmul.f32 %v7396, %v7396
        %v7628 = vmul.f32 %v7397, %v7397
        %v7629 = vmul.f32 %v7398, %v7398
        %v7630 = vmul.f32 %v7399, %v7399
        %v7631 = vmul.f32 %v7400, %v7400
        %v7632 = vmul.f32 %v7401, %v7401
        %v7633 = vmul.f32 %v7402, %v7402
        %v7634 = vmul.f32 %v7403, %v7403
        %v7635 = vmul.f32 %v7404, %v7404
        %v7636 = vmul.f32 %v7405, %v7405
        %v7637 = vmul.f32 %v7406, %v7406
        %v7638 = vadd.f32 %v7606, %v7607
        %v7639 = vadd.f32 %v7638, %v7608
        %v7640 = vadd.f32 %v7639, %v7609
        %v7641 = vadd.f32 %v7640, %v7610
        %v7642 = vadd.f32 %v7641, %v7611
        %v7643 = vadd.f32 %v7642, %v7612
        %v7644 = vadd.f32 %v7643, %v7613
        %v7645 = vadd.f32 %v7644, %v7614
        %v7646 = vadd.f32 %v7645, %v7615
        %v7647 = vadd.f32 %v7646, %v7616
        %v7648 = vadd.f32 %v7647, %v7617
        %v7649 = vadd.f32 %v7648, %v7618
        %v7650 = vadd.f32 %v7649, %v7619
        %v7651 = vadd.f32 %v7650, %v7620
        %v7652 = vadd.f32 %v7651, %v7621
        %v7653 = vadd.f32 %v7652, %v7622
        %v7654 = vadd.f32 %v7653, %v7623
        %v7655 = vadd.f32 %v7654, %v7624
        %v7656 = vadd.f32 %v7655, %v7625
        %v7657 = vadd.f32 %v7656, %v7626
        %v7658 = vadd.f32 %v7657, %v7627
        %v7659 = vadd.f32 %v7658, %v7628
        %v7660 = vadd.f32 %v7659, %v7629
        %v7661 = vadd.f32 %v7660, %v7630
        %v7662 = vadd.f32 %v7661, %v7631
        %v7663 = vadd.f32 %v7662, %v7632
        %v7664 = vadd.f32 %v7663, %v7633
        %v7665 = vadd.f32 %v7664, %v7634
        %v7666 = vadd.f32 %v7665, %v7635
        %v7667 = vadd.f32 %v7666, %v7636
        %v7668 = vadd.f32 %v7667, %v7637
        %v7669 = vrot.slane %v7668, 4
        %v7670 = vadd.f32 %v7668, %v7669
        %v7671 = vrot.slane %v7670, 2
        %v7672 = vadd.f32 %v7670, %v7671
        %v7673 = vrot.slane %v7672, 1
        %v7674 = vadd.f32 %v7672, %v7673
        %v7675 = vadd.f32 %v5289, %v7674
        %v7676 = vld [vmem:[%s1271] sm:$0xf]
        %v7677 = vld [vmem:[%s1271 + $0x4] sm:$0xf]
        %v7678 = vld [vmem:[%s1271 + $0x8] sm:$0x1]
        %v7679 = vld [vmem:[%s1271 + $0xc] sm:$0xf]
        %v7680 = vld [vmem:[%s1271 + $0x10] sm:$0xf]
        %v7681 = vld [vmem:[%s1271 + $0x14] sm:$0x1]
        %v7682 = vld [vmem:[%s1271 + $0x18] sm:$0xf]
        %v7683 = vld [vmem:[%s1271 + $0x1c] sm:$0xf]
        %v7684 = vld [vmem:[%s1271 + $0x20] sm:$0x1]
        %v7685 = vld [vmem:[%s1271 + $0x24] sm:$0xf]
        %v7686 = vld [vmem:[%s1271 + $0x28] sm:$0xf]
        %v7687 = vld [vmem:[%s1271 + $0x2c] sm:$0x1]
        %v7688 = vld [vmem:[%s1271 + $0x30] sm:$0xf]
        %v7689 = vld [vmem:[%s1271 + $0x34] sm:$0xf]
        %v7690 = vld [vmem:[%s1271 + $0x38] sm:$0x1]
        %v7691 = vld [vmem:[%s1271 + $0x3c] sm:$0xf]
        %v7692 = vld [vmem:[%s1271 + $0x40] sm:$0xf]
        %v7693 = vld [vmem:[%s1271 + $0x44] sm:$0x1]
        %v7694 = vld [vmem:[%s1271 + $0x48] sm:$0xf]
        %v7695 = vld [vmem:[%s1271 + $0x4c] sm:$0xf]
        %v7696 = vld [vmem:[%s1271 + $0x50] sm:$0x1]
        %v7697 = vld [vmem:[%s1271 + $0x54] sm:$0xf]
        %v7698 = vld [vmem:[%s1271 + $0x58] sm:$0xf]
        %v7699 = vld [vmem:[%s1271 + $0x5c] sm:$0x1]
        %v7700 = vld [vmem:[%s1271 + $0x60] sm:$0xf]
        %v7701 = vld [vmem:[%s1271 + $0x64] sm:$0xf]
        %v7702 = vld [vmem:[%s1271 + $0x68] sm:$0x1]
        %v7703 = vld [vmem:[%s1271 + $0x6c] sm:$0xf]
        %v7704 = vld [vmem:[%s1271 + $0x70] sm:$0xf]
        %v7705 = vld [vmem:[%s1271 + $0x74] sm:$0x1]
        %v7706 = vld [vmem:[%s1271 + $0x78] sm:$0xf]
        %v7707 = vld [vmem:[%s1271 + $0x7c] sm:$0xf]
        %v7708 = vld [vmem:[%s1271 + $0x80] sm:$0x1]
        %v7709 = vld [vmem:[%s1271 + $0x84] sm:$0xf]
        %v7710 = vld [vmem:[%s1271 + $0x88] sm:$0xf]
        %v7711 = vld [vmem:[%s1271 + $0x8c] sm:$0x1]
        %v7712 = vld [vmem:[%s1271 + $0x90] sm:$0xf]
        %v7713 = vld [vmem:[%s1271 + $0x94] sm:$0xf]
        %v7714 = vld [vmem:[%s1271 + $0x98] sm:$0x1]
        %v7715 = vld [vmem:[%s1271 + $0x9c] sm:$0xf]
        %v7716 = vld [vmem:[%s1271 + $0xa0] sm:$0xf]
        %v7717 = vld [vmem:[%s1271 + $0xa4] sm:$0x1]
        %v7718 = vld [vmem:[%s1271 + $0xa8] sm:$0xf]
        %v7719 = vld [vmem:[%s1271 + $0xac] sm:$0xf]
        %v7720 = vld [vmem:[%s1271 + $0xb0] sm:$0x1]
        %v7721 = vld [vmem:[%s1271 + $0xb4] sm:$0xf]
        %v7722 = vld [vmem:[%s1271 + $0xb8] sm:$0xf]
        %v7723 = vld [vmem:[%s1271 + $0xbc] sm:$0x1]
        %v7724 = vld [vmem:[%s243 + $0xc0] sm:$0xf]
        %v7725 = vld [vmem:[%s243 + $0xc4] sm:$0xf]
        %v7726 = vld [vmem:[%s243 + $0xc8] sm:$0xf]
        %v7727 = vld [vmem:[%s243 + $0xcc] sm:$0xf]
        %v7729 = vshrl.u32 %v7676, 16
        %v7731 = vrot.slane %v7729, 4
        %v7732 = vshll.u32 %v7676, 16
        %v7734 = vrot.slane %v7732, 5
        %v7735 = vor.u32 %v7731, %v7734
        %v7736 = vrot.slane %v7735, 4
        %v7738 = vshll.u32 %v7677, 16
        %v7740 = vrot.slane %v7738, 5
        %v7741 = vsel %vm315, %v7736, %v7740
        %v7742 = vshrl.u32 %v7677, 16
        %v7744 = vrot.slane %v7742, 4
        %v7745 = vor.u32 %v7744, %v7740
        %v7746 = vrot.slane %v7745, 4
        %v7748 = vshll.u32 %v7678, 16
        %v7750 = vrot.slane %v7748, 5
        %v7751 = vsel %vm315, %v7746, %v7750
        %v7753 = vshrl.u32 %v7679, 16
        %v7755 = vrot.slane %v7753, 4
        %v7756 = vshll.u32 %v7679, 16
        %v7758 = vrot.slane %v7756, 5
        %v7759 = vor.u32 %v7755, %v7758
        %v7760 = vrot.slane %v7759, 4
        %v7762 = vshll.u32 %v7680, 16
        %v7764 = vrot.slane %v7762, 5
        %v7765 = vsel %vm315, %v7760, %v7764
        %v7766 = vshrl.u32 %v7680, 16
        %v7768 = vrot.slane %v7766, 4
        %v7769 = vor.u32 %v7768, %v7764
        %v7770 = vrot.slane %v7769, 4
        %v7772 = vshll.u32 %v7681, 16
        %v7774 = vrot.slane %v7772, 5
        %v7775 = vsel %vm315, %v7770, %v7774
        %v7777 = vshrl.u32 %v7682, 16
        %v7779 = vrot.slane %v7777, 4
        %v7780 = vshll.u32 %v7682, 16
        %v7782 = vrot.slane %v7780, 5
        %v7783 = vor.u32 %v7779, %v7782
        %v7784 = vrot.slane %v7783, 4
        %v7786 = vshll.u32 %v7683, 16
        %v7788 = vrot.slane %v7786, 5
        %v7789 = vsel %vm315, %v7784, %v7788
        %v7790 = vshrl.u32 %v7683, 16
        %v7792 = vrot.slane %v7790, 4
        %v7793 = vor.u32 %v7792, %v7788
        %v7794 = vrot.slane %v7793, 4
        %v7796 = vshll.u32 %v7684, 16
        %v7798 = vrot.slane %v7796, 5
        %v7799 = vsel %vm315, %v7794, %v7798
        %v7801 = vshrl.u32 %v7685, 16
        %v7803 = vrot.slane %v7801, 4
        %v7804 = vshll.u32 %v7685, 16
        %v7806 = vrot.slane %v7804, 5
        %v7807 = vor.u32 %v7803, %v7806
        %v7808 = vrot.slane %v7807, 4
        %v7810 = vshll.u32 %v7686, 16
        %v7812 = vrot.slane %v7810, 5
        %v7813 = vsel %vm315, %v7808, %v7812
        %v7814 = vshrl.u32 %v7686, 16
        %v7816 = vrot.slane %v7814, 4
        %v7817 = vor.u32 %v7816, %v7812
        %v7818 = vrot.slane %v7817, 4
        %v7820 = vshll.u32 %v7687, 16
        %v7822 = vrot.slane %v7820, 5
        %v7823 = vsel %vm315, %v7818, %v7822
        %v7825 = vshrl.u32 %v7688, 16
        %v7827 = vrot.slane %v7825, 4
        %v7828 = vshll.u32 %v7688, 16
        %v7830 = vrot.slane %v7828, 5
        %v7831 = vor.u32 %v7827, %v7830
        %v7832 = vrot.slane %v7831, 4
        %v7834 = vshll.u32 %v7689, 16
        %v7836 = vrot.slane %v7834, 5
        %v7837 = vsel %vm315, %v7832, %v7836
        %v7838 = vshrl.u32 %v7689, 16
        %v7840 = vrot.slane %v7838, 4
        %v7841 = vor.u32 %v7840, %v7836
        %v7842 = vrot.slane %v7841, 4
        %v7844 = vshll.u32 %v7690, 16
        %v7846 = vrot.slane %v7844, 5
        %v7847 = vsel %vm315, %v7842, %v7846
        %v7849 = vshrl.u32 %v7691, 16
        %v7851 = vrot.slane %v7849, 4
        %v7852 = vshll.u32 %v7691, 16
        %v7854 = vrot.slane %v7852, 5
        %v7855 = vor.u32 %v7851, %v7854
        %v7856 = vrot.slane %v7855, 4
        %v7858 = vshll.u32 %v7692, 16
        %v7860 = vrot.slane %v7858, 5
        %v7861 = vsel %vm315, %v7856, %v7860
        %v7862 = vshrl.u32 %v7692, 16
        %v7864 = vrot.slane %v7862, 4
        %v7865 = vor.u32 %v7864, %v7860
        %v7866 = vrot.slane %v7865, 4
        %v7868 = vshll.u32 %v7693, 16
        %v7870 = vrot.slane %v7868, 5
        %v7871 = vsel %vm315, %v7866, %v7870
        %v7873 = vshrl.u32 %v7694, 16
        %v7875 = vrot.slane %v7873, 4
        %v7876 = vshll.u32 %v7694, 16
        %v7878 = vrot.slane %v7876, 5
        %v7879 = vor.u32 %v7875, %v7878
        %v7880 = vrot.slane %v7879, 4
        %v7882 = vshll.u32 %v7695, 16
        %v7884 = vrot.slane %v7882, 5
        %v7885 = vsel %vm315, %v7880, %v7884
        %v7886 = vshrl.u32 %v7695, 16
        %v7888 = vrot.slane %v7886, 4
        %v7889 = vor.u32 %v7888, %v7884
        %v7890 = vrot.slane %v7889, 4
        %v7892 = vshll.u32 %v7696, 16
        %v7894 = vrot.slane %v7892, 5
        %v7895 = vsel %vm315, %v7890, %v7894
        %v7897 = vshrl.u32 %v7697, 16
        %v7899 = vrot.slane %v7897, 4
        %v7900 = vshll.u32 %v7697, 16
        %v7902 = vrot.slane %v7900, 5
        %v7903 = vor.u32 %v7899, %v7902
        %v7904 = vrot.slane %v7903, 4
        %v7906 = vshll.u32 %v7698, 16
        %v7908 = vrot.slane %v7906, 5
        %v7909 = vsel %vm315, %v7904, %v7908
        %v7910 = vshrl.u32 %v7698, 16
        %v7912 = vrot.slane %v7910, 4
        %v7913 = vor.u32 %v7912, %v7908
        %v7914 = vrot.slane %v7913, 4
        %v7916 = vshll.u32 %v7699, 16
        %v7918 = vrot.slane %v7916, 5
        %v7919 = vsel %vm315, %v7914, %v7918
        %v7921 = vshrl.u32 %v7700, 16
        %v7923 = vrot.slane %v7921, 4
        %v7924 = vshll.u32 %v7700, 16
        %v7926 = vrot.slane %v7924, 5
        %v7927 = vor.u32 %v7923, %v7926
        %v7928 = vrot.slane %v7927, 4
        %v7930 = vshll.u32 %v7701, 16
        %v7932 = vrot.slane %v7930, 5
        %v7933 = vsel %vm315, %v7928, %v7932
        %v7934 = vshrl.u32 %v7701, 16
        %v7936 = vrot.slane %v7934, 4
        %v7937 = vor.u32 %v7936, %v7932
        %v7938 = vrot.slane %v7937, 4
        %v7940 = vshll.u32 %v7702, 16
        %v7942 = vrot.slane %v7940, 5
        %v7943 = vsel %vm315, %v7938, %v7942
        %v7945 = vshrl.u32 %v7703, 16
        %v7947 = vrot.slane %v7945, 4
        %v7948 = vshll.u32 %v7703, 16
        %v7950 = vrot.slane %v7948, 5
        %v7951 = vor.u32 %v7947, %v7950
        %v7952 = vrot.slane %v7951, 4
        %v7954 = vshll.u32 %v7704, 16
        %v7956 = vrot.slane %v7954, 5
        %v7957 = vsel %vm315, %v7952, %v7956
        %v7958 = vshrl.u32 %v7704, 16
        %v7960 = vrot.slane %v7958, 4
        %v7961 = vor.u32 %v7960, %v7956
        %v7962 = vrot.slane %v7961, 4
        %v7964 = vshll.u32 %v7705, 16
        %v7966 = vrot.slane %v7964, 5
        %v7967 = vsel %vm315, %v7962, %v7966
        %v7969 = vshrl.u32 %v7706, 16
        %v7971 = vrot.slane %v7969, 4
        %v7972 = vshll.u32 %v7706, 16
        %v7974 = vrot.slane %v7972, 5
        %v7975 = vor.u32 %v7971, %v7974
        %v7976 = vrot.slane %v7975, 4
        %v7978 = vshll.u32 %v7707, 16
        %v7980 = vrot.slane %v7978, 5
        %v7981 = vsel %vm315, %v7976, %v7980
        %v7982 = vshrl.u32 %v7707, 16
        %v7984 = vrot.slane %v7982, 4
        %v7985 = vor.u32 %v7984, %v7980
        %v7986 = vrot.slane %v7985, 4
        %v7988 = vshll.u32 %v7708, 16
        %v7990 = vrot.slane %v7988, 5
        %v7991 = vsel %vm315, %v7986, %v7990
        %v7993 = vshrl.u32 %v7709, 16
        %v7995 = vrot.slane %v7993, 4
        %v7996 = vshll.u32 %v7709, 16
        %v7998 = vrot.slane %v7996, 5
        %v7999 = vor.u32 %v7995, %v7998
        %v8000 = vrot.slane %v7999, 4
        %v8002 = vshll.u32 %v7710, 16
        %v8004 = vrot.slane %v8002, 5
        %v8005 = vsel %vm315, %v8000, %v8004
        %v8006 = vshrl.u32 %v7710, 16
        %v8008 = vrot.slane %v8006, 4
        %v8009 = vor.u32 %v8008, %v8004
        %v8010 = vrot.slane %v8009, 4
        %v8012 = vshll.u32 %v7711, 16
        %v8014 = vrot.slane %v8012, 5
        %v8015 = vsel %vm315, %v8010, %v8014
        %v8017 = vshrl.u32 %v7712, 16
        %v8019 = vrot.slane %v8017, 4
        %v8020 = vshll.u32 %v7712, 16
        %v8022 = vrot.slane %v8020, 5
        %v8023 = vor.u32 %v8019, %v8022
        %v8024 = vrot.slane %v8023, 4
        %v8026 = vshll.u32 %v7713, 16
        %v8028 = vrot.slane %v8026, 5
        %v8029 = vsel %vm315, %v8024, %v8028
        %v8030 = vshrl.u32 %v7713, 16
        %v8032 = vrot.slane %v8030, 4
        %v8033 = vor.u32 %v8032, %v8028
        %v8034 = vrot.slane %v8033, 4
        %v8036 = vshll.u32 %v7714, 16
        %v8038 = vrot.slane %v8036, 5
        %v8039 = vsel %vm315, %v8034, %v8038
        %v8041 = vshrl.u32 %v7715, 16
        %v8043 = vrot.slane %v8041, 4
        %v8044 = vshll.u32 %v7715, 16
        %v8046 = vrot.slane %v8044, 5
        %v8047 = vor.u32 %v8043, %v8046
        %v8048 = vrot.slane %v8047, 4
        %v8050 = vshll.u32 %v7716, 16
        %v8052 = vrot.slane %v8050, 5
        %v8053 = vsel %vm315, %v8048, %v8052
        %v8054 = vshrl.u32 %v7716, 16
        %v8056 = vrot.slane %v8054, 4
        %v8057 = vor.u32 %v8056, %v8052
        %v8058 = vrot.slane %v8057, 4
        %v8060 = vshll.u32 %v7717, 16
        %v8062 = vrot.slane %v8060, 5
        %v8063 = vsel %vm315, %v8058, %v8062
        %v8065 = vshrl.u32 %v7718, 16
        %v8067 = vrot.slane %v8065, 4
        %v8068 = vshll.u32 %v7718, 16
        %v8070 = vrot.slane %v8068, 5
        %v8071 = vor.u32 %v8067, %v8070
        %v8072 = vrot.slane %v8071, 4
        %v8074 = vshll.u32 %v7719, 16
        %v8076 = vrot.slane %v8074, 5
        %v8077 = vsel %vm315, %v8072, %v8076
        %v8078 = vshrl.u32 %v7719, 16
        %v8080 = vrot.slane %v8078, 4
        %v8081 = vor.u32 %v8080, %v8076
        %v8082 = vrot.slane %v8081, 4
        %v8084 = vshll.u32 %v7720, 16
        %v8086 = vrot.slane %v8084, 5
        %v8087 = vsel %vm315, %v8082, %v8086
        %v8089 = vshrl.u32 %v7721, 16
        %v8091 = vrot.slane %v8089, 4
        %v8092 = vshll.u32 %v7721, 16
        %v8094 = vrot.slane %v8092, 5
        %v8095 = vor.u32 %v8091, %v8094
        %v8096 = vrot.slane %v8095, 4
        %v8098 = vshll.u32 %v7722, 16
        %v8100 = vrot.slane %v8098, 5
        %v8101 = vsel %vm315, %v8096, %v8100
        %v8102 = vshrl.u32 %v7722, 16
        %v8104 = vrot.slane %v8102, 4
        %v8105 = vor.u32 %v8104, %v8100
        %v8106 = vrot.slane %v8105, 4
        %v8108 = vshll.u32 %v7723, 16
        %v8110 = vrot.slane %v8108, 5
        %v8111 = vsel %vm315, %v8106, %v8110
        %v8112 = vld [vmem:[%s1271] sm:$0xe]
        %v8113 = vld [vmem:[%s1271 + $0xc] sm:$0xe]
        %v8114 = vld [vmem:[%s1271 + $0x18] sm:$0xe]
        %v8115 = vld [vmem:[%s1271 + $0x24] sm:$0xe]
        %v8116 = vld [vmem:[%s1271 + $0x30] sm:$0xe]
        %v8117 = vld [vmem:[%s1271 + $0x3c] sm:$0xe]
        %v8118 = vld [vmem:[%s1271 + $0x48] sm:$0xe]
        %v8119 = vld [vmem:[%s1271 + $0x54] sm:$0xe]
        %v8120 = vld [vmem:[%s1271 + $0x60] sm:$0xe]
        %v8121 = vld [vmem:[%s1271 + $0x6c] sm:$0xe]
        %v8122 = vld [vmem:[%s1271 + $0x78] sm:$0xe]
        %v8123 = vld [vmem:[%s1271 + $0x84] sm:$0xe]
        %v8124 = vld [vmem:[%s1271 + $0x90] sm:$0xe]
        %v8125 = vld [vmem:[%s1271 + $0x9c] sm:$0xe]
        %v8126 = vld [vmem:[%s1271 + $0xa8] sm:$0xe]
        %v8127 = vld [vmem:[%s1271 + $0xb4] sm:$0xe]
        %v8128 = vld [vmem:[%s243 + $0xd0] sm:$0xf]
        %v8129 = vld [vmem:[%s243 + $0xd4] sm:$0xf]
        %v8130 = vld [vmem:[%s243 + $0xd8] sm:$0xf]
        %v8131 = vld [vmem:[%s243 + $0xdc] sm:$0xf]
        %v8180 = vrot.slane %v8112, 5
        %v8181 = vrot.slane %v8180, 4
        %v8182 = vrot.slane %v7677, 5
        %v8183 = vsel %vm3152, %v8181, %v8182
        %v8184 = vrot.slane %v8182, 4
        %v8185 = vrot.slane %v7678, 5
        %v8186 = vsel %vm3152, %v8184, %v8185
        %v8187 = vrot.slane %v8113, 5
        %v8188 = vrot.slane %v8187, 4
        %v8189 = vrot.slane %v7680, 5
        %v8190 = vsel %vm3152, %v8188, %v8189
        %v8191 = vrot.slane %v8189, 4
        %v8192 = vrot.slane %v7681, 5
        %v8193 = vsel %vm3152, %v8191, %v8192
        %v8194 = vrot.slane %v8114, 5
        %v8195 = vrot.slane %v8194, 4
        %v8196 = vrot.slane %v7683, 5
        %v8197 = vsel %vm3152, %v8195, %v8196
        %v8198 = vrot.slane %v8196, 4
        %v8199 = vrot.slane %v7684, 5
        %v8200 = vsel %vm3152, %v8198, %v8199
        %v8201 = vrot.slane %v8115, 5
        %v8202 = vrot.slane %v8201, 4
        %v8203 = vrot.slane %v7686, 5
        %v8204 = vsel %vm3152, %v8202, %v8203
        %v8205 = vrot.slane %v8203, 4
        %v8206 = vrot.slane %v7687, 5
        %v8207 = vsel %vm3152, %v8205, %v8206
        %v8208 = vrot.slane %v8116, 5
        %v8209 = vrot.slane %v8208, 4
        %v8210 = vrot.slane %v7689, 5
        %v8211 = vsel %vm3152, %v8209, %v8210
        %v8212 = vrot.slane %v8210, 4
        %v8213 = vrot.slane %v7690, 5
        %v8214 = vsel %vm3152, %v8212, %v8213
        %v8215 = vrot.slane %v8117, 5
        %v8216 = vrot.slane %v8215, 4
        %v8217 = vrot.slane %v7692, 5
        %v8218 = vsel %vm3152, %v8216, %v8217
        %v8219 = vrot.slane %v8217, 4
        %v8220 = vrot.slane %v7693, 5
        %v8221 = vsel %vm3152, %v8219, %v8220
        %v8222 = vrot.slane %v8118, 5
        %v8223 = vrot.slane %v8222, 4
        %v8224 = vrot.slane %v7695, 5
        %v8225 = vsel %vm3152, %v8223, %v8224
        %v8226 = vrot.slane %v8224, 4
        %v8227 = vrot.slane %v7696, 5
        %v8228 = vsel %vm3152, %v8226, %v8227
        %v8229 = vrot.slane %v8119, 5
        %v8230 = vrot.slane %v8229, 4
        %v8231 = vrot.slane %v7698, 5
        %v8232 = vsel %vm3152, %v8230, %v8231
        %v8233 = vrot.slane %v8231, 4
        %v8234 = vrot.slane %v7699, 5
        %v8235 = vsel %vm3152, %v8233, %v8234
        %v8236 = vrot.slane %v8120, 5
        %v8237 = vrot.slane %v8236, 4
        %v8238 = vrot.slane %v7701, 5
        %v8239 = vsel %vm3152, %v8237, %v8238
        %v8240 = vrot.slane %v8238, 4
        %v8241 = vrot.slane %v7702, 5
        %v8242 = vsel %vm3152, %v8240, %v8241
        %v8243 = vrot.slane %v8121, 5
        %v8244 = vrot.slane %v8243, 4
        %v8245 = vrot.slane %v7704, 5
        %v8246 = vsel %vm3152, %v8244, %v8245
        %v8247 = vrot.slane %v8245, 4
        %v8248 = vrot.slane %v7705, 5
        %v8249 = vsel %vm3152, %v8247, %v8248
        %v8250 = vrot.slane %v8122, 5
        %v8251 = vrot.slane %v8250, 4
        %v8252 = vrot.slane %v7707, 5
        %v8253 = vsel %vm3152, %v8251, %v8252
        %v8254 = vrot.slane %v8252, 4
        %v8255 = vrot.slane %v7708, 5
        %v8256 = vsel %vm3152, %v8254, %v8255
        %v8257 = vrot.slane %v8123, 5
        %v8258 = vrot.slane %v8257, 4
        %v8259 = vrot.slane %v7710, 5
        %v8260 = vsel %vm3152, %v8258, %v8259
        %v8261 = vrot.slane %v8259, 4
        %v8262 = vrot.slane %v7711, 5
        %v8263 = vsel %vm3152, %v8261, %v8262
        %v8264 = vrot.slane %v8124, 5
        %v8265 = vrot.slane %v8264, 4
        %v8266 = vrot.slane %v7713, 5
        %v8267 = vsel %vm3152, %v8265, %v8266
        %v8268 = vrot.slane %v8266, 4
        %v8269 = vrot.slane %v7714, 5
        %v8270 = vsel %vm3152, %v8268, %v8269
        %v8271 = vrot.slane %v8125, 5
        %v8272 = vrot.slane %v8271, 4
        %v8273 = vrot.slane %v7716, 5
        %v8274 = vsel %vm3152, %v8272, %v8273
        %v8275 = vrot.slane %v8273, 4
        %v8276 = vrot.slane %v7717, 5
        %v8277 = vsel %vm3152, %v8275, %v8276
        %v8278 = vrot.slane %v8126, 5
        %v8279 = vrot.slane %v8278, 4
        %v8280 = vrot.slane %v7719, 5
        %v8281 = vsel %vm3152, %v8279, %v8280
        %v8282 = vrot.slane %v8280, 4
        %v8283 = vrot.slane %v7720, 5
        %v8284 = vsel %vm3152, %v8282, %v8283
        %v8285 = vrot.slane %v8127, 5
        %v8286 = vrot.slane %v8285, 4
        %v8287 = vrot.slane %v7722, 5
        %v8288 = vsel %vm3152, %v8286, %v8287
        %v8289 = vrot.slane %v8287, 4
        %v8290 = vrot.slane %v7723, 5
        %v8291 = vsel %vm3152, %v8289, %v8290
        %v8292 = vunpack.c.l.b16 %v8183
        %v8293 = vunpack.c.l.b16 %v8186
        %v8294 = vunpack.c.l.b16 %v8190
        %v8295 = vunpack.c.l.b16 %v8193
        %v8296 = vunpack.c.l.b16 %v8197
        %v8297 = vunpack.c.l.b16 %v8200
        %v8298 = vunpack.c.l.b16 %v8204
        %v8299 = vunpack.c.l.b16 %v8207
        %v8300 = vunpack.c.l.b16 %v8211
        %v8301 = vunpack.c.l.b16 %v8214
        %v8302 = vunpack.c.l.b16 %v8218
        %v8303 = vunpack.c.l.b16 %v8221
        %v8304 = vunpack.c.l.b16 %v8225
        %v8305 = vunpack.c.l.b16 %v8228
        %v8306 = vunpack.c.l.b16 %v8232
        %v8307 = vunpack.c.l.b16 %v8235
        %v8308 = vunpack.c.l.b16 %v8239
        %v8309 = vunpack.c.l.b16 %v8242
        %v8310 = vunpack.c.l.b16 %v8246
        %v8311 = vunpack.c.l.b16 %v8249
        %v8312 = vunpack.c.l.b16 %v8253
        %v8313 = vunpack.c.l.b16 %v8256
        %v8314 = vunpack.c.l.b16 %v8260
        %v8315 = vunpack.c.l.b16 %v8263
        %v8316 = vunpack.c.l.b16 %v8267
        %v8317 = vunpack.c.l.b16 %v8270
        %v8318 = vunpack.c.l.b16 %v8274
        %v8319 = vunpack.c.l.b16 %v8277
        %v8320 = vunpack.c.l.b16 %v8281
        %v8321 = vunpack.c.l.b16 %v8284
        %v8322 = vunpack.c.l.b16 %v8288
        %v8323 = vunpack.c.l.b16 %v8291
        %v8324 = vpack.c.b16 %v8293, %v8292
        %v8325 = vpack.c.b16 %v8295, %v8294
        %v8326 = vpack.c.b16 %v8297, %v8296
        %v8327 = vpack.c.b16 %v8299, %v8298
        %v8328 = vpack.c.b16 %v8301, %v8300
        %v8329 = vpack.c.b16 %v8303, %v8302
        %v8330 = vpack.c.b16 %v8305, %v8304
        %v8331 = vpack.c.b16 %v8307, %v8306
        %v8332 = vpack.c.b16 %v8309, %v8308
        %v8333 = vpack.c.b16 %v8311, %v8310
        %v8334 = vpack.c.b16 %v8313, %v8312
        %v8335 = vpack.c.b16 %v8315, %v8314
        %v8336 = vpack.c.b16 %v8317, %v8316
        %v8337 = vpack.c.b16 %v8319, %v8318
        %v8338 = vpack.c.b16 %v8321, %v8320
        %v8339 = vpack.c.b16 %v8323, %v8322
        %v8344 = vunpack.c.l.b16 %v8128
        %v8345 = vunpack.c.l.b16 %v8129
        %v8346 = vunpack.c.l.b16 %v8130
        %v8347 = vunpack.c.l.b16 %v8131
        %v8348 = vpack.c.b16 %v8345, %v8344
        %v8349 = vpack.c.b16 %v8347, %v8346
        %v8353 = vsel %vm760, %v8324, 0
        %v8356 = vsel %vm760, %v8325, 0
        %v8359 = vsel %vm760, %v8326, 0
        %v8362 = vsel %vm760, %v8327, 0
        %v8365 = vsel %vm760, %v8328, 0
        %v8368 = vsel %vm760, %v8329, 0
        %v8371 = vsel %vm760, %v8330, 0
        %v8374 = vsel %vm760, %v8331, 0
        %v8377 = vsel %vm760, %v8332, 0
        %v8380 = vsel %vm760, %v8333, 0
        %v8383 = vsel %vm760, %v8334, 0
        %v8386 = vsel %vm760, %v8335, 0
        %v8389 = vsel %vm760, %v8336, 0
        %v8392 = vsel %vm760, %v8337, 0
        %v8395 = vsel %vm760, %v8338, 0
        %v8398 = vsel %vm760, %v8339, 0
        %8400 = vmatprep.subr.bf16.mxu0 0
        %8401 = vmatpush1.bf16.msra.mxu0 %v8348
        %8402 = vmatprep.subr.bf16.mxu0 0
        %8403 = vmatpush1.bf16.msra.mxu0 %v8349
        %8404 = vmatprep.subr.bf16.mxu0 0
        %8405 = vmatpush1.bf16.msra.mxu0 0
        %8406 = vmatprep.subr.bf16.mxu0 0
        %8407 = vmatpush1.bf16.msra.mxu0 0
        %8408 = vmatprep.subr.bf16.mxu0 0
        %8409 = vmatpush1.bf16.msra.mxu0 0
        %8410 = vmatprep.subr.bf16.mxu0 0
        %8411 = vmatpush1.bf16.msra.mxu0 0
        %8412 = vmatprep.subr.bf16.mxu0 0
        %8413 = vmatpush1.bf16.msra.mxu0 0
        %8414 = vmatprep.subr.bf16.mxu0 0
        %8415 = vmatpush1.bf16.msra.mxu0 0
        %8416 = vmatprep.subr.bf16.mxu0 0
        %8417 = vmatpush1.bf16.msra.mxu0 0
        %8418 = vmatprep.subr.bf16.mxu0 0
        %8419 = vmatpush1.bf16.msra.mxu0 0
        %8420 = vmatprep.subr.bf16.mxu0 0
        %8421 = vmatpush1.bf16.msra.mxu0 0
        %8422 = vmatprep.subr.bf16.mxu0 0
        %8423 = vmatpush1.bf16.msra.mxu0 0
        %8424 = vmatprep.subr.bf16.mxu0 0
        %8425 = vmatpush1.bf16.msra.mxu0 0
        %8426 = vmatprep.subr.bf16.mxu0 0
        %8427 = vmatpush1.bf16.msra.mxu0 0
        %8428 = vmatprep.subr.bf16.mxu0 0
        %8429 = vmatpush1.bf16.msra.mxu0 0
        %8430 = vmatprep.subr.bf16.mxu0 0
        %8431 = vmatpush1.bf16.msra.mxu0 0
        %8432 = vmatprep.mubr.bf16.mxu0 0
        %8433 = vmatmul.mubr.bf16.gmra.mrb[0].mxu0 %v8353
        %v8434 = vpop.f32.mrb[0].mxu0
        %v8435 = vadd.f32 0.0, %v8434
        %v8436 = vpop.f32.mrb[0].mxu0
        %v8437 = vpop.f32.mrb[0].mxu0
        %v8438 = vadd.f32 0.0, %v8437
        %v8439 = vpop.f32.mrb[0].mxu0
        %8440 = vmatprep.mubr.bf16.mxu0 0
        %8441 = vmatmul.mubr.bf16.gmra.mrb[0].mxu0 %v8356
        %v8442 = vpop.f32.mrb[0].mxu0
        %v8443 = vadd.f32 0.0, %v8442
        %v8444 = vpop.f32.mrb[0].mxu0
        %v8445 = vpop.f32.mrb[0].mxu0
        %v8446 = vadd.f32 0.0, %v8445
        %v8447 = vpop.f32.mrb[0].mxu0
        %8448 = vmatprep.mubr.bf16.mxu0 0
        %8449 = vmatmul.mubr.bf16.gmra.mrb[0].mxu0 %v8359
        %v8450 = vpop.f32.mrb[0].mxu0
        %v8451 = vadd.f32 0.0, %v8450
        %v8452 = vpop.f32.mrb[0].mxu0
        %v8453 = vpop.f32.mrb[0].mxu0
        %v8454 = vadd.f32 0.0, %v8453
        %v8455 = vpop.f32.mrb[0].mxu0
        %8456 = vmatprep.mubr.bf16.mxu0 0
        %8457 = vmatmul.mubr.bf16.gmra.mrb[0].mxu0 %v8362
        %v8458 = vpop.f32.mrb[0].mxu0
        %v8459 = vadd.f32 0.0, %v8458
        %v8460 = vpop.f32.mrb[0].mxu0
        %v8461 = vpop.f32.mrb[0].mxu0
        %v8462 = vadd.f32 0.0, %v8461
        %v8463 = vpop.f32.mrb[0].mxu0
        %8464 = vmatprep.mubr.bf16.mxu0 0
        %8465 = vmatmul.mubr.bf16.gmra.mrb[0].mxu0 %v8365
        %v8466 = vpop.f32.mrb[0].mxu0
        %v8467 = vadd.f32 0.0, %v8466
        %v8468 = vpop.f32.mrb[0].mxu0
        %v8469 = vpop.f32.mrb[0].mxu0
        %v8470 = vadd.f32 0.0, %v8469
        %v8471 = vpop.f32.mrb[0].mxu0
        %8472 = vmatprep.mubr.bf16.mxu0 0
        %8473 = vmatmul.mubr.bf16.gmra.mrb[0].mxu0 %v8368
        %v8474 = vpop.f32.mrb[0].mxu0
        %v8475 = vadd.f32 0.0, %v8474
        %v8476 = vpop.f32.mrb[0].mxu0
        %v8477 = vpop.f32.mrb[0].mxu0
        %v8478 = vadd.f32 0.0, %v8477
        %v8479 = vpop.f32.mrb[0].mxu0
        %8480 = vmatprep.mubr.bf16.mxu0 0
        %8481 = vmatmul.mubr.bf16.gmra.mrb[0].mxu0 %v8371
        %v8482 = vpop.f32.mrb[0].mxu0
        %v8483 = vadd.f32 0.0, %v8482
        %v8484 = vpop.f32.mrb[0].mxu0
        %v8485 = vpop.f32.mrb[0].mxu0
        %v8486 = vadd.f32 0.0, %v8485
        %v8487 = vpop.f32.mrb[0].mxu0
        %8488 = vmatprep.mubr.bf16.mxu0 0
        %8489 = vmatmul.mubr.bf16.gmra.mrb[0].mxu0 %v8374
        %v8490 = vpop.f32.mrb[0].mxu0
        %v8491 = vadd.f32 0.0, %v8490
        %v8492 = vpop.f32.mrb[0].mxu0
        %v8493 = vpop.f32.mrb[0].mxu0
        %v8494 = vadd.f32 0.0, %v8493
        %v8495 = vpop.f32.mrb[0].mxu0
        %8496 = vmatprep.mubr.bf16.mxu0 0
        %8497 = vmatmul.mubr.bf16.gmra.mrb[0].mxu0 %v8377
        %v8498 = vpop.f32.mrb[0].mxu0
        %v8499 = vadd.f32 0.0, %v8498
        %v8500 = vpop.f32.mrb[0].mxu0
        %v8501 = vpop.f32.mrb[0].mxu0
        %v8502 = vadd.f32 0.0, %v8501
        %v8503 = vpop.f32.mrb[0].mxu0
        %8504 = vmatprep.mubr.bf16.mxu0 0
        %8505 = vmatmul.mubr.bf16.gmra.mrb[0].mxu0 %v8380
        %v8506 = vpop.f32.mrb[0].mxu0
        %v8507 = vadd.f32 0.0, %v8506
        %v8508 = vpop.f32.mrb[0].mxu0
        %v8509 = vpop.f32.mrb[0].mxu0
        %v8510 = vadd.f32 0.0, %v8509
        %v8511 = vpop.f32.mrb[0].mxu0
        %8512 = vmatprep.mubr.bf16.mxu0 0
        %8513 = vmatmul.mubr.bf16.gmra.mrb[0].mxu0 %v8383
        %v8514 = vpop.f32.mrb[0].mxu0
        %v8515 = vadd.f32 0.0, %v8514
        %v8516 = vpop.f32.mrb[0].mxu0
        %v8517 = vpop.f32.mrb[0].mxu0
        %v8518 = vadd.f32 0.0, %v8517
        %v8519 = vpop.f32.mrb[0].mxu0
        %8520 = vmatprep.mubr.bf16.mxu0 0
        %8521 = vmatmul.mubr.bf16.gmra.mrb[0].mxu0 %v8386
        %v8522 = vpop.f32.mrb[0].mxu0
        %v8523 = vadd.f32 0.0, %v8522
        %v8524 = vpop.f32.mrb[0].mxu0
        %v8525 = vpop.f32.mrb[0].mxu0
        %v8526 = vadd.f32 0.0, %v8525
        %v8527 = vpop.f32.mrb[0].mxu0
        %8528 = vmatprep.mubr.bf16.mxu0 0
        %8529 = vmatmul.mubr.bf16.gmra.mrb[0].mxu0 %v8389
        %v8530 = vpop.f32.mrb[0].mxu0
        %v8531 = vadd.f32 0.0, %v8530
        %v8532 = vpop.f32.mrb[0].mxu0
        %v8533 = vpop.f32.mrb[0].mxu0
        %v8534 = vadd.f32 0.0, %v8533
        %v8535 = vpop.f32.mrb[0].mxu0
        %8536 = vmatprep.mubr.bf16.mxu0 0
        %8537 = vmatmul.mubr.bf16.gmra.mrb[0].mxu0 %v8392
        %v8538 = vpop.f32.mrb[0].mxu0
        %v8539 = vadd.f32 0.0, %v8538
        %v8540 = vpop.f32.mrb[0].mxu0
        %v8541 = vpop.f32.mrb[0].mxu0
        %v8542 = vadd.f32 0.0, %v8541
        %v8543 = vpop.f32.mrb[0].mxu0
        %8544 = vmatprep.mubr.bf16.mxu0 0
        %8545 = vmatmul.mubr.bf16.gmra.mrb[0].mxu0 %v8395
        %v8546 = vpop.f32.mrb[0].mxu0
        %v8547 = vadd.f32 0.0, %v8546
        %v8548 = vpop.f32.mrb[0].mxu0
        %v8549 = vpop.f32.mrb[0].mxu0
        %v8550 = vadd.f32 0.0, %v8549
        %v8551 = vpop.f32.mrb[0].mxu0
        %8552 = vmatprep.mubr.bf16.mxu0 0
        %8553 = vmatmul.mubr.bf16.gmra.mrb[0].mxu0 %v8398
        %v8554 = vpop.f32.mrb[0].mxu0
        %v8555 = vadd.f32 0.0, %v8554
        %v8556 = vpop.f32.mrb[0].mxu0
        %v8557 = vpop.f32.mrb[0].mxu0
        %v8558 = vadd.f32 0.0, %v8557
        %v8559 = vpop.f32.mrb[0].mxu0
        %8560 = vdwg.mxu0
        %v8561 = vunpack.c.l.b16 %v7741
        %v8562 = vunpack.c.l.b16 %v7751
        %v8563 = vunpack.c.l.b16 %v7765
        %v8564 = vunpack.c.l.b16 %v7775
        %v8565 = vunpack.c.l.b16 %v7789
        %v8566 = vunpack.c.l.b16 %v7799
        %v8567 = vunpack.c.l.b16 %v7813
        %v8568 = vunpack.c.l.b16 %v7823
        %v8569 = vunpack.c.l.b16 %v7837
        %v8570 = vunpack.c.l.b16 %v7847
        %v8571 = vunpack.c.l.b16 %v7861
        %v8572 = vunpack.c.l.b16 %v7871
        %v8573 = vunpack.c.l.b16 %v7885
        %v8574 = vunpack.c.l.b16 %v7895
        %v8575 = vunpack.c.l.b16 %v7909
        %v8576 = vunpack.c.l.b16 %v7919
        %v8577 = vunpack.c.l.b16 %v7933
        %v8578 = vunpack.c.l.b16 %v7943
        %v8579 = vunpack.c.l.b16 %v7957
        %v8580 = vunpack.c.l.b16 %v7967
        %v8581 = vunpack.c.l.b16 %v7981
        %v8582 = vunpack.c.l.b16 %v7991
        %v8583 = vunpack.c.l.b16 %v8005
        %v8584 = vunpack.c.l.b16 %v8015
        %v8585 = vunpack.c.l.b16 %v8029
        %v8586 = vunpack.c.l.b16 %v8039
        %v8587 = vunpack.c.l.b16 %v8053
        %v8588 = vunpack.c.l.b16 %v8063
        %v8589 = vunpack.c.l.b16 %v8077
        %v8590 = vunpack.c.l.b16 %v8087
        %v8591 = vunpack.c.l.b16 %v8101
        %v8592 = vunpack.c.l.b16 %v8111
        %v8593 = vpack.c.b16 %v8562, %v8561
        %v8594 = vpack.c.b16 %v8564, %v8563
        %v8595 = vpack.c.b16 %v8566, %v8565
        %v8596 = vpack.c.b16 %v8568, %v8567
        %v8597 = vpack.c.b16 %v8570, %v8569
        %v8598 = vpack.c.b16 %v8572, %v8571
        %v8599 = vpack.c.b16 %v8574, %v8573
        %v8600 = vpack.c.b16 %v8576, %v8575
        %v8601 = vpack.c.b16 %v8578, %v8577
        %v8602 = vpack.c.b16 %v8580, %v8579
        %v8603 = vpack.c.b16 %v8582, %v8581
        %v8604 = vpack.c.b16 %v8584, %v8583
        %v8605 = vpack.c.b16 %v8586, %v8585
        %v8606 = vpack.c.b16 %v8588, %v8587
        %v8607 = vpack.c.b16 %v8590, %v8589
        %v8608 = vpack.c.b16 %v8592, %v8591
        %v8613 = vunpack.c.l.b16 %v7724
        %v8614 = vunpack.c.l.b16 %v7725
        %v8615 = vunpack.c.l.b16 %v7726
        %v8616 = vunpack.c.l.b16 %v7727
        %v8617 = vpack.c.b16 %v8614, %v8613
        %v8618 = vpack.c.b16 %v8616, %v8615
        %v8622 = vsel %vm760, %v8593, 0
        %v8625 = vsel %vm760, %v8594, 0
        %v8628 = vsel %vm760, %v8595, 0
        %v8631 = vsel %vm760, %v8596, 0
        %v8634 = vsel %vm760, %v8597, 0
        %v8637 = vsel %vm760, %v8598, 0
        %v8640 = vsel %vm760, %v8599, 0
        %v8643 = vsel %vm760, %v8600, 0
        %v8646 = vsel %vm760, %v8601, 0
        %v8649 = vsel %vm760, %v8602, 0
        %v8652 = vsel %vm760, %v8603, 0
        %v8655 = vsel %vm760, %v8604, 0
        %v8658 = vsel %vm760, %v8605, 0
        %v8661 = vsel %vm760, %v8606, 0
        %v8664 = vsel %vm760, %v8607, 0
        %v8667 = vsel %vm760, %v8608, 0
        %8669 = vmatprep.subr.bf16.mxu0 0
        %8670 = vmatpush1.bf16.msra.mxu0 %v8617
        %8671 = vmatprep.subr.bf16.mxu0 0
        %8672 = vmatpush1.bf16.msra.mxu0 %v8618
        %8673 = vmatprep.subr.bf16.mxu0 0
        %8674 = vmatpush1.bf16.msra.mxu0 0
        %8675 = vmatprep.subr.bf16.mxu0 0
        %8676 = vmatpush1.bf16.msra.mxu0 0
        %8677 = vmatprep.subr.bf16.mxu0 0
        %8678 = vmatpush1.bf16.msra.mxu0 0
        %8679 = vmatprep.subr.bf16.mxu0 0
        %8680 = vmatpush1.bf16.msra.mxu0 0
        %8681 = vmatprep.subr.bf16.mxu0 0
        %8682 = vmatpush1.bf16.msra.mxu0 0
        %8683 = vmatprep.subr.bf16.mxu0 0
        %8684 = vmatpush1.bf16.msra.mxu0 0
        %8685 = vmatprep.subr.bf16.mxu0 0
        %8686 = vmatpush1.bf16.msra.mxu0 0
        %8687 = vmatprep.subr.bf16.mxu0 0
        %8688 = vmatpush1.bf16.msra.mxu0 0
        %8689 = vmatprep.subr.bf16.mxu0 0
        %8690 = vmatpush1.bf16.msra.mxu0 0
        %8691 = vmatprep.subr.bf16.mxu0 0
        %8692 = vmatpush1.bf16.msra.mxu0 0
        %8693 = vmatprep.subr.bf16.mxu0 0
        %8694 = vmatpush1.bf16.msra.mxu0 0
        %8695 = vmatprep.subr.bf16.mxu0 0
        %8696 = vmatpush1.bf16.msra.mxu0 0
        %8697 = vmatprep.subr.bf16.mxu0 0
        %8698 = vmatpush1.bf16.msra.mxu0 0
        %8699 = vmatprep.subr.bf16.mxu0 0
        %8700 = vmatpush1.bf16.msra.mxu0 0
        %8701 = vmatprep.mubr.bf16.mxu0 0
        %8702 = vmatmul.mubr.bf16.gmra.mrb[0].mxu0 %v8622
        %v8703 = vpop.f32.mrb[0].mxu0
        %v8704 = vadd.f32 %v8435, %v8703
        %v8705 = vpop.f32.mrb[0].mxu0
        %v8706 = vpop.f32.mrb[0].mxu0
        %v8707 = vadd.f32 %v8438, %v8706
        %v8708 = vpop.f32.mrb[0].mxu0
        %8709 = vmatprep.mubr.bf16.mxu0 0
        %8710 = vmatmul.mubr.bf16.gmra.mrb[0].mxu0 %v8625
        %v8711 = vpop.f32.mrb[0].mxu0
        %v8712 = vadd.f32 %v8443, %v8711
        %v8713 = vpop.f32.mrb[0].mxu0
        %v8714 = vpop.f32.mrb[0].mxu0
        %v8715 = vadd.f32 %v8446, %v8714
        %v8716 = vpop.f32.mrb[0].mxu0
        %8717 = vmatprep.mubr.bf16.mxu0 0
        %8718 = vmatmul.mubr.bf16.gmra.mrb[0].mxu0 %v8628
        %v8719 = vpop.f32.mrb[0].mxu0
        %v8720 = vadd.f32 %v8451, %v8719
        %v8721 = vpop.f32.mrb[0].mxu0
        %v8722 = vpop.f32.mrb[0].mxu0
        %v8723 = vadd.f32 %v8454, %v8722
        %v8724 = vpop.f32.mrb[0].mxu0
        %8725 = vmatprep.mubr.bf16.mxu0 0
        %8726 = vmatmul.mubr.bf16.gmra.mrb[0].mxu0 %v8631
        %v8727 = vpop.f32.mrb[0].mxu0
        %v8728 = vadd.f32 %v8459, %v8727
        %v8729 = vpop.f32.mrb[0].mxu0
        %v8730 = vpop.f32.mrb[0].mxu0
        %v8731 = vadd.f32 %v8462, %v8730
        %v8732 = vpop.f32.mrb[0].mxu0
        %8733 = vmatprep.mubr.bf16.mxu0 0
        %8734 = vmatmul.mubr.bf16.gmra.mrb[0].mxu0 %v8634
        %v8735 = vpop.f32.mrb[0].mxu0
        %v8736 = vadd.f32 %v8467, %v8735
        %v8737 = vpop.f32.mrb[0].mxu0
        %v8738 = vpop.f32.mrb[0].mxu0
        %v8739 = vadd.f32 %v8470, %v8738
        %v8740 = vpop.f32.mrb[0].mxu0
        %8741 = vmatprep.mubr.bf16.mxu0 0
        %8742 = vmatmul.mubr.bf16.gmra.mrb[0].mxu0 %v8637
        %v8743 = vpop.f32.mrb[0].mxu0
        %v8744 = vadd.f32 %v8475, %v8743
        %v8745 = vpop.f32.mrb[0].mxu0
        %v8746 = vpop.f32.mrb[0].mxu0
        %v8747 = vadd.f32 %v8478, %v8746
        %v8748 = vpop.f32.mrb[0].mxu0
        %8749 = vmatprep.mubr.bf16.mxu0 0
        %8750 = vmatmul.mubr.bf16.gmra.mrb[0].mxu0 %v8640
        %v8751 = vpop.f32.mrb[0].mxu0
        %v8752 = vadd.f32 %v8483, %v8751
        %v8753 = vpop.f32.mrb[0].mxu0
        %v8754 = vpop.f32.mrb[0].mxu0
        %v8755 = vadd.f32 %v8486, %v8754
        %v8756 = vpop.f32.mrb[0].mxu0
        %8757 = vmatprep.mubr.bf16.mxu0 0
        %8758 = vmatmul.mubr.bf16.gmra.mrb[0].mxu0 %v8643
        %v8759 = vpop.f32.mrb[0].mxu0
        %v8760 = vadd.f32 %v8491, %v8759
        %v8761 = vpop.f32.mrb[0].mxu0
        %v8762 = vpop.f32.mrb[0].mxu0
        %v8763 = vadd.f32 %v8494, %v8762
        %v8764 = vpop.f32.mrb[0].mxu0
        %8765 = vmatprep.mubr.bf16.mxu0 0
        %8766 = vmatmul.mubr.bf16.gmra.mrb[0].mxu0 %v8646
        %v8767 = vpop.f32.mrb[0].mxu0
        %v8768 = vadd.f32 %v8499, %v8767
        %v8769 = vpop.f32.mrb[0].mxu0
        %v8770 = vpop.f32.mrb[0].mxu0
        %v8771 = vadd.f32 %v8502, %v8770
        %v8772 = vpop.f32.mrb[0].mxu0
        %8773 = vmatprep.mubr.bf16.mxu0 0
        %8774 = vmatmul.mubr.bf16.gmra.mrb[0].mxu0 %v8649
        %v8775 = vpop.f32.mrb[0].mxu0
        %v8776 = vadd.f32 %v8507, %v8775
        %v8777 = vpop.f32.mrb[0].mxu0
        %v8778 = vpop.f32.mrb[0].mxu0
        %v8779 = vadd.f32 %v8510, %v8778
        %v8780 = vpop.f32.mrb[0].mxu0
        %8781 = vmatprep.mubr.bf16.mxu0 0
        %8782 = vmatmul.mubr.bf16.gmra.mrb[0].mxu0 %v8652
        %v8783 = vpop.f32.mrb[0].mxu0
        %v8784 = vadd.f32 %v8515, %v8783
        %v8785 = vpop.f32.mrb[0].mxu0
        %v8786 = vpop.f32.mrb[0].mxu0
        %v8787 = vadd.f32 %v8518, %v8786
        %v8788 = vpop.f32.mrb[0].mxu0
        %8789 = vmatprep.mubr.bf16.mxu0 0
        %8790 = vmatmul.mubr.bf16.gmra.mrb[0].mxu0 %v8655
        %v8791 = vpop.f32.mrb[0].mxu0
        %v8792 = vadd.f32 %v8523, %v8791
        %v8793 = vpop.f32.mrb[0].mxu0
        %v8794 = vpop.f32.mrb[0].mxu0
        %v8795 = vadd.f32 %v8526, %v8794
        %v8796 = vpop.f32.mrb[0].mxu0
        %8797 = vmatprep.mubr.bf16.mxu0 0
        %8798 = vmatmul.mubr.bf16.gmra.mrb[0].mxu0 %v8658
        %v8799 = vpop.f32.mrb[0].mxu0
        %v8800 = vadd.f32 %v8531, %v8799
        %v8801 = vpop.f32.mrb[0].mxu0
        %v8802 = vpop.f32.mrb[0].mxu0
        %v8803 = vadd.f32 %v8534, %v8802
        %v8804 = vpop.f32.mrb[0].mxu0
        %8805 = vmatprep.mubr.bf16.mxu0 0
        %8806 = vmatmul.mubr.bf16.gmra.mrb[0].mxu0 %v8661
        %v8807 = vpop.f32.mrb[0].mxu0
        %v8808 = vadd.f32 %v8539, %v8807
        %v8809 = vpop.f32.mrb[0].mxu0
        %v8810 = vpop.f32.mrb[0].mxu0
        %v8811 = vadd.f32 %v8542, %v8810
        %v8812 = vpop.f32.mrb[0].mxu0
        %8813 = vmatprep.mubr.bf16.mxu0 0
        %8814 = vmatmul.mubr.bf16.gmra.mrb[0].mxu0 %v8664
        %v8815 = vpop.f32.mrb[0].mxu0
        %v8816 = vadd.f32 %v8547, %v8815
        %v8817 = vpop.f32.mrb[0].mxu0
        %v8818 = vpop.f32.mrb[0].mxu0
        %v8819 = vadd.f32 %v8550, %v8818
        %v8820 = vpop.f32.mrb[0].mxu0
        %8821 = vmatprep.mubr.bf16.mxu0 0
        %8822 = vmatmul.mubr.bf16.gmra.mrb[0].mxu0 %v8667
        %v8823 = vpop.f32.mrb[0].mxu0
        %v8824 = vadd.f32 %v8555, %v8823
        %v8825 = vpop.f32.mrb[0].mxu0
        %v8826 = vpop.f32.mrb[0].mxu0
        %v8827 = vadd.f32 %v8558, %v8826
        %v8828 = vpop.f32.mrb[0].mxu0
        %8829 = vdwg.mxu0
        %v8830 = vld [vmem:[%s6300] sm:$0xf]
        %v8831 = vld [vmem:[%s6300 + $0x4] sm:$0xf]
        %v8832 = vld [vmem:[%s6300 + $0x8] sm:$0x1]
        %v8833 = vld [vmem:[%s6300 + $0xc] sm:$0xf]
        %v8834 = vld [vmem:[%s6300 + $0x10] sm:$0xf]
        %v8835 = vld [vmem:[%s6300 + $0x14] sm:$0x1]
        %v8836 = vld [vmem:[%s6300 + $0x18] sm:$0xf]
        %v8837 = vld [vmem:[%s6300 + $0x1c] sm:$0xf]
        %v8838 = vld [vmem:[%s6300 + $0x20] sm:$0x1]
        %v8839 = vld [vmem:[%s6300 + $0x24] sm:$0xf]
        %v8840 = vld [vmem:[%s6300 + $0x28] sm:$0xf]
        %v8841 = vld [vmem:[%s6300 + $0x2c] sm:$0x1]
        %v8842 = vld [vmem:[%s6300 + $0x30] sm:$0xf]
        %v8843 = vld [vmem:[%s6300 + $0x34] sm:$0xf]
        %v8844 = vld [vmem:[%s6300 + $0x38] sm:$0x1]
        %v8845 = vld [vmem:[%s6300 + $0x3c] sm:$0xf]
        %v8846 = vld [vmem:[%s6300 + $0x40] sm:$0xf]
        %v8847 = vld [vmem:[%s6300 + $0x44] sm:$0x1]
        %v8848 = vld [vmem:[%s6300 + $0x48] sm:$0xf]
        %v8849 = vld [vmem:[%s6300 + $0x4c] sm:$0xf]
        %v8850 = vld [vmem:[%s6300 + $0x50] sm:$0x1]
        %v8851 = vld [vmem:[%s6300 + $0x54] sm:$0xf]
        %v8852 = vld [vmem:[%s6300 + $0x58] sm:$0xf]
        %v8853 = vld [vmem:[%s6300 + $0x5c] sm:$0x1]
        %v8854 = vld [vmem:[%s6300 + $0x60] sm:$0xf]
        %v8855 = vld [vmem:[%s6300 + $0x64] sm:$0xf]
        %v8856 = vld [vmem:[%s6300 + $0x68] sm:$0x1]
        %v8857 = vld [vmem:[%s6300 + $0x6c] sm:$0xf]
        %v8858 = vld [vmem:[%s6300 + $0x70] sm:$0xf]
        %v8859 = vld [vmem:[%s6300 + $0x74] sm:$0x1]
        %v8860 = vld [vmem:[%s6300 + $0x78] sm:$0xf]
        %v8861 = vld [vmem:[%s6300 + $0x7c] sm:$0xf]
        %v8862 = vld [vmem:[%s6300 + $0x80] sm:$0x1]
        %v8863 = vld [vmem:[%s6300 + $0x84] sm:$0xf]
        %v8864 = vld [vmem:[%s6300 + $0x88] sm:$0xf]
        %v8865 = vld [vmem:[%s6300 + $0x8c] sm:$0x1]
        %v8866 = vld [vmem:[%s6300 + $0x90] sm:$0xf]
        %v8867 = vld [vmem:[%s6300 + $0x94] sm:$0xf]
        %v8868 = vld [vmem:[%s6300 + $0x98] sm:$0x1]
        %v8869 = vld [vmem:[%s6300 + $0x9c] sm:$0xf]
        %v8870 = vld [vmem:[%s6300 + $0xa0] sm:$0xf]
        %v8871 = vld [vmem:[%s6300 + $0xa4] sm:$0x1]
        %v8872 = vld [vmem:[%s6300 + $0xa8] sm:$0xf]
        %v8873 = vld [vmem:[%s6300 + $0xac] sm:$0xf]
        %v8874 = vld [vmem:[%s6300 + $0xb0] sm:$0x1]
        %v8875 = vld [vmem:[%s6300 + $0xb4] sm:$0xf]
        %v8876 = vld [vmem:[%s6300 + $0xb8] sm:$0xf]
        %v8877 = vld [vmem:[%s6300 + $0xbc] sm:$0x1]
        %v8878 = vld [vmem:[%s243 + $0xe0] sm:$0xf]
        %v8879 = vld [vmem:[%s243 + $0xe4] sm:$0xf]
        %v8880 = vld [vmem:[%s243 + $0xe8] sm:$0xf]
        %v8881 = vld [vmem:[%s243 + $0xec] sm:$0xf]
        %v8883 = vshrl.u32 %v8830, 16
        %v8885 = vrot.slane %v8883, 4
        %v8886 = vshll.u32 %v8830, 16
        %v8888 = vrot.slane %v8886, 5
        %v8889 = vor.u32 %v8885, %v8888
        %v8890 = vrot.slane %v8889, 4
        %v8892 = vshll.u32 %v8831, 16
        %v8894 = vrot.slane %v8892, 5
        %v8895 = vsel %vm315, %v8890, %v8894
        %v8896 = vshrl.u32 %v8831, 16
        %v8898 = vrot.slane %v8896, 4
        %v8899 = vor.u32 %v8898, %v8894
        %v8900 = vrot.slane %v8899, 4
        %v8902 = vshll.u32 %v8832, 16
        %v8904 = vrot.slane %v8902, 5
        %v8905 = vsel %vm315, %v8900, %v8904
        %v8907 = vshrl.u32 %v8833, 16
        %v8909 = vrot.slane %v8907, 4
        %v8910 = vshll.u32 %v8833, 16
        %v8912 = vrot.slane %v8910, 5
        %v8913 = vor.u32 %v8909, %v8912
        %v8914 = vrot.slane %v8913, 4
        %v8916 = vshll.u32 %v8834, 16
        %v8918 = vrot.slane %v8916, 5
        %v8919 = vsel %vm315, %v8914, %v8918
        %v8920 = vshrl.u32 %v8834, 16
        %v8922 = vrot.slane %v8920, 4
        %v8923 = vor.u32 %v8922, %v8918
        %v8924 = vrot.slane %v8923, 4
        %v8926 = vshll.u32 %v8835, 16
        %v8928 = vrot.slane %v8926, 5
        %v8929 = vsel %vm315, %v8924, %v8928
        %v8931 = vshrl.u32 %v8836, 16
        %v8933 = vrot.slane %v8931, 4
        %v8934 = vshll.u32 %v8836, 16
        %v8936 = vrot.slane %v8934, 5
        %v8937 = vor.u32 %v8933, %v8936
        %v8938 = vrot.slane %v8937, 4
        %v8940 = vshll.u32 %v8837, 16
        %v8942 = vrot.slane %v8940, 5
        %v8943 = vsel %vm315, %v8938, %v8942
        %v8944 = vshrl.u32 %v8837, 16
        %v8946 = vrot.slane %v8944, 4
        %v8947 = vor.u32 %v8946, %v8942
        %v8948 = vrot.slane %v8947, 4
        %v8950 = vshll.u32 %v8838, 16
        %v8952 = vrot.slane %v8950, 5
        %v8953 = vsel %vm315, %v8948, %v8952
        %v8955 = vshrl.u32 %v8839, 16
        %v8957 = vrot.slane %v8955, 4
        %v8958 = vshll.u32 %v8839, 16
        %v8960 = vrot.slane %v8958, 5
        %v8961 = vor.u32 %v8957, %v8960
        %v8962 = vrot.slane %v8961, 4
        %v8964 = vshll.u32 %v8840, 16
        %v8966 = vrot.slane %v8964, 5
        %v8967 = vsel %vm315, %v8962, %v8966
        %v8968 = vshrl.u32 %v8840, 16
        %v8970 = vrot.slane %v8968, 4
        %v8971 = vor.u32 %v8970, %v8966
        %v8972 = vrot.slane %v8971, 4
        %v8974 = vshll.u32 %v8841, 16
        %v8976 = vrot.slane %v8974, 5
        %v8977 = vsel %vm315, %v8972, %v8976
        %v8979 = vshrl.u32 %v8842, 16
        %v8981 = vrot.slane %v8979, 4
        %v8982 = vshll.u32 %v8842, 16
        %v8984 = vrot.slane %v8982, 5
        %v8985 = vor.u32 %v8981, %v8984
        %v8986 = vrot.slane %v8985, 4
        %v8988 = vshll.u32 %v8843, 16
        %v8990 = vrot.slane %v8988, 5
        %v8991 = vsel %vm315, %v8986, %v8990
        %v8992 = vshrl.u32 %v8843, 16
        %v8994 = vrot.slane %v8992, 4
        %v8995 = vor.u32 %v8994, %v8990
        %v8996 = vrot.slane %v8995, 4
        %v8998 = vshll.u32 %v8844, 16
        %v9000 = vrot.slane %v8998, 5
        %v9001 = vsel %vm315, %v8996, %v9000
        %v9003 = vshrl.u32 %v8845, 16
        %v9005 = vrot.slane %v9003, 4
        %v9006 = vshll.u32 %v8845, 16
        %v9008 = vrot.slane %v9006, 5
        %v9009 = vor.u32 %v9005, %v9008
        %v9010 = vrot.slane %v9009, 4
        %v9012 = vshll.u32 %v8846, 16
        %v9014 = vrot.slane %v9012, 5
        %v9015 = vsel %vm315, %v9010, %v9014
        %v9016 = vshrl.u32 %v8846, 16
        %v9018 = vrot.slane %v9016, 4
        %v9019 = vor.u32 %v9018, %v9014
        %v9020 = vrot.slane %v9019, 4
        %v9022 = vshll.u32 %v8847, 16
        %v9024 = vrot.slane %v9022, 5
        %v9025 = vsel %vm315, %v9020, %v9024
        %v9027 = vshrl.u32 %v8848, 16
        %v9029 = vrot.slane %v9027, 4
        %v9030 = vshll.u32 %v8848, 16
        %v9032 = vrot.slane %v9030, 5
        %v9033 = vor.u32 %v9029, %v9032
        %v9034 = vrot.slane %v9033, 4
        %v9036 = vshll.u32 %v8849, 16
        %v9038 = vrot.slane %v9036, 5
        %v9039 = vsel %vm315, %v9034, %v9038
        %v9040 = vshrl.u32 %v8849, 16
        %v9042 = vrot.slane %v9040, 4
        %v9043 = vor.u32 %v9042, %v9038
        %v9044 = vrot.slane %v9043, 4
        %v9046 = vshll.u32 %v8850, 16
        %v9048 = vrot.slane %v9046, 5
        %v9049 = vsel %vm315, %v9044, %v9048
        %v9051 = vshrl.u32 %v8851, 16
        %v9053 = vrot.slane %v9051, 4
        %v9054 = vshll.u32 %v8851, 16
        %v9056 = vrot.slane %v9054, 5
        %v9057 = vor.u32 %v9053, %v9056
        %v9058 = vrot.slane %v9057, 4
        %v9060 = vshll.u32 %v8852, 16
        %v9062 = vrot.slane %v9060, 5
        %v9063 = vsel %vm315, %v9058, %v9062
        %v9064 = vshrl.u32 %v8852, 16
        %v9066 = vrot.slane %v9064, 4
        %v9067 = vor.u32 %v9066, %v9062
        %v9068 = vrot.slane %v9067, 4
        %v9070 = vshll.u32 %v8853, 16
        %v9072 = vrot.slane %v9070, 5
        %v9073 = vsel %vm315, %v9068, %v9072
        %v9075 = vshrl.u32 %v8854, 16
        %v9077 = vrot.slane %v9075, 4
        %v9078 = vshll.u32 %v8854, 16
        %v9080 = vrot.slane %v9078, 5
        %v9081 = vor.u32 %v9077, %v9080
        %v9082 = vrot.slane %v9081, 4
        %v9084 = vshll.u32 %v8855, 16
        %v9086 = vrot.slane %v9084, 5
        %v9087 = vsel %vm315, %v9082, %v9086
        %v9088 = vshrl.u32 %v8855, 16
        %v9090 = vrot.slane %v9088, 4
        %v9091 = vor.u32 %v9090, %v9086
        %v9092 = vrot.slane %v9091, 4
        %v9094 = vshll.u32 %v8856, 16
        %v9096 = vrot.slane %v9094, 5
        %v9097 = vsel %vm315, %v9092, %v9096
        %v9099 = vshrl.u32 %v8857, 16
        %v9101 = vrot.slane %v9099, 4
        %v9102 = vshll.u32 %v8857, 16
        %v9104 = vrot.slane %v9102, 5
        %v9105 = vor.u32 %v9101, %v9104
        %v9106 = vrot.slane %v9105, 4
        %v9108 = vshll.u32 %v8858, 16
        %v9110 = vrot.slane %v9108, 5
        %v9111 = vsel %vm315, %v9106, %v9110
        %v9112 = vshrl.u32 %v8858, 16
        %v9114 = vrot.slane %v9112, 4
        %v9115 = vor.u32 %v9114, %v9110
        %v9116 = vrot.slane %v9115, 4
        %v9118 = vshll.u32 %v8859, 16
        %v9120 = vrot.slane %v9118, 5
        %v9121 = vsel %vm315, %v9116, %v9120
        %v9123 = vshrl.u32 %v8860, 16
        %v9125 = vrot.slane %v9123, 4
        %v9126 = vshll.u32 %v8860, 16
        %v9128 = vrot.slane %v9126, 5
        %v9129 = vor.u32 %v9125, %v9128
        %v9130 = vrot.slane %v9129, 4
        %v9132 = vshll.u32 %v8861, 16
        %v9134 = vrot.slane %v9132, 5
        %v9135 = vsel %vm315, %v9130, %v9134
        %v9136 = vshrl.u32 %v8861, 16
        %v9138 = vrot.slane %v9136, 4
        %v9139 = vor.u32 %v9138, %v9134
        %v9140 = vrot.slane %v9139, 4
        %v9142 = vshll.u32 %v8862, 16
        %v9144 = vrot.slane %v9142, 5
        %v9145 = vsel %vm315, %v9140, %v9144
        %v9147 = vshrl.u32 %v8863, 16
        %v9149 = vrot.slane %v9147, 4
        %v9150 = vshll.u32 %v8863, 16
        %v9152 = vrot.slane %v9150, 5
        %v9153 = vor.u32 %v9149, %v9152
        %v9154 = vrot.slane %v9153, 4
        %v9156 = vshll.u32 %v8864, 16
        %v9158 = vrot.slane %v9156, 5
        %v9159 = vsel %vm315, %v9154, %v9158
        %v9160 = vshrl.u32 %v8864, 16
        %v9162 = vrot.slane %v9160, 4
        %v9163 = vor.u32 %v9162, %v9158
        %v9164 = vrot.slane %v9163, 4
        %v9166 = vshll.u32 %v8865, 16
        %v9168 = vrot.slane %v9166, 5
        %v9169 = vsel %vm315, %v9164, %v9168
        %v9171 = vshrl.u32 %v8866, 16
        %v9173 = vrot.slane %v9171, 4
        %v9174 = vshll.u32 %v8866, 16
        %v9176 = vrot.slane %v9174, 5
        %v9177 = vor.u32 %v9173, %v9176
        %v9178 = vrot.slane %v9177, 4
        %v9180 = vshll.u32 %v8867, 16
        %v9182 = vrot.slane %v9180, 5
        %v9183 = vsel %vm315, %v9178, %v9182
        %v9184 = vshrl.u32 %v8867, 16
        %v9186 = vrot.slane %v9184, 4
        %v9187 = vor.u32 %v9186, %v9182
        %v9188 = vrot.slane %v9187, 4
        %v9190 = vshll.u32 %v8868, 16
        %v9192 = vrot.slane %v9190, 5
        %v9193 = vsel %vm315, %v9188, %v9192
        %v9195 = vshrl.u32 %v8869, 16
        %v9197 = vrot.slane %v9195, 4
        %v9198 = vshll.u32 %v8869, 16
        %v9200 = vrot.slane %v9198, 5
        %v9201 = vor.u32 %v9197, %v9200
        %v9202 = vrot.slane %v9201, 4
        %v9204 = vshll.u32 %v8870, 16
        %v9206 = vrot.slane %v9204, 5
        %v9207 = vsel %vm315, %v9202, %v9206
        %v9208 = vshrl.u32 %v8870, 16
        %v9210 = vrot.slane %v9208, 4
        %v9211 = vor.u32 %v9210, %v9206
        %v9212 = vrot.slane %v9211, 4
        %v9214 = vshll.u32 %v8871, 16
        %v9216 = vrot.slane %v9214, 5
        %v9217 = vsel %vm315, %v9212, %v9216
        %v9219 = vshrl.u32 %v8872, 16
        %v9221 = vrot.slane %v9219, 4
        %v9222 = vshll.u32 %v8872, 16
        %v9224 = vrot.slane %v9222, 5
        %v9225 = vor.u32 %v9221, %v9224
        %v9226 = vrot.slane %v9225, 4
        %v9228 = vshll.u32 %v8873, 16
        %v9230 = vrot.slane %v9228, 5
        %v9231 = vsel %vm315, %v9226, %v9230
        %v9232 = vshrl.u32 %v8873, 16
        %v9234 = vrot.slane %v9232, 4
        %v9235 = vor.u32 %v9234, %v9230
        %v9236 = vrot.slane %v9235, 4
        %v9238 = vshll.u32 %v8874, 16
        %v9240 = vrot.slane %v9238, 5
        %v9241 = vsel %vm315, %v9236, %v9240
        %v9243 = vshrl.u32 %v8875, 16
        %v9245 = vrot.slane %v9243, 4
        %v9246 = vshll.u32 %v8875, 16
        %v9248 = vrot.slane %v9246, 5
        %v9249 = vor.u32 %v9245, %v9248
        %v9250 = vrot.slane %v9249, 4
        %v9252 = vshll.u32 %v8876, 16
        %v9254 = vrot.slane %v9252, 5
        %v9255 = vsel %vm315, %v9250, %v9254
        %v9256 = vshrl.u32 %v8876, 16
        %v9258 = vrot.slane %v9256, 4
        %v9259 = vor.u32 %v9258, %v9254
        %v9260 = vrot.slane %v9259, 4
        %v9262 = vshll.u32 %v8877, 16
        %v9264 = vrot.slane %v9262, 5
        %v9265 = vsel %vm315, %v9260, %v9264
        %v9266 = vunpack.c.l.b16 %v8895
        %v9267 = vunpack.c.l.b16 %v8905
        %v9268 = vunpack.c.l.b16 %v8919
        %v9269 = vunpack.c.l.b16 %v8929
        %v9270 = vunpack.c.l.b16 %v8943
        %v9271 = vunpack.c.l.b16 %v8953
        %v9272 = vunpack.c.l.b16 %v8967
        %v9273 = vunpack.c.l.b16 %v8977
        %v9274 = vunpack.c.l.b16 %v8991
        %v9275 = vunpack.c.l.b16 %v9001
        %v9276 = vunpack.c.l.b16 %v9015
        %v9277 = vunpack.c.l.b16 %v9025
        %v9278 = vunpack.c.l.b16 %v9039
        %v9279 = vunpack.c.l.b16 %v9049
        %v9280 = vunpack.c.l.b16 %v9063
        %v9281 = vunpack.c.l.b16 %v9073
        %v9282 = vunpack.c.l.b16 %v9087
        %v9283 = vunpack.c.l.b16 %v9097
        %v9284 = vunpack.c.l.b16 %v9111
        %v9285 = vunpack.c.l.b16 %v9121
        %v9286 = vunpack.c.l.b16 %v9135
        %v9287 = vunpack.c.l.b16 %v9145
        %v9288 = vunpack.c.l.b16 %v9159
        %v9289 = vunpack.c.l.b16 %v9169
        %v9290 = vunpack.c.l.b16 %v9183
        %v9291 = vunpack.c.l.b16 %v9193
        %v9292 = vunpack.c.l.b16 %v9207
        %v9293 = vunpack.c.l.b16 %v9217
        %v9294 = vunpack.c.l.b16 %v9231
        %v9295 = vunpack.c.l.b16 %v9241
        %v9296 = vunpack.c.l.b16 %v9255
        %v9297 = vunpack.c.l.b16 %v9265
        %v9298 = vpack.c.b16 %v9267, %v9266
        %v9299 = vpack.c.b16 %v9269, %v9268
        %v9300 = vpack.c.b16 %v9271, %v9270
        %v9301 = vpack.c.b16 %v9273, %v9272
        %v9302 = vpack.c.b16 %v9275, %v9274
        %v9303 = vpack.c.b16 %v9277, %v9276
        %v9304 = vpack.c.b16 %v9279, %v9278
        %v9305 = vpack.c.b16 %v9281, %v9280
        %v9306 = vpack.c.b16 %v9283, %v9282
        %v9307 = vpack.c.b16 %v9285, %v9284
        %v9308 = vpack.c.b16 %v9287, %v9286
        %v9309 = vpack.c.b16 %v9289, %v9288
        %v9310 = vpack.c.b16 %v9291, %v9290
        %v9311 = vpack.c.b16 %v9293, %v9292
        %v9312 = vpack.c.b16 %v9295, %v9294
        %v9313 = vpack.c.b16 %v9297, %v9296
        %v9318 = vunpack.c.l.b16 %v8878
        %v9319 = vunpack.c.l.b16 %v8879
        %v9320 = vunpack.c.l.b16 %v8880
        %v9321 = vunpack.c.l.b16 %v8881
        %v9322 = vpack.c.b16 %v9319, %v9318
        %v9323 = vpack.c.b16 %v9321, %v9320
        %v9327 = vsel %vm760, %v9298, 0
        %v9330 = vsel %vm760, %v9299, 0
        %v9333 = vsel %vm760, %v9300, 0
        %v9336 = vsel %vm760, %v9301, 0
        %v9339 = vsel %vm760, %v9302, 0
        %v9342 = vsel %vm760, %v9303, 0
        %v9345 = vsel %vm760, %v9304, 0
        %v9348 = vsel %vm760, %v9305, 0
        %v9351 = vsel %vm760, %v9306, 0
        %v9354 = vsel %vm760, %v9307, 0
        %v9357 = vsel %vm760, %v9308, 0
        %v9360 = vsel %vm760, %v9309, 0
        %v9363 = vsel %vm760, %v9310, 0
        %v9366 = vsel %vm760, %v9311, 0
        %v9369 = vsel %vm760, %v9312, 0
        %v9372 = vsel %vm760, %v9313, 0
        %9374 = vmatprep.subr.bf16.mxu0 0
        %9375 = vmatpush1.bf16.msra.mxu0 %v9322
        %9376 = vmatprep.subr.bf16.mxu0 0
        %9377 = vmatpush1.bf16.msra.mxu0 %v9323
        %9378 = vmatprep.subr.bf16.mxu0 0
        %9379 = vmatpush1.bf16.msra.mxu0 0
        %9380 = vmatprep.subr.bf16.mxu0 0
        %9381 = vmatpush1.bf16.msra.mxu0 0
        %9382 = vmatprep.subr.bf16.mxu0 0
        %9383 = vmatpush1.bf16.msra.mxu0 0
        %9384 = vmatprep.subr.bf16.mxu0 0
        %9385 = vmatpush1.bf16.msra.mxu0 0
        %9386 = vmatprep.subr.bf16.mxu0 0
        %9387 = vmatpush1.bf16.msra.mxu0 0
        %9388 = vmatprep.subr.bf16.mxu0 0
        %9389 = vmatpush1.bf16.msra.mxu0 0
        %9390 = vmatprep.subr.bf16.mxu0 0
        %9391 = vmatpush1.bf16.msra.mxu0 0
        %9392 = vmatprep.subr.bf16.mxu0 0
        %9393 = vmatpush1.bf16.msra.mxu0 0
        %9394 = vmatprep.subr.bf16.mxu0 0
        %9395 = vmatpush1.bf16.msra.mxu0 0
        %9396 = vmatprep.subr.bf16.mxu0 0
        %9397 = vmatpush1.bf16.msra.mxu0 0
        %9398 = vmatprep.subr.bf16.mxu0 0
        %9399 = vmatpush1.bf16.msra.mxu0 0
        %9400 = vmatprep.subr.bf16.mxu0 0
        %9401 = vmatpush1.bf16.msra.mxu0 0
        %9402 = vmatprep.subr.bf16.mxu0 0
        %9403 = vmatpush1.bf16.msra.mxu0 0
        %9404 = vmatprep.subr.bf16.mxu0 0
        %9405 = vmatpush1.bf16.msra.mxu0 0
        %9406 = vmatprep.mubr.bf16.mxu0 0
        %9407 = vmatmul.mubr.bf16.gmra.mrb[0].mxu0 %v9327
        %v9408 = vpop.f32.mrb[0].mxu0
        %v9409 = vadd.f32 0.0, %v9408
        %v9410 = vpop.f32.mrb[0].mxu0
        %v9411 = vpop.f32.mrb[0].mxu0
        %v9412 = vadd.f32 0.0, %v9411
        %v9413 = vpop.f32.mrb[0].mxu0
        %9414 = vmatprep.mubr.bf16.mxu0 0
        %9415 = vmatmul.mubr.bf16.gmra.mrb[0].mxu0 %v9330
        %v9416 = vpop.f32.mrb[0].mxu0
        %v9417 = vadd.f32 0.0, %v9416
        %v9418 = vpop.f32.mrb[0].mxu0
        %v9419 = vpop.f32.mrb[0].mxu0
        %v9420 = vadd.f32 0.0, %v9419
        %v9421 = vpop.f32.mrb[0].mxu0
        %9422 = vmatprep.mubr.bf16.mxu0 0
        %9423 = vmatmul.mubr.bf16.gmra.mrb[0].mxu0 %v9333
        %v9424 = vpop.f32.mrb[0].mxu0
        %v9425 = vadd.f32 0.0, %v9424
        %v9426 = vpop.f32.mrb[0].mxu0
        %v9427 = vpop.f32.mrb[0].mxu0
        %v9428 = vadd.f32 0.0, %v9427
        %v9429 = vpop.f32.mrb[0].mxu0
        %9430 = vmatprep.mubr.bf16.mxu0 0
        %9431 = vmatmul.mubr.bf16.gmra.mrb[0].mxu0 %v9336
        %v9432 = vpop.f32.mrb[0].mxu0
        %v9433 = vadd.f32 0.0, %v9432
        %v9434 = vpop.f32.mrb[0].mxu0
        %v9435 = vpop.f32.mrb[0].mxu0
        %v9436 = vadd.f32 0.0, %v9435
        %v9437 = vpop.f32.mrb[0].mxu0
        %9438 = vmatprep.mubr.bf16.mxu0 0
        %9439 = vmatmul.mubr.bf16.gmra.mrb[0].mxu0 %v9339
        %v9440 = vpop.f32.mrb[0].mxu0
        %v9441 = vadd.f32 0.0, %v9440
        %v9442 = vpop.f32.mrb[0].mxu0
        %v9443 = vpop.f32.mrb[0].mxu0
        %v9444 = vadd.f32 0.0, %v9443
        %v9445 = vpop.f32.mrb[0].mxu0
        %9446 = vmatprep.mubr.bf16.mxu0 0
        %9447 = vmatmul.mubr.bf16.gmra.mrb[0].mxu0 %v9342
        %v9448 = vpop.f32.mrb[0].mxu0
        %v9449 = vadd.f32 0.0, %v9448
        %v9450 = vpop.f32.mrb[0].mxu0
        %v9451 = vpop.f32.mrb[0].mxu0
        %v9452 = vadd.f32 0.0, %v9451
        %v9453 = vpop.f32.mrb[0].mxu0
        %9454 = vmatprep.mubr.bf16.mxu0 0
        %9455 = vmatmul.mubr.bf16.gmra.mrb[0].mxu0 %v9345
        %v9456 = vpop.f32.mrb[0].mxu0
        %v9457 = vadd.f32 0.0, %v9456
        %v9458 = vpop.f32.mrb[0].mxu0
        %v9459 = vpop.f32.mrb[0].mxu0
        %v9460 = vadd.f32 0.0, %v9459
        %v9461 = vpop.f32.mrb[0].mxu0
        %9462 = vmatprep.mubr.bf16.mxu0 0
        %9463 = vmatmul.mubr.bf16.gmra.mrb[0].mxu0 %v9348
        %v9464 = vpop.f32.mrb[0].mxu0
        %v9465 = vadd.f32 0.0, %v9464
        %v9466 = vpop.f32.mrb[0].mxu0
        %v9467 = vpop.f32.mrb[0].mxu0
        %v9468 = vadd.f32 0.0, %v9467
        %v9469 = vpop.f32.mrb[0].mxu0
        %9470 = vmatprep.mubr.bf16.mxu0 0
        %9471 = vmatmul.mubr.bf16.gmra.mrb[0].mxu0 %v9351
        %v9472 = vpop.f32.mrb[0].mxu0
        %v9473 = vadd.f32 0.0, %v9472
        %v9474 = vpop.f32.mrb[0].mxu0
        %v9475 = vpop.f32.mrb[0].mxu0
        %v9476 = vadd.f32 0.0, %v9475
        %v9477 = vpop.f32.mrb[0].mxu0
        %9478 = vmatprep.mubr.bf16.mxu0 0
        %9479 = vmatmul.mubr.bf16.gmra.mrb[0].mxu0 %v9354
        %v9480 = vpop.f32.mrb[0].mxu0
        %v9481 = vadd.f32 0.0, %v9480
        %v9482 = vpop.f32.mrb[0].mxu0
        %v9483 = vpop.f32.mrb[0].mxu0
        %v9484 = vadd.f32 0.0, %v9483
        %v9485 = vpop.f32.mrb[0].mxu0
        %9486 = vmatprep.mubr.bf16.mxu0 0
        %9487 = vmatmul.mubr.bf16.gmra.mrb[0].mxu0 %v9357
        %v9488 = vpop.f32.mrb[0].mxu0
        %v9489 = vadd.f32 0.0, %v9488
        %v9490 = vpop.f32.mrb[0].mxu0
        %v9491 = vpop.f32.mrb[0].mxu0
        %v9492 = vadd.f32 0.0, %v9491
        %v9493 = vpop.f32.mrb[0].mxu0
        %9494 = vmatprep.mubr.bf16.mxu0 0
        %9495 = vmatmul.mubr.bf16.gmra.mrb[0].mxu0 %v9360
        %v9496 = vpop.f32.mrb[0].mxu0
        %v9497 = vadd.f32 0.0, %v9496
        %v9498 = vpop.f32.mrb[0].mxu0
        %v9499 = vpop.f32.mrb[0].mxu0
        %v9500 = vadd.f32 0.0, %v9499
        %v9501 = vpop.f32.mrb[0].mxu0
        %9502 = vmatprep.mubr.bf16.mxu0 0
        %9503 = vmatmul.mubr.bf16.gmra.mrb[0].mxu0 %v9363
        %v9504 = vpop.f32.mrb[0].mxu0
        %v9505 = vadd.f32 0.0, %v9504
        %v9506 = vpop.f32.mrb[0].mxu0
        %v9507 = vpop.f32.mrb[0].mxu0
        %v9508 = vadd.f32 0.0, %v9507
        %v9509 = vpop.f32.mrb[0].mxu0
        %9510 = vmatprep.mubr.bf16.mxu0 0
        %9511 = vmatmul.mubr.bf16.gmra.mrb[0].mxu0 %v9366
        %v9512 = vpop.f32.mrb[0].mxu0
        %v9513 = vadd.f32 0.0, %v9512
        %v9514 = vpop.f32.mrb[0].mxu0
        %v9515 = vpop.f32.mrb[0].mxu0
        %v9516 = vadd.f32 0.0, %v9515
        %v9517 = vpop.f32.mrb[0].mxu0
        %9518 = vmatprep.mubr.bf16.mxu0 0
        %9519 = vmatmul.mubr.bf16.gmra.mrb[0].mxu0 %v9369
        %v9520 = vpop.f32.mrb[0].mxu0
        %v9521 = vadd.f32 0.0, %v9520
        %v9522 = vpop.f32.mrb[0].mxu0
        %v9523 = vpop.f32.mrb[0].mxu0
        %v9524 = vadd.f32 0.0, %v9523
        %v9525 = vpop.f32.mrb[0].mxu0
        %9526 = vmatprep.mubr.bf16.mxu0 0
        %9527 = vmatmul.mubr.bf16.gmra.mrb[0].mxu0 %v9372
        %v9528 = vpop.f32.mrb[0].mxu0
        %v9529 = vadd.f32 0.0, %v9528
        %v9530 = vpop.f32.mrb[0].mxu0
        %v9531 = vpop.f32.mrb[0].mxu0
        %v9532 = vadd.f32 0.0, %v9531
        %v9533 = vpop.f32.mrb[0].mxu0
        %9534 = vdwg.mxu0
        %v9535 = vadd.f32 %v8704, %v9409
        %v9536 = vadd.f32 %v8707, %v9412
        %v9537 = vadd.f32 %v8712, %v9417
        %v9538 = vadd.f32 %v8715, %v9420
        %v9539 = vadd.f32 %v8720, %v9425
        %v9540 = vadd.f32 %v8723, %v9428
        %v9541 = vadd.f32 %v8728, %v9433
        %v9542 = vadd.f32 %v8731, %v9436
        %v9543 = vadd.f32 %v8736, %v9441
        %v9544 = vadd.f32 %v8739, %v9444
        %v9545 = vadd.f32 %v8744, %v9449
        %v9546 = vadd.f32 %v8747, %v9452
        %v9547 = vadd.f32 %v8752, %v9457
        %v9548 = vadd.f32 %v8755, %v9460
        %v9549 = vadd.f32 %v8760, %v9465
        %v9550 = vadd.f32 %v8763, %v9468
        %v9551 = vadd.f32 %v8768, %v9473
        %v9552 = vadd.f32 %v8771, %v9476
        %v9553 = vadd.f32 %v8776, %v9481
        %v9554 = vadd.f32 %v8779, %v9484
        %v9555 = vadd.f32 %v8784, %v9489
        %v9556 = vadd.f32 %v8787, %v9492
        %v9557 = vadd.f32 %v8792, %v9497
        %v9558 = vadd.f32 %v8795, %v9500
        %v9559 = vadd.f32 %v8800, %v9505
        %v9560 = vadd.f32 %v8803, %v9508
        %v9561 = vadd.f32 %v8808, %v9513
        %v9562 = vadd.f32 %v8811, %v9516
        %v9563 = vadd.f32 %v8816, %v9521
        %v9564 = vadd.f32 %v8819, %v9524
        %v9565 = vadd.f32 %v8824, %v9529
        %v9566 = vadd.f32 %v8827, %v9532
        %v9567 = vld [vmem:[%s6300] sm:$0xe]
        %v9568 = vld [vmem:[%s6300 + $0xc] sm:$0xe]
        %v9569 = vld [vmem:[%s6300 + $0x18] sm:$0xe]
        %v9570 = vld [vmem:[%s6300 + $0x24] sm:$0xe]
        %v9571 = vld [vmem:[%s6300 + $0x30] sm:$0xe]
        %v9572 = vld [vmem:[%s6300 + $0x3c] sm:$0xe]
        %v9573 = vld [vmem:[%s6300 + $0x48] sm:$0xe]
        %v9574 = vld [vmem:[%s6300 + $0x54] sm:$0xe]
        %v9575 = vld [vmem:[%s6300 + $0x60] sm:$0xe]
        %v9576 = vld [vmem:[%s6300 + $0x6c] sm:$0xe]
        %v9577 = vld [vmem:[%s6300 + $0x78] sm:$0xe]
        %v9578 = vld [vmem:[%s6300 + $0x84] sm:$0xe]
        %v9579 = vld [vmem:[%s6300 + $0x90] sm:$0xe]
        %v9580 = vld [vmem:[%s6300 + $0x9c] sm:$0xe]
        %v9581 = vld [vmem:[%s6300 + $0xa8] sm:$0xe]
        %v9582 = vld [vmem:[%s6300 + $0xb4] sm:$0xe]
        %v9583 = vld [vmem:[%s243 + $0xf0] sm:$0xf]
        %v9584 = vld [vmem:[%s243 + $0xf4] sm:$0xf]
        %v9585 = vld [vmem:[%s243 + $0xf8] sm:$0xf]
        %v9586 = vld [vmem:[%s243 + $0xfc] sm:$0xf]
        %v9635 = vrot.slane %v9567, 5
        %v9636 = vrot.slane %v9635, 4
        %v9637 = vrot.slane %v8831, 5
        %v9638 = vsel %vm3152, %v9636, %v9637
        %v9639 = vrot.slane %v9637, 4
        %v9640 = vrot.slane %v8832, 5
        %v9641 = vsel %vm3152, %v9639, %v9640
        %v9642 = vrot.slane %v9568, 5
        %v9643 = vrot.slane %v9642, 4
        %v9644 = vrot.slane %v8834, 5
        %v9645 = vsel %vm3152, %v9643, %v9644
        %v9646 = vrot.slane %v9644, 4
        %v9647 = vrot.slane %v8835, 5
        %v9648 = vsel %vm3152, %v9646, %v9647
        %v9649 = vrot.slane %v9569, 5
        %v9650 = vrot.slane %v9649, 4
        %v9651 = vrot.slane %v8837, 5
        %v9652 = vsel %vm3152, %v9650, %v9651
        %v9653 = vrot.slane %v9651, 4
        %v9654 = vrot.slane %v8838, 5
        %v9655 = vsel %vm3152, %v9653, %v9654
        %v9656 = vrot.slane %v9570, 5
        %v9657 = vrot.slane %v9656, 4
        %v9658 = vrot.slane %v8840, 5
        %v9659 = vsel %vm3152, %v9657, %v9658
        %v9660 = vrot.slane %v9658, 4
        %v9661 = vrot.slane %v8841, 5
        %v9662 = vsel %vm3152, %v9660, %v9661
        %v9663 = vrot.slane %v9571, 5
        %v9664 = vrot.slane %v9663, 4
        %v9665 = vrot.slane %v8843, 5
        %v9666 = vsel %vm3152, %v9664, %v9665
        %v9667 = vrot.slane %v9665, 4
        %v9668 = vrot.slane %v8844, 5
        %v9669 = vsel %vm3152, %v9667, %v9668
        %v9670 = vrot.slane %v9572, 5
        %v9671 = vrot.slane %v9670, 4
        %v9672 = vrot.slane %v8846, 5
        %v9673 = vsel %vm3152, %v9671, %v9672
        %v9674 = vrot.slane %v9672, 4
        %v9675 = vrot.slane %v8847, 5
        %v9676 = vsel %vm3152, %v9674, %v9675
        %v9677 = vrot.slane %v9573, 5
        %v9678 = vrot.slane %v9677, 4
        %v9679 = vrot.slane %v8849, 5
        %v9680 = vsel %vm3152, %v9678, %v9679
        %v9681 = vrot.slane %v9679, 4
        %v9682 = vrot.slane %v8850, 5
        %v9683 = vsel %vm3152, %v9681, %v9682
        %v9684 = vrot.slane %v9574, 5
        %v9685 = vrot.slane %v9684, 4
        %v9686 = vrot.slane %v8852, 5
        %v9687 = vsel %vm3152, %v9685, %v9686
        %v9688 = vrot.slane %v9686, 4
        %v9689 = vrot.slane %v8853, 5
        %v9690 = vsel %vm3152, %v9688, %v9689
        %v9691 = vrot.slane %v9575, 5
        %v9692 = vrot.slane %v9691, 4
        %v9693 = vrot.slane %v8855, 5
        %v9694 = vsel %vm3152, %v9692, %v9693
        %v9695 = vrot.slane %v9693, 4
        %v9696 = vrot.slane %v8856, 5
        %v9697 = vsel %vm3152, %v9695, %v9696
        %v9698 = vrot.slane %v9576, 5
        %v9699 = vrot.slane %v9698, 4
        %v9700 = vrot.slane %v8858, 5
        %v9701 = vsel %vm3152, %v9699, %v9700
        %v9702 = vrot.slane %v9700, 4
        %v9703 = vrot.slane %v8859, 5
        %v9704 = vsel %vm3152, %v9702, %v9703
        %v9705 = vrot.slane %v9577, 5
        %v9706 = vrot.slane %v9705, 4
        %v9707 = vrot.slane %v8861, 5
        %v9708 = vsel %vm3152, %v9706, %v9707
        %v9709 = vrot.slane %v9707, 4
        %v9710 = vrot.slane %v8862, 5
        %v9711 = vsel %vm3152, %v9709, %v9710
        %v9712 = vrot.slane %v9578, 5
        %v9713 = vrot.slane %v9712, 4
        %v9714 = vrot.slane %v8864, 5
        %v9715 = vsel %vm3152, %v9713, %v9714
        %v9716 = vrot.slane %v9714, 4
        %v9717 = vrot.slane %v8865, 5
        %v9718 = vsel %vm3152, %v9716, %v9717
        %v9719 = vrot.slane %v9579, 5
        %v9720 = vrot.slane %v9719, 4
        %v9721 = vrot.slane %v8867, 5
        %v9722 = vsel %vm3152, %v9720, %v9721
        %v9723 = vrot.slane %v9721, 4
        %v9724 = vrot.slane %v8868, 5
        %v9725 = vsel %vm3152, %v9723, %v9724
        %v9726 = vrot.slane %v9580, 5
        %v9727 = vrot.slane %v9726, 4
        %v9728 = vrot.slane %v8870, 5
        %v9729 = vsel %vm3152, %v9727, %v9728
        %v9730 = vrot.slane %v9728, 4
        %v9731 = vrot.slane %v8871, 5
        %v9732 = vsel %vm3152, %v9730, %v9731
        %v9733 = vrot.slane %v9581, 5
        %v9734 = vrot.slane %v9733, 4
        %v9735 = vrot.slane %v8873, 5
        %v9736 = vsel %vm3152, %v9734, %v9735
        %v9737 = vrot.slane %v9735, 4
        %v9738 = vrot.slane %v8874, 5
        %v9739 = vsel %vm3152, %v9737, %v9738
        %v9740 = vrot.slane %v9582, 5
        %v9741 = vrot.slane %v9740, 4
        %v9742 = vrot.slane %v8876, 5
        %v9743 = vsel %vm3152, %v9741, %v9742
        %v9744 = vrot.slane %v9742, 4
        %v9745 = vrot.slane %v8877, 5
        %v9746 = vsel %vm3152, %v9744, %v9745
        %v9747 = vunpack.c.l.b16 %v9638
        %v9748 = vunpack.c.l.b16 %v9641
        %v9749 = vunpack.c.l.b16 %v9645
        %v9750 = vunpack.c.l.b16 %v9648
        %v9751 = vunpack.c.l.b16 %v9652
        %v9752 = vunpack.c.l.b16 %v9655
        %v9753 = vunpack.c.l.b16 %v9659
        %v9754 = vunpack.c.l.b16 %v9662
        %v9755 = vunpack.c.l.b16 %v9666
        %v9756 = vunpack.c.l.b16 %v9669
        %v9757 = vunpack.c.l.b16 %v9673
        %v9758 = vunpack.c.l.b16 %v9676
        %v9759 = vunpack.c.l.b16 %v9680
        %v9760 = vunpack.c.l.b16 %v9683
        %v9761 = vunpack.c.l.b16 %v9687
        %v9762 = vunpack.c.l.b16 %v9690
        %v9763 = vunpack.c.l.b16 %v9694
        %v9764 = vunpack.c.l.b16 %v9697
        %v9765 = vunpack.c.l.b16 %v9701
        %v9766 = vunpack.c.l.b16 %v9704
        %v9767 = vunpack.c.l.b16 %v9708
        %v9768 = vunpack.c.l.b16 %v9711
        %v9769 = vunpack.c.l.b16 %v9715
        %v9770 = vunpack.c.l.b16 %v9718
        %v9771 = vunpack.c.l.b16 %v9722
        %v9772 = vunpack.c.l.b16 %v9725
        %v9773 = vunpack.c.l.b16 %v9729
        %v9774 = vunpack.c.l.b16 %v9732
        %v9775 = vunpack.c.l.b16 %v9736
        %v9776 = vunpack.c.l.b16 %v9739
        %v9777 = vunpack.c.l.b16 %v9743
        %v9778 = vunpack.c.l.b16 %v9746
        %v9779 = vpack.c.b16 %v9748, %v9747
        %v9780 = vpack.c.b16 %v9750, %v9749
        %v9781 = vpack.c.b16 %v9752, %v9751
        %v9782 = vpack.c.b16 %v9754, %v9753
        %v9783 = vpack.c.b16 %v9756, %v9755
        %v9784 = vpack.c.b16 %v9758, %v9757
        %v9785 = vpack.c.b16 %v9760, %v9759
        %v9786 = vpack.c.b16 %v9762, %v9761
        %v9787 = vpack.c.b16 %v9764, %v9763
        %v9788 = vpack.c.b16 %v9766, %v9765
        %v9789 = vpack.c.b16 %v9768, %v9767
        %v9790 = vpack.c.b16 %v9770, %v9769
        %v9791 = vpack.c.b16 %v9772, %v9771
        %v9792 = vpack.c.b16 %v9774, %v9773
        %v9793 = vpack.c.b16 %v9776, %v9775
        %v9794 = vpack.c.b16 %v9778, %v9777
        %v9799 = vunpack.c.l.b16 %v9583
        %v9800 = vunpack.c.l.b16 %v9584
        %v9801 = vunpack.c.l.b16 %v9585
        %v9802 = vunpack.c.l.b16 %v9586
        %v9803 = vpack.c.b16 %v9800, %v9799
        %v9804 = vpack.c.b16 %v9802, %v9801
        %v9808 = vsel %vm760, %v9779, 0
        %v9811 = vsel %vm760, %v9780, 0
        %v9814 = vsel %vm760, %v9781, 0
        %v9817 = vsel %vm760, %v9782, 0
        %v9820 = vsel %vm760, %v9783, 0
        %v9823 = vsel %vm760, %v9784, 0
        %v9826 = vsel %vm760, %v9785, 0
        %v9829 = vsel %vm760, %v9786, 0
        %v9832 = vsel %vm760, %v9787, 0
        %v9835 = vsel %vm760, %v9788, 0
        %v9838 = vsel %vm760, %v9789, 0
        %v9841 = vsel %vm760, %v9790, 0
        %v9844 = vsel %vm760, %v9791, 0
        %v9847 = vsel %vm760, %v9792, 0
        %v9850 = vsel %vm760, %v9793, 0
        %v9853 = vsel %vm760, %v9794, 0
        %9855 = vmatprep.subr.bf16.mxu0 0
        %9856 = vmatpush1.bf16.msra.mxu0 %v9803
        %9857 = vmatprep.subr.bf16.mxu0 0
        %9858 = vmatpush1.bf16.msra.mxu0 %v9804
        %9859 = vmatprep.subr.bf16.mxu0 0
        %9860 = vmatpush1.bf16.msra.mxu0 0
        %9861 = vmatprep.subr.bf16.mxu0 0
        %9862 = vmatpush1.bf16.msra.mxu0 0
        %9863 = vmatprep.subr.bf16.mxu0 0
        %9864 = vmatpush1.bf16.msra.mxu0 0
        %9865 = vmatprep.subr.bf16.mxu0 0
        %9866 = vmatpush1.bf16.msra.mxu0 0
        %9867 = vmatprep.subr.bf16.mxu0 0
        %9868 = vmatpush1.bf16.msra.mxu0 0
        %9869 = vmatprep.subr.bf16.mxu0 0
        %9870 = vmatpush1.bf16.msra.mxu0 0
        %9871 = vmatprep.subr.bf16.mxu0 0
        %9872 = vmatpush1.bf16.msra.mxu0 0
        %9873 = vmatprep.subr.bf16.mxu0 0
        %9874 = vmatpush1.bf16.msra.mxu0 0
        %9875 = vmatprep.subr.bf16.mxu0 0
        %9876 = vmatpush1.bf16.msra.mxu0 0
        %9877 = vmatprep.subr.bf16.mxu0 0
        %9878 = vmatpush1.bf16.msra.mxu0 0
        %9879 = vmatprep.subr.bf16.mxu0 0
        %9880 = vmatpush1.bf16.msra.mxu0 0
        %9881 = vmatprep.subr.bf16.mxu0 0
        %9882 = vmatpush1.bf16.msra.mxu0 0
        %9883 = vmatprep.subr.bf16.mxu0 0
        %9884 = vmatpush1.bf16.msra.mxu0 0
        %9885 = vmatprep.subr.bf16.mxu0 0
        %9886 = vmatpush1.bf16.msra.mxu0 0
        %9887 = vmatprep.mubr.bf16.mxu0 0
        %9888 = vmatmul.mubr.bf16.gmra.mrb[0].mxu0 %v9808
        %v9889 = vpop.f32.mrb[0].mxu0
        %v9890 = vadd.f32 0.0, %v9889
        %v9891 = vpop.f32.mrb[0].mxu0
        %v9892 = vpop.f32.mrb[0].mxu0
        %v9893 = vadd.f32 0.0, %v9892
        %v9894 = vpop.f32.mrb[0].mxu0
        %9895 = vmatprep.mubr.bf16.mxu0 0
        %9896 = vmatmul.mubr.bf16.gmra.mrb[0].mxu0 %v9811
        %v9897 = vpop.f32.mrb[0].mxu0
        %v9898 = vadd.f32 0.0, %v9897
        %v9899 = vpop.f32.mrb[0].mxu0
        %v9900 = vpop.f32.mrb[0].mxu0
        %v9901 = vadd.f32 0.0, %v9900
        %v9902 = vpop.f32.mrb[0].mxu0
        %9903 = vmatprep.mubr.bf16.mxu0 0
        %9904 = vmatmul.mubr.bf16.gmra.mrb[0].mxu0 %v9814
        %v9905 = vpop.f32.mrb[0].mxu0
        %v9906 = vadd.f32 0.0, %v9905
        %v9907 = vpop.f32.mrb[0].mxu0
        %v9908 = vpop.f32.mrb[0].mxu0
        %v9909 = vadd.f32 0.0, %v9908
        %v9910 = vpop.f32.mrb[0].mxu0
        %9911 = vmatprep.mubr.bf16.mxu0 0
        %9912 = vmatmul.mubr.bf16.gmra.mrb[0].mxu0 %v9817
        %v9913 = vpop.f32.mrb[0].mxu0
        %v9914 = vadd.f32 0.0, %v9913
        %v9915 = vpop.f32.mrb[0].mxu0
        %v9916 = vpop.f32.mrb[0].mxu0
        %v9917 = vadd.f32 0.0, %v9916
        %v9918 = vpop.f32.mrb[0].mxu0
        %9919 = vmatprep.mubr.bf16.mxu0 0
        %9920 = vmatmul.mubr.bf16.gmra.mrb[0].mxu0 %v9820
        %v9921 = vpop.f32.mrb[0].mxu0
        %v9922 = vadd.f32 0.0, %v9921
        %v9923 = vpop.f32.mrb[0].mxu0
        %v9924 = vpop.f32.mrb[0].mxu0
        %v9925 = vadd.f32 0.0, %v9924
        %v9926 = vpop.f32.mrb[0].mxu0
        %9927 = vmatprep.mubr.bf16.mxu0 0
        %9928 = vmatmul.mubr.bf16.gmra.mrb[0].mxu0 %v9823
        %v9929 = vpop.f32.mrb[0].mxu0
        %v9930 = vadd.f32 0.0, %v9929
        %v9931 = vpop.f32.mrb[0].mxu0
        %v9932 = vpop.f32.mrb[0].mxu0
        %v9933 = vadd.f32 0.0, %v9932
        %v9934 = vpop.f32.mrb[0].mxu0
        %9935 = vmatprep.mubr.bf16.mxu0 0
        %9936 = vmatmul.mubr.bf16.gmra.mrb[0].mxu0 %v9826
        %v9937 = vpop.f32.mrb[0].mxu0
        %v9938 = vadd.f32 0.0, %v9937
        %v9939 = vpop.f32.mrb[0].mxu0
        %v9940 = vpop.f32.mrb[0].mxu0
        %v9941 = vadd.f32 0.0, %v9940
        %v9942 = vpop.f32.mrb[0].mxu0
        %9943 = vmatprep.mubr.bf16.mxu0 0
        %9944 = vmatmul.mubr.bf16.gmra.mrb[0].mxu0 %v9829
        %v9945 = vpop.f32.mrb[0].mxu0
        %v9946 = vadd.f32 0.0, %v9945
        %v9947 = vpop.f32.mrb[0].mxu0
        %v9948 = vpop.f32.mrb[0].mxu0
        %v9949 = vadd.f32 0.0, %v9948
        %v9950 = vpop.f32.mrb[0].mxu0
        %9951 = vmatprep.mubr.bf16.mxu0 0
        %9952 = vmatmul.mubr.bf16.gmra.mrb[0].mxu0 %v9832
        %v9953 = vpop.f32.mrb[0].mxu0
        %v9954 = vadd.f32 0.0, %v9953
        %v9955 = vpop.f32.mrb[0].mxu0
        %v9956 = vpop.f32.mrb[0].mxu0
        %v9957 = vadd.f32 0.0, %v9956
        %v9958 = vpop.f32.mrb[0].mxu0
        %9959 = vmatprep.mubr.bf16.mxu0 0
        %9960 = vmatmul.mubr.bf16.gmra.mrb[0].mxu0 %v9835
        %v9961 = vpop.f32.mrb[0].mxu0
        %v9962 = vadd.f32 0.0, %v9961
        %v9963 = vpop.f32.mrb[0].mxu0
        %v9964 = vpop.f32.mrb[0].mxu0
        %v9965 = vadd.f32 0.0, %v9964
        %v9966 = vpop.f32.mrb[0].mxu0
        %9967 = vmatprep.mubr.bf16.mxu0 0
        %9968 = vmatmul.mubr.bf16.gmra.mrb[0].mxu0 %v9838
        %v9969 = vpop.f32.mrb[0].mxu0
        %v9970 = vadd.f32 0.0, %v9969
        %v9971 = vpop.f32.mrb[0].mxu0
        %v9972 = vpop.f32.mrb[0].mxu0
        %v9973 = vadd.f32 0.0, %v9972
        %v9974 = vpop.f32.mrb[0].mxu0
        %9975 = vmatprep.mubr.bf16.mxu0 0
        %9976 = vmatmul.mubr.bf16.gmra.mrb[0].mxu0 %v9841
        %v9977 = vpop.f32.mrb[0].mxu0
        %v9978 = vadd.f32 0.0, %v9977
        %v9979 = vpop.f32.mrb[0].mxu0
        %v9980 = vpop.f32.mrb[0].mxu0
        %v9981 = vadd.f32 0.0, %v9980
        %v9982 = vpop.f32.mrb[0].mxu0
        %9983 = vmatprep.mubr.bf16.mxu0 0
        %9984 = vmatmul.mubr.bf16.gmra.mrb[0].mxu0 %v9844
        %v9985 = vpop.f32.mrb[0].mxu0
        %v9986 = vadd.f32 0.0, %v9985
        %v9987 = vpop.f32.mrb[0].mxu0
        %v9988 = vpop.f32.mrb[0].mxu0
        %v9989 = vadd.f32 0.0, %v9988
        %v9990 = vpop.f32.mrb[0].mxu0
        %9991 = vmatprep.mubr.bf16.mxu0 0
        %9992 = vmatmul.mubr.bf16.gmra.mrb[0].mxu0 %v9847
        %v9993 = vpop.f32.mrb[0].mxu0
        %v9994 = vadd.f32 0.0, %v9993
        %v9995 = vpop.f32.mrb[0].mxu0
        %v9996 = vpop.f32.mrb[0].mxu0
        %v9997 = vadd.f32 0.0, %v9996
        %v9998 = vpop.f32.mrb[0].mxu0
        %9999 = vmatprep.mubr.bf16.mxu0 0
        %10000 = vmatmul.mubr.bf16.gmra.mrb[0].mxu0 %v9850
        %v10001 = vpop.f32.mrb[0].mxu0
        %v10002 = vadd.f32 0.0, %v10001
        %v10003 = vpop.f32.mrb[0].mxu0
        %v10004 = vpop.f32.mrb[0].mxu0
        %v10005 = vadd.f32 0.0, %v10004
        %v10006 = vpop.f32.mrb[0].mxu0
        %10007 = vmatprep.mubr.bf16.mxu0 0
        %10008 = vmatmul.mubr.bf16.gmra.mrb[0].mxu0 %v9853
        %v10009 = vpop.f32.mrb[0].mxu0
        %v10010 = vadd.f32 0.0, %v10009
        %v10011 = vpop.f32.mrb[0].mxu0
        %v10012 = vpop.f32.mrb[0].mxu0
        %v10013 = vadd.f32 0.0, %v10012
        %v10014 = vpop.f32.mrb[0].mxu0
        %10015 = vdwg.mxu0
        %v10016 = vadd.f32 %v9535, %v9890
        %v10017 = vadd.f32 %v9536, %v9893
        %v10018 = vadd.f32 %v9537, %v9898
        %v10019 = vadd.f32 %v9538, %v9901
        %v10020 = vadd.f32 %v9539, %v9906
        %v10021 = vadd.f32 %v9540, %v9909
        %v10022 = vadd.f32 %v9541, %v9914
        %v10023 = vadd.f32 %v9542, %v9917
        %v10024 = vadd.f32 %v9543, %v9922
        %v10025 = vadd.f32 %v9544, %v9925
        %v10026 = vadd.f32 %v9545, %v9930
        %v10027 = vadd.f32 %v9546, %v9933
        %v10028 = vadd.f32 %v9547, %v9938
        %v10029 = vadd.f32 %v9548, %v9941
        %v10030 = vadd.f32 %v9549, %v9946
        %v10031 = vadd.f32 %v9550, %v9949
        %v10032 = vadd.f32 %v9551, %v9954
        %v10033 = vadd.f32 %v9552, %v9957
        %v10034 = vadd.f32 %v9553, %v9962
        %v10035 = vadd.f32 %v9554, %v9965
        %v10036 = vadd.f32 %v9555, %v9970
        %v10037 = vadd.f32 %v9556, %v9973
        %v10038 = vadd.f32 %v9557, %v9978
        %v10039 = vadd.f32 %v9558, %v9981
        %v10040 = vadd.f32 %v9559, %v9986
        %v10041 = vadd.f32 %v9560, %v9989
        %v10042 = vadd.f32 %v9561, %v9994
        %v10043 = vadd.f32 %v9562, %v9997
        %v10044 = vadd.f32 %v9563, %v10002
        %v10045 = vadd.f32 %v9564, %v10005
        %v10046 = vadd.f32 %v9565, %v10010
        %v10047 = vadd.f32 %v9566, %v10013
        %v10048 = vpack.c.bf16 %v10017, %v10016
        %v10049 = vpack.c.bf16 %v10019, %v10018
        %v10050 = vpack.c.bf16 %v10021, %v10020
        %v10051 = vpack.c.bf16 %v10023, %v10022
        %v10052 = vpack.c.bf16 %v10025, %v10024
        %v10053 = vpack.c.bf16 %v10027, %v10026
        %v10054 = vpack.c.bf16 %v10029, %v10028
        %v10055 = vpack.c.bf16 %v10031, %v10030
        %v10056 = vpack.c.bf16 %v10033, %v10032
        %v10057 = vpack.c.bf16 %v10035, %v10034
        %v10058 = vpack.c.bf16 %v10037, %v10036
        %v10059 = vpack.c.bf16 %v10039, %v10038
        %v10060 = vpack.c.bf16 %v10041, %v10040
        %v10061 = vpack.c.bf16 %v10043, %v10042
        %v10062 = vpack.c.bf16 %v10045, %v10044
        %v10063 = vpack.c.bf16 %v10047, %v10046
        %v10080 = vunpack.c.l.b16 %v10048
        %v10081 = vunpack.c.h.b16 %v10048
        %v10082 = vunpack.c.l.b16 %v10049
        %v10083 = vunpack.c.h.b16 %v10049
        %v10084 = vunpack.c.l.b16 %v10050
        %v10085 = vunpack.c.h.b16 %v10050
        %v10086 = vunpack.c.l.b16 %v10051
        %v10087 = vunpack.c.h.b16 %v10051
        %v10088 = vunpack.c.l.b16 %v10052
        %v10089 = vunpack.c.h.b16 %v10052
        %v10090 = vunpack.c.l.b16 %v10053
        %v10091 = vunpack.c.h.b16 %v10053
        %v10092 = vunpack.c.l.b16 %v10054
        %v10093 = vunpack.c.h.b16 %v10054
        %v10094 = vunpack.c.l.b16 %v10055
        %v10095 = vunpack.c.h.b16 %v10055
        %v10096 = vunpack.c.l.b16 %v10056
        %v10097 = vunpack.c.h.b16 %v10056
        %v10098 = vunpack.c.l.b16 %v10057
        %v10099 = vunpack.c.h.b16 %v10057
        %v10100 = vunpack.c.l.b16 %v10058
        %v10101 = vunpack.c.h.b16 %v10058
        %v10102 = vunpack.c.l.b16 %v10059
        %v10103 = vunpack.c.h.b16 %v10059
        %v10104 = vunpack.c.l.b16 %v10060
        %v10105 = vunpack.c.h.b16 %v10060
        %v10106 = vunpack.c.l.b16 %v10061
        %v10107 = vunpack.c.h.b16 %v10061
        %v10108 = vunpack.c.l.b16 %v10062
        %v10109 = vunpack.c.h.b16 %v10062
        %v10110 = vunpack.c.l.b16 %v10063
        %v10111 = vunpack.c.h.b16 %v10063
        %v10112 = vpack.c.b16 %v10080, %v10080
        %v10113 = vpack.c.b16 %v10081, %v10081
        %v10114 = vpack.c.b16 %v10082, %v10082
        %v10115 = vpack.c.b16 %v10083, %v10083
        %v10116 = vpack.c.b16 %v10084, %v10084
        %v10117 = vpack.c.b16 %v10085, %v10085
        %v10118 = vpack.c.b16 %v10086, %v10086
        %v10119 = vpack.c.b16 %v10087, %v10087
        %v10120 = vpack.c.b16 %v10088, %v10088
        %v10121 = vpack.c.b16 %v10089, %v10089
        %v10122 = vpack.c.b16 %v10090, %v10090
        %v10123 = vpack.c.b16 %v10091, %v10091
        %v10124 = vpack.c.b16 %v10092, %v10092
        %v10125 = vpack.c.b16 %v10093, %v10093
        %v10126 = vpack.c.b16 %v10094, %v10094
        %v10127 = vpack.c.b16 %v10095, %v10095
        %v10128 = vpack.c.b16 %v10096, %v10096
        %v10129 = vpack.c.b16 %v10097, %v10097
        %v10130 = vpack.c.b16 %v10098, %v10098
        %v10131 = vpack.c.b16 %v10099, %v10099
        %v10132 = vpack.c.b16 %v10100, %v10100
        %v10133 = vpack.c.b16 %v10101, %v10101
        %v10134 = vpack.c.b16 %v10102, %v10102
        %v10135 = vpack.c.b16 %v10103, %v10103
        %v10136 = vpack.c.b16 %v10104, %v10104
        %v10137 = vpack.c.b16 %v10105, %v10105
        %v10138 = vpack.c.b16 %v10106, %v10106
        %v10139 = vpack.c.b16 %v10107, %v10107
        %v10140 = vpack.c.b16 %v10108, %v10108
        %v10141 = vpack.c.b16 %v10109, %v10109
        %v10142 = vpack.c.b16 %v10110, %v10110
        %v10143 = vpack.c.b16 %v10111, %v10111
        %s10176 = scalar_lea.vmem %s218, 384 [#allocation2]
        %10177 = vst [vmem:[%s10176] sm:$0xf] %v10112
        %10178 = vst [vmem:[%s10176 + $0x4] sm:$0xf] %v10113
        %10179 = vst [vmem:[%s10176 + $0x8] sm:$0xf] %v10114
        %10180 = vst [vmem:[%s10176 + $0xc] sm:$0xf] %v10115
        %10181 = vst [vmem:[%s10176 + $0x10] sm:$0xf] %v10116
        %10182 = vst [vmem:[%s10176 + $0x14] sm:$0xf] %v10117
        %10183 = vst [vmem:[%s10176 + $0x18] sm:$0xf] %v10118
        %10184 = vst [vmem:[%s10176 + $0x1c] sm:$0xf] %v10119
        %10185 = vst [vmem:[%s10176 + $0x20] sm:$0xf] %v10120
        %10186 = vst [vmem:[%s10176 + $0x24] sm:$0xf] %v10121
        %10187 = vst [vmem:[%s10176 + $0x28] sm:$0xf] %v10122
        %10188 = vst [vmem:[%s10176 + $0x2c] sm:$0xf] %v10123
        %10189 = vst [vmem:[%s10176 + $0x30] sm:$0xf] %v10124
        %10190 = vst [vmem:[%s10176 + $0x34] sm:$0xf] %v10125
        %10191 = vst [vmem:[%s10176 + $0x38] sm:$0xf] %v10126
        %10192 = vst [vmem:[%s10176 + $0x3c] sm:$0xf] %v10127
        %10193 = vst [vmem:[%s10176 + $0x40] sm:$0xf] %v10128
        %10194 = vst [vmem:[%s10176 + $0x44] sm:$0xf] %v10129
        %10195 = vst [vmem:[%s10176 + $0x48] sm:$0xf] %v10130
        %10196 = vst [vmem:[%s10176 + $0x4c] sm:$0xf] %v10131
        %10197 = vst [vmem:[%s10176 + $0x50] sm:$0xf] %v10132
        %10198 = vst [vmem:[%s10176 + $0x54] sm:$0xf] %v10133
        %10199 = vst [vmem:[%s10176 + $0x58] sm:$0xf] %v10134
        %10200 = vst [vmem:[%s10176 + $0x5c] sm:$0xf] %v10135
        %10201 = vst [vmem:[%s10176 + $0x60] sm:$0xf] %v10136
        %10202 = vst [vmem:[%s10176 + $0x64] sm:$0xf] %v10137
        %10203 = vst [vmem:[%s10176 + $0x68] sm:$0xf] %v10138
        %10204 = vst [vmem:[%s10176 + $0x6c] sm:$0xf] %v10139
        %10205 = vst [vmem:[%s10176 + $0x70] sm:$0xf] %v10140
        %10206 = vst [vmem:[%s10176 + $0x74] sm:$0xf] %v10141
        %10207 = vst [vmem:[%s10176 + $0x78] sm:$0xf] %v10142
        %10208 = vst [vmem:[%s10176 + $0x7c] sm:$0xf] %v10143
        %v10209 = vadd.f32 %v10016, %v10017
        %v10210 = vadd.f32 %v10209, %v10018
        %v10211 = vadd.f32 %v10210, %v10019
        %v10212 = vadd.f32 %v10211, %v10020
        %v10213 = vadd.f32 %v10212, %v10021
        %v10214 = vadd.f32 %v10213, %v10022
        %v10215 = vadd.f32 %v10214, %v10023
        %v10216 = vadd.f32 %v10215, %v10024
        %v10217 = vadd.f32 %v10216, %v10025
        %v10218 = vadd.f32 %v10217, %v10026
        %v10219 = vadd.f32 %v10218, %v10027
        %v10220 = vadd.f32 %v10219, %v10028
        %v10221 = vadd.f32 %v10220, %v10029
        %v10222 = vadd.f32 %v10221, %v10030
        %v10223 = vadd.f32 %v10222, %v10031
        %v10224 = vadd.f32 %v10223, %v10032
        %v10225 = vadd.f32 %v10224, %v10033
        %v10226 = vadd.f32 %v10225, %v10034
        %v10227 = vadd.f32 %v10226, %v10035
        %v10228 = vadd.f32 %v10227, %v10036
        %v10229 = vadd.f32 %v10228, %v10037
        %v10230 = vadd.f32 %v10229, %v10038
        %v10231 = vadd.f32 %v10230, %v10039
        %v10232 = vadd.f32 %v10231, %v10040
        %v10233 = vadd.f32 %v10232, %v10041
        %v10234 = vadd.f32 %v10233, %v10042
        %v10235 = vadd.f32 %v10234, %v10043
        %v10236 = vadd.f32 %v10235, %v10044
        %v10237 = vadd.f32 %v10236, %v10045
        %v10238 = vadd.f32 %v10237, %v10046
        %v10239 = vadd.f32 %v10238, %v10047
        %v10240 = vrot.slane %v10239, 4
        %v10241 = vadd.f32 %v10239, %v10240
        %v10242 = vrot.slane %v10241, 2
        %v10243 = vadd.f32 %v10241, %v10242
        %v10244 = vrot.slane %v10243, 1
        %v10245 = vadd.f32 %v10243, %v10244
        %v10246 = vadd.f32 %v7605, %v10245
        %v10247 = vmul.f32 %v10016, %v10016
        %v10248 = vmul.f32 %v10017, %v10017
        %v10249 = vmul.f32 %v10018, %v10018
        %v10250 = vmul.f32 %v10019, %v10019
        %v10251 = vmul.f32 %v10020, %v10020
        %v10252 = vmul.f32 %v10021, %v10021
        %v10253 = vmul.f32 %v10022, %v10022
        %v10254 = vmul.f32 %v10023, %v10023
        %v10255 = vmul.f32 %v10024, %v10024
        %v10256 = vmul.f32 %v10025, %v10025
        %v10257 = vmul.f32 %v10026, %v10026
        %v10258 = vmul.f32 %v10027, %v10027
        %v10259 = vmul.f32 %v10028, %v10028
        %v10260 = vmul.f32 %v10029, %v10029
        %v10261 = vmul.f32 %v10030, %v10030
        %v10262 = vmul.f32 %v10031, %v10031
        %v10263 = vmul.f32 %v10032, %v10032
        %v10264 = vmul.f32 %v10033, %v10033
        %v10265 = vmul.f32 %v10034, %v10034
        %v10266 = vmul.f32 %v10035, %v10035
        %v10267 = vmul.f32 %v10036, %v10036
        %v10268 = vmul.f32 %v10037, %v10037
        %v10269 = vmul.f32 %v10038, %v10038
        %v10270 = vmul.f32 %v10039, %v10039
        %v10271 = vmul.f32 %v10040, %v10040
        %v10272 = vmul.f32 %v10041, %v10041
        %v10273 = vmul.f32 %v10042, %v10042
        %v10274 = vmul.f32 %v10043, %v10043
        %v10275 = vmul.f32 %v10044, %v10044
        %v10276 = vmul.f32 %v10045, %v10045
        %v10277 = vmul.f32 %v10046, %v10046
        %v10278 = vmul.f32 %v10047, %v10047
        %v10279 = vadd.f32 %v10247, %v10248
        %v10280 = vadd.f32 %v10279, %v10249
        %v10281 = vadd.f32 %v10280, %v10250
        %v10282 = vadd.f32 %v10281, %v10251
        %v10283 = vadd.f32 %v10282, %v10252
        %v10284 = vadd.f32 %v10283, %v10253
        %v10285 = vadd.f32 %v10284, %v10254
        %v10286 = vadd.f32 %v10285, %v10255
        %v10287 = vadd.f32 %v10286, %v10256
        %v10288 = vadd.f32 %v10287, %v10257
        %v10289 = vadd.f32 %v10288, %v10258
        %v10290 = vadd.f32 %v10289, %v10259
        %v10291 = vadd.f32 %v10290, %v10260
        %v10292 = vadd.f32 %v10291, %v10261
        %v10293 = vadd.f32 %v10292, %v10262
        %v10294 = vadd.f32 %v10293, %v10263
        %v10295 = vadd.f32 %v10294, %v10264
        %v10296 = vadd.f32 %v10295, %v10265
        %v10297 = vadd.f32 %v10296, %v10266
        %v10298 = vadd.f32 %v10297, %v10267
        %v10299 = vadd.f32 %v10298, %v10268
        %v10300 = vadd.f32 %v10299, %v10269
        %v10301 = vadd.f32 %v10300, %v10270
        %v10302 = vadd.f32 %v10301, %v10271
        %v10303 = vadd.f32 %v10302, %v10272
        %v10304 = vadd.f32 %v10303, %v10273
        %v10305 = vadd.f32 %v10304, %v10274
        %v10306 = vadd.f32 %v10305, %v10275
        %v10307 = vadd.f32 %v10306, %v10276
        %v10308 = vadd.f32 %v10307, %v10277
        %v10309 = vadd.f32 %v10308, %v10278
        %v10310 = vrot.slane %v10309, 4
        %v10311 = vadd.f32 %v10309, %v10310
        %v10312 = vrot.slane %v10311, 2
        %v10313 = vadd.f32 %v10311, %v10312
        %v10314 = vrot.slane %v10313, 1
        %v10315 = vadd.f32 %v10313, %v10314
        %v10316 = vadd.f32 %v7675, %v10315
        %10317 = vst [vmem:[%s249] sm:$0x1] %v10246
        %10318 = vst [vmem:[%s255] sm:$0x1] %v10316
        %s10319 = sand.u32 %s90, 1
        %s10320 = sand.u32 %s90, 1
        %s10321 = smul.addr %s10320, 512
        %s10322 = scalar_lea.vmem [#allocation2], %s10321
        %p10323 = scmp.lt.s32.totalorder %s20, 1
        %s10324 = scalar_select %p10323, %s20, 1
        %p10325 = scmp.lt.s32.totalorder %s21, 0
        %s10326 = scalar_select %p10325, %s21, 0
        %s10327 = sadd.s32 %s10326, %s10324
        %s10328 = scalar_lea.vmem %s3, %s10327
        %p10329 = scmp.lt.s32.totalorder %s20, 1
        %s10330 = scalar_select %p10329, %s20, 1
        %p10331 = scmp.lt.s32.totalorder %s21, 0
        %s10332 = scalar_select %p10331, %s21, 0
        %s10333 = sadd.s32 %s10332, %s10330
        %s10334 = scalar_lea.vmem %s4, %s10333
        // Predicated region
        $region29: #{up_forward.2} parent=27 // pred_check
          %p10335 = pneg %p100
        $region30: #{up_forward.2} parent=27 // pred_check_branch
          %10337 = sbr.rel (%p10335) target = $region32
        $region31: #{up_forward.2} parent=27 // pred_region
          %s10338 = smul.addr %s20, 32
          %s10339 = sadd.s32 %s21, %s10338
          %s10340 = smul.addr %s10339, 4
          %s10341 = scalar_lea.vmem %s2, %s10340
          // Predicated region
          $region33: #{up_forward.2} parent=31 // pred_check
            _
          $region34: #{up_forward.2} parent=31 // pred_check_branch
            %10343 = sbr.rel (0) target = $region36
          $region35: #{up_forward.2} parent=31 // pred_region
            // Predicated region
            $region37: #{up_forward.2} parent=35 // pred_check
              _
            $region38: #{up_forward.2} parent=35 // pred_check_branch
              %10345 = sbr.rel target = $region40
            $region39: #{up_forward.2} parent=35 // pred_region
              // Predicated region
              $region52: #{up_forward.2} parent=39 // pred_check
                _
              $region53: #{up_forward.2} parent=39 // pred_check_branch
                %10614 = sbr.rel (0) target = $region55
              $region54: #{up_forward.2} parent=39 // pred_region
                loop: start=0, step=1, limit=1
                $region56: #{up_forward.2} parent=54 // loop_pre_header
                  _
                $region57: #{up_forward.2} parent=54 // loop_header
                  %s10616 = sphi 0, %s10620
                  %p10617 = scmp.ge.s32.totalorder %s10616, 1
                  %s10621 = sphi %s10322, %s10322
                  %s10622 = sphi %s10341, %s10341
                $region58: #{up_forward.2} parent=54 // loop_header_branch
                  %10619 = sbr.rel (%p10617) target = $region62
                $region59: #{up_forward.2} parent=54 // loop_body
                  _
                $region60: #{up_forward.2} parent=54 // loop_footer
                  %s10620 = sadd.s32 1, %s10616
                $region61: #{up_forward.2} parent=54 // loop_footer_branch
                  %10615 = sbr.rel target = $region57
                $region62: #{up_forward.2} parent=54 // loop_exit
                  _
                loop: start=0, step=1, limit=1
                $region63: #{up_forward.2} parent=54 // loop_pre_header
                  _
                $region64: #{up_forward.2} parent=54 // loop_header
                  %s10625 = sphi 0, %s10629
                  %p10626 = scmp.ge.s32.totalorder %s10625, 1
                  %s10630 = sphi %s10322, %s10322
                  %s10631 = sphi %s10341, %s10341
                $region65: #{up_forward.2} parent=54 // loop_header_branch
                  %10628 = sbr.rel (%p10626) target = $region69
                $region66: #{up_forward.2} parent=54 // loop_body
                  %v10632 = vld [vmem:[%s10630] sm:$0xf]
                  %10633 = vst [vmem:[%s10631] sm:$0xf] %v10632
                  %v10634 = vld [vmem:[%s10630 + $0x4] sm:$0xf]
                  %10635 = vst [vmem:[%s10631 + $0x4] sm:$0xf] %v10634
                  %v10636 = vld [vmem:[%s10630 + $0x8] sm:$0xf]
                  %10637 = vst [vmem:[%s10631 + $0x8] sm:$0xf] %v10636
                  %v10638 = vld [vmem:[%s10630 + $0xc] sm:$0xf]
                  %10639 = vst [vmem:[%s10631 + $0xc] sm:$0xf] %v10638
                  %v10640 = vld [vmem:[%s10630 + $0x10] sm:$0xf]
                  %10641 = vst [vmem:[%s10631 + $0x10] sm:$0xf] %v10640
                  %v10642 = vld [vmem:[%s10630 + $0x14] sm:$0xf]
                  %10643 = vst [vmem:[%s10631 + $0x14] sm:$0xf] %v10642
                  %v10644 = vld [vmem:[%s10630 + $0x18] sm:$0xf]
                  %10645 = vst [vmem:[%s10631 + $0x18] sm:$0xf] %v10644
                  %v10646 = vld [vmem:[%s10630 + $0x1c] sm:$0xf]
                  %10647 = vst [vmem:[%s10631 + $0x1c] sm:$0xf] %v10646
                  %v10648 = vld [vmem:[%s10630 + $0x20] sm:$0xf]
                  %10649 = vst [vmem:[%s10631 + $0x20] sm:$0xf] %v10648
                  %v10650 = vld [vmem:[%s10630 + $0x24] sm:$0xf]
                  %10651 = vst [vmem:[%s10631 + $0x24] sm:$0xf] %v10650
                  %v10652 = vld [vmem:[%s10630 + $0x28] sm:$0xf]
                  %10653 = vst [vmem:[%s10631 + $0x28] sm:$0xf] %v10652
                  %v10654 = vld [vmem:[%s10630 + $0x2c] sm:$0xf]
                  %10655 = vst [vmem:[%s10631 + $0x2c] sm:$0xf] %v10654
                  %v10656 = vld [vmem:[%s10630 + $0x30] sm:$0xf]
                  %10657 = vst [vmem:[%s10631 + $0x30] sm:$0xf] %v10656
                  %v10658 = vld [vmem:[%s10630 + $0x34] sm:$0xf]
                  %10659 = vst [vmem:[%s10631 + $0x34] sm:$0xf] %v10658
                  %v10660 = vld [vmem:[%s10630 + $0x38] sm:$0xf]
                  %10661 = vst [vmem:[%s10631 + $0x38] sm:$0xf] %v10660
                  %v10662 = vld [vmem:[%s10630 + $0x3c] sm:$0xf]
                  %10663 = vst [vmem:[%s10631 + $0x3c] sm:$0xf] %v10662
                  %v10664 = vld [vmem:[%s10630 + $0x40] sm:$0xf]
                  %10665 = vst [vmem:[%s10631 + $0x40] sm:$0xf] %v10664
                  %v10666 = vld [vmem:[%s10630 + $0x44] sm:$0xf]
                  %10667 = vst [vmem:[%s10631 + $0x44] sm:$0xf] %v10666
                  %v10668 = vld [vmem:[%s10630 + $0x48] sm:$0xf]
                  %10669 = vst [vmem:[%s10631 + $0x48] sm:$0xf] %v10668
                  %v10670 = vld [vmem:[%s10630 + $0x4c] sm:$0xf]
                  %10671 = vst [vmem:[%s10631 + $0x4c] sm:$0xf] %v10670
                  %v10672 = vld [vmem:[%s10630 + $0x50] sm:$0xf]
                  %10673 = vst [vmem:[%s10631 + $0x50] sm:$0xf] %v10672
                  %v10674 = vld [vmem:[%s10630 + $0x54] sm:$0xf]
                  %10675 = vst [vmem:[%s10631 + $0x54] sm:$0xf] %v10674
                  %v10676 = vld [vmem:[%s10630 + $0x58] sm:$0xf]
                  %10677 = vst [vmem:[%s10631 + $0x58] sm:$0xf] %v10676
                  %v10678 = vld [vmem:[%s10630 + $0x5c] sm:$0xf]
                  %10679 = vst [vmem:[%s10631 + $0x5c] sm:$0xf] %v10678
                  %v10680 = vld [vmem:[%s10630 + $0x60] sm:$0xf]
                  %10681 = vst [vmem:[%s10631 + $0x60] sm:$0xf] %v10680
                  %v10682 = vld [vmem:[%s10630 + $0x64] sm:$0xf]
                  %10683 = vst [vmem:[%s10631 + $0x64] sm:$0xf] %v10682
                  %v10684 = vld [vmem:[%s10630 + $0x68] sm:$0xf]
                  %10685 = vst [vmem:[%s10631 + $0x68] sm:$0xf] %v10684
                  %v10686 = vld [vmem:[%s10630 + $0x6c] sm:$0xf]
                  %10687 = vst [vmem:[%s10631 + $0x6c] sm:$0xf] %v10686
                  %v10688 = vld [vmem:[%s10630 + $0x70] sm:$0xf]
                  %10689 = vst [vmem:[%s10631 + $0x70] sm:$0xf] %v10688
                  %v10690 = vld [vmem:[%s10630 + $0x74] sm:$0xf]
                  %10691 = vst [vmem:[%s10631 + $0x74] sm:$0xf] %v10690
                  %v10692 = vld [vmem:[%s10630 + $0x78] sm:$0xf]
                  %10693 = vst [vmem:[%s10631 + $0x78] sm:$0xf] %v10692
                  %v10694 = vld [vmem:[%s10630 + $0x7c] sm:$0xf]
                  %10695 = vst [vmem:[%s10631 + $0x7c] sm:$0xf] %v10694
                  %v10696 = vld [vmem:[%s10630 + $0x80] sm:$0xf]
                  %10697 = vst [vmem:[%s10631 + $0x100] sm:$0xf] %v10696
                  %v10698 = vld [vmem:[%s10630 + $0x84] sm:$0xf]
                  %10699 = vst [vmem:[%s10631 + $0x104] sm:$0xf] %v10698
                  %v10700 = vld [vmem:[%s10630 + $0x88] sm:$0xf]
                  %10701 = vst [vmem:[%s10631 + $0x108] sm:$0xf] %v10700
                  %v10702 = vld [vmem:[%s10630 + $0x8c] sm:$0xf]
                  %10703 = vst [vmem:[%s10631 + $0x10c] sm:$0xf] %v10702
                  %v10704 = vld [vmem:[%s10630 + $0x90] sm:$0xf]
                  %10705 = vst [vmem:[%s10631 + $0x110] sm:$0xf] %v10704
                  %v10706 = vld [vmem:[%s10630 + $0x94] sm:$0xf]
                  %10707 = vst [vmem:[%s10631 + $0x114] sm:$0xf] %v10706
                  %v10708 = vld [vmem:[%s10630 + $0x98] sm:$0xf]
                  %10709 = vst [vmem:[%s10631 + $0x118] sm:$0xf] %v10708
                  %v10710 = vld [vmem:[%s10630 + $0x9c] sm:$0xf]
                  %10711 = vst [vmem:[%s10631 + $0x11c] sm:$0xf] %v10710
                  %v10712 = vld [vmem:[%s10630 + $0xa0] sm:$0xf]
                  %10713 = vst [vmem:[%s10631 + $0x120] sm:$0xf] %v10712
                  %v10714 = vld [vmem:[%s10630 + $0xa4] sm:$0xf]
                  %10715 = vst [vmem:[%s10631 + $0x124] sm:$0xf] %v10714
                  %v10716 = vld [vmem:[%s10630 + $0xa8] sm:$0xf]
                  %10717 = vst [vmem:[%s10631 + $0x128] sm:$0xf] %v10716
                  %v10718 = vld [vmem:[%s10630 + $0xac] sm:$0xf]
                  %10719 = vst [vmem:[%s10631 + $0x12c] sm:$0xf] %v10718
                  %v10720 = vld [vmem:[%s10630 + $0xb0] sm:$0xf]
                  %10721 = vst [vmem:[%s10631 + $0x130] sm:$0xf] %v10720
                  %v10722 = vld [vmem:[%s10630 + $0xb4] sm:$0xf]
                  %10723 = vst [vmem:[%s10631 + $0x134] sm:$0xf] %v10722
                  %v10724 = vld [vmem:[%s10630 + $0xb8] sm:$0xf]
                  %10725 = vst [vmem:[%s10631 + $0x138] sm:$0xf] %v10724
                  %v10726 = vld [vmem:[%s10630 + $0xbc] sm:$0xf]
                  %10727 = vst [vmem:[%s10631 + $0x13c] sm:$0xf] %v10726
                  %v10728 = vld [vmem:[%s10630 + $0xc0] sm:$0xf]
                  %10729 = vst [vmem:[%s10631 + $0x140] sm:$0xf] %v10728
                  %v10730 = vld [vmem:[%s10630 + $0xc4] sm:$0xf]
                  %10731 = vst [vmem:[%s10631 + $0x144] sm:$0xf] %v10730
                  %v10732 = vld [vmem:[%s10630 + $0xc8] sm:$0xf]
                  %10733 = vst [vmem:[%s10631 + $0x148] sm:$0xf] %v10732
                  %v10734 = vld [vmem:[%s10630 + $0xcc] sm:$0xf]
                  %10735 = vst [vmem:[%s10631 + $0x14c] sm:$0xf] %v10734
                  %v10736 = vld [vmem:[%s10630 + $0xd0] sm:$0xf]
                  %10737 = vst [vmem:[%s10631 + $0x150] sm:$0xf] %v10736
                  %v10738 = vld [vmem:[%s10630 + $0xd4] sm:$0xf]
                  %10739 = vst [vmem:[%s10631 + $0x154] sm:$0xf] %v10738
                  %v10740 = vld [vmem:[%s10630 + $0xd8] sm:$0xf]
                  %10741 = vst [vmem:[%s10631 + $0x158] sm:$0xf] %v10740
                  %v10742 = vld [vmem:[%s10630 + $0xdc] sm:$0xf]
                  %10743 = vst [vmem:[%s10631 + $0x15c] sm:$0xf] %v10742
                  %v10744 = vld [vmem:[%s10630 + $0xe0] sm:$0xf]
                  %10745 = vst [vmem:[%s10631 + $0x160] sm:$0xf] %v10744
                  %v10746 = vld [vmem:[%s10630 + $0xe4] sm:$0xf]
                  %10747 = vst [vmem:[%s10631 + $0x164] sm:$0xf] %v10746
                  %v10748 = vld [vmem:[%s10630 + $0xe8] sm:$0xf]
                  %10749 = vst [vmem:[%s10631 + $0x168] sm:$0xf] %v10748
                  %v10750 = vld [vmem:[%s10630 + $0xec] sm:$0xf]
                  %10751 = vst [vmem:[%s10631 + $0x16c] sm:$0xf] %v10750
                  %v10752 = vld [vmem:[%s10630 + $0xf0] sm:$0xf]
                  %10753 = vst [vmem:[%s10631 + $0x170] sm:$0xf] %v10752
                  %v10754 = vld [vmem:[%s10630 + $0xf4] sm:$0xf]
                  %10755 = vst [vmem:[%s10631 + $0x174] sm:$0xf] %v10754
                  %v10756 = vld [vmem:[%s10630 + $0xf8] sm:$0xf]
                  %10757 = vst [vmem:[%s10631 + $0x178] sm:$0xf] %v10756
                  %v10758 = vld [vmem:[%s10630 + $0xfc] sm:$0xf]
                  %10759 = vst [vmem:[%s10631 + $0x17c] sm:$0xf] %v10758
                  %v10760 = vld [vmem:[%s10630 + $0x100] sm:$0xf]
                  %10761 = vst [vmem:[%s10631 + $0x200] sm:$0xf] %v10760
                  %v10762 = vld [vmem:[%s10630 + $0x104] sm:$0xf]
                  %10763 = vst [vmem:[%s10631 + $0x204] sm:$0xf] %v10762
                  %v10764 = vld [vmem:[%s10630 + $0x108] sm:$0xf]
                  %10765 = vst [vmem:[%s10631 + $0x208] sm:$0xf] %v10764
                  %v10766 = vld [vmem:[%s10630 + $0x10c] sm:$0xf]
                  %10767 = vst [vmem:[%s10631 + $0x20c] sm:$0xf] %v10766
                  %v10768 = vld [vmem:[%s10630 + $0x110] sm:$0xf]
                  %10769 = vst [vmem:[%s10631 + $0x210] sm:$0xf] %v10768
                  %v10770 = vld [vmem:[%s10630 + $0x114] sm:$0xf]
                  %10771 = vst [vmem:[%s10631 + $0x214] sm:$0xf] %v10770
                  %v10772 = vld [vmem:[%s10630 + $0x118] sm:$0xf]
                  %10773 = vst [vmem:[%s10631 + $0x218] sm:$0xf] %v10772
                  %v10774 = vld [vmem:[%s10630 + $0x11c] sm:$0xf]
                  %10775 = vst [vmem:[%s10631 + $0x21c] sm:$0xf] %v10774
                  %v10776 = vld [vmem:[%s10630 + $0x120] sm:$0xf]
                  %10777 = vst [vmem:[%s10631 + $0x220] sm:$0xf] %v10776
                  %v10778 = vld [vmem:[%s10630 + $0x124] sm:$0xf]
                  %10779 = vst [vmem:[%s10631 + $0x224] sm:$0xf] %v10778
                  %v10780 = vld [vmem:[%s10630 + $0x128] sm:$0xf]
                  %10781 = vst [vmem:[%s10631 + $0x228] sm:$0xf] %v10780
                  %v10782 = vld [vmem:[%s10630 + $0x12c] sm:$0xf]
                  %10783 = vst [vmem:[%s10631 + $0x22c] sm:$0xf] %v10782
                  %v10784 = vld [vmem:[%s10630 + $0x130] sm:$0xf]
                  %10785 = vst [vmem:[%s10631 + $0x230] sm:$0xf] %v10784
                  %v10786 = vld [vmem:[%s10630 + $0x134] sm:$0xf]
                  %10787 = vst [vmem:[%s10631 + $0x234] sm:$0xf] %v10786
                  %v10788 = vld [vmem:[%s10630 + $0x138] sm:$0xf]
                  %10789 = vst [vmem:[%s10631 + $0x238] sm:$0xf] %v10788
                  %v10790 = vld [vmem:[%s10630 + $0x13c] sm:$0xf]
                  %10791 = vst [vmem:[%s10631 + $0x23c] sm:$0xf] %v10790
                  %v10792 = vld [vmem:[%s10630 + $0x140] sm:$0xf]
                  %10793 = vst [vmem:[%s10631 + $0x240] sm:$0xf] %v10792
                  %v10794 = vld [vmem:[%s10630 + $0x144] sm:$0xf]
                  %10795 = vst [vmem:[%s10631 + $0x244] sm:$0xf] %v10794
                  %v10796 = vld [vmem:[%s10630 + $0x148] sm:$0xf]
                  %10797 = vst [vmem:[%s10631 + $0x248] sm:$0xf] %v10796
                  %v10798 = vld [vmem:[%s10630 + $0x14c] sm:$0xf]
                  %10799 = vst [vmem:[%s10631 + $0x24c] sm:$0xf] %v10798
                  %v10800 = vld [vmem:[%s10630 + $0x150] sm:$0xf]
                  %10801 = vst [vmem:[%s10631 + $0x250] sm:$0xf] %v10800
                  %v10802 = vld [vmem:[%s10630 + $0x154] sm:$0xf]
                  %10803 = vst [vmem:[%s10631 + $0x254] sm:$0xf] %v10802
                  %v10804 = vld [vmem:[%s10630 + $0x158] sm:$0xf]
                  %10805 = vst [vmem:[%s10631 + $0x258] sm:$0xf] %v10804
                  %v10806 = vld [vmem:[%s10630 + $0x15c] sm:$0xf]
                  %10807 = vst [vmem:[%s10631 + $0x25c] sm:$0xf] %v10806
                  %v10808 = vld [vmem:[%s10630 + $0x160] sm:$0xf]
                  %10809 = vst [vmem:[%s10631 + $0x260] sm:$0xf] %v10808
                  %v10810 = vld [vmem:[%s10630 + $0x164] sm:$0xf]
                  %10811 = vst [vmem:[%s10631 + $0x264] sm:$0xf] %v10810
                  %v10812 = vld [vmem:[%s10630 + $0x168] sm:$0xf]
                  %10813 = vst [vmem:[%s10631 + $0x268] sm:$0xf] %v10812
                  %v10814 = vld [vmem:[%s10630 + $0x16c] sm:$0xf]
                  %10815 = vst [vmem:[%s10631 + $0x26c] sm:$0xf] %v10814
                  %v10816 = vld [vmem:[%s10630 + $0x170] sm:$0xf]
                  %10817 = vst [vmem:[%s10631 + $0x270] sm:$0xf] %v10816
                  %v10818 = vld [vmem:[%s10630 + $0x174] sm:$0xf]
                  %10819 = vst [vmem:[%s10631 + $0x274] sm:$0xf] %v10818
                  %v10820 = vld [vmem:[%s10630 + $0x178] sm:$0xf]
                  %10821 = vst [vmem:[%s10631 + $0x278] sm:$0xf] %v10820
                  %v10822 = vld [vmem:[%s10630 + $0x17c] sm:$0xf]
                  %10823 = vst [vmem:[%s10631 + $0x27c] sm:$0xf] %v10822
                  %v10824 = vld [vmem:[%s10630 + $0x180] sm:$0xf]
                  %10825 = vst [vmem:[%s10631 + $0x300] sm:$0xf] %v10824
                  %v10826 = vld [vmem:[%s10630 + $0x184] sm:$0xf]
                  %10827 = vst [vmem:[%s10631 + $0x304] sm:$0xf] %v10826
                  %v10828 = vld [vmem:[%s10630 + $0x188] sm:$0xf]
                  %10829 = vst [vmem:[%s10631 + $0x308] sm:$0xf] %v10828
                  %v10830 = vld [vmem:[%s10630 + $0x18c] sm:$0xf]
                  %10831 = vst [vmem:[%s10631 + $0x30c] sm:$0xf] %v10830
                  %v10832 = vld [vmem:[%s10630 + $0x190] sm:$0xf]
                  %10833 = vst [vmem:[%s10631 + $0x310] sm:$0xf] %v10832
                  %v10834 = vld [vmem:[%s10630 + $0x194] sm:$0xf]
                  %10835 = vst [vmem:[%s10631 + $0x314] sm:$0xf] %v10834
                  %v10836 = vld [vmem:[%s10630 + $0x198] sm:$0xf]
                  %10837 = vst [vmem:[%s10631 + $0x318] sm:$0xf] %v10836
                  %v10838 = vld [vmem:[%s10630 + $0x19c] sm:$0xf]
                  %10839 = vst [vmem:[%s10631 + $0x31c] sm:$0xf] %v10838
                  %v10840 = vld [vmem:[%s10630 + $0x1a0] sm:$0xf]
                  %10841 = vst [vmem:[%s10631 + $0x320] sm:$0xf] %v10840
                  %v10842 = vld [vmem:[%s10630 + $0x1a4] sm:$0xf]
                  %10843 = vst [vmem:[%s10631 + $0x324] sm:$0xf] %v10842
                  %v10844 = vld [vmem:[%s10630 + $0x1a8] sm:$0xf]
                  %10845 = vst [vmem:[%s10631 + $0x328] sm:$0xf] %v10844
                  %v10846 = vld [vmem:[%s10630 + $0x1ac] sm:$0xf]
                  %10847 = vst [vmem:[%s10631 + $0x32c] sm:$0xf] %v10846
                  %v10848 = vld [vmem:[%s10630 + $0x1b0] sm:$0xf]
                  %10849 = vst [vmem:[%s10631 + $0x330] sm:$0xf] %v10848
                  %v10850 = vld [vmem:[%s10630 + $0x1b4] sm:$0xf]
                  %10851 = vst [vmem:[%s10631 + $0x334] sm:$0xf] %v10850
                  %v10852 = vld [vmem:[%s10630 + $0x1b8] sm:$0xf]
                  %10853 = vst [vmem:[%s10631 + $0x338] sm:$0xf] %v10852
                  %v10854 = vld [vmem:[%s10630 + $0x1bc] sm:$0xf]
                  %10855 = vst [vmem:[%s10631 + $0x33c] sm:$0xf] %v10854
                  %v10856 = vld [vmem:[%s10630 + $0x1c0] sm:$0xf]
                  %10857 = vst [vmem:[%s10631 + $0x340] sm:$0xf] %v10856
                  %v10858 = vld [vmem:[%s10630 + $0x1c4] sm:$0xf]
                  %10859 = vst [vmem:[%s10631 + $0x344] sm:$0xf] %v10858
                  %v10860 = vld [vmem:[%s10630 + $0x1c8] sm:$0xf]
                  %10861 = vst [vmem:[%s10631 + $0x348] sm:$0xf] %v10860
                  %v10862 = vld [vmem:[%s10630 + $0x1cc] sm:$0xf]
                  %10863 = vst [vmem:[%s10631 + $0x34c] sm:$0xf] %v10862
                  %v10864 = vld [vmem:[%s10630 + $0x1d0] sm:$0xf]
                  %10865 = vst [vmem:[%s10631 + $0x350] sm:$0xf] %v10864
                  %v10866 = vld [vmem:[%s10630 + $0x1d4] sm:$0xf]
                  %10867 = vst [vmem:[%s10631 + $0x354] sm:$0xf] %v10866
                  %v10868 = vld [vmem:[%s10630 + $0x1d8] sm:$0xf]
                  %10869 = vst [vmem:[%s10631 + $0x358] sm:$0xf] %v10868
                  %v10870 = vld [vmem:[%s10630 + $0x1dc] sm:$0xf]
                  %10871 = vst [vmem:[%s10631 + $0x35c] sm:$0xf] %v10870
                  %v10872 = vld [vmem:[%s10630 + $0x1e0] sm:$0xf]
                  %10873 = vst [vmem:[%s10631 + $0x360] sm:$0xf] %v10872
                  %v10874 = vld [vmem:[%s10630 + $0x1e4] sm:$0xf]
                  %10875 = vst [vmem:[%s10631 + $0x364] sm:$0xf] %v10874
                  %v10876 = vld [vmem:[%s10630 + $0x1e8] sm:$0xf]
                  %10877 = vst [vmem:[%s10631 + $0x368] sm:$0xf] %v10876
                  %v10878 = vld [vmem:[%s10630 + $0x1ec] sm:$0xf]
                  %10879 = vst [vmem:[%s10631 + $0x36c] sm:$0xf] %v10878
                  %v10880 = vld [vmem:[%s10630 + $0x1f0] sm:$0xf]
                  %10881 = vst [vmem:[%s10631 + $0x370] sm:$0xf] %v10880
                  %v10882 = vld [vmem:[%s10630 + $0x1f4] sm:$0xf]
                  %10883 = vst [vmem:[%s10631 + $0x374] sm:$0xf] %v10882
                  %v10884 = vld [vmem:[%s10630 + $0x1f8] sm:$0xf]
                  %10885 = vst [vmem:[%s10631 + $0x378] sm:$0xf] %v10884
                  %v10886 = vld [vmem:[%s10630 + $0x1fc] sm:$0xf]
                  %10887 = vst [vmem:[%s10631 + $0x37c] sm:$0xf] %v10886
                $region67: #{up_forward.2} parent=54 // loop_footer
                  %s10629 = sadd.s32 1, %s10625
                $region68: #{up_forward.2} parent=54 // loop_footer_branch
                  %10624 = sbr.rel target = $region64
                $region69: #{up_forward.2} parent=54 // loop_exit
                  _
              $region55: #{up_forward.2} parent=39 // pred_fallthru
                _
            $region40: #{up_forward.2} parent=35 // pred_fallthru
              _
            // Predicated region
            $region41: #{up_forward.2} parent=35 // pred_check
              _
            $region42: #{up_forward.2} parent=35 // pred_check_branch
              %10347 = sbr.rel (0) target = $region44
            $region43: #{up_forward.2} parent=35 // pred_region
              loop: start=0, step=1, limit=1
              $region45: #{up_forward.2} parent=43 // loop_pre_header
                _
              $region46: #{up_forward.2} parent=43 // loop_header
                %s10350 = sphi 0, %s10354
                %p10351 = scmp.ge.s32.totalorder %s10350, 1
                %s10355 = sphi %s10322, %s10322
                %s10356 = sphi %s10341, %s10341
              $region47: #{up_forward.2} parent=43 // loop_header_branch
                %10353 = sbr.rel (%p10351) target = $region51
              $region48: #{up_forward.2} parent=43 // loop_body
                %v10357 = vld [vmem:[%s10355] sm:$0xf]
                %10358 = vst [vmem:[%s10356] sm:$0xf] %v10357
                %v10359 = vld [vmem:[%s10355 + $0x4] sm:$0xf]
                %10360 = vst [vmem:[%s10356 + $0x4] sm:$0xf] %v10359
                %v10361 = vld [vmem:[%s10355 + $0x8] sm:$0xf]
                %10362 = vst [vmem:[%s10356 + $0x8] sm:$0xf] %v10361
                %v10363 = vld [vmem:[%s10355 + $0xc] sm:$0xf]
                %10364 = vst [vmem:[%s10356 + $0xc] sm:$0xf] %v10363
                %v10365 = vld [vmem:[%s10355 + $0x10] sm:$0xf]
                %10366 = vst [vmem:[%s10356 + $0x10] sm:$0xf] %v10365
                %v10367 = vld [vmem:[%s10355 + $0x14] sm:$0xf]
                %10368 = vst [vmem:[%s10356 + $0x14] sm:$0xf] %v10367
                %v10369 = vld [vmem:[%s10355 + $0x18] sm:$0xf]
                %10370 = vst [vmem:[%s10356 + $0x18] sm:$0xf] %v10369
                %v10371 = vld [vmem:[%s10355 + $0x1c] sm:$0xf]
                %10372 = vst [vmem:[%s10356 + $0x1c] sm:$0xf] %v10371
                %v10373 = vld [vmem:[%s10355 + $0x20] sm:$0xf]
                %10374 = vst [vmem:[%s10356 + $0x20] sm:$0xf] %v10373
                %v10375 = vld [vmem:[%s10355 + $0x24] sm:$0xf]
                %10376 = vst [vmem:[%s10356 + $0x24] sm:$0xf] %v10375
                %v10377 = vld [vmem:[%s10355 + $0x28] sm:$0xf]
                %10378 = vst [vmem:[%s10356 + $0x28] sm:$0xf] %v10377
                %v10379 = vld [vmem:[%s10355 + $0x2c] sm:$0xf]
                %10380 = vst [vmem:[%s10356 + $0x2c] sm:$0xf] %v10379
                %v10381 = vld [vmem:[%s10355 + $0x30] sm:$0xf]
                %10382 = vst [vmem:[%s10356 + $0x30] sm:$0xf] %v10381
                %v10383 = vld [vmem:[%s10355 + $0x34] sm:$0xf]
                %10384 = vst [vmem:[%s10356 + $0x34] sm:$0xf] %v10383
                %v10385 = vld [vmem:[%s10355 + $0x38] sm:$0xf]
                %10386 = vst [vmem:[%s10356 + $0x38] sm:$0xf] %v10385
                %v10387 = vld [vmem:[%s10355 + $0x3c] sm:$0xf]
                %10388 = vst [vmem:[%s10356 + $0x3c] sm:$0xf] %v10387
                %v10389 = vld [vmem:[%s10355 + $0x40] sm:$0xf]
                %10390 = vst [vmem:[%s10356 + $0x40] sm:$0xf] %v10389
                %v10391 = vld [vmem:[%s10355 + $0x44] sm:$0xf]
                %10392 = vst [vmem:[%s10356 + $0x44] sm:$0xf] %v10391
                %v10393 = vld [vmem:[%s10355 + $0x48] sm:$0xf]
                %10394 = vst [vmem:[%s10356 + $0x48] sm:$0xf] %v10393
                %v10395 = vld [vmem:[%s10355 + $0x4c] sm:$0xf]
                %10396 = vst [vmem:[%s10356 + $0x4c] sm:$0xf] %v10395
                %v10397 = vld [vmem:[%s10355 + $0x50] sm:$0xf]
                %10398 = vst [vmem:[%s10356 + $0x50] sm:$0xf] %v10397
                %v10399 = vld [vmem:[%s10355 + $0x54] sm:$0xf]
                %10400 = vst [vmem:[%s10356 + $0x54] sm:$0xf] %v10399
                %v10401 = vld [vmem:[%s10355 + $0x58] sm:$0xf]
                %10402 = vst [vmem:[%s10356 + $0x58] sm:$0xf] %v10401
                %v10403 = vld [vmem:[%s10355 + $0x5c] sm:$0xf]
                %10404 = vst [vmem:[%s10356 + $0x5c] sm:$0xf] %v10403
                %v10405 = vld [vmem:[%s10355 + $0x60] sm:$0xf]
                %10406 = vst [vmem:[%s10356 + $0x60] sm:$0xf] %v10405
                %v10407 = vld [vmem:[%s10355 + $0x64] sm:$0xf]
                %10408 = vst [vmem:[%s10356 + $0x64] sm:$0xf] %v10407
                %v10409 = vld [vmem:[%s10355 + $0x68] sm:$0xf]
                %10410 = vst [vmem:[%s10356 + $0x68] sm:$0xf] %v10409
                %v10411 = vld [vmem:[%s10355 + $0x6c] sm:$0xf]
                %10412 = vst [vmem:[%s10356 + $0x6c] sm:$0xf] %v10411
                %v10413 = vld [vmem:[%s10355 + $0x70] sm:$0xf]
                %10414 = vst [vmem:[%s10356 + $0x70] sm:$0xf] %v10413
                %v10415 = vld [vmem:[%s10355 + $0x74] sm:$0xf]
                %10416 = vst [vmem:[%s10356 + $0x74] sm:$0xf] %v10415
                %v10417 = vld [vmem:[%s10355 + $0x78] sm:$0xf]
                %10418 = vst [vmem:[%s10356 + $0x78] sm:$0xf] %v10417
                %v10419 = vld [vmem:[%s10355 + $0x7c] sm:$0xf]
                %10420 = vst [vmem:[%s10356 + $0x7c] sm:$0xf] %v10419
                %v10421 = vld [vmem:[%s10355 + $0x80] sm:$0xf]
                %10422 = vst [vmem:[%s10356 + $0x100] sm:$0xf] %v10421
                %v10423 = vld [vmem:[%s10355 + $0x84] sm:$0xf]
                %10424 = vst [vmem:[%s10356 + $0x104] sm:$0xf] %v10423
                %v10425 = vld [vmem:[%s10355 + $0x88] sm:$0xf]
                %10426 = vst [vmem:[%s10356 + $0x108] sm:$0xf] %v10425
                %v10427 = vld [vmem:[%s10355 + $0x8c] sm:$0xf]
                %10428 = vst [vmem:[%s10356 + $0x10c] sm:$0xf] %v10427
                %v10429 = vld [vmem:[%s10355 + $0x90] sm:$0xf]
                %10430 = vst [vmem:[%s10356 + $0x110] sm:$0xf] %v10429
                %v10431 = vld [vmem:[%s10355 + $0x94] sm:$0xf]
                %10432 = vst [vmem:[%s10356 + $0x114] sm:$0xf] %v10431
                %v10433 = vld [vmem:[%s10355 + $0x98] sm:$0xf]
                %10434 = vst [vmem:[%s10356 + $0x118] sm:$0xf] %v10433
                %v10435 = vld [vmem:[%s10355 + $0x9c] sm:$0xf]
                %10436 = vst [vmem:[%s10356 + $0x11c] sm:$0xf] %v10435
                %v10437 = vld [vmem:[%s10355 + $0xa0] sm:$0xf]
                %10438 = vst [vmem:[%s10356 + $0x120] sm:$0xf] %v10437
                %v10439 = vld [vmem:[%s10355 + $0xa4] sm:$0xf]
                %10440 = vst [vmem:[%s10356 + $0x124] sm:$0xf] %v10439
                %v10441 = vld [vmem:[%s10355 + $0xa8] sm:$0xf]
                %10442 = vst [vmem:[%s10356 + $0x128] sm:$0xf] %v10441
                %v10443 = vld [vmem:[%s10355 + $0xac] sm:$0xf]
                %10444 = vst [vmem:[%s10356 + $0x12c] sm:$0xf] %v10443
                %v10445 = vld [vmem:[%s10355 + $0xb0] sm:$0xf]
                %10446 = vst [vmem:[%s10356 + $0x130] sm:$0xf] %v10445
                %v10447 = vld [vmem:[%s10355 + $0xb4] sm:$0xf]
                %10448 = vst [vmem:[%s10356 + $0x134] sm:$0xf] %v10447
                %v10449 = vld [vmem:[%s10355 + $0xb8] sm:$0xf]
                %10450 = vst [vmem:[%s10356 + $0x138] sm:$0xf] %v10449
                %v10451 = vld [vmem:[%s10355 + $0xbc] sm:$0xf]
                %10452 = vst [vmem:[%s10356 + $0x13c] sm:$0xf] %v10451
                %v10453 = vld [vmem:[%s10355 + $0xc0] sm:$0xf]
                %10454 = vst [vmem:[%s10356 + $0x140] sm:$0xf] %v10453
                %v10455 = vld [vmem:[%s10355 + $0xc4] sm:$0xf]
                %10456 = vst [vmem:[%s10356 + $0x144] sm:$0xf] %v10455
                %v10457 = vld [vmem:[%s10355 + $0xc8] sm:$0xf]
                %10458 = vst [vmem:[%s10356 + $0x148] sm:$0xf] %v10457
                %v10459 = vld [vmem:[%s10355 + $0xcc] sm:$0xf]
                %10460 = vst [vmem:[%s10356 + $0x14c] sm:$0xf] %v10459
                %v10461 = vld [vmem:[%s10355 + $0xd0] sm:$0xf]
                %10462 = vst [vmem:[%s10356 + $0x150] sm:$0xf] %v10461
                %v10463 = vld [vmem:[%s10355 + $0xd4] sm:$0xf]
                %10464 = vst [vmem:[%s10356 + $0x154] sm:$0xf] %v10463
                %v10465 = vld [vmem:[%s10355 + $0xd8] sm:$0xf]
                %10466 = vst [vmem:[%s10356 + $0x158] sm:$0xf] %v10465
                %v10467 = vld [vmem:[%s10355 + $0xdc] sm:$0xf]
                %10468 = vst [vmem:[%s10356 + $0x15c] sm:$0xf] %v10467
                %v10469 = vld [vmem:[%s10355 + $0xe0] sm:$0xf]
                %10470 = vst [vmem:[%s10356 + $0x160] sm:$0xf] %v10469
                %v10471 = vld [vmem:[%s10355 + $0xe4] sm:$0xf]
                %10472 = vst [vmem:[%s10356 + $0x164] sm:$0xf] %v10471
                %v10473 = vld [vmem:[%s10355 + $0xe8] sm:$0xf]
                %10474 = vst [vmem:[%s10356 + $0x168] sm:$0xf] %v10473
                %v10475 = vld [vmem:[%s10355 + $0xec] sm:$0xf]
                %10476 = vst [vmem:[%s10356 + $0x16c] sm:$0xf] %v10475
                %v10477 = vld [vmem:[%s10355 + $0xf0] sm:$0xf]
                %10478 = vst [vmem:[%s10356 + $0x170] sm:$0xf] %v10477
                %v10479 = vld [vmem:[%s10355 + $0xf4] sm:$0xf]
                %10480 = vst [vmem:[%s10356 + $0x174] sm:$0xf] %v10479
                %v10481 = vld [vmem:[%s10355 + $0xf8] sm:$0xf]
                %10482 = vst [vmem:[%s10356 + $0x178] sm:$0xf] %v10481
                %v10483 = vld [vmem:[%s10355 + $0xfc] sm:$0xf]
                %10484 = vst [vmem:[%s10356 + $0x17c] sm:$0xf] %v10483
                %v10485 = vld [vmem:[%s10355 + $0x100] sm:$0xf]
                %10486 = vst [vmem:[%s10356 + $0x200] sm:$0xf] %v10485
                %v10487 = vld [vmem:[%s10355 + $0x104] sm:$0xf]
                %10488 = vst [vmem:[%s10356 + $0x204] sm:$0xf] %v10487
                %v10489 = vld [vmem:[%s10355 + $0x108] sm:$0xf]
                %10490 = vst [vmem:[%s10356 + $0x208] sm:$0xf] %v10489
                %v10491 = vld [vmem:[%s10355 + $0x10c] sm:$0xf]
                %10492 = vst [vmem:[%s10356 + $0x20c] sm:$0xf] %v10491
                %v10493 = vld [vmem:[%s10355 + $0x110] sm:$0xf]
                %10494 = vst [vmem:[%s10356 + $0x210] sm:$0xf] %v10493
                %v10495 = vld [vmem:[%s10355 + $0x114] sm:$0xf]
                %10496 = vst [vmem:[%s10356 + $0x214] sm:$0xf] %v10495
                %v10497 = vld [vmem:[%s10355 + $0x118] sm:$0xf]
                %10498 = vst [vmem:[%s10356 + $0x218] sm:$0xf] %v10497
                %v10499 = vld [vmem:[%s10355 + $0x11c] sm:$0xf]
                %10500 = vst [vmem:[%s10356 + $0x21c] sm:$0xf] %v10499
                %v10501 = vld [vmem:[%s10355 + $0x120] sm:$0xf]
                %10502 = vst [vmem:[%s10356 + $0x220] sm:$0xf] %v10501
                %v10503 = vld [vmem:[%s10355 + $0x124] sm:$0xf]
                %10504 = vst [vmem:[%s10356 + $0x224] sm:$0xf] %v10503
                %v10505 = vld [vmem:[%s10355 + $0x128] sm:$0xf]
                %10506 = vst [vmem:[%s10356 + $0x228] sm:$0xf] %v10505
                %v10507 = vld [vmem:[%s10355 + $0x12c] sm:$0xf]
                %10508 = vst [vmem:[%s10356 + $0x22c] sm:$0xf] %v10507
                %v10509 = vld [vmem:[%s10355 + $0x130] sm:$0xf]
                %10510 = vst [vmem:[%s10356 + $0x230] sm:$0xf] %v10509
                %v10511 = vld [vmem:[%s10355 + $0x134] sm:$0xf]
                %10512 = vst [vmem:[%s10356 + $0x234] sm:$0xf] %v10511
                %v10513 = vld [vmem:[%s10355 + $0x138] sm:$0xf]
                %10514 = vst [vmem:[%s10356 + $0x238] sm:$0xf] %v10513
                %v10515 = vld [vmem:[%s10355 + $0x13c] sm:$0xf]
                %10516 = vst [vmem:[%s10356 + $0x23c] sm:$0xf] %v10515
                %v10517 = vld [vmem:[%s10355 + $0x140] sm:$0xf]
                %10518 = vst [vmem:[%s10356 + $0x240] sm:$0xf] %v10517
                %v10519 = vld [vmem:[%s10355 + $0x144] sm:$0xf]
                %10520 = vst [vmem:[%s10356 + $0x244] sm:$0xf] %v10519
                %v10521 = vld [vmem:[%s10355 + $0x148] sm:$0xf]
                %10522 = vst [vmem:[%s10356 + $0x248] sm:$0xf] %v10521
                %v10523 = vld [vmem:[%s10355 + $0x14c] sm:$0xf]
                %10524 = vst [vmem:[%s10356 + $0x24c] sm:$0xf] %v10523
                %v10525 = vld [vmem:[%s10355 + $0x150] sm:$0xf]
                %10526 = vst [vmem:[%s10356 + $0x250] sm:$0xf] %v10525
                %v10527 = vld [vmem:[%s10355 + $0x154] sm:$0xf]
                %10528 = vst [vmem:[%s10356 + $0x254] sm:$0xf] %v10527
                %v10529 = vld [vmem:[%s10355 + $0x158] sm:$0xf]
                %10530 = vst [vmem:[%s10356 + $0x258] sm:$0xf] %v10529
                %v10531 = vld [vmem:[%s10355 + $0x15c] sm:$0xf]
                %10532 = vst [vmem:[%s10356 + $0x25c] sm:$0xf] %v10531
                %v10533 = vld [vmem:[%s10355 + $0x160] sm:$0xf]
                %10534 = vst [vmem:[%s10356 + $0x260] sm:$0xf] %v10533
                %v10535 = vld [vmem:[%s10355 + $0x164] sm:$0xf]
                %10536 = vst [vmem:[%s10356 + $0x264] sm:$0xf] %v10535
                %v10537 = vld [vmem:[%s10355 + $0x168] sm:$0xf]
                %10538 = vst [vmem:[%s10356 + $0x268] sm:$0xf] %v10537
                %v10539 = vld [vmem:[%s10355 + $0x16c] sm:$0xf]
                %10540 = vst [vmem:[%s10356 + $0x26c] sm:$0xf] %v10539
                %v10541 = vld [vmem:[%s10355 + $0x170] sm:$0xf]
                %10542 = vst [vmem:[%s10356 + $0x270] sm:$0xf] %v10541
                %v10543 = vld [vmem:[%s10355 + $0x174] sm:$0xf]
                %10544 = vst [vmem:[%s10356 + $0x274] sm:$0xf] %v10543
                %v10545 = vld [vmem:[%s10355 + $0x178] sm:$0xf]
                %10546 = vst [vmem:[%s10356 + $0x278] sm:$0xf] %v10545
                %v10547 = vld [vmem:[%s10355 + $0x17c] sm:$0xf]
                %10548 = vst [vmem:[%s10356 + $0x27c] sm:$0xf] %v10547
                %v10549 = vld [vmem:[%s10355 + $0x180] sm:$0xf]
                %10550 = vst [vmem:[%s10356 + $0x300] sm:$0xf] %v10549
                %v10551 = vld [vmem:[%s10355 + $0x184] sm:$0xf]
                %10552 = vst [vmem:[%s10356 + $0x304] sm:$0xf] %v10551
                %v10553 = vld [vmem:[%s10355 + $0x188] sm:$0xf]
                %10554 = vst [vmem:[%s10356 + $0x308] sm:$0xf] %v10553
                %v10555 = vld [vmem:[%s10355 + $0x18c] sm:$0xf]
                %10556 = vst [vmem:[%s10356 + $0x30c] sm:$0xf] %v10555
                %v10557 = vld [vmem:[%s10355 + $0x190] sm:$0xf]
                %10558 = vst [vmem:[%s10356 + $0x310] sm:$0xf] %v10557
                %v10559 = vld [vmem:[%s10355 + $0x194] sm:$0xf]
                %10560 = vst [vmem:[%s10356 + $0x314] sm:$0xf] %v10559
                %v10561 = vld [vmem:[%s10355 + $0x198] sm:$0xf]
                %10562 = vst [vmem:[%s10356 + $0x318] sm:$0xf] %v10561
                %v10563 = vld [vmem:[%s10355 + $0x19c] sm:$0xf]
                %10564 = vst [vmem:[%s10356 + $0x31c] sm:$0xf] %v10563
                %v10565 = vld [vmem:[%s10355 + $0x1a0] sm:$0xf]
                %10566 = vst [vmem:[%s10356 + $0x320] sm:$0xf] %v10565
                %v10567 = vld [vmem:[%s10355 + $0x1a4] sm:$0xf]
                %10568 = vst [vmem:[%s10356 + $0x324] sm:$0xf] %v10567
                %v10569 = vld [vmem:[%s10355 + $0x1a8] sm:$0xf]
                %10570 = vst [vmem:[%s10356 + $0x328] sm:$0xf] %v10569
                %v10571 = vld [vmem:[%s10355 + $0x1ac] sm:$0xf]
                %10572 = vst [vmem:[%s10356 + $0x32c] sm:$0xf] %v10571
                %v10573 = vld [vmem:[%s10355 + $0x1b0] sm:$0xf]
                %10574 = vst [vmem:[%s10356 + $0x330] sm:$0xf] %v10573
                %v10575 = vld [vmem:[%s10355 + $0x1b4] sm:$0xf]
                %10576 = vst [vmem:[%s10356 + $0x334] sm:$0xf] %v10575
                %v10577 = vld [vmem:[%s10355 + $0x1b8] sm:$0xf]
                %10578 = vst [vmem:[%s10356 + $0x338] sm:$0xf] %v10577
                %v10579 = vld [vmem:[%s10355 + $0x1bc] sm:$0xf]
                %10580 = vst [vmem:[%s10356 + $0x33c] sm:$0xf] %v10579
                %v10581 = vld [vmem:[%s10355 + $0x1c0] sm:$0xf]
                %10582 = vst [vmem:[%s10356 + $0x340] sm:$0xf] %v10581
                %v10583 = vld [vmem:[%s10355 + $0x1c4] sm:$0xf]
                %10584 = vst [vmem:[%s10356 + $0x344] sm:$0xf] %v10583
                %v10585 = vld [vmem:[%s10355 + $0x1c8] sm:$0xf]
                %10586 = vst [vmem:[%s10356 + $0x348] sm:$0xf] %v10585
                %v10587 = vld [vmem:[%s10355 + $0x1cc] sm:$0xf]
                %10588 = vst [vmem:[%s10356 + $0x34c] sm:$0xf] %v10587
                %v10589 = vld [vmem:[%s10355 + $0x1d0] sm:$0xf]
                %10590 = vst [vmem:[%s10356 + $0x350] sm:$0xf] %v10589
                %v10591 = vld [vmem:[%s10355 + $0x1d4] sm:$0xf]
                %10592 = vst [vmem:[%s10356 + $0x354] sm:$0xf] %v10591
                %v10593 = vld [vmem:[%s10355 + $0x1d8] sm:$0xf]
                %10594 = vst [vmem:[%s10356 + $0x358] sm:$0xf] %v10593
                %v10595 = vld [vmem:[%s10355 + $0x1dc] sm:$0xf]
                %10596 = vst [vmem:[%s10356 + $0x35c] sm:$0xf] %v10595
                %v10597 = vld [vmem:[%s10355 + $0x1e0] sm:$0xf]
                %10598 = vst [vmem:[%s10356 + $0x360] sm:$0xf] %v10597
                %v10599 = vld [vmem:[%s10355 + $0x1e4] sm:$0xf]
                %10600 = vst [vmem:[%s10356 + $0x364] sm:$0xf] %v10599
                %v10601 = vld [vmem:[%s10355 + $0x1e8] sm:$0xf]
                %10602 = vst [vmem:[%s10356 + $0x368] sm:$0xf] %v10601
                %v10603 = vld [vmem:[%s10355 + $0x1ec] sm:$0xf]
                %10604 = vst [vmem:[%s10356 + $0x36c] sm:$0xf] %v10603
                %v10605 = vld [vmem:[%s10355 + $0x1f0] sm:$0xf]
                %10606 = vst [vmem:[%s10356 + $0x370] sm:$0xf] %v10605
                %v10607 = vld [vmem:[%s10355 + $0x1f4] sm:$0xf]
                %10608 = vst [vmem:[%s10356 + $0x374] sm:$0xf] %v10607
                %v10609 = vld [vmem:[%s10355 + $0x1f8] sm:$0xf]
                %10610 = vst [vmem:[%s10356 + $0x378] sm:$0xf] %v10609
                %v10611 = vld [vmem:[%s10355 + $0x1fc] sm:$0xf]
                %10612 = vst [vmem:[%s10356 + $0x37c] sm:$0xf] %v10611
              $region49: #{up_forward.2} parent=43 // loop_footer
                %s10354 = sadd.s32 1, %s10350
              $region50: #{up_forward.2} parent=43 // loop_footer_branch
                %10349 = sbr.rel target = $region46
              $region51: #{up_forward.2} parent=43 // loop_exit
                _
            $region44: #{up_forward.2} parent=35 // pred_fallthru
              _
          $region36: #{up_forward.2} parent=31 // pred_fallthru
            _
          %10888 = vnop
        $region32: #{up_forward.2} parent=27 // pred_fallthru
          _
        // Predicated region
        $region70: #{up_forward.2} parent=27 // pred_check
          %p10889 = pneg %p128
        $region71: #{up_forward.2} parent=27 // pred_check_branch
          %10891 = sbr.rel (%p10889) target = $region73
        $region72: #{up_forward.2} parent=27 // pred_region
          _
        $region73: #{up_forward.2} parent=27 // pred_fallthru
          _
        // Predicated region
        $region74: #{up_forward.2} parent=27 // pred_check
          %p10892 = pneg %p156
        $region75: #{up_forward.2} parent=27 // pred_check_branch
          %10894 = sbr.rel (%p10892) target = $region77
        $region76: #{up_forward.2} parent=27 // pred_region
          _
        $region77: #{up_forward.2} parent=27 // pred_fallthru
          _
      $region28: #{up_forward.2} parent=5 // pred_fallthru
        _
      %p10895 = scmp.le.s32.totalorder 2, %s11
      // Predicated region
      $region78: #{up_forward.2} parent=5 // pred_check
        %p10896 = pneg %p10895
      $region79: #{up_forward.2} parent=5 // pred_check_branch
        %10898 = sbr.rel (%p10896) target = $region81
      $region80: #{up_forward.2} parent=5 // pred_region
        %s10899 = ssub.s32 %s11, 2
        // Predicated region
        $region82: #{up_forward.2} parent=80 // pred_check
          %p10900 = pneg %p106
        $region83: #{up_forward.2} parent=80 // pred_check_branch
          %10902 = sbr.rel (%p10900) target = $region85
        $region84: #{up_forward.2} parent=80 // pred_region
          %s10903 = sand.u32 %s91, 1
          %s10904 = sand.u32 %s91, 1
          %s10905 = smul.addr %s10904, 512
          %s10906 = scalar_lea.vmem [#allocation2], %s10905
        $region85: #{up_forward.2} parent=80 // pred_fallthru
          _
        // Predicated region
        $region86: #{up_forward.2} parent=80 // pred_check
          %p10907 = pneg %p134
        $region87: #{up_forward.2} parent=80 // pred_check_branch
          %10909 = sbr.rel (%p10907) target = $region89
        $region88: #{up_forward.2} parent=80 // pred_region
          %p10910 = scmp.lt.s32.totalorder %s22, 1
          %s10911 = scalar_select %p10910, %s22, 1
          %p10912 = scmp.lt.s32.totalorder %s23, 0
          %s10913 = scalar_select %p10912, %s23, 0
          %s10914 = sadd.s32 %s10913, %s10911
          %s10915 = scalar_lea.vmem %s3, %s10914
        $region89: #{up_forward.2} parent=80 // pred_fallthru
          _
        // Predicated region
        $region90: #{up_forward.2} parent=80 // pred_check
          %p10916 = pneg %p162
        $region91: #{up_forward.2} parent=80 // pred_check_branch
          %10918 = sbr.rel (%p10916) target = $region93
        $region92: #{up_forward.2} parent=80 // pred_region
          %p10919 = scmp.lt.s32.totalorder %s22, 1
          %s10920 = scalar_select %p10919, %s22, 1
          %p10921 = scmp.lt.s32.totalorder %s23, 0
          %s10922 = scalar_select %p10921, %s23, 0
          %s10923 = sadd.s32 %s10922, %s10920
          %s10924 = scalar_lea.vmem %s4, %s10923
        $region93: #{up_forward.2} parent=80 // pred_fallthru
          _
      $region81: #{up_forward.2} parent=5 // pred_fallthru
        _
    $region6: #{up_forward.2} parent=1 // loop_footer
      %s15 = sadd.s32 1, %s11
    $region7: #{up_forward.2} parent=1 // loop_footer_branch
      %10 = sbr.rel target = $region3
    $region8: #{up_forward.2} parent=1 // loop_exit
      _

</llo_original>
